<compile_context>
chip_gen: v7x
topology: tpu7x:2x2x1
jax: 0.10.0
libtpu: 0.0.40
codegen_flags: <defaults>
</compile_context>

<pallas_src>
import math
import functools

import jax
import jax.numpy as jnp
from jax.experimental import pallas as pl
from jax.experimental.pallas import tpu as pltpu


def _attention_kernel(pe_ref, x_ref, wqkv_ref, wo_ref, bo_ref, o_ref, *,
                      f, tb, c, heads, dim_head, matmul_dtype):
    """Fused temporal self-attention on a (f, tb, c) block.

    pe_ref   : (f, c)         positional encoding (f32)
    x_ref    : (f, tb, c)     hidden-state block (frames, token tile, channels)
    wqkv_ref : (c, 3*inner)   fused Q|K|V weights, columns in d-major order
    wo_ref   : (inner, c)     output projection weights, rows in d-major order
    bo_ref   : (1, c)         output projection bias (f32)
    o_ref    : (f, tb, c)
    """
    inner = heads * dim_head
    mm_dtype = jnp.float32 if matmul_dtype is None else matmul_dtype
    approx = mm_dtype == jnp.bfloat16          # EUP vrcp on the bf16 path
    scale = 1.0 / math.sqrt(dim_head)

    # Temporal positional encoding, broadcast over the token tile (f32 math).
    x = x_ref[...].astype(jnp.float32) + pe_ref[...][:, None, :]       # (f,tb,c)

    # ---- fused Q/K/V projection: one big MXU matmul, bf16 in / f32 acc ----
    x2 = x.reshape(f * tb, c).astype(mm_dtype)
    qkv = jnp.dot(x2, wqkv_ref[...],
                  preferred_element_type=jnp.float32)                  # (f*tb,3I)

    # ---- re-lay for the attention core: tokens (tb) on lanes --------------
    # One (tb, 3I) -> (3I, tb) transpose per frame.  Q/K/V are then SUBLANE
    # slices (8-aligned, never misaligned lane slices), and the head split
    # inner -> (dh, H) is a clean second-minor split because the weight
    # columns were permuted to d-major order on the host (H=8 => no-op).
    qkvT = jnp.transpose(qkv.reshape(f, tb, 3 * inner), (0, 2, 1))     # (f,3I,tb)
    q = qkvT[:, 0 * inner:1 * inner, :].reshape(f, dim_head, heads, tb) * scale
    k = qkvT[:, 1 * inner:2 * inner, :].reshape(f, dim_head, heads, tb)
    v = qkvT[:, 2 * inner:3 * inner, :].reshape(f, dim_head, heads, tb)

    # ---- attention core: VPU multiply-accumulate, (H, tb) dense vreg dims --
    # s[a, b, h, t] = sum_d q[a, d, h, t] * k[b, d, h, t]
    # f is tiny (<= 24, the positional-encoding max_len) so the python loop
    # stays small; dh / f_k are leading (non-vreg) axes -> plain vreg adds.
    s_rows = []
    for a in range(f):
        s_rows.append(jnp.sum(q[a][None] * k, axis=1))                 # (f,H,tb)
    s = jnp.stack(s_rows, axis=0)                                      # (f,f,H,tb)

    # Numerically-stable softmax over the key-frame axis (leading axis).
    m = jnp.max(s, axis=1, keepdims=True)
    p = jnp.exp(s - m)
    denom = jnp.sum(p, axis=1, keepdims=True)
    p = p * pl.reciprocal(denom, approx=approx)

    # ctx[a, d, h, t] = sum_b p[a, b, h, t] * v[b, d, h, t]
    ctx_rows = []
    for a in range(f):
        ctx_rows.append(jnp.sum(p[a][:, None] * v, axis=0))            # (dh,H,tb)
    ctx = jnp.stack(ctx_rows, axis=0)                                  # (f,dh,H,tb)

    # ---- output projection: back to token-major, one MXU matmul -----------
    ctxT = jnp.transpose(ctx.reshape(f, inner, tb), (0, 2, 1))         # (f,tb,I)
    y = jnp.dot(ctxT.reshape(f * tb, inner).astype(mm_dtype), wo_ref[...],
                preferred_element_type=jnp.float32)                    # (f*tb,c)
    y = y + bo_ref[...]
    o_ref[...] = y.reshape(f, tb, c).astype(o_ref.dtype)


def _pick_token_tile(d, target):
    """Largest divisor of d that is <= target and a multiple of 8.

    Falls back to d itself (full dimension) if d has no such divisor; that is
    only legal because the block then spans the whole axis, so the (8, 128)
    block-shape constraint does not apply.  Do not reuse for partial blocks.
    """
    tb = min(target, d)
    for cand in range(tb, 0, -1):
        if d % cand == 0 and (cand % 8 == 0 or cand == d):
            return cand
    return d


def _head_permutation(heads, dim_head):
    """Output-channel permutation: torch h-major (i = h*dh + d) -> d-major
    (j = d*heads + h), so the in-kernel (inner -> dh, heads) split is clean."""
    j = jnp.arange(heads * dim_head)
    return (j % heads) * dim_head + (j // heads)


def versatile_attention_pallas(hidden_states, params, *, video_length, heads,
                               dim_head, encoder_hidden_states=None,
                               attention_mask=None, tb=128,
                               matmul_dtype=jnp.bfloat16,
                               vmem_limit_bytes=64 << 20):
    """Temporal self-attention forward.  hidden_states: (B*F, D, C) -> same.

    matmul_dtype=jnp.bfloat16 (default) feeds the MXU bf16 with f32
    accumulation; pass matmul_dtype=None for an exact f32 path.
    On v7x (64 MiB VMEM) with large C, use tb=64.
    """
    if encoder_hidden_states is not None:
        # TODO(synk): cross-attention branch (context repeated over d) is not
        #             implemented; refuse rather than silently self-attend.
        raise NotImplementedError("cross-attention path not implemented")
    if attention_mask is not None:
        raise NotImplementedError("attention_mask is not supported "
                                  "(the reference module raises as well)")

    bf, d, c = hidden_states.shape
    f = video_length
    assert bf % f == 0, "batch*frames must be divisible by video_length"
    b = bf // f
    inner = heads * dim_head
    tb = _pick_token_tile(d, tb)
    mm_dtype = jnp.float32 if matmul_dtype is None else matmul_dtype

    # Free view '(b f) d c' -> 'b f d c'; the module's
    # '(b f) d c -> (b d) f c' rearrange is folded into the index maps below.
    x4 = hidden_states.reshape(b, f, d, c)

    # Host-side weight prep (one-off): d-major column permutation + bf16 cast.
    perm = _head_permutation(heads, dim_head)
    wqkv = jnp.concatenate([params["wq"][:, perm], params["wk"][:, perm],
                            params["wv"][:, perm]], axis=1).astype(mm_dtype)
    wo = params["wo"][perm, :].astype(mm_dtype)
    pe = params["pe"][:f].astype(jnp.float32)
    bo = params["bo"].reshape(1, c).astype(jnp.float32)

    kern = functools.partial(_attention_kernel, f=f, tb=tb, c=c, heads=heads,
                             dim_head=dim_head, matmul_dtype=matmul_dtype)

    def _specs(single_buffer_weights):
        # Grid-invariant operands: request single buffering to reclaim VMEM.
        kw = {"pipeline_mode": pl.Buffered(1)} if single_buffer_weights else {}
        const2 = lambda shape: pl.BlockSpec(shape, lambda bi, di: (0, 0), **kw)
        in_specs = [
            const2((f, c)),                                              # pe
            pl.BlockSpec((None, f, tb, c), lambda bi, di: (bi, 0, di, 0)),  # x
            const2((c, 3 * inner)),                                      # wqkv
            const2((inner, c)),                                          # wo
            const2((1, c)),                                              # bo
        ]
        out_spec = pl.BlockSpec((None, f, tb, c), lambda bi, di: (bi, 0, di, 0))
        return in_specs, out_spec

    def _run(single_buffer_weights):
        in_specs, out_spec = _specs(single_buffer_weights)
        return pl.pallas_call(
            kern,
            out_shape=jax.ShapeDtypeStruct((b, f, d, c), hidden_states.dtype),
            grid_spec=pltpu.PrefetchScalarGridSpec(
                num_scalar_prefetch=0,
                grid=(b, d // tb),
                in_specs=in_specs,
                out_specs=out_spec),
            compiler_params=pltpu.CompilerParams(
                dimension_semantics=("parallel", "parallel"),
                vmem_limit_bytes=vmem_limit_bytes),
        )(pe, x4, wqkv, wo, bo)

    try:
        out = _run(True)
    except Exception:
        # pipeline_mode / pl.Buffered not supported on this JAX version:
        # fall back to default double buffering (correctness unaffected).
        out = _run(False)

    # Free view back: 'b f d c' -> '(b f) d c'.
    return out.reshape(b * f, d, c)


def make_positional_encoding(d_model, max_len):
    position = jnp.arange(max_len, dtype=jnp.float32)[:, None]
    div_term = jnp.exp(jnp.arange(0, d_model, 2, dtype=jnp.float32)
                       * (-math.log(10000.0) / d_model))
    pe = jnp.zeros((max_len, d_model), dtype=jnp.float32)
    pe = pe.at[:, 0::2].set(jnp.sin(position * div_term))
    pe = pe.at[:, 1::2].set(jnp.cos(position * div_term))
    return pe


def reference_jnp(hidden_states, params, *, video_length, heads, dim_head):
    bf, d, c = hidden_states.shape
    f = video_length
    b = bf // f
    x = hidden_states.reshape(b, f, d, c).transpose(0, 2, 1, 3).reshape(b * d, f, c)
    x = x + params["pe"][None, :f, :]
    q = x @ params["wq"]
    k = x @ params["wk"]
    v = x @ params["wv"]
    bd = b * d
    q = q.reshape(bd, f, heads, dim_head).transpose(0, 2, 1, 3)
    k = k.reshape(bd, f, heads, dim_head).transpose(0, 2, 1, 3)
    v = v.reshape(bd, f, heads, dim_head).transpose(0, 2, 1, 3)
    s = jnp.einsum("bhqd,bhkd->bhqk", q, k) / math.sqrt(dim_head)
    p = jax.nn.softmax(s, axis=-1)
    o = jnp.einsum("bhqk,bhkd->bhqd", p, v)
    o = o.transpose(0, 2, 1, 3).reshape(bd, f, heads * dim_head)
    y = o @ params["wo"] + params["bo"]
    return y.reshape(b, d, f, c).transpose(0, 2, 1, 3).reshape(b * f, d, c)


if __name__ == "__main__":
    # Small shapes consistent with the module: batch b=2, video_length f=8,
    # spatial tokens d=16, query_dim c=32, heads=8, dim_head=4 (inner_dim=32).
    B, F_LEN, D_TOK, C = 2, 8, 16, 32
    HEADS, DIM_HEAD = 8, 4
    INNER = HEADS * DIM_HEAD
    MAX_LEN = 24

    key = jax.random.PRNGKey(0)
    k_x, k_q, k_k, k_v, k_o, k_b = jax.random.split(key, 6)

    hidden_states = jax.random.normal(k_x, (B * F_LEN, D_TOK, C), jnp.float32)

    # AdvancedLinear weights are (out, in); stored transposed so the kernel
    # computes x @ W directly.  to_q/k/v have no bias (module default),
    # to_out[0] has a bias.
    scale_in = 1.0 / math.sqrt(C)
    params = {
        "wq": jax.random.normal(k_q, (C, INNER), jnp.float32) * scale_in,
        "wk": jax.random.normal(k_k, (C, INNER), jnp.float32) * scale_in,
        "wv": jax.random.normal(k_v, (C, INNER), jnp.float32) * scale_in,
        "wo": jax.random.normal(k_o, (INNER, C), jnp.float32) / math.sqrt(INNER),
        "bo": jax.random.normal(k_b, (1, C), jnp.float32) * 0.01,
        "pe": make_positional_encoding(C, MAX_LEN),
    }

    ref = reference_jnp(hidden_states, params, video_length=F_LEN,
                        heads=HEADS, dim_head=DIM_HEAD)

    # Default (production) path: bf16 MXU inputs, f32 accumulation.
    out_bf16 = versatile_attention_pallas(hidden_states, params,
                                          video_length=F_LEN, heads=HEADS,
                                          dim_head=DIM_HEAD)
    out_bf16 = jax.block_until_ready(out_bf16)
    assert out_bf16.shape == (B * F_LEN, D_TOK, C)
    err_bf16 = float(jnp.max(jnp.abs(out_bf16 - ref)))
    # Loose sanity bound for the bf16 path; exactness is proven by the f32 run.
    assert err_bf16 < 2.5e-1, f"bf16 path mismatch vs f32 reference: {err_bf16}"

    # Exact-algorithm check: pure f32 path against the jnp reference.
    out_f32 = versatile_attention_pallas(hidden_states, params,
                                         video_length=F_LEN, heads=HEADS,
                                         dim_head=DIM_HEAD, matmul_dtype=None)
    out_f32 = jax.block_until_ready(out_f32)
    err_f32 = float(jnp.max(jnp.abs(out_f32 - ref)))
    assert err_f32 < 1e-4, f"f32 path mismatch vs jnp reference: {err_f32}"

    print("KERNEL_OK")
</pallas_src>

<mosaic_0001>
module attributes {stable_mosaic.version = 11 : i64} {
  func.func @_attention_kernel(%arg0: i32, %arg1: i32, %arg2: memref<8x32xf32, #tpu.memory_space<vmem>>, %arg3: memref<1x8x16x32xf32, #tpu.memory_space<vmem>>, %arg4: memref<32x96xbf16, #tpu.memory_space<vmem>>, %arg5: memref<32x32xbf16, #tpu.memory_space<vmem>>, %arg6: memref<1x32xf32, #tpu.memory_space<vmem>>, %arg7: memref<1x8x16x32xf32, #tpu.memory_space<vmem>>) attributes {dimension_semantics = [#tpu.dimension_semantics<parallel>, #tpu.dimension_semantics<parallel>], iteration_bounds = array<i64: 2, 1>, scalar_prefetch = 0 : i64, scratch_operands = 0 : i64, tpu.core_type = #tpu.core_type<tc>, window_params = [{pipeline_mode = #tpu.pipeline_mode<synchronous>, transform_indices = @transform_0, window_bounds = array<i64: 8, 32>}, {transform_indices = @transform_1, window_bounds = array<i64: 1, 8, 16, 32>}, {pipeline_mode = #tpu.pipeline_mode<synchronous>, transform_indices = @transform_2, window_bounds = array<i64: 32, 96>}, {pipeline_mode = #tpu.pipeline_mode<synchronous>, transform_indices = @transform_3, window_bounds = array<i64: 32, 32>}, {pipeline_mode = #tpu.pipeline_mode<synchronous>, transform_indices = @transform_4, window_bounds = array<i64: 1, 32>}, {transform_indices = @transform_5, window_bounds = array<i64: 1, 8, 16, 32>}]} {
    %c0 = arith.constant 0 : index
    %c0_0 = arith.constant 0 : index
    %c0_1 = arith.constant 0 : index
    %c0_2 = arith.constant 0 : index
    %0 = vector.load %arg3[%c0, %c0_0, %c0_1, %c0_2] : memref<1x8x16x32xf32, #tpu.memory_space<vmem>>, vector<1x8x16x32xf32>
    %1 = vector.shape_cast %0 : vector<1x8x16x32xf32> to vector<8x16x32xf32>
    %c0_3 = arith.constant 0 : index
    %c0_4 = arith.constant 0 : index
    %2 = vector.load %arg2[%c0_3, %c0_4] : memref<8x32xf32, #tpu.memory_space<vmem>>, vector<8x32xf32>
    %3 = vector.shape_cast %2 : vector<8x32xf32> to vector<8x1x32xf32>
    %4 = vector.broadcast %3 : vector<8x1x32xf32> to vector<8x16x32xf32>
    %5 = arith.addf %1, %4 : vector<8x16x32xf32>
    %6 = vector.shape_cast %5 : vector<8x16x32xf32> to vector<128x32xf32>
    %7 = arith.truncf %6 : vector<128x32xf32> to vector<128x32xbf16>
    %c0_5 = arith.constant 0 : index
    %c0_6 = arith.constant 0 : index
    %8 = vector.load %arg4[%c0_5, %c0_6] : memref<32x96xbf16, #tpu.memory_space<vmem>>, vector<32x96xbf16>
    %cst = arith.constant dense<0.000000e+00> : vector<128x96xf32>
    %9 = tpu.matmul %7, %8, %cst {dimension_numbers = #tpu.dot_dimension_numbers<[1], [0], [0], [1], [0, 0, 1, 1], [], []>} : vector<128x32xbf16>, vector<32x96xbf16>, vector<128x96xf32> -> vector<128x96xf32>
    %10 = vector.shape_cast %9 : vector<128x96xf32> to vector<8x16x96xf32>
    %11 = tpu.transpose %10, [0, 2, 1] : vector<8x16x96xf32> -> vector<8x96x16xf32>
    %12 = vector.extract_strided_slice %11 {offsets = [0, 0, 0], sizes = [8, 32, 16], strides = [1, 1, 1]} : vector<8x96x16xf32> to vector<8x32x16xf32>
    %13 = vector.shape_cast %12 : vector<8x32x16xf32> to vector<8x4x8x16xf32>
    %cst_7 = arith.constant 5.000000e-01 : f32
    %14 = vector.broadcast %cst_7 : f32 to vector<8x4x8x16xf32>
    %15 = arith.mulf %13, %14 : vector<8x4x8x16xf32>
    %16 = vector.extract_strided_slice %11 {offsets = [0, 32, 0], sizes = [8, 32, 16], strides = [1, 1, 1]} : vector<8x96x16xf32> to vector<8x32x16xf32>
    %17 = vector.shape_cast %16 : vector<8x32x16xf32> to vector<8x4x8x16xf32>
    %18 = vector.extract_strided_slice %11 {offsets = [0, 64, 0], sizes = [8, 32, 16], strides = [1, 1, 1]} : vector<8x96x16xf32> to vector<8x32x16xf32>
    %19 = vector.shape_cast %18 : vector<8x32x16xf32> to vector<8x4x8x16xf32>
    %20 = vector.extract_strided_slice %15 {offsets = [0, 0, 0, 0], sizes = [1, 4, 8, 16], strides = [1, 1, 1, 1]} : vector<8x4x8x16xf32> to vector<1x4x8x16xf32>
    %21 = vector.shape_cast %20 : vector<1x4x8x16xf32> to vector<4x8x16xf32>
    %22 = vector.shape_cast %21 : vector<4x8x16xf32> to vector<1x4x8x16xf32>
    %23 = vector.broadcast %22 : vector<1x4x8x16xf32> to vector<8x4x8x16xf32>
    %24 = arith.mulf %23, %17 : vector<8x4x8x16xf32>
    %cst_8 = arith.constant dense<0.000000e+00> : vector<8x8x16xf32>
    %25 = vector.multi_reduction <add>, %24, %cst_8 [1] : vector<8x4x8x16xf32> to vector<8x8x16xf32>
    %26 = vector.extract_strided_slice %15 {offsets = [1, 0, 0, 0], sizes = [1, 4, 8, 16], strides = [1, 1, 1, 1]} : vector<8x4x8x16xf32> to vector<1x4x8x16xf32>
    %27 = vector.shape_cast %26 : vector<1x4x8x16xf32> to vector<4x8x16xf32>
    %28 = vector.shape_cast %27 : vector<4x8x16xf32> to vector<1x4x8x16xf32>
    %29 = vector.broadcast %28 : vector<1x4x8x16xf32> to vector<8x4x8x16xf32>
    %30 = arith.mulf %29, %17 : vector<8x4x8x16xf32>
    %cst_9 = arith.constant dense<0.000000e+00> : vector<8x8x16xf32>
    %31 = vector.multi_reduction <add>, %30, %cst_9 [1] : vector<8x4x8x16xf32> to vector<8x8x16xf32>
    %32 = vector.extract_strided_slice %15 {offsets = [2, 0, 0, 0], sizes = [1, 4, 8, 16], strides = [1, 1, 1, 1]} : vector<8x4x8x16xf32> to vector<1x4x8x16xf32>
    %33 = vector.shape_cast %32 : vector<1x4x8x16xf32> to vector<4x8x16xf32>
    %34 = vector.shape_cast %33 : vector<4x8x16xf32> to vector<1x4x8x16xf32>
    %35 = vector.broadcast %34 : vector<1x4x8x16xf32> to vector<8x4x8x16xf32>
    %36 = arith.mulf %35, %17 : vector<8x4x8x16xf32>
    %cst_10 = arith.constant dense<0.000000e+00> : vector<8x8x16xf32>
    %37 = vector.multi_reduction <add>, %36, %cst_10 [1] : vector<8x4x8x16xf32> to vector<8x8x16xf32>
    %38 = vector.extract_strided_slice %15 {offsets = [3, 0, 0, 0], sizes = [1, 4, 8, 16], strides = [1, 1, 1, 1]} : vector<8x4x8x16xf32> to vector<1x4x8x16xf32>
    %39 = vector.shape_cast %38 : vector<1x4x8x16xf32> to vector<4x8x16xf32>
    %40 = vector.shape_cast %39 : vector<4x8x16xf32> to vector<1x4x8x16xf32>
    %41 = vector.broadcast %40 : vector<1x4x8x16xf32> to vector<8x4x8x16xf32>
    %42 = arith.mulf %41, %17 : vector<8x4x8x16xf32>
    %cst_11 = arith.constant dense<0.000000e+00> : vector<8x8x16xf32>
    %43 = vector.multi_reduction <add>, %42, %cst_11 [1] : vector<8x4x8x16xf32> to vector<8x8x16xf32>
    %44 = vector.extract_strided_slice %15 {offsets = [4, 0, 0, 0], sizes = [1, 4, 8, 16], strides = [1, 1, 1, 1]} : vector<8x4x8x16xf32> to vector<1x4x8x16xf32>
    %45 = vector.shape_cast %44 : vector<1x4x8x16xf32> to vector<4x8x16xf32>
    %46 = vector.shape_cast %45 : vector<4x8x16xf32> to vector<1x4x8x16xf32>
    %47 = vector.broadcast %46 : vector<1x4x8x16xf32> to vector<8x4x8x16xf32>
    %48 = arith.mulf %47, %17 : vector<8x4x8x16xf32>
    %cst_12 = arith.constant dense<0.000000e+00> : vector<8x8x16xf32>
    %49 = vector.multi_reduction <add>, %48, %cst_12 [1] : vector<8x4x8x16xf32> to vector<8x8x16xf32>
    %50 = vector.extract_strided_slice %15 {offsets = [5, 0, 0, 0], sizes = [1, 4, 8, 16], strides = [1, 1, 1, 1]} : vector<8x4x8x16xf32> to vector<1x4x8x16xf32>
    %51 = vector.shape_cast %50 : vector<1x4x8x16xf32> to vector<4x8x16xf32>
    %52 = vector.shape_cast %51 : vector<4x8x16xf32> to vector<1x4x8x16xf32>
    %53 = vector.broadcast %52 : vector<1x4x8x16xf32> to vector<8x4x8x16xf32>
    %54 = arith.mulf %53, %17 : vector<8x4x8x16xf32>
    %cst_13 = arith.constant dense<0.000000e+00> : vector<8x8x16xf32>
    %55 = vector.multi_reduction <add>, %54, %cst_13 [1] : vector<8x4x8x16xf32> to vector<8x8x16xf32>
    %56 = vector.extract_strided_slice %15 {offsets = [6, 0, 0, 0], sizes = [1, 4, 8, 16], strides = [1, 1, 1, 1]} : vector<8x4x8x16xf32> to vector<1x4x8x16xf32>
    %57 = vector.shape_cast %56 : vector<1x4x8x16xf32> to vector<4x8x16xf32>
    %58 = vector.shape_cast %57 : vector<4x8x16xf32> to vector<1x4x8x16xf32>
    %59 = vector.broadcast %58 : vector<1x4x8x16xf32> to vector<8x4x8x16xf32>
    %60 = arith.mulf %59, %17 : vector<8x4x8x16xf32>
    %cst_14 = arith.constant dense<0.000000e+00> : vector<8x8x16xf32>
    %61 = vector.multi_reduction <add>, %60, %cst_14 [1] : vector<8x4x8x16xf32> to vector<8x8x16xf32>
    %62 = vector.extract_strided_slice %15 {offsets = [7, 0, 0, 0], sizes = [1, 4, 8, 16], strides = [1, 1, 1, 1]} : vector<8x4x8x16xf32> to vector<1x4x8x16xf32>
    %63 = vector.shape_cast %62 : vector<1x4x8x16xf32> to vector<4x8x16xf32>
    %64 = vector.shape_cast %63 : vector<4x8x16xf32> to vector<1x4x8x16xf32>
    %65 = vector.broadcast %64 : vector<1x4x8x16xf32> to vector<8x4x8x16xf32>
    %66 = arith.mulf %65, %17 : vector<8x4x8x16xf32>
    %cst_15 = arith.constant dense<0.000000e+00> : vector<8x8x16xf32>
    %67 = vector.multi_reduction <add>, %66, %cst_15 [1] : vector<8x4x8x16xf32> to vector<8x8x16xf32>
    %68 = vector.shape_cast %25 : vector<8x8x16xf32> to vector<1x8x8x16xf32>
    %69 = vector.shape_cast %31 : vector<8x8x16xf32> to vector<1x8x8x16xf32>
    %70 = vector.shape_cast %37 : vector<8x8x16xf32> to vector<1x8x8x16xf32>
    %71 = vector.shape_cast %43 : vector<8x8x16xf32> to vector<1x8x8x16xf32>
    %72 = vector.shape_cast %49 : vector<8x8x16xf32> to vector<1x8x8x16xf32>
    %73 = vector.shape_cast %55 : vector<8x8x16xf32> to vector<1x8x8x16xf32>
    %74 = vector.shape_cast %61 : vector<8x8x16xf32> to vector<1x8x8x16xf32>
    %75 = vector.shape_cast %67 : vector<8x8x16xf32> to vector<1x8x8x16xf32>
    %76 = tpu.concatenate %68, %69, %70, %71, %72, %73, %74, %75 in 0 : vector<1x8x8x16xf32>, vector<1x8x8x16xf32>, vector<1x8x8x16xf32>, vector<1x8x8x16xf32>, vector<1x8x8x16xf32>, vector<1x8x8x16xf32>, vector<1x8x8x16xf32>, vector<1x8x8x16xf32> -> vector<8x8x8x16xf32>
    %cst_16 = arith.constant dense<0xFF800000> : vector<8x8x16xf32>
    %77 = vector.multi_reduction <maximumf>, %76, %cst_16 [1] : vector<8x8x8x16xf32> to vector<8x8x16xf32>
    %78 = vector.shape_cast %77 : vector<8x8x16xf32> to vector<8x1x8x16xf32>
    %79 = vector.broadcast %78 : vector<8x1x8x16xf32> to vector<8x8x8x16xf32>
    %80 = arith.subf %76, %79 : vector<8x8x8x16xf32>
    %81 = math.exp %80 : vector<8x8x8x16xf32>
    %cst_17 = arith.constant dense<0.000000e+00> : vector<8x8x16xf32>
    %82 = vector.multi_reduction <add>, %81, %cst_17 [1] : vector<8x8x8x16xf32> to vector<8x8x16xf32>
    %83 = vector.shape_cast %82 : vector<8x8x16xf32> to vector<8x1x8x16xf32>
    %84 = tpu.reciprocal %83 {approx = true} : vector<8x1x8x16xf32> -> vector<8x1x8x16xf32>
    %85 = vector.broadcast %84 : vector<8x1x8x16xf32> to vector<8x8x8x16xf32>
    %86 = arith.mulf %81, %85 : vector<8x8x8x16xf32>
    %87 = vector.extract_strided_slice %86 {offsets = [0, 0, 0, 0], sizes = [1, 8, 8, 16], strides = [1, 1, 1, 1]} : vector<8x8x8x16xf32> to vector<1x8x8x16xf32>
    %88 = vector.shape_cast %87 : vector<1x8x8x16xf32> to vector<8x8x16xf32>
    %89 = vector.shape_cast %88 : vector<8x8x16xf32> to vector<8x1x8x16xf32>
    %90 = vector.broadcast %89 : vector<8x1x8x16xf32> to vector<8x4x8x16xf32>
    %91 = arith.mulf %90, %19 : vector<8x4x8x16xf32>
    %cst_18 = arith.constant dense<0.000000e+00> : vector<4x8x16xf32>
    %92 = vector.multi_reduction <add>, %91, %cst_18 [0] : vector<8x4x8x16xf32> to vector<4x8x16xf32>
    %93 = vector.extract_strided_slice %86 {offsets = [1, 0, 0, 0], sizes = [1, 8, 8, 16], strides = [1, 1, 1, 1]} : vector<8x8x8x16xf32> to vector<1x8x8x16xf32>
    %94 = vector.shape_cast %93 : vector<1x8x8x16xf32> to vector<8x8x16xf32>
    %95 = vector.shape_cast %94 : vector<8x8x16xf32> to vector<8x1x8x16xf32>
    %96 = vector.broadcast %95 : vector<8x1x8x16xf32> to vector<8x4x8x16xf32>
    %97 = arith.mulf %96, %19 : vector<8x4x8x16xf32>
    %cst_19 = arith.constant dense<0.000000e+00> : vector<4x8x16xf32>
    %98 = vector.multi_reduction <add>, %97, %cst_19 [0] : vector<8x4x8x16xf32> to vector<4x8x16xf32>
    %99 = vector.extract_strided_slice %86 {offsets = [2, 0, 0, 0], sizes = [1, 8, 8, 16], strides = [1, 1, 1, 1]} : vector<8x8x8x16xf32> to vector<1x8x8x16xf32>
    %100 = vector.shape_cast %99 : vector<1x8x8x16xf32> to vector<8x8x16xf32>
    %101 = vector.shape_cast %100 : vector<8x8x16xf32> to vector<8x1x8x16xf32>
    %102 = vector.broadcast %101 : vector<8x1x8x16xf32> to vector<8x4x8x16xf32>
    %103 = arith.mulf %102, %19 : vector<8x4x8x16xf32>
    %cst_20 = arith.constant dense<0.000000e+00> : vector<4x8x16xf32>
    %104 = vector.multi_reduction <add>, %103, %cst_20 [0] : vector<8x4x8x16xf32> to vector<4x8x16xf32>
    %105 = vector.extract_strided_slice %86 {offsets = [3, 0, 0, 0], sizes = [1, 8, 8, 16], strides = [1, 1, 1, 1]} : vector<8x8x8x16xf32> to vector<1x8x8x16xf32>
    %106 = vector.shape_cast %105 : vector<1x8x8x16xf32> to vector<8x8x16xf32>
    %107 = vector.shape_cast %106 : vector<8x8x16xf32> to vector<8x1x8x16xf32>
    %108 = vector.broadcast %107 : vector<8x1x8x16xf32> to vector<8x4x8x16xf32>
    %109 = arith.mulf %108, %19 : vector<8x4x8x16xf32>
    %cst_21 = arith.constant dense<0.000000e+00> : vector<4x8x16xf32>
    %110 = vector.multi_reduction <add>, %109, %cst_21 [0] : vector<8x4x8x16xf32> to vector<4x8x16xf32>
    %111 = vector.extract_strided_slice %86 {offsets = [4, 0, 0, 0], sizes = [1, 8, 8, 16], strides = [1, 1, 1, 1]} : vector<8x8x8x16xf32> to vector<1x8x8x16xf32>
    %112 = vector.shape_cast %111 : vector<1x8x8x16xf32> to vector<8x8x16xf32>
    %113 = vector.shape_cast %112 : vector<8x8x16xf32> to vector<8x1x8x16xf32>
    %114 = vector.broadcast %113 : vector<8x1x8x16xf32> to vector<8x4x8x16xf32>
    %115 = arith.mulf %114, %19 : vector<8x4x8x16xf32>
    %cst_22 = arith.constant dense<0.000000e+00> : vector<4x8x16xf32>
    %116 = vector.multi_reduction <add>, %115, %cst_22 [0] : vector<8x4x8x16xf32> to vector<4x8x16xf32>
    %117 = vector.extract_strided_slice %86 {offsets = [5, 0, 0, 0], sizes = [1, 8, 8, 16], strides = [1, 1, 1, 1]} : vector<8x8x8x16xf32> to vector<1x8x8x16xf32>
    %118 = vector.shape_cast %117 : vector<1x8x8x16xf32> to vector<8x8x16xf32>
    %119 = vector.shape_cast %118 : vector<8x8x16xf32> to vector<8x1x8x16xf32>
    %120 = vector.broadcast %119 : vector<8x1x8x16xf32> to vector<8x4x8x16xf32>
    %121 = arith.mulf %120, %19 : vector<8x4x8x16xf32>
    %cst_23 = arith.constant dense<0.000000e+00> : vector<4x8x16xf32>
    %122 = vector.multi_reduction <add>, %121, %cst_23 [0] : vector<8x4x8x16xf32> to vector<4x8x16xf32>
    %123 = vector.extract_strided_slice %86 {offsets = [6, 0, 0, 0], sizes = [1, 8, 8, 16], strides = [1, 1, 1, 1]} : vector<8x8x8x16xf32> to vector<1x8x8x16xf32>
    %124 = vector.shape_cast %123 : vector<1x8x8x16xf32> to vector<8x8x16xf32>
    %125 = vector.shape_cast %124 : vector<8x8x16xf32> to vector<8x1x8x16xf32>
    %126 = vector.broadcast %125 : vector<8x1x8x16xf32> to vector<8x4x8x16xf32>
    %127 = arith.mulf %126, %19 : vector<8x4x8x16xf32>
    %cst_24 = arith.constant dense<0.000000e+00> : vector<4x8x16xf32>
    %128 = vector.multi_reduction <add>, %127, %cst_24 [0] : vector<8x4x8x16xf32> to vector<4x8x16xf32>
    %129 = vector.extract_strided_slice %86 {offsets = [7, 0, 0, 0], sizes = [1, 8, 8, 16], strides = [1, 1, 1, 1]} : vector<8x8x8x16xf32> to vector<1x8x8x16xf32>
    %130 = vector.shape_cast %129 : vector<1x8x8x16xf32> to vector<8x8x16xf32>
    %131 = vector.shape_cast %130 : vector<8x8x16xf32> to vector<8x1x8x16xf32>
    %132 = vector.broadcast %131 : vector<8x1x8x16xf32> to vector<8x4x8x16xf32>
    %133 = arith.mulf %132, %19 : vector<8x4x8x16xf32>
    %cst_25 = arith.constant dense<0.000000e+00> : vector<4x8x16xf32>
    %134 = vector.multi_reduction <add>, %133, %cst_25 [0] : vector<8x4x8x16xf32> to vector<4x8x16xf32>
    %135 = vector.shape_cast %92 : vector<4x8x16xf32> to vector<1x4x8x16xf32>
    %136 = vector.shape_cast %98 : vector<4x8x16xf32> to vector<1x4x8x16xf32>
    %137 = vector.shape_cast %104 : vector<4x8x16xf32> to vector<1x4x8x16xf32>
    %138 = vector.shape_cast %110 : vector<4x8x16xf32> to vector<1x4x8x16xf32>
    %139 = vector.shape_cast %116 : vector<4x8x16xf32> to vector<1x4x8x16xf32>
    %140 = vector.shape_cast %122 : vector<4x8x16xf32> to vector<1x4x8x16xf32>
    %141 = vector.shape_cast %128 : vector<4x8x16xf32> to vector<1x4x8x16xf32>
    %142 = vector.shape_cast %134 : vector<4x8x16xf32> to vector<1x4x8x16xf32>
    %143 = tpu.concatenate %135, %136, %137, %138, %139, %140, %141, %142 in 0 : vector<1x4x8x16xf32>, vector<1x4x8x16xf32>, vector<1x4x8x16xf32>, vector<1x4x8x16xf32>, vector<1x4x8x16xf32>, vector<1x4x8x16xf32>, vector<1x4x8x16xf32>, vector<1x4x8x16xf32> -> vector<8x4x8x16xf32>
    %144 = vector.shape_cast %143 : vector<8x4x8x16xf32> to vector<8x32x16xf32>
    %145 = tpu.transpose %144, [0, 2, 1] : vector<8x32x16xf32> -> vector<8x16x32xf32>
    %146 = vector.shape_cast %145 : vector<8x16x32xf32> to vector<128x32xf32>
    %147 = arith.truncf %146 : vector<128x32xf32> to vector<128x32xbf16>
    %c0_26 = arith.constant 0 : index
    %c0_27 = arith.constant 0 : index
    %148 = vector.load %arg5[%c0_26, %c0_27] : memref<32x32xbf16, #tpu.memory_space<vmem>>, vector<32x32xbf16>
    %cst_28 = arith.constant dense<0.000000e+00> : vector<128x32xf32>
    %149 = tpu.matmul %147, %148, %cst_28 {dimension_numbers = #tpu.dot_dimension_numbers<[1], [0], [0], [1], [0, 0, 1, 1], [], []>} : vector<128x32xbf16>, vector<32x32xbf16>, vector<128x32xf32> -> vector<128x32xf32>
    %c0_29 = arith.constant 0 : index
    %c0_30 = arith.constant 0 : index
    %150 = vector.load %arg6[%c0_29, %c0_30] : memref<1x32xf32, #tpu.memory_space<vmem>>, vector<1x32xf32>
    %151 = vector.broadcast %150 : vector<1x32xf32> to vector<128x32xf32>
    %152 = arith.addf %149, %151 : vector<128x32xf32>
    %153 = vector.shape_cast %152 : vector<128x32xf32> to vector<8x16x32xf32>
    %c0_31 = arith.constant 0 : index
    %c0_32 = arith.constant 0 : index
    %c0_33 = arith.constant 0 : index
    %c0_34 = arith.constant 0 : index
    %154 = vector.load %arg7[%c0_31, %c0_32, %c0_33, %c0_34] : memref<1x8x16x32xf32, #tpu.memory_space<vmem>>, vector<1x8x16x32xf32>
    %155 = vector.shape_cast %154 : vector<1x8x16x32xf32> to vector<8x16x32xf32>
    %156 = vector.shape_cast %153 : vector<8x16x32xf32> to vector<1x8x16x32xf32>
    tpu.vector_store %arg7[%c0_31, %c0_32, %c0_33, %c0_34], %156 {strides = array<i32>} : memref<1x8x16x32xf32, #tpu.memory_space<vmem>>, vector<1x8x16x32xf32>,
    return
  }
  func.func @transform_0(%arg0: i32, %arg1: i32) -> (i32, i32) {
    %c0_i32 = arith.constant 0 : i32
    %c0_i32_0 = arith.constant 0 : i32
    %c0_i32_1 = arith.constant 0 : i32
    return %c0_i32, %c0_i32_0 : i32, i32
  }
  func.func @transform_1(%arg0: i32, %arg1: i32) -> (i32, i32, i32, i32) {
    %c0_i32 = arith.constant 0 : i32
    %c0_i32_0 = arith.constant 0 : i32
    %c0_i32_1 = arith.constant 0 : i32
    return %arg0, %c0_i32, %arg1, %c0_i32_0 : i32, i32, i32, i32
  }
  func.func @transform_2(%arg0: i32, %arg1: i32) -> (i32, i32) {
    %c0_i32 = arith.constant 0 : i32
    %c0_i32_0 = arith.constant 0 : i32
    %c0_i32_1 = arith.constant 0 : i32
    return %c0_i32, %c0_i32_0 : i32, i32
  }
  func.func @transform_3(%arg0: i32, %arg1: i32) -> (i32, i32) {
    %c0_i32 = arith.constant 0 : i32
    %c0_i32_0 = arith.constant 0 : i32
    %c0_i32_1 = arith.constant 0 : i32
    return %c0_i32, %c0_i32_0 : i32, i32
  }
  func.func @transform_4(%arg0: i32, %arg1: i32) -> (i32, i32) {
    %c0_i32 = arith.constant 0 : i32
    %c0_i32_0 = arith.constant 0 : i32
    %c0_i32_1 = arith.constant 0 : i32
    return %c0_i32, %c0_i32_0 : i32, i32
  }
  func.func @transform_5(%arg0: i32, %arg1: i32) -> (i32, i32, i32, i32) {
    %c0_i32 = arith.constant 0 : i32
    %c0_i32_0 = arith.constant 0 : i32
    %c0_i32_1 = arith.constant 0 : i32
    return %arg0, %c0_i32, %arg1, %c0_i32_0 : i32, i32, i32, i32
  }
}

module attributes {stable_mosaic.version = 11 : i64} {
  func.func @_attention_kernel(%arg0: i32, %arg1: i32, %arg2: memref<8x32xf32, #tpu.memory_space<vmem>>, %arg3: memref<1x8x16x32xf32, #tpu.memory_space<vmem>>, %arg4: memref<32x96xbf16, #tpu.memory_space<vmem>>, %arg5: memref<32x32xbf16, #tpu.memory_space<vmem>>, %arg6: memref<1x32xf32, #tpu.memory_space<vmem>>, %arg7: memref<1x8x16x32xf32, #tpu.memory_space<vmem>>) attributes {dimension_semantics = [#tpu.dimension_semantics<parallel>, #tpu.dimension_semantics<parallel>], iteration_bounds = array<i64: 2, 1>, scalar_prefetch = 0 : i64, scratch_operands = 0 : i64, tpu.core_type = #tpu.core_type<tc>, window_params = [{pipeline_mode = #tpu.pipeline_mode<synchronous>, transform_indices = @transform_0, window_bounds = array<i64: 8, 32>}, {transform_indices = @transform_1, window_bounds = array<i64: 1, 8, 16, 32>}, {pipeline_mode = #tpu.pipeline_mode<synchronous>, transform_indices = @transform_2, window_bounds = array<i64: 32, 96>}, {pipeline_mode = #tpu.pipeline_mode<synchronous>, transform_indices = @transform_3, window_bounds = array<i64: 32, 32>}, {pipeline_mode = #tpu.pipeline_mode<synchronous>, transform_indices = @transform_4, window_bounds = array<i64: 1, 32>}, {transform_indices = @transform_5, window_bounds = array<i64: 1, 8, 16, 32>}]} {
    %c0 = arith.constant 0 : index
    %c0_0 = arith.constant 0 : index
    %c0_1 = arith.constant 0 : index
    %c0_2 = arith.constant 0 : index
    %0 = vector.load %arg3[%c0, %c0_0, %c0_1, %c0_2] : memref<1x8x16x32xf32, #tpu.memory_space<vmem>>, vector<1x8x16x32xf32>
    %1 = vector.shape_cast %0 : vector<1x8x16x32xf32> to vector<8x16x32xf32>
    %c0_3 = arith.constant 0 : index
    %c0_4 = arith.constant 0 : index
    %2 = vector.load %arg2[%c0_3, %c0_4] : memref<8x32xf32, #tpu.memory_space<vmem>>, vector<8x32xf32>
    %3 = vector.shape_cast %2 : vector<8x32xf32> to vector<8x1x32xf32>
    %4 = vector.broadcast %3 : vector<8x1x32xf32> to vector<8x16x32xf32>
    %5 = arith.addf %1, %4 : vector<8x16x32xf32>
    %6 = vector.shape_cast %5 : vector<8x16x32xf32> to vector<128x32xf32>
    %7 = arith.truncf %6 : vector<128x32xf32> to vector<128x32xbf16>
    %c0_5 = arith.constant 0 : index
    %c0_6 = arith.constant 0 : index
    %8 = vector.load %arg4[%c0_5, %c0_6] : memref<32x96xbf16, #tpu.memory_space<vmem>>, vector<32x96xbf16>
    %cst = arith.constant dense<0.000000e+00> : vector<128x96xf32>
    %9 = tpu.matmul %7, %8, %cst {dimension_numbers = #tpu.dot_dimension_numbers<[1], [0], [0], [1], [0, 0, 1, 1], [], []>} : vector<128x32xbf16>, vector<32x96xbf16>, vector<128x96xf32> -> vector<128x96xf32>
    %10 = vector.shape_cast %9 : vector<128x96xf32> to vector<8x16x96xf32>
    %11 = tpu.transpose %10, [0, 2, 1] : vector<8x16x96xf32> -> vector<8x96x16xf32>
    %12 = vector.extract_strided_slice %11 {offsets = [0, 0, 0], sizes = [8, 32, 16], strides = [1, 1, 1]} : vector<8x96x16xf32> to vector<8x32x16xf32>
    %13 = vector.shape_cast %12 : vector<8x32x16xf32> to vector<8x4x8x16xf32>
    %cst_7 = arith.constant 5.000000e-01 : f32
    %14 = vector.broadcast %cst_7 : f32 to vector<8x4x8x16xf32>
    %15 = arith.mulf %13, %14 : vector<8x4x8x16xf32>
    %16 = vector.extract_strided_slice %11 {offsets = [0, 32, 0], sizes = [8, 32, 16], strides = [1, 1, 1]} : vector<8x96x16xf32> to vector<8x32x16xf32>
    %17 = vector.shape_cast %16 : vector<8x32x16xf32> to vector<8x4x8x16xf32>
    %18 = vector.extract_strided_slice %11 {offsets = [0, 64, 0], sizes = [8, 32, 16], strides = [1, 1, 1]} : vector<8x96x16xf32> to vector<8x32x16xf32>
    %19 = vector.shape_cast %18 : vector<8x32x16xf32> to vector<8x4x8x16xf32>
    %20 = vector.extract_strided_slice %15 {offsets = [0, 0, 0, 0], sizes = [1, 4, 8, 16], strides = [1, 1, 1, 1]} : vector<8x4x8x16xf32> to vector<1x4x8x16xf32>
    %21 = vector.shape_cast %20 : vector<1x4x8x16xf32> to vector<4x8x16xf32>
    %22 = vector.shape_cast %21 : vector<4x8x16xf32> to vector<1x4x8x16xf32>
    %23 = vector.broadcast %22 : vector<1x4x8x16xf32> to vector<8x4x8x16xf32>
    %24 = arith.mulf %23, %17 : vector<8x4x8x16xf32>
    %cst_8 = arith.constant dense<0.000000e+00> : vector<8x8x16xf32>
    %25 = vector.multi_reduction <add>, %24, %cst_8 [1] : vector<8x4x8x16xf32> to vector<8x8x16xf32>
    %26 = vector.extract_strided_slice %15 {offsets = [1, 0, 0, 0], sizes = [1, 4, 8, 16], strides = [1, 1, 1, 1]} : vector<8x4x8x16xf32> to vector<1x4x8x16xf32>
    %27 = vector.shape_cast %26 : vector<1x4x8x16xf32> to vector<4x8x16xf32>
    %28 = vector.shape_cast %27 : vector<4x8x16xf32> to vector<1x4x8x16xf32>
    %29 = vector.broadcast %28 : vector<1x4x8x16xf32> to vector<8x4x8x16xf32>
    %30 = arith.mulf %29, %17 : vector<8x4x8x16xf32>
    %cst_9 = arith.constant dense<0.000000e+00> : vector<8x8x16xf32>
    %31 = vector.multi_reduction <add>, %30, %cst_9 [1] : vector<8x4x8x16xf32> to vector<8x8x16xf32>
    %32 = vector.extract_strided_slice %15 {offsets = [2, 0, 0, 0], sizes = [1, 4, 8, 16], strides = [1, 1, 1, 1]} : vector<8x4x8x16xf32> to vector<1x4x8x16xf32>
    %33 = vector.shape_cast %32 : vector<1x4x8x16xf32> to vector<4x8x16xf32>
    %34 = vector.shape_cast %33 : vector<4x8x16xf32> to vector<1x4x8x16xf32>
    %35 = vector.broadcast %34 : vector<1x4x8x16xf32> to vector<8x4x8x16xf32>
    %36 = arith.mulf %35, %17 : vector<8x4x8x16xf32>
    %cst_10 = arith.constant dense<0.000000e+00> : vector<8x8x16xf32>
    %37 = vector.multi_reduction <add>, %36, %cst_10 [1] : vector<8x4x8x16xf32> to vector<8x8x16xf32>
    %38 = vector.extract_strided_slice %15 {offsets = [3, 0, 0, 0], sizes = [1, 4, 8, 16], strides = [1, 1, 1, 1]} : vector<8x4x8x16xf32> to vector<1x4x8x16xf32>
    %39 = vector.shape_cast %38 : vector<1x4x8x16xf32> to vector<4x8x16xf32>
    %40 = vector.shape_cast %39 : vector<4x8x16xf32> to vector<1x4x8x16xf32>
    %41 = vector.broadcast %40 : vector<1x4x8x16xf32> to vector<8x4x8x16xf32>
    %42 = arith.mulf %41, %17 : vector<8x4x8x16xf32>
    %cst_11 = arith.constant dense<0.000000e+00> : vector<8x8x16xf32>
    %43 = vector.multi_reduction <add>, %42, %cst_11 [1] : vector<8x4x8x16xf32> to vector<8x8x16xf32>
    %44 = vector.extract_strided_slice %15 {offsets = [4, 0, 0, 0], sizes = [1, 4, 8, 16], strides = [1, 1, 1, 1]} : vector<8x4x8x16xf32> to vector<1x4x8x16xf32>
    %45 = vector.shape_cast %44 : vector<1x4x8x16xf32> to vector<4x8x16xf32>
    %46 = vector.shape_cast %45 : vector<4x8x16xf32> to vector<1x4x8x16xf32>
    %47 = vector.broadcast %46 : vector<1x4x8x16xf32> to vector<8x4x8x16xf32>
    %48 = arith.mulf %47, %17 : vector<8x4x8x16xf32>
    %cst_12 = arith.constant dense<0.000000e+00> : vector<8x8x16xf32>
    %49 = vector.multi_reduction <add>, %48, %cst_12 [1] : vector<8x4x8x16xf32> to vector<8x8x16xf32>
    %50 = vector.extract_strided_slice %15 {offsets = [5, 0, 0, 0], sizes = [1, 4, 8, 16], strides = [1, 1, 1, 1]} : vector<8x4x8x16xf32> to vector<1x4x8x16xf32>
    %51 = vector.shape_cast %50 : vector<1x4x8x16xf32> to vector<4x8x16xf32>
    %52 = vector.shape_cast %51 : vector<4x8x16xf32> to vector<1x4x8x16xf32>
    %53 = vector.broadcast %52 : vector<1x4x8x16xf32> to vector<8x4x8x16xf32>
    %54 = arith.mulf %53, %17 : vector<8x4x8x16xf32>
    %cst_13 = arith.constant dense<0.000000e+00> : vector<8x8x16xf32>
    %55 = vector.multi_reduction <add>, %54, %cst_13 [1] : vector<8x4x8x16xf32> to vector<8x8x16xf32>
    %56 = vector.extract_strided_slice %15 {offsets = [6, 0, 0, 0], sizes = [1, 4, 8, 16], strides = [1, 1, 1, 1]} : vector<8x4x8x16xf32> to vector<1x4x8x16xf32>
    %57 = vector.shape_cast %56 : vector<1x4x8x16xf32> to vector<4x8x16xf32>
    %58 = vector.shape_cast %57 : vector<4x8x16xf32> to vector<1x4x8x16xf32>
    %59 = vector.broadcast %58 : vector<1x4x8x16xf32> to vector<8x4x8x16xf32>
    %60 = arith.mulf %59, %17 : vector<8x4x8x16xf32>
    %cst_14 = arith.constant dense<0.000000e+00> : vector<8x8x16xf32>
    %61 = vector.multi_reduction <add>, %60, %cst_14 [1] : vector<8x4x8x16xf32> to vector<8x8x16xf32>
    %62 = vector.extract_strided_slice %15 {offsets = [7, 0, 0, 0], sizes = [1, 4, 8, 16], strides = [1, 1, 1, 1]} : vector<8x4x8x16xf32> to vector<1x4x8x16xf32>
    %63 = vector.shape_cast %62 : vector<1x4x8x16xf32> to vector<4x8x16xf32>
    %64 = vector.shape_cast %63 : vector<4x8x16xf32> to vector<1x4x8x16xf32>
    %65 = vector.broadcast %64 : vector<1x4x8x16xf32> to vector<8x4x8x16xf32>
    %66 = arith.mulf %65, %17 : vector<8x4x8x16xf32>
    %cst_15 = arith.constant dense<0.000000e+00> : vector<8x8x16xf32>
    %67 = vector.multi_reduction <add>, %66, %cst_15 [1] : vector<8x4x8x16xf32> to vector<8x8x16xf32>
    %68 = vector.shape_cast %25 : vector<8x8x16xf32> to vector<1x8x8x16xf32>
    %69 = vector.shape_cast %31 : vector<8x8x16xf32> to vector<1x8x8x16xf32>
    %70 = vector.shape_cast %37 : vector<8x8x16xf32> to vector<1x8x8x16xf32>
    %71 = vector.shape_cast %43 : vector<8x8x16xf32> to vector<1x8x8x16xf32>
    %72 = vector.shape_cast %49 : vector<8x8x16xf32> to vector<1x8x8x16xf32>
    %73 = vector.shape_cast %55 : vector<8x8x16xf32> to vector<1x8x8x16xf32>
    %74 = vector.shape_cast %61 : vector<8x8x16xf32> to vector<1x8x8x16xf32>
    %75 = vector.shape_cast %67 : vector<8x8x16xf32> to vector<1x8x8x16xf32>
    %76 = tpu.concatenate %68, %69, %70, %71, %72, %73, %74, %75 in 0 : vector<1x8x8x16xf32>, vector<1x8x8x16xf32>, vector<1x8x8x16xf32>, vector<1x8x8x16xf32>, vector<1x8x8x16xf32>, vector<1x8x8x16xf32>, vector<1x8x8x16xf32>, vector<1x8x8x16xf32> -> vector<8x8x8x16xf32>
    %cst_16 = arith.constant dense<0xFF800000> : vector<8x8x16xf32>
    %77 = vector.multi_reduction <maximumf>, %76, %cst_16 [1] : vector<8x8x8x16xf32> to vector<8x8x16xf32>
    %78 = vector.shape_cast %77 : vector<8x8x16xf32> to vector<8x1x8x16xf32>
    %79 = vector.broadcast %78 : vector<8x1x8x16xf32> to vector<8x8x8x16xf32>
    %80 = arith.subf %76, %79 : vector<8x8x8x16xf32>
    %81 = math.exp %80 : vector<8x8x8x16xf32>
    %cst_17 = arith.constant dense<0.000000e+00> : vector<8x8x16xf32>
    %82 = vector.multi_reduction <add>, %81, %cst_17 [1] : vector<8x8x8x16xf32> to vector<8x8x16xf32>
    %83 = vector.shape_cast %82 : vector<8x8x16xf32> to vector<8x1x8x16xf32>
    %84 = tpu.reciprocal %83 {approx = true} : vector<8x1x8x16xf32> -> vector<8x1x8x16xf32>
    %85 = vector.broadcast %84 : vector<8x1x8x16xf32> to vector<8x8x8x16xf32>
    %86 = arith.mulf %81, %85 : vector<8x8x8x16xf32>
    %87 = vector.extract_strided_slice %86 {offsets = [0, 0, 0, 0], sizes = [1, 8, 8, 16], strides = [1, 1, 1, 1]} : vector<8x8x8x16xf32> to vector<1x8x8x16xf32>
    %88 = vector.shape_cast %87 : vector<1x8x8x16xf32> to vector<8x8x16xf32>
    %89 = vector.shape_cast %88 : vector<8x8x16xf32> to vector<8x1x8x16xf32>
    %90 = vector.broadcast %89 : vector<8x1x8x16xf32> to vector<8x4x8x16xf32>
    %91 = arith.mulf %90, %19 : vector<8x4x8x16xf32>
    %cst_18 = arith.constant dense<0.000000e+00> : vector<4x8x16xf32>
    %92 = vector.multi_reduction <add>, %91, %cst_18 [0] : vector<8x4x8x16xf32> to vector<4x8x16xf32>
    %93 = vector.extract_strided_slice %86 {offsets = [1, 0, 0, 0], sizes = [1, 8, 8, 16], strides = [1, 1, 1, 1]} : vector<8x8x8x16xf32> to vector<1x8x8x16xf32>
    %94 = vector.shape_cast %93 : vector<1x8x8x16xf32> to vector<8x8x16xf32>
    %95 = vector.shape_cast %94 : vector<8x8x16xf32> to vector<8x1x8x16xf32>
    %96 = vector.broadcast %95 : vector<8x1x8x16xf32> to vector<8x4x8x16xf32>
    %97 = arith.mulf %96, %19 : vector<8x4x8x16xf32>
    %cst_19 = arith.constant dense<0.000000e+00> : vector<4x8x16xf32>
    %98 = vector.multi_reduction <add>, %97, %cst_19 [0] : vector<8x4x8x16xf32> to vector<4x8x16xf32>
    %99 = vector.extract_strided_slice %86 {offsets = [2, 0, 0, 0], sizes = [1, 8, 8, 16], strides = [1, 1, 1, 1]} : vector<8x8x8x16xf32> to vector<1x8x8x16xf32>
    %100 = vector.shape_cast %99 : vector<1x8x8x16xf32> to vector<8x8x16xf32>
    %101 = vector.shape_cast %100 : vector<8x8x16xf32> to vector<8x1x8x16xf32>
    %102 = vector.broadcast %101 : vector<8x1x8x16xf32> to vector<8x4x8x16xf32>
    %103 = arith.mulf %102, %19 : vector<8x4x8x16xf32>
    %cst_20 = arith.constant dense<0.000000e+00> : vector<4x8x16xf32>
    %104 = vector.multi_reduction <add>, %103, %cst_20 [0] : vector<8x4x8x16xf32> to vector<4x8x16xf32>
    %105 = vector.extract_strided_slice %86 {offsets = [3, 0, 0, 0], sizes = [1, 8, 8, 16], strides = [1, 1, 1, 1]} : vector<8x8x8x16xf32> to vector<1x8x8x16xf32>
    %106 = vector.shape_cast %105 : vector<1x8x8x16xf32> to vector<8x8x16xf32>
    %107 = vector.shape_cast %106 : vector<8x8x16xf32> to vector<8x1x8x16xf32>
    %108 = vector.broadcast %107 : vector<8x1x8x16xf32> to vector<8x4x8x16xf32>
    %109 = arith.mulf %108, %19 : vector<8x4x8x16xf32>
    %cst_21 = arith.constant dense<0.000000e+00> : vector<4x8x16xf32>
    %110 = vector.multi_reduction <add>, %109, %cst_21 [0] : vector<8x4x8x16xf32> to vector<4x8x16xf32>
    %111 = vector.extract_strided_slice %86 {offsets = [4, 0, 0, 0], sizes = [1, 8, 8, 16], strides = [1, 1, 1, 1]} : vector<8x8x8x16xf32> to vector<1x8x8x16xf32>
    %112 = vector.shape_cast %111 : vector<1x8x8x16xf32> to vector<8x8x16xf32>
    %113 = vector.shape_cast %112 : vector<8x8x16xf32> to vector<8x1x8x16xf32>
    %114 = vector.broadcast %113 : vector<8x1x8x16xf32> to vector<8x4x8x16xf32>
    %115 = arith.mulf %114, %19 : vector<8x4x8x16xf32>
    %cst_22 = arith.constant dense<0.000000e+00> : vector<4x8x16xf32>
    %116 = vector.multi_reduction <add>, %115, %cst_22 [0] : vector<8x4x8x16xf32> to vector<4x8x16xf32>
    %117 = vector.extract_strided_slice %86 {offsets = [5, 0, 0, 0], sizes = [1, 8, 8, 16], strides = [1, 1, 1, 1]} : vector<8x8x8x16xf32> to vector<1x8x8x16xf32>
    %118 = vector.shape_cast %117 : vector<1x8x8x16xf32> to vector<8x8x16xf32>
    %119 = vector.shape_cast %118 : vector<8x8x16xf32> to vector<8x1x8x16xf32>
    %120 = vector.broadcast %119 : vector<8x1x8x16xf32> to vector<8x4x8x16xf32>
    %121 = arith.mulf %120, %19 : vector<8x4x8x16xf32>
    %cst_23 = arith.constant dense<0.000000e+00> : vector<4x8x16xf32>
    %122 = vector.multi_reduction <add>, %121, %cst_23 [0] : vector<8x4x8x16xf32> to vector<4x8x16xf32>
    %123 = vector.extract_strided_slice %86 {offsets = [6, 0, 0, 0], sizes = [1, 8, 8, 16], strides = [1, 1, 1, 1]} : vector<8x8x8x16xf32> to vector<1x8x8x16xf32>
    %124 = vector.shape_cast %123 : vector<1x8x8x16xf32> to vector<8x8x16xf32>
    %125 = vector.shape_cast %124 : vector<8x8x16xf32> to vector<8x1x8x16xf32>
    %126 = vector.broadcast %125 : vector<8x1x8x16xf32> to vector<8x4x8x16xf32>
    %127 = arith.mulf %126, %19 : vector<8x4x8x16xf32>
    %cst_24 = arith.constant dense<0.000000e+00> : vector<4x8x16xf32>
    %128 = vector.multi_reduction <add>, %127, %cst_24 [0] : vector<8x4x8x16xf32> to vector<4x8x16xf32>
    %129 = vector.extract_strided_slice %86 {offsets = [7, 0, 0, 0], sizes = [1, 8, 8, 16], strides = [1, 1, 1, 1]} : vector<8x8x8x16xf32> to vector<1x8x8x16xf32>
    %130 = vector.shape_cast %129 : vector<1x8x8x16xf32> to vector<8x8x16xf32>
    %131 = vector.shape_cast %130 : vector<8x8x16xf32> to vector<8x1x8x16xf32>
    %132 = vector.broadcast %131 : vector<8x1x8x16xf32> to vector<8x4x8x16xf32>
    %133 = arith.mulf %132, %19 : vector<8x4x8x16xf32>
    %cst_25 = arith.constant dense<0.000000e+00> : vector<4x8x16xf32>
    %134 = vector.multi_reduction <add>, %133, %cst_25 [0] : vector<8x4x8x16xf32> to vector<4x8x16xf32>
    %135 = vector.shape_cast %92 : vector<4x8x16xf32> to vector<1x4x8x16xf32>
    %136 = vector.shape_cast %98 : vector<4x8x16xf32> to vector<1x4x8x16xf32>
    %137 = vector.shape_cast %104 : vector<4x8x16xf32> to vector<1x4x8x16xf32>
    %138 = vector.shape_cast %110 : vector<4x8x16xf32> to vector<1x4x8x16xf32>
    %139 = vector.shape_cast %116 : vector<4x8x16xf32> to vector<1x4x8x16xf32>
    %140 = vector.shape_cast %122 : vector<4x8x16xf32> to vector<1x4x8x16xf32>
    %141 = vector.shape_cast %128 : vector<4x8x16xf32> to vector<1x4x8x16xf32>
    %142 = vector.shape_cast %134 : vector<4x8x16xf32> to vector<1x4x8x16xf32>
    %143 = tpu.concatenate %135, %136, %137, %138, %139, %140, %141, %142 in 0 : vector<1x4x8x16xf32>, vector<1x4x8x16xf32>, vector<1x4x8x16xf32>, vector<1x4x8x16xf32>, vector<1x4x8x16xf32>, vector<1x4x8x16xf32>, vector<1x4x8x16xf32>, vector<1x4x8x16xf32> -> vector<8x4x8x16xf32>
    %144 = vector.shape_cast %143 : vector<8x4x8x16xf32> to vector<8x32x16xf32>
    %145 = tpu.transpose %144, [0, 2, 1] : vector<8x32x16xf32> -> vector<8x16x32xf32>
    %146 = vector.shape_cast %145 : vector<8x16x32xf32> to vector<128x32xf32>
    %147 = arith.truncf %146 : vector<128x32xf32> to vector<128x32xbf16>
    %c0_26 = arith.constant 0 : index
    %c0_27 = arith.constant 0 : index
    %148 = vector.load %arg5[%c0_26, %c0_27] : memref<32x32xbf16, #tpu.memory_space<vmem>>, vector<32x32xbf16>
    %cst_28 = arith.constant dense<0.000000e+00> : vector<128x32xf32>
    %149 = tpu.matmul %147, %148, %cst_28 {dimension_numbers = #tpu.dot_dimension_numbers<[1], [0], [0], [1], [0, 0, 1, 1], [], []>} : vector<128x32xbf16>, vector<32x32xbf16>, vector<128x32xf32> -> vector<128x32xf32>
    %c0_29 = arith.constant 0 : index
    %c0_30 = arith.constant 0 : index
    %150 = vector.load %arg6[%c0_29, %c0_30] : memref<1x32xf32, #tpu.memory_space<vmem>>, vector<1x32xf32>
    %151 = vector.broadcast %150 : vector<1x32xf32> to vector<128x32xf32>
    %152 = arith.addf %149, %151 : vector<128x32xf32>
    %153 = vector.shape_cast %152 : vector<128x32xf32> to vector<8x16x32xf32>
    %c0_31 = arith.constant 0 : index
    %c0_32 = arith.constant 0 : index
    %c0_33 = arith.constant 0 : index
    %c0_34 = arith.constant 0 : index
    %154 = vector.load %arg7[%c0_31, %c0_32, %c0_33, %c0_34] : memref<1x8x16x32xf32, #tpu.memory_space<vmem>>, vector<1x8x16x32xf32>
    %155 = vector.shape_cast %154 : vector<1x8x16x32xf32> to vector<8x16x32xf32>
    %156 = vector.shape_cast %153 : vector<8x16x32xf32> to vector<1x8x16x32xf32>
    tpu.vector_store %arg7[%c0_31, %c0_32, %c0_33, %c0_34], %156 {strides = array<i32>} : memref<1x8x16x32xf32, #tpu.memory_space<vmem>>, vector<1x8x16x32xf32>,
    return
  }
  func.func @transform_0(%arg0: i32, %arg1: i32) -> (i32, i32) {
    %c0_i32 = arith.constant 0 : i32
    %c0_i32_0 = arith.constant 0 : i32
    %c0_i32_1 = arith.constant 0 : i32
    return %c0_i32, %c0_i32_0 : i32, i32
  }
  func.func @transform_1(%arg0: i32, %arg1: i32) -> (i32, i32, i32, i32) {
    %c0_i32 = arith.constant 0 : i32
    %c0_i32_0 = arith.constant 0 : i32
    %c0_i32_1 = arith.constant 0 : i32
    return %arg0, %c0_i32, %arg1, %c0_i32_0 : i32, i32, i32, i32
  }
  func.func @transform_2(%arg0: i32, %arg1: i32) -> (i32, i32) {
    %c0_i32 = arith.constant 0 : i32
    %c0_i32_0 = arith.constant 0 : i32
    %c0_i32_1 = arith.constant 0 : i32
    return %c0_i32, %c0_i32_0 : i32, i32
  }
  func.func @transform_3(%arg0: i32, %arg1: i32) -> (i32, i32) {
    %c0_i32 = arith.constant 0 : i32
    %c0_i32_0 = arith.constant 0 : i32
    %c0_i32_1 = arith.constant 0 : i32
    return %c0_i32, %c0_i32_0 : i32, i32
  }
  func.func @transform_4(%arg0: i32, %arg1: i32) -> (i32, i32) {
    %c0_i32 = arith.constant 0 : i32
    %c0_i32_0 = arith.constant 0 : i32
    %c0_i32_1 = arith.constant 0 : i32
    return %c0_i32, %c0_i32_0 : i32, i32
  }
  func.func @transform_5(%arg0: i32, %arg1: i32) -> (i32, i32, i32, i32) {
    %c0_i32 = arith.constant 0 : i32
    %c0_i32_0 = arith.constant 0 : i32
    %c0_i32_1 = arith.constant 0 : i32
    return %arg0, %c0_i32, %arg1, %c0_i32_0 : i32, i32, i32, i32
  }
}

</mosaic_0001>

<llo_original>
// kernel: tpu_custom_call.1
$region0: #{tpu_custom_call.1}
  #allocation0 [shape = 'u32[]', space=smem, size = 0x4, offset = 0x4, fixed_abs, tag = 'smem constant byte address 0x4 - core index']
  #allocation1 [shape = 'u32[144,128]{1,0:T(1,128)}', space=vmem, size = 0x12000, scoped, tag = 'internal scratch']
  %s0 = inlined_call_operand.hbm [shape: f32[8,32], index: 0, kind: input, shape index: {}]
  %s1 = inlined_call_operand.hbm [shape: f32[2,8,16,32], index: 1, kind: input, shape index: {}]
  %s2 = inlined_call_operand.hbm [shape: bf16[32,96], index: 2, kind: input, shape index: {}]
  %s3 = inlined_call_operand.hbm [shape: bf16[32,32], index: 3, kind: input, shape index: {}]
  %s4 = inlined_call_operand.hbm [shape: f32[1,32], index: 4, kind: input, shape index: {}]
  %s5 = inlined_call_operand.hbm [shape: f32[2,8,16,32], index: 5, kind: output, shape index: {}]
  %s6 = sld [smem:[#allocation0]]
  $region73: #{tpu_custom_call.1} parent=0
    _
  %s8 = ssub.s32 1, %s6
  %s9 = scalar_select 0, %s8, %s6
  $region1: #{tpu_custom_call.1} parent=0
    #allocation2 [shape = 'u8[4096]{0}', space=vmem, size = 0x1000, scoped, tag = 'input window, operand 0, single buffered']
    #allocation3 [shape = 's32[2]{0}', space=sflag, size = 0x8, scoped, tag = 'scoped memory for tpu_custom_call.1']
    #allocation4 [shape = 's32[2]{0}', space=sflag, size = 0x8, scoped, tag = 'scoped memory for tpu_custom_call.1']
    #allocation5 [shape = 'u8[131072]{0}', space=vmem, size = 0x20000, scoped, tag = 'input window, operand 1']
    #allocation6 [shape = 's32[2]{0}', space=sflag, size = 0x8, scoped, tag = 'scoped memory for tpu_custom_call.1']
    #allocation7 [shape = 'u8[8192]{0}', space=vmem, size = 0x2000, scoped, tag = 'input window, operand 2, single buffered']
    #allocation8 [shape = 'u8[8192]{0}', space=vmem, size = 0x2000, scoped, tag = 'input window, operand 3, single buffered']
    #allocation9 [shape = 's32[1]{0}', space=sflag, size = 0x4, scoped, tag = 'scoped memory for tpu_custom_call.1']
    #allocation10 [shape = 'u8[512]{0}', space=vmem, size = 0x400, scoped, tag = 'input window, operand 4, single buffered']
    #allocation11 [shape = 'u8[131072]{0}', space=vmem, size = 0x20000, scoped, tag = 'output window, operand 0']
    %10 = vsyncpa [#allocation3], 0
    %11 = vsyncpa [#allocation6], 0
    %s12 = scalar_lea.sflag [#allocation6], 1
    %13 = vsyncpa %s12, 0
    %14 = vsyncpa [#allocation9], 0
    %15 = vsyncpa [#allocation4], 0
    %s16 = scalar_lea.sflag [#allocation4], 1
    %17 = vsyncpa %s16, 0
    loop: start=0, step=1, limit=4
    $region2: #{tpu_custom_call.1} parent=1 // loop_pre_header
      _
    $region3: #{tpu_custom_call.1} parent=1 // loop_header
      %s19 = sphi 0, %s23
      %p20 = scmp.ge.s32.totalorder %s19, 4
      %s26 = sphi 0, %s38
      %s27 = sphi 0, %s34
      %s28 = sphi 0, %s26
      %s29 = sphi 0, %s27
      %s30 = sphi 0, %s28
      %s31 = sphi 0, %s29
      %s39 = sphi 0, %s39
      %s41 = sphi 0, %s39
      %s42 = sphi 0, %s41
      %s56 = sphi 0, %s42
      %s64 = sphi 0, %s66
      %s67 = sphi 0, %s64
      %s68 = sphi 0, %s67
      %s84 = sphi 0, %s68
      %s88 = sphi 0, %s88
      %s90 = sphi 0, %s88
      %s91 = sphi 0, %s90
      %s105 = sphi 0, %s91
      %s109 = sphi 0, %s109
      %s111 = sphi 0, %s109
      %s112 = sphi 0, %s111
      %s126 = sphi 0, %s112
      %s130 = sphi 0, %s130
      %s132 = sphi 0, %s130
      %s133 = sphi 0, %s132
      %s147 = sphi 0, %s133
      %s155 = sphi 0, %s157
      %s158 = sphi 0, %s155
      %s159 = sphi 0, %s158
      %s175 = sphi 0, %s159
    $region4: #{tpu_custom_call.1} parent=1 // loop_header_branch
      %22 = sbr.rel (%p20) target = $region8
    $region5: #{tpu_custom_call.1} parent=1 // loop_body
      %s24 = ssub.s32 %s19, 1
      %s25 = ssub.s32 %s19, 2
      %s32 = sadd.s32 1, %s27
      %p33 = scmp.ge.s32.totalorder %s32, 1
      %s34 = scalar_select %p33, 0, %s32
      %s35 = sadd.s32 1, %s26
      %s36 = scalar_select %p33, %s35, %s26
      %p37 = scmp.ge.s32.totalorder %s36, 2
      %s38 = scalar_select %p37, 0, %s36
      %s40 = sadd.s32 %s39, 1
      %p43 = scmp.eq.s32.totalorder %s19, 1
      %p44 = scmp.ne.s32.totalorder %s39, %s41
      %p45 = scmp.eq.s32.totalorder %s19, 0
      %p46 = por %p44, %p45
      %p47 = scmp.ne.s32.totalorder %s39, %s41
      %p48 = scmp.eq.s32.totalorder %s24, 1
      %p49 = por %p47, %p48
      %p50 = scmp.ne.s32.totalorder %s41, %s42
      %p51 = scmp.eq.s32.totalorder %s24, 0
      %p52 = por %p50, %p51
      %p53 = scmp.ne.s32.totalorder %s41, %s42
      %p54 = scmp.eq.s32.totalorder %s25, 1
      %p55 = por %p53, %p54
      %p57 = scmp.ne.s32.totalorder %s42, %s56
      %p58 = scmp.eq.s32.totalorder %s25, 0
      %p59 = por %p57, %p58
      %s60 = ssub.s32 %s26, %s38
      %s61 = ssub.s32 %s27, %s34
      %s62 = sor.u32 %s60, %s61
      %p63 = scmp.eq.s32.totalorder %s62, 0
      %s65 = sadd.s32 %s64, 1
      %s66 = scalar_select %p63, %s64, %s65
      %p69 = pneg %p63
      %p70 = scmp.eq.s32.totalorder %s19, 1
      %p71 = por %p69, %p70
      %p72 = scmp.ne.s32.totalorder %s64, %s67
      %p73 = scmp.eq.s32.totalorder %s19, 0
      %p74 = por %p72, %p73
      %p75 = scmp.ne.s32.totalorder %s64, %s67
      %p76 = scmp.eq.s32.totalorder %s24, 1
      %p77 = por %p75, %p76
      %p78 = scmp.ne.s32.totalorder %s67, %s68
      %p79 = scmp.eq.s32.totalorder %s24, 0
      %p80 = por %p78, %p79
      %p81 = scmp.ne.s32.totalorder %s67, %s68
      %p82 = scmp.eq.s32.totalorder %s25, 1
      %p83 = por %p81, %p82
      %p85 = scmp.ne.s32.totalorder %s68, %s84
      %p86 = scmp.eq.s32.totalorder %s25, 0
      %p87 = por %p85, %p86
      %s89 = sadd.s32 %s88, 1
      %p92 = scmp.eq.s32.totalorder %s19, 1
      %p93 = scmp.ne.s32.totalorder %s88, %s90
      %p94 = scmp.eq.s32.totalorder %s19, 0
      %p95 = por %p93, %p94
      %p96 = scmp.ne.s32.totalorder %s88, %s90
      %p97 = scmp.eq.s32.totalorder %s24, 1
      %p98 = por %p96, %p97
      %p99 = scmp.ne.s32.totalorder %s90, %s91
      %p100 = scmp.eq.s32.totalorder %s24, 0
      %p101 = por %p99, %p100
      %p102 = scmp.ne.s32.totalorder %s90, %s91
      %p103 = scmp.eq.s32.totalorder %s25, 1
      %p104 = por %p102, %p103
      %p106 = scmp.ne.s32.totalorder %s91, %s105
      %p107 = scmp.eq.s32.totalorder %s25, 0
      %p108 = por %p106, %p107
      %s110 = sadd.s32 %s109, 1
      %p113 = scmp.eq.s32.totalorder %s19, 1
      %p114 = scmp.ne.s32.totalorder %s109, %s111
      %p115 = scmp.eq.s32.totalorder %s19, 0
      %p116 = por %p114, %p115
      %p117 = scmp.ne.s32.totalorder %s109, %s111
      %p118 = scmp.eq.s32.totalorder %s24, 1
      %p119 = por %p117, %p118
      %p120 = scmp.ne.s32.totalorder %s111, %s112
      %p121 = scmp.eq.s32.totalorder %s24, 0
      %p122 = por %p120, %p121
      %p123 = scmp.ne.s32.totalorder %s111, %s112
      %p124 = scmp.eq.s32.totalorder %s25, 1
      %p125 = por %p123, %p124
      %p127 = scmp.ne.s32.totalorder %s112, %s126
      %p128 = scmp.eq.s32.totalorder %s25, 0
      %p129 = por %p127, %p128
      %s131 = sadd.s32 %s130, 1
      %p134 = scmp.eq.s32.totalorder %s19, 1
      %p135 = scmp.ne.s32.totalorder %s130, %s132
      %p136 = scmp.eq.s32.totalorder %s19, 0
      %p137 = por %p135, %p136
      %p138 = scmp.ne.s32.totalorder %s130, %s132
      %p139 = scmp.eq.s32.totalorder %s24, 1
      %p140 = por %p138, %p139
      %p141 = scmp.ne.s32.totalorder %s132, %s133
      %p142 = scmp.eq.s32.totalorder %s24, 0
      %p143 = por %p141, %p142
      %p144 = scmp.ne.s32.totalorder %s132, %s133
      %p145 = scmp.eq.s32.totalorder %s25, 1
      %p146 = por %p144, %p145
      %p148 = scmp.ne.s32.totalorder %s133, %s147
      %p149 = scmp.eq.s32.totalorder %s25, 0
      %p150 = por %p148, %p149
      %s151 = ssub.s32 %s26, %s38
      %s152 = ssub.s32 %s27, %s34
      %s153 = sor.u32 %s151, %s152
      %p154 = scmp.eq.s32.totalorder %s153, 0
      %s156 = sadd.s32 %s155, 1
      %s157 = scalar_select %p154, %s155, %s156
      %p160 = pneg %p154
      %p161 = scmp.eq.s32.totalorder %s19, 1
      %p162 = por %p160, %p161
      %p163 = scmp.ne.s32.totalorder %s155, %s158
      %p164 = scmp.eq.s32.totalorder %s19, 0
      %p165 = por %p163, %p164
      %p166 = scmp.ne.s32.totalorder %s155, %s158
      %p167 = scmp.eq.s32.totalorder %s24, 1
      %p168 = por %p166, %p167
      %p169 = scmp.ne.s32.totalorder %s158, %s159
      %p170 = scmp.eq.s32.totalorder %s24, 0
      %p171 = por %p169, %p170
      %p172 = scmp.ne.s32.totalorder %s158, %s159
      %p173 = scmp.eq.s32.totalorder %s25, 1
      %p174 = por %p172, %p173
      %p176 = scmp.ne.s32.totalorder %s159, %s175
      %p177 = scmp.eq.s32.totalorder %s25, 0
      %p178 = por %p176, %p177
      %p179 = scmp.le.s32.totalorder 1, %s19
      %p180 = scmp.lt.s32.totalorder %s19, 3
      %p181 = pnand %p179, %p180
      %p182 = pneg %p181
      // Predicated region
      $region9: #{tpu_custom_call.1} parent=5 // pred_check
        _
      $region10: #{tpu_custom_call.1} parent=5 // pred_check_branch
        %184 = sbr.rel (%p181) target = $region12
      $region11: #{tpu_custom_call.1} parent=5 // pred_region
        %s185 = ssub.s32 %s19, 1
        // Predicated region
        $region13: #{tpu_custom_call.1} parent=11 // pred_check
          %p186 = pneg %p52
        $region14: #{tpu_custom_call.1} parent=11 // pred_check_branch
          %188 = sbr.rel (%p186) target = $region16
        $region15: #{tpu_custom_call.1} parent=11 // pred_region
          %s190 = ssub.s32 128, 128
          %191 = vsyncadd [#allocation3], %s190
          %s193 = sshll.u32 [#allocation2], 4
          %s194 = int_to_ptr.vmem [resolvable:$true] %s193
          %196 = dma.hbm_to_vmem [thread:$0]  %s0, 128, %s194, [#allocation3]
        $region16: #{tpu_custom_call.1} parent=11 // pred_fallthru
          _
        // Predicated region
        $region17: #{tpu_custom_call.1} parent=11 // pred_check
          %p197 = pneg %p101
        $region18: #{tpu_custom_call.1} parent=11 // pred_check_branch
          %199 = sbr.rel (%p197) target = $region20
        $region19: #{tpu_custom_call.1} parent=11 // pred_region
          %s201 = ssub.s32 256, 256
          %202 = vsyncadd [#allocation6], %s201
          %s203 = sshll.u32 [#allocation7], 4
          %s204 = int_to_ptr.vmem [resolvable:$true] %s203
          %209 = dma.hbm_to_vmem [thread:$0]  %s2, 256, %s204, [#allocation6], 64, 64, 4
        $region20: #{tpu_custom_call.1} parent=11 // pred_fallthru
          _
        // Predicated region
        $region21: #{tpu_custom_call.1} parent=11 // pred_check
          %p210 = pneg %p122
        $region22: #{tpu_custom_call.1} parent=11 // pred_check_branch
          %212 = sbr.rel (%p210) target = $region24
        $region23: #{tpu_custom_call.1} parent=11 // pred_region
          %s214 = ssub.s32 256, 256
          %215 = vsyncadd [#allocation9], %s214
          %s216 = sshll.u32 [#allocation8], 4
          %s217 = int_to_ptr.vmem [resolvable:$true] %s216
          %222 = dma.hbm_to_vmem [thread:$0]  %s3, 256, %s217, [#allocation9], 64, 64, 4
        $region24: #{tpu_custom_call.1} parent=11 // pred_fallthru
          _
        // Predicated region
        $region25: #{tpu_custom_call.1} parent=11 // pred_check
          %p223 = pneg %p143
        $region26: #{tpu_custom_call.1} parent=11 // pred_check_branch
          %225 = sbr.rel (%p223) target = $region28
        $region27: #{tpu_custom_call.1} parent=11 // pred_region
          %s227 = ssub.s32 16, 16
          %228 = vsyncadd [#allocation9], %s227
          %s230 = sshll.u32 [#allocation10], 4
          %s231 = int_to_ptr.vmem [resolvable:$true] %s230
          %233 = dma.hbm_to_vmem [thread:$0]  %s4, 16, %s231, [#allocation9]
        $region28: #{tpu_custom_call.1} parent=11 // pred_fallthru
          _
      $region12: #{tpu_custom_call.1} parent=5 // pred_fallthru
        _
      %p234 = scmp.lt.s32.totalorder %s19, 2
      // Predicated region
      $region29: #{tpu_custom_call.1} parent=5 // pred_check
        %p235 = pneg %p234
      $region30: #{tpu_custom_call.1} parent=5 // pred_check_branch
        %237 = sbr.rel (%p235) target = $region32
      $region31: #{tpu_custom_call.1} parent=5 // pred_region
        // Predicated region
        $region33: #{tpu_custom_call.1} parent=31 // pred_check
          %p238 = pneg %p74
        $region34: #{tpu_custom_call.1} parent=31 // pred_check_branch
          %240 = sbr.rel (%p238) target = $region36
        $region35: #{tpu_custom_call.1} parent=31 // pred_region
          %s241 = sand.u32 %s19, 1
          %s242 = scalar_lea.sflag [#allocation6], %s241
          %s243 = sand.u32 %s64, 1
          %s244 = smul.addr %s243, 128
          %s245 = scalar_lea.vmem [#allocation5], %s244
          %s246 = smul.u32 2, %s27
          %s248 = ssub.s32 2048, 2048
          %249 = vsyncadd %s242, %s248
          %s250 = smul.addr %s26, 16
          %s251 = sadd.s32 %s246, %s250
          %s252 = smul.addr %s251, 128
          %s253 = scalar_lea.hbm %s1, %s252
          %s254 = sshll.u32 %s245, 4
          %s255 = int_to_ptr.vmem [resolvable:$true] %s254
          %260 = dma.hbm_to_vmem [thread:$0]  %s253, 2048, %s255, %s242, 128, 128, 8
        $region36: #{tpu_custom_call.1} parent=31 // pred_fallthru
          _
      $region32: #{tpu_custom_call.1} parent=5 // pred_fallthru
        _
      %p261 = scmp.le.s32.totalorder 1, %s19
      %p262 = scmp.lt.s32.totalorder %s19, 3
      %p263 = pnand %p261, %p262
      %p264 = pneg %p263
      // Predicated region
      $region37: #{tpu_custom_call.1} parent=5 // pred_check
        _
      $region38: #{tpu_custom_call.1} parent=5 // pred_check_branch
        %266 = sbr.rel (%p263) target = $region40
      $region39: #{tpu_custom_call.1} parent=5 // pred_region
        %s267 = ssub.s32 %s19, 1
        // Predicated region
        $region41: #{tpu_custom_call.1} parent=39 // pred_check
          %p268 = pneg %p52
        $region42: #{tpu_custom_call.1} parent=39 // pred_check_branch
          %270 = sbr.rel (%p268) target = $region44
        $region43: #{tpu_custom_call.1} parent=39 // pred_region
          %271 = dma.done [#allocation3], 128
        $region44: #{tpu_custom_call.1} parent=39 // pred_fallthru
          _
        %s272 = sand.u32 %s24, 1
        %s273 = scalar_lea.sflag [#allocation6], %s272
        %s274 = sand.u32 %s67, 1
        %s275 = smul.addr %s274, 128
        %s276 = scalar_lea.vmem [#allocation5], %s275
        // Predicated region
        $region45: #{tpu_custom_call.1} parent=39 // pred_check
          %p277 = pneg %p80
        $region46: #{tpu_custom_call.1} parent=39 // pred_check_branch
          %279 = sbr.rel (%p277) target = $region48
        $region47: #{tpu_custom_call.1} parent=39 // pred_region
          %280 = dma.done %s273, 2048
        $region48: #{tpu_custom_call.1} parent=39 // pred_fallthru
          _
        // Predicated region
        $region49: #{tpu_custom_call.1} parent=39 // pred_check
          %p281 = pneg %p101
        $region50: #{tpu_custom_call.1} parent=39 // pred_check_branch
          %283 = sbr.rel (%p281) target = $region52
        $region51: #{tpu_custom_call.1} parent=39 // pred_region
          %284 = dma.done [#allocation6], 256
        $region52: #{tpu_custom_call.1} parent=39 // pred_fallthru
          _
        // Predicated region
        $region53: #{tpu_custom_call.1} parent=39 // pred_check
          %p285 = pneg %p122
        $region54: #{tpu_custom_call.1} parent=39 // pred_check_branch
          %287 = sbr.rel (%p285) target = $region56
        $region55: #{tpu_custom_call.1} parent=39 // pred_region
          %288 = dma.done [#allocation9], 256
        $region56: #{tpu_custom_call.1} parent=39 // pred_fallthru
          _
        // Predicated region
        $region57: #{tpu_custom_call.1} parent=39 // pred_check
          %p289 = pneg %p143
        $region58: #{tpu_custom_call.1} parent=39 // pred_check_branch
          %291 = sbr.rel (%p289) target = $region60
        $region59: #{tpu_custom_call.1} parent=39 // pred_region
          %292 = dma.done [#allocation9], 16
        $region60: #{tpu_custom_call.1} parent=39 // pred_fallthru
          _
        %p293 = pneg %p52
        %p294 = pneg %p49
        %s295 = sand.u32 %s24, 1
        %s296 = scalar_lea.sflag [#allocation6], %s295
        %s297 = sand.u32 %s67, 1
        %s298 = smul.addr %s297, 128
        %s299 = scalar_lea.vmem [#allocation5], %s298
        %p300 = pneg %p80
        %p301 = pneg %p77
        %p302 = pneg %p101
        %p303 = pneg %p98
        %p304 = pneg %p122
        %p305 = pneg %p119
        %p306 = pneg %p143
        %p307 = pneg %p140
        %p308 = pneg %p171
        %p309 = pneg %p168
        %s310 = sand.u32 %s158, 1
        %s311 = scalar_lea.sflag [#allocation4], %s310
        %s312 = sand.u32 %s158, 1
        %s313 = smul.addr %s312, 128
        %s314 = scalar_lea.vmem [#allocation11], %s313
        %s315 = smul.u32 2, %s29
        %s316 = smul.u32 2, %s29
        %v318 = vld [vmem:[%s276] sm:$0xff]
        %v319 = vld [vmem:[%s276 + $0x8] sm:$0xff]
        %v320 = vld [vmem:[%s276 + $0x10] sm:$0xff]
        %v321 = vld [vmem:[%s276 + $0x18] sm:$0xff]
        %v322 = vld [vmem:[%s276 + $0x20] sm:$0xff]
        %v323 = vld [vmem:[%s276 + $0x28] sm:$0xff]
        %v324 = vld [vmem:[%s276 + $0x30] sm:$0xff]
        %v325 = vld [vmem:[%s276 + $0x38] sm:$0xff]
        %v326 = vld [vmem:[%s276 + $0x40] sm:$0xff]
        %v327 = vld [vmem:[%s276 + $0x48] sm:$0xff]
        %v328 = vld [vmem:[%s276 + $0x50] sm:$0xff]
        %v329 = vld [vmem:[%s276 + $0x58] sm:$0xff]
        %v330 = vld [vmem:[%s276 + $0x60] sm:$0xff]
        %v331 = vld [vmem:[%s276 + $0x68] sm:$0xff]
        %v332 = vld [vmem:[%s276 + $0x70] sm:$0xff]
        %v333 = vld [vmem:[%s276 + $0x78] sm:$0xff]
        %v334 = vld [vmem:[#allocation2] sm:$0xff]
        %v336 = vcombine.high %v334, %v334
        %v338 = vunpack.c.l.s4 1966171168
        %v339 = vunpack.c.0.s8 %v338
        %v340 = vlaneseq
        %v341 = vshrl.u32 %v340, 7
        %v342 = vsub.s32 %v339, %v341
        %v343 = vrot.slane %v334, %v342
        %v345 = vunpack.c.l.s4 1966171168
        %v346 = vunpack.c.0.s8 %v345
        %v347 = vlaneseq
        %v348 = vshrl.u32 %v347, 7
        %v349 = vsub.s32 %v346, %v348
        %v350 = vrot.slane %v336, %v349
        %v351 = vcombine.high %v343, %v343
        %v352 = vcombine.high %v350, %v350
        %v354 = vunpack.c.l.s4 1966171168
        %v355 = vunpack.c.0.s8 %v354
        %v356 = vlaneseq
        %v357 = vshrl.u32 %v356, 7
        %v358 = vsub.s32 %v355, %v357
        %v359 = vrot.slane %v343, %v358
        %v361 = vunpack.c.l.s4 1966171168
        %v362 = vunpack.c.0.s8 %v361
        %v363 = vlaneseq
        %v364 = vshrl.u32 %v363, 7
        %v365 = vsub.s32 %v362, %v364
        %v366 = vrot.slane %v350, %v365
        %v368 = vunpack.c.l.s4 1966171168
        %v369 = vunpack.c.0.s8 %v368
        %v370 = vlaneseq
        %v371 = vshrl.u32 %v370, 7
        %v372 = vsub.s32 %v369, %v371
        %v373 = vrot.slane %v351, %v372
        %v375 = vunpack.c.l.s4 1966171168
        %v376 = vunpack.c.0.s8 %v375
        %v377 = vlaneseq
        %v378 = vshrl.u32 %v377, 7
        %v379 = vsub.s32 %v376, %v378
        %v380 = vrot.slane %v352, %v379
        %v381 = vcombine.high %v359, %v359
        %v382 = vcombine.high %v366, %v366
        %v383 = vcombine.high %v373, %v373
        %v384 = vcombine.high %v380, %v380
        %v385 = vlaneseq
        %v386 = vshrl.u32 %v385, 7
        %v387 = vsub.s32 0, %v386
        %v388 = vrot.slane %v359, %v387
        %v389 = vlaneseq
        %v390 = vshrl.u32 %v389, 7
        %v391 = vsub.s32 0, %v390
        %v392 = vrot.slane %v373, %v391
        %v393 = vlaneseq
        %v394 = vshrl.u32 %v393, 7
        %v395 = vsub.s32 0, %v394
        %v396 = vrot.slane %v381, %v395
        %v397 = vlaneseq
        %v398 = vshrl.u32 %v397, 7
        %v399 = vsub.s32 0, %v398
        %v400 = vrot.slane %v383, %v399
        %v401 = vlaneseq
        %v402 = vshrl.u32 %v401, 7
        %v403 = vsub.s32 0, %v402
        %v404 = vrot.slane %v366, %v403
        %v405 = vlaneseq
        %v406 = vshrl.u32 %v405, 7
        %v407 = vsub.s32 0, %v406
        %v408 = vrot.slane %v380, %v407
        %v409 = vlaneseq
        %v410 = vshrl.u32 %v409, 7
        %v411 = vsub.s32 0, %v410
        %v412 = vrot.slane %v382, %v411
        %v413 = vlaneseq
        %v414 = vshrl.u32 %v413, 7
        %v415 = vsub.s32 0, %v414
        %v416 = vrot.slane %v384, %v415
        %v425 = vadd.f32 %v318, %v388
        %v426 = vadd.f32 %v319, %v388
        %v427 = vadd.f32 %v320, %v392
        %v428 = vadd.f32 %v321, %v392
        %v429 = vadd.f32 %v322, %v396
        %v430 = vadd.f32 %v323, %v396
        %v431 = vadd.f32 %v324, %v400
        %v432 = vadd.f32 %v325, %v400
        %v433 = vadd.f32 %v326, %v404
        %v434 = vadd.f32 %v327, %v404
        %v435 = vadd.f32 %v328, %v408
        %v436 = vadd.f32 %v329, %v408
        %v437 = vadd.f32 %v330, %v412
        %v438 = vadd.f32 %v331, %v412
        %v439 = vadd.f32 %v332, %v416
        %v440 = vadd.f32 %v333, %v416
        %v441 = vpack.c.bf16 %v426, %v425
        %v442 = vpack.c.bf16 %v428, %v427
        %v443 = vpack.c.bf16 %v430, %v429
        %v444 = vpack.c.bf16 %v432, %v431
        %v445 = vpack.c.bf16 %v434, %v433
        %v446 = vpack.c.bf16 %v436, %v435
        %v447 = vpack.c.bf16 %v438, %v437
        %v448 = vpack.c.bf16 %v440, %v439
        %v449 = vld [vmem:[#allocation7] sm:$0xf]
        %v450 = vld [vmem:[#allocation7 + $0x4] sm:$0xf]
        %v451 = vld [vmem:[#allocation7 + $0x8] sm:$0xf]
        %v452 = vld [vmem:[#allocation7 + $0xc] sm:$0xf]
        %v457 = vunpack.c.l.b16 %v449
        %v458 = vunpack.c.l.b16 %v450
        %v459 = vunpack.c.l.b16 %v451
        %v460 = vunpack.c.l.b16 %v452
        %v461 = vpack.c.b16 %v458, %v457
        %v462 = vpack.c.b16 %v460, %v459
        %vm465 = vcmask 261120
        %v467 = vsel %vm465, %v441, 0
        %v470 = vsel %vm465, %v442, 0
        %v473 = vsel %vm465, %v443, 0
        %v476 = vsel %vm465, %v444, 0
        %v479 = vsel %vm465, %v445, 0
        %v482 = vsel %vm465, %v446, 0
        %v485 = vsel %vm465, %v447, 0
        %v488 = vsel %vm465, %v448, 0
        %490 = vmatprep.subr.bf16.mxu0 0
        %491 = vmatpush1.bf16.msra.mxu0 %v461
        %492 = vmatprep.subr.bf16.mxu0 0
        %493 = vmatpush1.bf16.msra.mxu0 %v462
        %494 = vmatprep.subr.bf16.mxu0 0
        %495 = vmatpush1.bf16.msra.mxu0 0
        %496 = vmatprep.subr.bf16.mxu0 0
        %497 = vmatpush1.bf16.msra.mxu0 0
        %498 = vmatprep.subr.bf16.mxu0 0
        %499 = vmatpush1.bf16.msra.mxu0 0
        %500 = vmatprep.subr.bf16.mxu0 0
        %501 = vmatpush1.bf16.msra.mxu0 0
        %502 = vmatprep.subr.bf16.mxu0 0
        %503 = vmatpush1.bf16.msra.mxu0 0
        %504 = vmatprep.subr.bf16.mxu0 0
        %505 = vmatpush1.bf16.msra.mxu0 0
        %506 = vmatprep.subr.bf16.mxu0 0
        %507 = vmatpush1.bf16.msra.mxu0 0
        %508 = vmatprep.subr.bf16.mxu0 0
        %509 = vmatpush1.bf16.msra.mxu0 0
        %510 = vmatprep.subr.bf16.mxu0 0
        %511 = vmatpush1.bf16.msra.mxu0 0
        %512 = vmatprep.subr.bf16.mxu0 0
        %513 = vmatpush1.bf16.msra.mxu0 0
        %514 = vmatprep.subr.bf16.mxu0 0
        %515 = vmatpush1.bf16.msra.mxu0 0
        %516 = vmatprep.subr.bf16.mxu0 0
        %517 = vmatpush1.bf16.msra.mxu0 0
        %518 = vmatprep.subr.bf16.mxu0 0
        %519 = vmatpush1.bf16.msra.mxu0 0
        %520 = vmatprep.subr.bf16.mxu0 0
        %521 = vmatpush1.bf16.msra.mxu0 0
        %522 = vmatprep.mubr.bf16.mxu0 0
        %523 = vmatmul.mubr.bf16.gmra.mrb[0].mxu0 %v467
        %v524 = vpop.f32.mrb[0].mxu0
        %v525 = vadd.f32 0.0, %v524
        %v526 = vpop.f32.mrb[0].mxu0
        %v527 = vpop.f32.mrb[0].mxu0
        %v528 = vadd.f32 0.0, %v527
        %v529 = vpop.f32.mrb[0].mxu0
        %530 = vmatprep.mubr.bf16.mxu0 0
        %531 = vmatmul.mubr.bf16.gmra.mrb[0].mxu0 %v470
        %v532 = vpop.f32.mrb[0].mxu0
        %v533 = vadd.f32 0.0, %v532
        %v534 = vpop.f32.mrb[0].mxu0
        %v535 = vpop.f32.mrb[0].mxu0
        %v536 = vadd.f32 0.0, %v535
        %v537 = vpop.f32.mrb[0].mxu0
        %538 = vmatprep.mubr.bf16.mxu0 0
        %539 = vmatmul.mubr.bf16.gmra.mrb[0].mxu0 %v473
        %v540 = vpop.f32.mrb[0].mxu0
        %v541 = vadd.f32 0.0, %v540
        %v542 = vpop.f32.mrb[0].mxu0
        %v543 = vpop.f32.mrb[0].mxu0
        %v544 = vadd.f32 0.0, %v543
        %v545 = vpop.f32.mrb[0].mxu0
        %546 = vmatprep.mubr.bf16.mxu0 0
        %547 = vmatmul.mubr.bf16.gmra.mrb[0].mxu0 %v476
        %v548 = vpop.f32.mrb[0].mxu0
        %v549 = vadd.f32 0.0, %v548
        %v550 = vpop.f32.mrb[0].mxu0
        %v551 = vpop.f32.mrb[0].mxu0
        %v552 = vadd.f32 0.0, %v551
        %v553 = vpop.f32.mrb[0].mxu0
        %554 = vmatprep.mubr.bf16.mxu0 0
        %555 = vmatmul.mubr.bf16.gmra.mrb[0].mxu0 %v479
        %v556 = vpop.f32.mrb[0].mxu0
        %v557 = vadd.f32 0.0, %v556
        %v558 = vpop.f32.mrb[0].mxu0
        %v559 = vpop.f32.mrb[0].mxu0
        %v560 = vadd.f32 0.0, %v559
        %v561 = vpop.f32.mrb[0].mxu0
        %562 = vmatprep.mubr.bf16.mxu0 0
        %563 = vmatmul.mubr.bf16.gmra.mrb[0].mxu0 %v482
        %v564 = vpop.f32.mrb[0].mxu0
        %v565 = vadd.f32 0.0, %v564
        %v566 = vpop.f32.mrb[0].mxu0
        %v567 = vpop.f32.mrb[0].mxu0
        %v568 = vadd.f32 0.0, %v567
        %v569 = vpop.f32.mrb[0].mxu0
        %570 = vmatprep.mubr.bf16.mxu0 0
        %571 = vmatmul.mubr.bf16.gmra.mrb[0].mxu0 %v485
        %v572 = vpop.f32.mrb[0].mxu0
        %v573 = vadd.f32 0.0, %v572
        %v574 = vpop.f32.mrb[0].mxu0
        %v575 = vpop.f32.mrb[0].mxu0
        %v576 = vadd.f32 0.0, %v575
        %v577 = vpop.f32.mrb[0].mxu0
        %578 = vmatprep.mubr.bf16.mxu0 0
        %579 = vmatmul.mubr.bf16.gmra.mrb[0].mxu0 %v488
        %v580 = vpop.f32.mrb[0].mxu0
        %v581 = vadd.f32 0.0, %v580
        %v582 = vpop.f32.mrb[0].mxu0
        %v583 = vpop.f32.mrb[0].mxu0
        %v584 = vadd.f32 0.0, %v583
        %v585 = vpop.f32.mrb[0].mxu0
        %586 = vdwg.mxu0
        %587 = vxpose.xlu0.b32.start [1/16] %v525, 128
        %588 = vxpose.xlu0.b32.cont [2/16] %v528, 128
        %589 = vxpose.xlu0.b32.cont [3/16] 0.0, 128
        %590 = vxpose.xlu0.b32.cont [4/16] 0.0, 128
        %591 = vxpose.xlu0.b32.cont [5/16] 0.0, 128
        %592 = vxpose.xlu0.b32.cont [6/16] 0.0, 128
        %593 = vxpose.xlu0.b32.cont [7/16] 0.0, 128
        %594 = vxpose.xlu0.b32.cont [8/16] 0.0, 128
        %595 = vxpose.xlu0.b32.cont [9/16] 0.0, 128
        %596 = vxpose.xlu0.b32.cont [10/16] 0.0, 128
        %597 = vxpose.xlu0.b32.cont [11/16] 0.0, 128
        %598 = vxpose.xlu0.b32.cont [12/16] 0.0, 128
        %599 = vxpose.xlu0.b32.cont [13/16] 0.0, 128
        %600 = vxpose.xlu0.b32.cont [14/16] 0.0, 128
        %601 = vxpose.xlu0.b32.cont [15/16] 0.0, 128
        %602 = vxpose.xlu0.b32.end [16/16] 0.0, 128
        %v603 = vpop.trf.xlu0
        %v604 = vpop.trf.xlu0
        %v605 = vpop.trf.xlu0
        %v606 = vpop.trf.xlu0
        %v607 = vpop.trf.xlu0
        %v608 = vpop.trf.xlu0
        %v609 = vpop.trf.xlu0
        %v610 = vpop.trf.xlu0
        %v611 = vpop.trf.xlu0
        %v612 = vpop.trf.xlu0
        %v613 = vpop.trf.xlu0
        %v614 = vpop.trf.xlu0
        %v615 = vpop.trf.xlu0
        %v616 = vpop.trf.xlu0
        %v617 = vpop.trf.xlu0
        %v618 = vpop.trf.xlu0
        %619 = vxpose.xlu0.b32.start [1/16] %v533, 128
        %620 = vxpose.xlu0.b32.cont [2/16] %v536, 128
        %621 = vxpose.xlu0.b32.cont [3/16] 0.0, 128
        %622 = vxpose.xlu0.b32.cont [4/16] 0.0, 128
        %623 = vxpose.xlu0.b32.cont [5/16] 0.0, 128
        %624 = vxpose.xlu0.b32.cont [6/16] 0.0, 128
        %625 = vxpose.xlu0.b32.cont [7/16] 0.0, 128
        %626 = vxpose.xlu0.b32.cont [8/16] 0.0, 128
        %627 = vxpose.xlu0.b32.cont [9/16] 0.0, 128
        %628 = vxpose.xlu0.b32.cont [10/16] 0.0, 128
        %629 = vxpose.xlu0.b32.cont [11/16] 0.0, 128
        %630 = vxpose.xlu0.b32.cont [12/16] 0.0, 128
        %631 = vxpose.xlu0.b32.cont [13/16] 0.0, 128
        %632 = vxpose.xlu0.b32.cont [14/16] 0.0, 128
        %633 = vxpose.xlu0.b32.cont [15/16] 0.0, 128
        %634 = vxpose.xlu0.b32.end [16/16] 0.0, 128
        %v635 = vpop.trf.xlu0
        %v636 = vpop.trf.xlu0
        %v637 = vpop.trf.xlu0
        %v638 = vpop.trf.xlu0
        %v639 = vpop.trf.xlu0
        %v640 = vpop.trf.xlu0
        %v641 = vpop.trf.xlu0
        %v642 = vpop.trf.xlu0
        %v643 = vpop.trf.xlu0
        %v644 = vpop.trf.xlu0
        %v645 = vpop.trf.xlu0
        %v646 = vpop.trf.xlu0
        %v647 = vpop.trf.xlu0
        %v648 = vpop.trf.xlu0
        %v649 = vpop.trf.xlu0
        %v650 = vpop.trf.xlu0
        %651 = vxpose.xlu0.b32.start [1/16] %v541, 128
        %652 = vxpose.xlu0.b32.cont [2/16] %v544, 128
        %653 = vxpose.xlu0.b32.cont [3/16] 0.0, 128
        %654 = vxpose.xlu0.b32.cont [4/16] 0.0, 128
        %655 = vxpose.xlu0.b32.cont [5/16] 0.0, 128
        %656 = vxpose.xlu0.b32.cont [6/16] 0.0, 128
        %657 = vxpose.xlu0.b32.cont [7/16] 0.0, 128
        %658 = vxpose.xlu0.b32.cont [8/16] 0.0, 128
        %659 = vxpose.xlu0.b32.cont [9/16] 0.0, 128
        %660 = vxpose.xlu0.b32.cont [10/16] 0.0, 128
        %661 = vxpose.xlu0.b32.cont [11/16] 0.0, 128
        %662 = vxpose.xlu0.b32.cont [12/16] 0.0, 128
        %663 = vxpose.xlu0.b32.cont [13/16] 0.0, 128
        %664 = vxpose.xlu0.b32.cont [14/16] 0.0, 128
        %665 = vxpose.xlu0.b32.cont [15/16] 0.0, 128
        %666 = vxpose.xlu0.b32.end [16/16] 0.0, 128
        %v667 = vpop.trf.xlu0
        %v668 = vpop.trf.xlu0
        %v669 = vpop.trf.xlu0
        %v670 = vpop.trf.xlu0
        %v671 = vpop.trf.xlu0
        %v672 = vpop.trf.xlu0
        %v673 = vpop.trf.xlu0
        %v674 = vpop.trf.xlu0
        %v675 = vpop.trf.xlu0
        %v676 = vpop.trf.xlu0
        %v677 = vpop.trf.xlu0
        %v678 = vpop.trf.xlu0
        %v679 = vpop.trf.xlu0
        %v680 = vpop.trf.xlu0
        %v681 = vpop.trf.xlu0
        %v682 = vpop.trf.xlu0
        %683 = vxpose.xlu0.b32.start [1/16] %v549, 128
        %684 = vxpose.xlu0.b32.cont [2/16] %v552, 128
        %685 = vxpose.xlu0.b32.cont [3/16] 0.0, 128
        %686 = vxpose.xlu0.b32.cont [4/16] 0.0, 128
        %687 = vxpose.xlu0.b32.cont [5/16] 0.0, 128
        %688 = vxpose.xlu0.b32.cont [6/16] 0.0, 128
        %689 = vxpose.xlu0.b32.cont [7/16] 0.0, 128
        %690 = vxpose.xlu0.b32.cont [8/16] 0.0, 128
        %691 = vxpose.xlu0.b32.cont [9/16] 0.0, 128
        %692 = vxpose.xlu0.b32.cont [10/16] 0.0, 128
        %693 = vxpose.xlu0.b32.cont [11/16] 0.0, 128
        %694 = vxpose.xlu0.b32.cont [12/16] 0.0, 128
        %695 = vxpose.xlu0.b32.cont [13/16] 0.0, 128
        %696 = vxpose.xlu0.b32.cont [14/16] 0.0, 128
        %697 = vxpose.xlu0.b32.cont [15/16] 0.0, 128
        %698 = vxpose.xlu0.b32.end [16/16] 0.0, 128
        %v699 = vpop.trf.xlu0
        %v700 = vpop.trf.xlu0
        %v701 = vpop.trf.xlu0
        %v702 = vpop.trf.xlu0
        %v703 = vpop.trf.xlu0
        %v704 = vpop.trf.xlu0
        %v705 = vpop.trf.xlu0
        %v706 = vpop.trf.xlu0
        %v707 = vpop.trf.xlu0
        %v708 = vpop.trf.xlu0
        %v709 = vpop.trf.xlu0
        %v710 = vpop.trf.xlu0
        %v711 = vpop.trf.xlu0
        %v712 = vpop.trf.xlu0
        %v713 = vpop.trf.xlu0
        %v714 = vpop.trf.xlu0
        %715 = vxpose.xlu0.b32.start [1/16] %v557, 128
        %716 = vxpose.xlu0.b32.cont [2/16] %v560, 128
        %717 = vxpose.xlu0.b32.cont [3/16] 0.0, 128
        %718 = vxpose.xlu0.b32.cont [4/16] 0.0, 128
        %719 = vxpose.xlu0.b32.cont [5/16] 0.0, 128
        %720 = vxpose.xlu0.b32.cont [6/16] 0.0, 128
        %721 = vxpose.xlu0.b32.cont [7/16] 0.0, 128
        %722 = vxpose.xlu0.b32.cont [8/16] 0.0, 128
        %723 = vxpose.xlu0.b32.cont [9/16] 0.0, 128
        %724 = vxpose.xlu0.b32.cont [10/16] 0.0, 128
        %725 = vxpose.xlu0.b32.cont [11/16] 0.0, 128
        %726 = vxpose.xlu0.b32.cont [12/16] 0.0, 128
        %727 = vxpose.xlu0.b32.cont [13/16] 0.0, 128
        %728 = vxpose.xlu0.b32.cont [14/16] 0.0, 128
        %729 = vxpose.xlu0.b32.cont [15/16] 0.0, 128
        %730 = vxpose.xlu0.b32.end [16/16] 0.0, 128
        %v731 = vpop.trf.xlu0
        %v732 = vpop.trf.xlu0
        %v733 = vpop.trf.xlu0
        %v734 = vpop.trf.xlu0
        %v735 = vpop.trf.xlu0
        %v736 = vpop.trf.xlu0
        %v737 = vpop.trf.xlu0
        %v738 = vpop.trf.xlu0
        %v739 = vpop.trf.xlu0
        %v740 = vpop.trf.xlu0
        %v741 = vpop.trf.xlu0
        %v742 = vpop.trf.xlu0
        %v743 = vpop.trf.xlu0
        %v744 = vpop.trf.xlu0
        %v745 = vpop.trf.xlu0
        %v746 = vpop.trf.xlu0
        %747 = vxpose.xlu0.b32.start [1/16] %v565, 128
        %748 = vxpose.xlu0.b32.cont [2/16] %v568, 128
        %749 = vxpose.xlu0.b32.cont [3/16] 0.0, 128
        %750 = vxpose.xlu0.b32.cont [4/16] 0.0, 128
        %751 = vxpose.xlu0.b32.cont [5/16] 0.0, 128
        %752 = vxpose.xlu0.b32.cont [6/16] 0.0, 128
        %753 = vxpose.xlu0.b32.cont [7/16] 0.0, 128
        %754 = vxpose.xlu0.b32.cont [8/16] 0.0, 128
        %755 = vxpose.xlu0.b32.cont [9/16] 0.0, 128
        %756 = vxpose.xlu0.b32.cont [10/16] 0.0, 128
        %757 = vxpose.xlu0.b32.cont [11/16] 0.0, 128
        %758 = vxpose.xlu0.b32.cont [12/16] 0.0, 128
        %759 = vxpose.xlu0.b32.cont [13/16] 0.0, 128
        %760 = vxpose.xlu0.b32.cont [14/16] 0.0, 128
        %761 = vxpose.xlu0.b32.cont [15/16] 0.0, 128
        %762 = vxpose.xlu0.b32.end [16/16] 0.0, 128
        %v763 = vpop.trf.xlu0
        %v764 = vpop.trf.xlu0
        %v765 = vpop.trf.xlu0
        %v766 = vpop.trf.xlu0
        %v767 = vpop.trf.xlu0
        %v768 = vpop.trf.xlu0
        %v769 = vpop.trf.xlu0
        %v770 = vpop.trf.xlu0
        %v771 = vpop.trf.xlu0
        %v772 = vpop.trf.xlu0
        %v773 = vpop.trf.xlu0
        %v774 = vpop.trf.xlu0
        %v775 = vpop.trf.xlu0
        %v776 = vpop.trf.xlu0
        %v777 = vpop.trf.xlu0
        %v778 = vpop.trf.xlu0
        %779 = vxpose.xlu0.b32.start [1/16] %v573, 128
        %780 = vxpose.xlu0.b32.cont [2/16] %v576, 128
        %781 = vxpose.xlu0.b32.cont [3/16] 0.0, 128
        %782 = vxpose.xlu0.b32.cont [4/16] 0.0, 128
        %783 = vxpose.xlu0.b32.cont [5/16] 0.0, 128
        %784 = vxpose.xlu0.b32.cont [6/16] 0.0, 128
        %785 = vxpose.xlu0.b32.cont [7/16] 0.0, 128
        %786 = vxpose.xlu0.b32.cont [8/16] 0.0, 128
        %787 = vxpose.xlu0.b32.cont [9/16] 0.0, 128
        %788 = vxpose.xlu0.b32.cont [10/16] 0.0, 128
        %789 = vxpose.xlu0.b32.cont [11/16] 0.0, 128
        %790 = vxpose.xlu0.b32.cont [12/16] 0.0, 128
        %791 = vxpose.xlu0.b32.cont [13/16] 0.0, 128
        %792 = vxpose.xlu0.b32.cont [14/16] 0.0, 128
        %793 = vxpose.xlu0.b32.cont [15/16] 0.0, 128
        %794 = vxpose.xlu0.b32.end [16/16] 0.0, 128
        %v795 = vpop.trf.xlu0
        %v796 = vpop.trf.xlu0
        %v797 = vpop.trf.xlu0
        %v798 = vpop.trf.xlu0
        %v799 = vpop.trf.xlu0
        %v800 = vpop.trf.xlu0
        %v801 = vpop.trf.xlu0
        %v802 = vpop.trf.xlu0
        %v803 = vpop.trf.xlu0
        %v804 = vpop.trf.xlu0
        %v805 = vpop.trf.xlu0
        %v806 = vpop.trf.xlu0
        %v807 = vpop.trf.xlu0
        %v808 = vpop.trf.xlu0
        %v809 = vpop.trf.xlu0
        %v810 = vpop.trf.xlu0
        %811 = vxpose.xlu0.b32.start [1/16] %v581, 128
        %812 = vxpose.xlu0.b32.cont [2/16] %v584, 128
        %813 = vxpose.xlu0.b32.cont [3/16] 0.0, 128
        %814 = vxpose.xlu0.b32.cont [4/16] 0.0, 128
        %815 = vxpose.xlu0.b32.cont [5/16] 0.0, 128
        %816 = vxpose.xlu0.b32.cont [6/16] 0.0, 128
        %817 = vxpose.xlu0.b32.cont [7/16] 0.0, 128
        %818 = vxpose.xlu0.b32.cont [8/16] 0.0, 128
        %819 = vxpose.xlu0.b32.cont [9/16] 0.0, 128
        %820 = vxpose.xlu0.b32.cont [10/16] 0.0, 128
        %821 = vxpose.xlu0.b32.cont [11/16] 0.0, 128
        %822 = vxpose.xlu0.b32.cont [12/16] 0.0, 128
        %823 = vxpose.xlu0.b32.cont [13/16] 0.0, 128
        %824 = vxpose.xlu0.b32.cont [14/16] 0.0, 128
        %825 = vxpose.xlu0.b32.cont [15/16] 0.0, 128
        %826 = vxpose.xlu0.b32.end [16/16] 0.0, 128
        %v827 = vpop.trf.xlu0
        %v828 = vpop.trf.xlu0
        %v829 = vpop.trf.xlu0
        %v830 = vpop.trf.xlu0
        %v831 = vpop.trf.xlu0
        %v832 = vpop.trf.xlu0
        %v833 = vpop.trf.xlu0
        %v834 = vpop.trf.xlu0
        %v835 = vpop.trf.xlu0
        %v836 = vpop.trf.xlu0
        %v837 = vpop.trf.xlu0
        %v838 = vpop.trf.xlu0
        %v839 = vpop.trf.xlu0
        %v840 = vpop.trf.xlu0
        %v841 = vpop.trf.xlu0
        %v842 = vpop.trf.xlu0
        %v843 = vmul.f32 %v603, 0.5
        %v844 = vmul.f32 %v604, 0.5
        %v845 = vmul.f32 %v605, 0.5
        %v846 = vmul.f32 %v606, 0.5
        %v847 = vmul.f32 %v635, 0.5
        %v848 = vmul.f32 %v636, 0.5
        %v849 = vmul.f32 %v637, 0.5
        %v850 = vmul.f32 %v638, 0.5
        %v851 = vmul.f32 %v667, 0.5
        %v852 = vmul.f32 %v668, 0.5
        %v853 = vmul.f32 %v669, 0.5
        %v854 = vmul.f32 %v670, 0.5
        %v855 = vmul.f32 %v699, 0.5
        %v856 = vmul.f32 %v700, 0.5
        %v857 = vmul.f32 %v701, 0.5
        %v858 = vmul.f32 %v702, 0.5
        %v859 = vmul.f32 %v731, 0.5
        %v860 = vmul.f32 %v732, 0.5
        %v861 = vmul.f32 %v733, 0.5
        %v862 = vmul.f32 %v734, 0.5
        %v863 = vmul.f32 %v763, 0.5
        %v864 = vmul.f32 %v764, 0.5
        %v865 = vmul.f32 %v765, 0.5
        %v866 = vmul.f32 %v766, 0.5
        %v867 = vmul.f32 %v795, 0.5
        %v868 = vmul.f32 %v796, 0.5
        %v869 = vmul.f32 %v797, 0.5
        %v870 = vmul.f32 %v798, 0.5
        %v871 = vmul.f32 %v827, 0.5
        %v872 = vmul.f32 %v828, 0.5
        %v873 = vmul.f32 %v829, 0.5
        %v874 = vmul.f32 %v830, 0.5
        %v875 = vmul.f32 %v843, %v607
        %v876 = vmul.f32 %v844, %v608
        %v877 = vmul.f32 %v845, %v609
        %v878 = vmul.f32 %v846, %v610
        %v879 = vmul.f32 %v843, %v639
        %v880 = vmul.f32 %v844, %v640
        %v881 = vmul.f32 %v845, %v641
        %v882 = vmul.f32 %v846, %v642
        %v883 = vmul.f32 %v843, %v671
        %v884 = vmul.f32 %v844, %v672
        %v885 = vmul.f32 %v845, %v673
        %v886 = vmul.f32 %v846, %v674
        %v887 = vmul.f32 %v843, %v703
        %v888 = vmul.f32 %v844, %v704
        %v889 = vmul.f32 %v845, %v705
        %v890 = vmul.f32 %v846, %v706
        %v891 = vmul.f32 %v843, %v735
        %v892 = vmul.f32 %v844, %v736
        %v893 = vmul.f32 %v845, %v737
        %v894 = vmul.f32 %v846, %v738
        %v895 = vmul.f32 %v843, %v767
        %v896 = vmul.f32 %v844, %v768
        %v897 = vmul.f32 %v845, %v769
        %v898 = vmul.f32 %v846, %v770
        %v899 = vmul.f32 %v843, %v799
        %v900 = vmul.f32 %v844, %v800
        %v901 = vmul.f32 %v845, %v801
        %v902 = vmul.f32 %v846, %v802
        %v903 = vmul.f32 %v843, %v831
        %v904 = vmul.f32 %v844, %v832
        %v905 = vmul.f32 %v845, %v833
        %v906 = vmul.f32 %v846, %v834
        %vm907 = vcmask 130048
        %v908 = vsel %vm907, %v875, 0.0
        %v909 = vsel %vm907, %v876, 0.0
        %v910 = vadd.f32 %v908, %v909
        %v911 = vsel %vm907, %v877, 0.0
        %v912 = vadd.f32 %v910, %v911
        %v913 = vsel %vm907, %v878, 0.0
        %v914 = vadd.f32 %v912, %v913
        %v915 = vsel %vm907, %v879, 0.0
        %v916 = vsel %vm907, %v880, 0.0
        %v917 = vadd.f32 %v915, %v916
        %v918 = vsel %vm907, %v881, 0.0
        %v919 = vadd.f32 %v917, %v918
        %v920 = vsel %vm907, %v882, 0.0
        %v921 = vadd.f32 %v919, %v920
        %v922 = vsel %vm907, %v883, 0.0
        %v923 = vsel %vm907, %v884, 0.0
        %v924 = vadd.f32 %v922, %v923
        %v925 = vsel %vm907, %v885, 0.0
        %v926 = vadd.f32 %v924, %v925
        %v927 = vsel %vm907, %v886, 0.0
        %v928 = vadd.f32 %v926, %v927
        %v929 = vsel %vm907, %v887, 0.0
        %v930 = vsel %vm907, %v888, 0.0
        %v931 = vadd.f32 %v929, %v930
        %v932 = vsel %vm907, %v889, 0.0
        %v933 = vadd.f32 %v931, %v932
        %v934 = vsel %vm907, %v890, 0.0
        %v935 = vadd.f32 %v933, %v934
        %v936 = vsel %vm907, %v891, 0.0
        %v937 = vsel %vm907, %v892, 0.0
        %v938 = vadd.f32 %v936, %v937
        %v939 = vsel %vm907, %v893, 0.0
        %v940 = vadd.f32 %v938, %v939
        %v941 = vsel %vm907, %v894, 0.0
        %v942 = vadd.f32 %v940, %v941
        %v943 = vsel %vm907, %v895, 0.0
        %v944 = vsel %vm907, %v896, 0.0
        %v945 = vadd.f32 %v943, %v944
        %v946 = vsel %vm907, %v897, 0.0
        %v947 = vadd.f32 %v945, %v946
        %v948 = vsel %vm907, %v898, 0.0
        %v949 = vadd.f32 %v947, %v948
        %v950 = vsel %vm907, %v899, 0.0
        %v951 = vsel %vm907, %v900, 0.0
        %v952 = vadd.f32 %v950, %v951
        %v953 = vsel %vm907, %v901, 0.0
        %v954 = vadd.f32 %v952, %v953
        %v955 = vsel %vm907, %v902, 0.0
        %v956 = vadd.f32 %v954, %v955
        %v957 = vsel %vm907, %v903, 0.0
        %v958 = vsel %vm907, %v904, 0.0
        %v959 = vadd.f32 %v957, %v958
        %v960 = vsel %vm907, %v905, 0.0
        %v961 = vadd.f32 %v959, %v960
        %v962 = vsel %vm907, %v906, 0.0
        %v963 = vadd.f32 %v961, %v962
        %v964 = vmul.f32 %v847, %v607
        %v965 = vmul.f32 %v848, %v608
        %v966 = vmul.f32 %v849, %v609
        %v967 = vmul.f32 %v850, %v610
        %v968 = vmul.f32 %v847, %v639
        %v969 = vmul.f32 %v848, %v640
        %v970 = vmul.f32 %v849, %v641
        %v971 = vmul.f32 %v850, %v642
        %v972 = vmul.f32 %v847, %v671
        %v973 = vmul.f32 %v848, %v672
        %v974 = vmul.f32 %v849, %v673
        %v975 = vmul.f32 %v850, %v674
        %v976 = vmul.f32 %v847, %v703
        %v977 = vmul.f32 %v848, %v704
        %v978 = vmul.f32 %v849, %v705
        %v979 = vmul.f32 %v850, %v706
        %v980 = vmul.f32 %v847, %v735
        %v981 = vmul.f32 %v848, %v736
        %v982 = vmul.f32 %v849, %v737
        %v983 = vmul.f32 %v850, %v738
        %v984 = vmul.f32 %v847, %v767
        %v985 = vmul.f32 %v848, %v768
        %v986 = vmul.f32 %v849, %v769
        %v987 = vmul.f32 %v850, %v770
        %v988 = vmul.f32 %v847, %v799
        %v989 = vmul.f32 %v848, %v800
        %v990 = vmul.f32 %v849, %v801
        %v991 = vmul.f32 %v850, %v802
        %v992 = vmul.f32 %v847, %v831
        %v993 = vmul.f32 %v848, %v832
        %v994 = vmul.f32 %v849, %v833
        %v995 = vmul.f32 %v850, %v834
        %v996 = vsel %vm907, %v964, 0.0
        %v997 = vsel %vm907, %v965, 0.0
        %v998 = vadd.f32 %v996, %v997
        %v999 = vsel %vm907, %v966, 0.0
        %v1000 = vadd.f32 %v998, %v999
        %v1001 = vsel %vm907, %v967, 0.0
        %v1002 = vadd.f32 %v1000, %v1001
        %v1003 = vsel %vm907, %v968, 0.0
        %v1004 = vsel %vm907, %v969, 0.0
        %v1005 = vadd.f32 %v1003, %v1004
        %v1006 = vsel %vm907, %v970, 0.0
        %v1007 = vadd.f32 %v1005, %v1006
        %v1008 = vsel %vm907, %v971, 0.0
        %v1009 = vadd.f32 %v1007, %v1008
        %v1010 = vsel %vm907, %v972, 0.0
        %v1011 = vsel %vm907, %v973, 0.0
        %v1012 = vadd.f32 %v1010, %v1011
        %v1013 = vsel %vm907, %v974, 0.0
        %v1014 = vadd.f32 %v1012, %v1013
        %v1015 = vsel %vm907, %v975, 0.0
        %v1016 = vadd.f32 %v1014, %v1015
        %v1017 = vsel %vm907, %v976, 0.0
        %v1018 = vsel %vm907, %v977, 0.0
        %v1019 = vadd.f32 %v1017, %v1018
        %v1020 = vsel %vm907, %v978, 0.0
        %v1021 = vadd.f32 %v1019, %v1020
        %v1022 = vsel %vm907, %v979, 0.0
        %v1023 = vadd.f32 %v1021, %v1022
        %v1024 = vsel %vm907, %v980, 0.0
        %v1025 = vsel %vm907, %v981, 0.0
        %v1026 = vadd.f32 %v1024, %v1025
        %v1027 = vsel %vm907, %v982, 0.0
        %v1028 = vadd.f32 %v1026, %v1027
        %v1029 = vsel %vm907, %v983, 0.0
        %v1030 = vadd.f32 %v1028, %v1029
        %v1031 = vsel %vm907, %v984, 0.0
        %v1032 = vsel %vm907, %v985, 0.0
        %v1033 = vadd.f32 %v1031, %v1032
        %v1034 = vsel %vm907, %v986, 0.0
        %v1035 = vadd.f32 %v1033, %v1034
        %v1036 = vsel %vm907, %v987, 0.0
        %v1037 = vadd.f32 %v1035, %v1036
        %v1038 = vsel %vm907, %v988, 0.0
        %v1039 = vsel %vm907, %v989, 0.0
        %v1040 = vadd.f32 %v1038, %v1039
        %v1041 = vsel %vm907, %v990, 0.0
        %v1042 = vadd.f32 %v1040, %v1041
        %v1043 = vsel %vm907, %v991, 0.0
        %v1044 = vadd.f32 %v1042, %v1043
        %v1045 = vsel %vm907, %v992, 0.0
        %v1046 = vsel %vm907, %v993, 0.0
        %v1047 = vadd.f32 %v1045, %v1046
        %v1048 = vsel %vm907, %v994, 0.0
        %v1049 = vadd.f32 %v1047, %v1048
        %v1050 = vsel %vm907, %v995, 0.0
        %v1051 = vadd.f32 %v1049, %v1050
        %v1052 = vmul.f32 %v851, %v607
        %v1053 = vmul.f32 %v852, %v608
        %v1054 = vmul.f32 %v853, %v609
        %v1055 = vmul.f32 %v854, %v610
        %v1056 = vmul.f32 %v851, %v639
        %v1057 = vmul.f32 %v852, %v640
        %v1058 = vmul.f32 %v853, %v641
        %v1059 = vmul.f32 %v854, %v642
        %v1060 = vmul.f32 %v851, %v671
        %v1061 = vmul.f32 %v852, %v672
        %v1062 = vmul.f32 %v853, %v673
        %v1063 = vmul.f32 %v854, %v674
        %v1064 = vmul.f32 %v851, %v703
        %v1065 = vmul.f32 %v852, %v704
        %v1066 = vmul.f32 %v853, %v705
        %v1067 = vmul.f32 %v854, %v706
        %v1068 = vmul.f32 %v851, %v735
        %v1069 = vmul.f32 %v852, %v736
        %v1070 = vmul.f32 %v853, %v737
        %v1071 = vmul.f32 %v854, %v738
        %v1072 = vmul.f32 %v851, %v767
        %v1073 = vmul.f32 %v852, %v768
        %v1074 = vmul.f32 %v853, %v769
        %v1075 = vmul.f32 %v854, %v770
        %v1076 = vmul.f32 %v851, %v799
        %v1077 = vmul.f32 %v852, %v800
        %v1078 = vmul.f32 %v853, %v801
        %v1079 = vmul.f32 %v854, %v802
        %v1080 = vmul.f32 %v851, %v831
        %v1081 = vmul.f32 %v852, %v832
        %v1082 = vmul.f32 %v853, %v833
        %v1083 = vmul.f32 %v854, %v834
        %v1084 = vsel %vm907, %v1052, 0.0
        %v1085 = vsel %vm907, %v1053, 0.0
        %v1086 = vadd.f32 %v1084, %v1085
        %v1087 = vsel %vm907, %v1054, 0.0
        %v1088 = vadd.f32 %v1086, %v1087
        %v1089 = vsel %vm907, %v1055, 0.0
        %v1090 = vadd.f32 %v1088, %v1089
        %v1091 = vsel %vm907, %v1056, 0.0
        %v1092 = vsel %vm907, %v1057, 0.0
        %v1093 = vadd.f32 %v1091, %v1092
        %v1094 = vsel %vm907, %v1058, 0.0
        %v1095 = vadd.f32 %v1093, %v1094
        %v1096 = vsel %vm907, %v1059, 0.0
        %v1097 = vadd.f32 %v1095, %v1096
        %v1098 = vsel %vm907, %v1060, 0.0
        %v1099 = vsel %vm907, %v1061, 0.0
        %v1100 = vadd.f32 %v1098, %v1099
        %v1101 = vsel %vm907, %v1062, 0.0
        %v1102 = vadd.f32 %v1100, %v1101
        %v1103 = vsel %vm907, %v1063, 0.0
        %v1104 = vadd.f32 %v1102, %v1103
        %v1105 = vsel %vm907, %v1064, 0.0
        %v1106 = vsel %vm907, %v1065, 0.0
        %v1107 = vadd.f32 %v1105, %v1106
        %v1108 = vsel %vm907, %v1066, 0.0
        %v1109 = vadd.f32 %v1107, %v1108
        %v1110 = vsel %vm907, %v1067, 0.0
        %v1111 = vadd.f32 %v1109, %v1110
        %v1112 = vsel %vm907, %v1068, 0.0
        %v1113 = vsel %vm907, %v1069, 0.0
        %v1114 = vadd.f32 %v1112, %v1113
        %v1115 = vsel %vm907, %v1070, 0.0
        %v1116 = vadd.f32 %v1114, %v1115
        %v1117 = vsel %vm907, %v1071, 0.0
        %v1118 = vadd.f32 %v1116, %v1117
        %v1119 = vsel %vm907, %v1072, 0.0
        %v1120 = vsel %vm907, %v1073, 0.0
        %v1121 = vadd.f32 %v1119, %v1120
        %v1122 = vsel %vm907, %v1074, 0.0
        %v1123 = vadd.f32 %v1121, %v1122
        %v1124 = vsel %vm907, %v1075, 0.0
        %v1125 = vadd.f32 %v1123, %v1124
        %v1126 = vsel %vm907, %v1076, 0.0
        %v1127 = vsel %vm907, %v1077, 0.0
        %v1128 = vadd.f32 %v1126, %v1127
        %v1129 = vsel %vm907, %v1078, 0.0
        %v1130 = vadd.f32 %v1128, %v1129
        %v1131 = vsel %vm907, %v1079, 0.0
        %v1132 = vadd.f32 %v1130, %v1131
        %v1133 = vsel %vm907, %v1080, 0.0
        %v1134 = vsel %vm907, %v1081, 0.0
        %v1135 = vadd.f32 %v1133, %v1134
        %v1136 = vsel %vm907, %v1082, 0.0
        %v1137 = vadd.f32 %v1135, %v1136
        %v1138 = vsel %vm907, %v1083, 0.0
        %v1139 = vadd.f32 %v1137, %v1138
        %v1140 = vmul.f32 %v855, %v607
        %v1141 = vmul.f32 %v856, %v608
        %v1142 = vmul.f32 %v857, %v609
        %v1143 = vmul.f32 %v858, %v610
        %v1144 = vmul.f32 %v855, %v639
        %v1145 = vmul.f32 %v856, %v640
        %v1146 = vmul.f32 %v857, %v641
        %v1147 = vmul.f32 %v858, %v642
        %v1148 = vmul.f32 %v855, %v671
        %v1149 = vmul.f32 %v856, %v672
        %v1150 = vmul.f32 %v857, %v673
        %v1151 = vmul.f32 %v858, %v674
        %v1152 = vmul.f32 %v855, %v703
        %v1153 = vmul.f32 %v856, %v704
        %v1154 = vmul.f32 %v857, %v705
        %v1155 = vmul.f32 %v858, %v706
        %v1156 = vmul.f32 %v855, %v735
        %v1157 = vmul.f32 %v856, %v736
        %v1158 = vmul.f32 %v857, %v737
        %v1159 = vmul.f32 %v858, %v738
        %v1160 = vmul.f32 %v855, %v767
        %v1161 = vmul.f32 %v856, %v768
        %v1162 = vmul.f32 %v857, %v769
        %v1163 = vmul.f32 %v858, %v770
        %v1164 = vmul.f32 %v855, %v799
        %v1165 = vmul.f32 %v856, %v800
        %v1166 = vmul.f32 %v857, %v801
        %v1167 = vmul.f32 %v858, %v802
        %v1168 = vmul.f32 %v855, %v831
        %v1169 = vmul.f32 %v856, %v832
        %v1170 = vmul.f32 %v857, %v833
        %v1171 = vmul.f32 %v858, %v834
        %v1172 = vsel %vm907, %v1140, 0.0
        %v1173 = vsel %vm907, %v1141, 0.0
        %v1174 = vadd.f32 %v1172, %v1173
        %v1175 = vsel %vm907, %v1142, 0.0
        %v1176 = vadd.f32 %v1174, %v1175
        %v1177 = vsel %vm907, %v1143, 0.0
        %v1178 = vadd.f32 %v1176, %v1177
        %v1179 = vsel %vm907, %v1144, 0.0
        %v1180 = vsel %vm907, %v1145, 0.0
        %v1181 = vadd.f32 %v1179, %v1180
        %v1182 = vsel %vm907, %v1146, 0.0
        %v1183 = vadd.f32 %v1181, %v1182
        %v1184 = vsel %vm907, %v1147, 0.0
        %v1185 = vadd.f32 %v1183, %v1184
        %v1186 = vsel %vm907, %v1148, 0.0
        %v1187 = vsel %vm907, %v1149, 0.0
        %v1188 = vadd.f32 %v1186, %v1187
        %v1189 = vsel %vm907, %v1150, 0.0
        %v1190 = vadd.f32 %v1188, %v1189
        %v1191 = vsel %vm907, %v1151, 0.0
        %v1192 = vadd.f32 %v1190, %v1191
        %v1193 = vsel %vm907, %v1152, 0.0
        %v1194 = vsel %vm907, %v1153, 0.0
        %v1195 = vadd.f32 %v1193, %v1194
        %v1196 = vsel %vm907, %v1154, 0.0
        %v1197 = vadd.f32 %v1195, %v1196
        %v1198 = vsel %vm907, %v1155, 0.0
        %v1199 = vadd.f32 %v1197, %v1198
        %v1200 = vsel %vm907, %v1156, 0.0
        %v1201 = vsel %vm907, %v1157, 0.0
        %v1202 = vadd.f32 %v1200, %v1201
        %v1203 = vsel %vm907, %v1158, 0.0
        %v1204 = vadd.f32 %v1202, %v1203
        %v1205 = vsel %vm907, %v1159, 0.0
        %v1206 = vadd.f32 %v1204, %v1205
        %v1207 = vsel %vm907, %v1160, 0.0
        %v1208 = vsel %vm907, %v1161, 0.0
        %v1209 = vadd.f32 %v1207, %v1208
        %v1210 = vsel %vm907, %v1162, 0.0
        %v1211 = vadd.f32 %v1209, %v1210
        %v1212 = vsel %vm907, %v1163, 0.0
        %v1213 = vadd.f32 %v1211, %v1212
        %v1214 = vsel %vm907, %v1164, 0.0
        %v1215 = vsel %vm907, %v1165, 0.0
        %v1216 = vadd.f32 %v1214, %v1215
        %v1217 = vsel %vm907, %v1166, 0.0
        %v1218 = vadd.f32 %v1216, %v1217
        %v1219 = vsel %vm907, %v1167, 0.0
        %v1220 = vadd.f32 %v1218, %v1219
        %v1221 = vsel %vm907, %v1168, 0.0
        %v1222 = vsel %vm907, %v1169, 0.0
        %v1223 = vadd.f32 %v1221, %v1222
        %v1224 = vsel %vm907, %v1170, 0.0
        %v1225 = vadd.f32 %v1223, %v1224
        %v1226 = vsel %vm907, %v1171, 0.0
        %v1227 = vadd.f32 %v1225, %v1226
        %v1228 = vmul.f32 %v859, %v607
        %v1229 = vmul.f32 %v860, %v608
        %v1230 = vmul.f32 %v861, %v609
        %v1231 = vmul.f32 %v862, %v610
        %v1232 = vmul.f32 %v859, %v639
        %v1233 = vmul.f32 %v860, %v640
        %v1234 = vmul.f32 %v861, %v641
        %v1235 = vmul.f32 %v862, %v642
        %v1236 = vmul.f32 %v859, %v671
        %v1237 = vmul.f32 %v860, %v672
        %v1238 = vmul.f32 %v861, %v673
        %v1239 = vmul.f32 %v862, %v674
        %v1240 = vmul.f32 %v859, %v703
        %v1241 = vmul.f32 %v860, %v704
        %v1242 = vmul.f32 %v861, %v705
        %v1243 = vmul.f32 %v862, %v706
        %v1244 = vmul.f32 %v859, %v735
        %v1245 = vmul.f32 %v860, %v736
        %v1246 = vmul.f32 %v861, %v737
        %v1247 = vmul.f32 %v862, %v738
        %v1248 = vmul.f32 %v859, %v767
        %v1249 = vmul.f32 %v860, %v768
        %v1250 = vmul.f32 %v861, %v769
        %v1251 = vmul.f32 %v862, %v770
        %v1252 = vmul.f32 %v859, %v799
        %v1253 = vmul.f32 %v860, %v800
        %v1254 = vmul.f32 %v861, %v801
        %v1255 = vmul.f32 %v862, %v802
        %v1256 = vmul.f32 %v859, %v831
        %v1257 = vmul.f32 %v860, %v832
        %v1258 = vmul.f32 %v861, %v833
        %v1259 = vmul.f32 %v862, %v834
        %v1260 = vsel %vm907, %v1228, 0.0
        %v1261 = vsel %vm907, %v1229, 0.0
        %v1262 = vadd.f32 %v1260, %v1261
        %v1263 = vsel %vm907, %v1230, 0.0
        %v1264 = vadd.f32 %v1262, %v1263
        %v1265 = vsel %vm907, %v1231, 0.0
        %v1266 = vadd.f32 %v1264, %v1265
        %v1267 = vsel %vm907, %v1232, 0.0
        %v1268 = vsel %vm907, %v1233, 0.0
        %v1269 = vadd.f32 %v1267, %v1268
        %v1270 = vsel %vm907, %v1234, 0.0
        %v1271 = vadd.f32 %v1269, %v1270
        %v1272 = vsel %vm907, %v1235, 0.0
        %v1273 = vadd.f32 %v1271, %v1272
        %v1274 = vsel %vm907, %v1236, 0.0
        %v1275 = vsel %vm907, %v1237, 0.0
        %v1276 = vadd.f32 %v1274, %v1275
        %v1277 = vsel %vm907, %v1238, 0.0
        %v1278 = vadd.f32 %v1276, %v1277
        %v1279 = vsel %vm907, %v1239, 0.0
        %v1280 = vadd.f32 %v1278, %v1279
        %v1281 = vsel %vm907, %v1240, 0.0
        %v1282 = vsel %vm907, %v1241, 0.0
        %v1283 = vadd.f32 %v1281, %v1282
        %v1284 = vsel %vm907, %v1242, 0.0
        %v1285 = vadd.f32 %v1283, %v1284
        %v1286 = vsel %vm907, %v1243, 0.0
        %v1287 = vadd.f32 %v1285, %v1286
        %v1288 = vsel %vm907, %v1244, 0.0
        %v1289 = vsel %vm907, %v1245, 0.0
        %v1290 = vadd.f32 %v1288, %v1289
        %v1291 = vsel %vm907, %v1246, 0.0
        %v1292 = vadd.f32 %v1290, %v1291
        %v1293 = vsel %vm907, %v1247, 0.0
        %v1294 = vadd.f32 %v1292, %v1293
        %v1295 = vsel %vm907, %v1248, 0.0
        %v1296 = vsel %vm907, %v1249, 0.0
        %v1297 = vadd.f32 %v1295, %v1296
        %v1298 = vsel %vm907, %v1250, 0.0
        %v1299 = vadd.f32 %v1297, %v1298
        %v1300 = vsel %vm907, %v1251, 0.0
        %v1301 = vadd.f32 %v1299, %v1300
        %v1302 = vsel %vm907, %v1252, 0.0
        %v1303 = vsel %vm907, %v1253, 0.0
        %v1304 = vadd.f32 %v1302, %v1303
        %v1305 = vsel %vm907, %v1254, 0.0
        %v1306 = vadd.f32 %v1304, %v1305
        %v1307 = vsel %vm907, %v1255, 0.0
        %v1308 = vadd.f32 %v1306, %v1307
        %v1309 = vsel %vm907, %v1256, 0.0
        %v1310 = vsel %vm907, %v1257, 0.0
        %v1311 = vadd.f32 %v1309, %v1310
        %v1312 = vsel %vm907, %v1258, 0.0
        %v1313 = vadd.f32 %v1311, %v1312
        %v1314 = vsel %vm907, %v1259, 0.0
        %v1315 = vadd.f32 %v1313, %v1314
        %v1316 = vmul.f32 %v863, %v607
        %v1317 = vmul.f32 %v864, %v608
        %v1318 = vmul.f32 %v865, %v609
        %v1319 = vmul.f32 %v866, %v610
        %v1320 = vmul.f32 %v863, %v639
        %v1321 = vmul.f32 %v864, %v640
        %v1322 = vmul.f32 %v865, %v641
        %v1323 = vmul.f32 %v866, %v642
        %v1324 = vmul.f32 %v863, %v671
        %v1325 = vmul.f32 %v864, %v672
        %v1326 = vmul.f32 %v865, %v673
        %v1327 = vmul.f32 %v866, %v674
        %v1328 = vmul.f32 %v863, %v703
        %v1329 = vmul.f32 %v864, %v704
        %v1330 = vmul.f32 %v865, %v705
        %v1331 = vmul.f32 %v866, %v706
        %v1332 = vmul.f32 %v863, %v735
        %v1333 = vmul.f32 %v864, %v736
        %v1334 = vmul.f32 %v865, %v737
        %v1335 = vmul.f32 %v866, %v738
        %v1336 = vmul.f32 %v863, %v767
        %v1337 = vmul.f32 %v864, %v768
        %v1338 = vmul.f32 %v865, %v769
        %v1339 = vmul.f32 %v866, %v770
        %v1340 = vmul.f32 %v863, %v799
        %v1341 = vmul.f32 %v864, %v800
        %v1342 = vmul.f32 %v865, %v801
        %v1343 = vmul.f32 %v866, %v802
        %v1344 = vmul.f32 %v863, %v831
        %v1345 = vmul.f32 %v864, %v832
        %v1346 = vmul.f32 %v865, %v833
        %v1347 = vmul.f32 %v866, %v834
        %v1348 = vsel %vm907, %v1316, 0.0
        %v1349 = vsel %vm907, %v1317, 0.0
        %v1350 = vadd.f32 %v1348, %v1349
        %v1351 = vsel %vm907, %v1318, 0.0
        %v1352 = vadd.f32 %v1350, %v1351
        %v1353 = vsel %vm907, %v1319, 0.0
        %v1354 = vadd.f32 %v1352, %v1353
        %v1355 = vsel %vm907, %v1320, 0.0
        %v1356 = vsel %vm907, %v1321, 0.0
        %v1357 = vadd.f32 %v1355, %v1356
        %v1358 = vsel %vm907, %v1322, 0.0
        %v1359 = vadd.f32 %v1357, %v1358
        %v1360 = vsel %vm907, %v1323, 0.0
        %v1361 = vadd.f32 %v1359, %v1360
        %v1362 = vsel %vm907, %v1324, 0.0
        %v1363 = vsel %vm907, %v1325, 0.0
        %v1364 = vadd.f32 %v1362, %v1363
        %v1365 = vsel %vm907, %v1326, 0.0
        %v1366 = vadd.f32 %v1364, %v1365
        %v1367 = vsel %vm907, %v1327, 0.0
        %v1368 = vadd.f32 %v1366, %v1367
        %v1369 = vsel %vm907, %v1328, 0.0
        %v1370 = vsel %vm907, %v1329, 0.0
        %v1371 = vadd.f32 %v1369, %v1370
        %v1372 = vsel %vm907, %v1330, 0.0
        %v1373 = vadd.f32 %v1371, %v1372
        %v1374 = vsel %vm907, %v1331, 0.0
        %v1375 = vadd.f32 %v1373, %v1374
        %v1376 = vsel %vm907, %v1332, 0.0
        %v1377 = vsel %vm907, %v1333, 0.0
        %v1378 = vadd.f32 %v1376, %v1377
        %v1379 = vsel %vm907, %v1334, 0.0
        %v1380 = vadd.f32 %v1378, %v1379
        %v1381 = vsel %vm907, %v1335, 0.0
        %v1382 = vadd.f32 %v1380, %v1381
        %v1383 = vsel %vm907, %v1336, 0.0
        %v1384 = vsel %vm907, %v1337, 0.0
        %v1385 = vadd.f32 %v1383, %v1384
        %v1386 = vsel %vm907, %v1338, 0.0
        %v1387 = vadd.f32 %v1385, %v1386
        %v1388 = vsel %vm907, %v1339, 0.0
        %v1389 = vadd.f32 %v1387, %v1388
        %v1390 = vsel %vm907, %v1340, 0.0
        %v1391 = vsel %vm907, %v1341, 0.0
        %v1392 = vadd.f32 %v1390, %v1391
        %v1393 = vsel %vm907, %v1342, 0.0
        %v1394 = vadd.f32 %v1392, %v1393
        %v1395 = vsel %vm907, %v1343, 0.0
        %v1396 = vadd.f32 %v1394, %v1395
        %v1397 = vsel %vm907, %v1344, 0.0
        %v1398 = vsel %vm907, %v1345, 0.0
        %v1399 = vadd.f32 %v1397, %v1398
        %v1400 = vsel %vm907, %v1346, 0.0
        %v1401 = vadd.f32 %v1399, %v1400
        %v1402 = vsel %vm907, %v1347, 0.0
        %v1403 = vadd.f32 %v1401, %v1402
        %v1404 = vmul.f32 %v867, %v607
        %v1405 = vmul.f32 %v868, %v608
        %v1406 = vmul.f32 %v869, %v609
        %v1407 = vmul.f32 %v870, %v610
        %v1408 = vmul.f32 %v867, %v639
        %v1409 = vmul.f32 %v868, %v640
        %v1410 = vmul.f32 %v869, %v641
        %v1411 = vmul.f32 %v870, %v642
        %v1412 = vmul.f32 %v867, %v671
        %v1413 = vmul.f32 %v868, %v672
        %v1414 = vmul.f32 %v869, %v673
        %v1415 = vmul.f32 %v870, %v674
        %v1416 = vmul.f32 %v867, %v703
        %v1417 = vmul.f32 %v868, %v704
        %v1418 = vmul.f32 %v869, %v705
        %v1419 = vmul.f32 %v870, %v706
        %v1420 = vmul.f32 %v867, %v735
        %v1421 = vmul.f32 %v868, %v736
        %v1422 = vmul.f32 %v869, %v737
        %v1423 = vmul.f32 %v870, %v738
        %v1424 = vmul.f32 %v867, %v767
        %v1425 = vmul.f32 %v868, %v768
        %v1426 = vmul.f32 %v869, %v769
        %v1427 = vmul.f32 %v870, %v770
        %v1428 = vmul.f32 %v867, %v799
        %v1429 = vmul.f32 %v868, %v800
        %v1430 = vmul.f32 %v869, %v801
        %v1431 = vmul.f32 %v870, %v802
        %v1432 = vmul.f32 %v867, %v831
        %v1433 = vmul.f32 %v868, %v832
        %v1434 = vmul.f32 %v869, %v833
        %v1435 = vmul.f32 %v870, %v834
        %v1436 = vsel %vm907, %v1404, 0.0
        %v1437 = vsel %vm907, %v1405, 0.0
        %v1438 = vadd.f32 %v1436, %v1437
        %v1439 = vsel %vm907, %v1406, 0.0
        %v1440 = vadd.f32 %v1438, %v1439
        %v1441 = vsel %vm907, %v1407, 0.0
        %v1442 = vadd.f32 %v1440, %v1441
        %v1443 = vsel %vm907, %v1408, 0.0
        %v1444 = vsel %vm907, %v1409, 0.0
        %v1445 = vadd.f32 %v1443, %v1444
        %v1446 = vsel %vm907, %v1410, 0.0
        %v1447 = vadd.f32 %v1445, %v1446
        %v1448 = vsel %vm907, %v1411, 0.0
        %v1449 = vadd.f32 %v1447, %v1448
        %v1450 = vsel %vm907, %v1412, 0.0
        %v1451 = vsel %vm907, %v1413, 0.0
        %v1452 = vadd.f32 %v1450, %v1451
        %v1453 = vsel %vm907, %v1414, 0.0
        %v1454 = vadd.f32 %v1452, %v1453
        %v1455 = vsel %vm907, %v1415, 0.0
        %v1456 = vadd.f32 %v1454, %v1455
        %v1457 = vsel %vm907, %v1416, 0.0
        %v1458 = vsel %vm907, %v1417, 0.0
        %v1459 = vadd.f32 %v1457, %v1458
        %v1460 = vsel %vm907, %v1418, 0.0
        %v1461 = vadd.f32 %v1459, %v1460
        %v1462 = vsel %vm907, %v1419, 0.0
        %v1463 = vadd.f32 %v1461, %v1462
        %v1464 = vsel %vm907, %v1420, 0.0
        %v1465 = vsel %vm907, %v1421, 0.0
        %v1466 = vadd.f32 %v1464, %v1465
        %v1467 = vsel %vm907, %v1422, 0.0
        %v1468 = vadd.f32 %v1466, %v1467
        %v1469 = vsel %vm907, %v1423, 0.0
        %v1470 = vadd.f32 %v1468, %v1469
        %v1471 = vsel %vm907, %v1424, 0.0
        %v1472 = vsel %vm907, %v1425, 0.0
        %v1473 = vadd.f32 %v1471, %v1472
        %v1474 = vsel %vm907, %v1426, 0.0
        %v1475 = vadd.f32 %v1473, %v1474
        %v1476 = vsel %vm907, %v1427, 0.0
        %v1477 = vadd.f32 %v1475, %v1476
        %v1478 = vsel %vm907, %v1428, 0.0
        %v1479 = vsel %vm907, %v1429, 0.0
        %v1480 = vadd.f32 %v1478, %v1479
        %v1481 = vsel %vm907, %v1430, 0.0
        %v1482 = vadd.f32 %v1480, %v1481
        %v1483 = vsel %vm907, %v1431, 0.0
        %v1484 = vadd.f32 %v1482, %v1483
        %v1485 = vsel %vm907, %v1432, 0.0
        %v1486 = vsel %vm907, %v1433, 0.0
        %v1487 = vadd.f32 %v1485, %v1486
        %v1488 = vsel %vm907, %v1434, 0.0
        %v1489 = vadd.f32 %v1487, %v1488
        %v1490 = vsel %vm907, %v1435, 0.0
        %v1491 = vadd.f32 %v1489, %v1490
        %v1492 = vmul.f32 %v871, %v607
        %v1493 = vmul.f32 %v872, %v608
        %v1494 = vmul.f32 %v873, %v609
        %v1495 = vmul.f32 %v874, %v610
        %v1496 = vmul.f32 %v871, %v639
        %v1497 = vmul.f32 %v872, %v640
        %v1498 = vmul.f32 %v873, %v641
        %v1499 = vmul.f32 %v874, %v642
        %v1500 = vmul.f32 %v871, %v671
        %v1501 = vmul.f32 %v872, %v672
        %v1502 = vmul.f32 %v873, %v673
        %v1503 = vmul.f32 %v874, %v674
        %v1504 = vmul.f32 %v871, %v703
        %v1505 = vmul.f32 %v872, %v704
        %v1506 = vmul.f32 %v873, %v705
        %v1507 = vmul.f32 %v874, %v706
        %v1508 = vmul.f32 %v871, %v735
        %v1509 = vmul.f32 %v872, %v736
        %v1510 = vmul.f32 %v873, %v737
        %v1511 = vmul.f32 %v874, %v738
        %v1512 = vmul.f32 %v871, %v767
        %v1513 = vmul.f32 %v872, %v768
        %v1514 = vmul.f32 %v873, %v769
        %v1515 = vmul.f32 %v874, %v770
        %v1516 = vmul.f32 %v871, %v799
        %v1517 = vmul.f32 %v872, %v800
        %v1518 = vmul.f32 %v873, %v801
        %v1519 = vmul.f32 %v874, %v802
        %v1520 = vmul.f32 %v871, %v831
        %v1521 = vmul.f32 %v872, %v832
        %v1522 = vmul.f32 %v873, %v833
        %v1523 = vmul.f32 %v874, %v834
        %v1524 = vsel %vm907, %v1492, 0.0
        %v1525 = vsel %vm907, %v1493, 0.0
        %v1526 = vadd.f32 %v1524, %v1525
        %v1527 = vsel %vm907, %v1494, 0.0
        %v1528 = vadd.f32 %v1526, %v1527
        %v1529 = vsel %vm907, %v1495, 0.0
        %v1530 = vadd.f32 %v1528, %v1529
        %v1531 = vsel %vm907, %v1496, 0.0
        %v1532 = vsel %vm907, %v1497, 0.0
        %v1533 = vadd.f32 %v1531, %v1532
        %v1534 = vsel %vm907, %v1498, 0.0
        %v1535 = vadd.f32 %v1533, %v1534
        %v1536 = vsel %vm907, %v1499, 0.0
        %v1537 = vadd.f32 %v1535, %v1536
        %v1538 = vsel %vm907, %v1500, 0.0
        %v1539 = vsel %vm907, %v1501, 0.0
        %v1540 = vadd.f32 %v1538, %v1539
        %v1541 = vsel %vm907, %v1502, 0.0
        %v1542 = vadd.f32 %v1540, %v1541
        %v1543 = vsel %vm907, %v1503, 0.0
        %v1544 = vadd.f32 %v1542, %v1543
        %v1545 = vsel %vm907, %v1504, 0.0
        %v1546 = vsel %vm907, %v1505, 0.0
        %v1547 = vadd.f32 %v1545, %v1546
        %v1548 = vsel %vm907, %v1506, 0.0
        %v1549 = vadd.f32 %v1547, %v1548
        %v1550 = vsel %vm907, %v1507, 0.0
        %v1551 = vadd.f32 %v1549, %v1550
        %v1552 = vsel %vm907, %v1508, 0.0
        %v1553 = vsel %vm907, %v1509, 0.0
        %v1554 = vadd.f32 %v1552, %v1553
        %v1555 = vsel %vm907, %v1510, 0.0
        %v1556 = vadd.f32 %v1554, %v1555
        %v1557 = vsel %vm907, %v1511, 0.0
        %v1558 = vadd.f32 %v1556, %v1557
        %v1559 = vsel %vm907, %v1512, 0.0
        %v1560 = vsel %vm907, %v1513, 0.0
        %v1561 = vadd.f32 %v1559, %v1560
        %v1562 = vsel %vm907, %v1514, 0.0
        %v1563 = vadd.f32 %v1561, %v1562
        %v1564 = vsel %vm907, %v1515, 0.0
        %v1565 = vadd.f32 %v1563, %v1564
        %v1566 = vsel %vm907, %v1516, 0.0
        %v1567 = vsel %vm907, %v1517, 0.0
        %v1568 = vadd.f32 %v1566, %v1567
        %v1569 = vsel %vm907, %v1518, 0.0
        %v1570 = vadd.f32 %v1568, %v1569
        %v1571 = vsel %vm907, %v1519, 0.0
        %v1572 = vadd.f32 %v1570, %v1571
        %v1573 = vsel %vm907, %v1520, 0.0
        %v1574 = vsel %vm907, %v1521, 0.0
        %v1575 = vadd.f32 %v1573, %v1574
        %v1576 = vsel %vm907, %v1522, 0.0
        %v1577 = vadd.f32 %v1575, %v1576
        %v1578 = vsel %vm907, %v1523, 0.0
        %v1579 = vadd.f32 %v1577, %v1578
        %v1580 = vsel %vm907, %v914, -inf
        %v1581 = vsel %vm907, %v921, -inf
        %v1582 = vmax.f32 %v1580, %v1581
        %v1583 = vsel %vm907, %v928, -inf
        %v1584 = vmax.f32 %v1582, %v1583
        %v1585 = vsel %vm907, %v935, -inf
        %v1586 = vmax.f32 %v1584, %v1585
        %v1587 = vsel %vm907, %v942, -inf
        %v1588 = vmax.f32 %v1586, %v1587
        %v1589 = vsel %vm907, %v949, -inf
        %v1590 = vmax.f32 %v1588, %v1589
        %v1591 = vsel %vm907, %v956, -inf
        %v1592 = vmax.f32 %v1590, %v1591
        %v1593 = vsel %vm907, %v963, -inf
        %v1594 = vmax.f32 %v1592, %v1593
        %v1595 = vsel %vm907, %v1002, -inf
        %v1596 = vsel %vm907, %v1009, -inf
        %v1597 = vmax.f32 %v1595, %v1596
        %v1598 = vsel %vm907, %v1016, -inf
        %v1599 = vmax.f32 %v1597, %v1598
        %v1600 = vsel %vm907, %v1023, -inf
        %v1601 = vmax.f32 %v1599, %v1600
        %v1602 = vsel %vm907, %v1030, -inf
        %v1603 = vmax.f32 %v1601, %v1602
        %v1604 = vsel %vm907, %v1037, -inf
        %v1605 = vmax.f32 %v1603, %v1604
        %v1606 = vsel %vm907, %v1044, -inf
        %v1607 = vmax.f32 %v1605, %v1606
        %v1608 = vsel %vm907, %v1051, -inf
        %v1609 = vmax.f32 %v1607, %v1608
        %v1610 = vsel %vm907, %v1090, -inf
        %v1611 = vsel %vm907, %v1097, -inf
        %v1612 = vmax.f32 %v1610, %v1611
        %v1613 = vsel %vm907, %v1104, -inf
        %v1614 = vmax.f32 %v1612, %v1613
        %v1615 = vsel %vm907, %v1111, -inf
        %v1616 = vmax.f32 %v1614, %v1615
        %v1617 = vsel %vm907, %v1118, -inf
        %v1618 = vmax.f32 %v1616, %v1617
        %v1619 = vsel %vm907, %v1125, -inf
        %v1620 = vmax.f32 %v1618, %v1619
        %v1621 = vsel %vm907, %v1132, -inf
        %v1622 = vmax.f32 %v1620, %v1621
        %v1623 = vsel %vm907, %v1139, -inf
        %v1624 = vmax.f32 %v1622, %v1623
        %v1625 = vsel %vm907, %v1178, -inf
        %v1626 = vsel %vm907, %v1185, -inf
        %v1627 = vmax.f32 %v1625, %v1626
        %v1628 = vsel %vm907, %v1192, -inf
        %v1629 = vmax.f32 %v1627, %v1628
        %v1630 = vsel %vm907, %v1199, -inf
        %v1631 = vmax.f32 %v1629, %v1630
        %v1632 = vsel %vm907, %v1206, -inf
        %v1633 = vmax.f32 %v1631, %v1632
        %v1634 = vsel %vm907, %v1213, -inf
        %v1635 = vmax.f32 %v1633, %v1634
        %v1636 = vsel %vm907, %v1220, -inf
        %v1637 = vmax.f32 %v1635, %v1636
        %v1638 = vsel %vm907, %v1227, -inf
        %v1639 = vmax.f32 %v1637, %v1638
        %v1640 = vsel %vm907, %v1266, -inf
        %v1641 = vsel %vm907, %v1273, -inf
        %v1642 = vmax.f32 %v1640, %v1641
        %v1643 = vsel %vm907, %v1280, -inf
        %v1644 = vmax.f32 %v1642, %v1643
        %v1645 = vsel %vm907, %v1287, -inf
        %v1646 = vmax.f32 %v1644, %v1645
        %v1647 = vsel %vm907, %v1294, -inf
        %v1648 = vmax.f32 %v1646, %v1647
        %v1649 = vsel %vm907, %v1301, -inf
        %v1650 = vmax.f32 %v1648, %v1649
        %v1651 = vsel %vm907, %v1308, -inf
        %v1652 = vmax.f32 %v1650, %v1651
        %v1653 = vsel %vm907, %v1315, -inf
        %v1654 = vmax.f32 %v1652, %v1653
        %v1655 = vsel %vm907, %v1354, -inf
        %v1656 = vsel %vm907, %v1361, -inf
        %v1657 = vmax.f32 %v1655, %v1656
        %v1658 = vsel %vm907, %v1368, -inf
        %v1659 = vmax.f32 %v1657, %v1658
        %v1660 = vsel %vm907, %v1375, -inf
        %v1661 = vmax.f32 %v1659, %v1660
        %v1662 = vsel %vm907, %v1382, -inf
        %v1663 = vmax.f32 %v1661, %v1662
        %v1664 = vsel %vm907, %v1389, -inf
        %v1665 = vmax.f32 %v1663, %v1664
        %v1666 = vsel %vm907, %v1396, -inf
        %v1667 = vmax.f32 %v1665, %v1666
        %v1668 = vsel %vm907, %v1403, -inf
        %v1669 = vmax.f32 %v1667, %v1668
        %v1670 = vsel %vm907, %v1442, -inf
        %v1671 = vsel %vm907, %v1449, -inf
        %v1672 = vmax.f32 %v1670, %v1671
        %v1673 = vsel %vm907, %v1456, -inf
        %v1674 = vmax.f32 %v1672, %v1673
        %v1675 = vsel %vm907, %v1463, -inf
        %v1676 = vmax.f32 %v1674, %v1675
        %v1677 = vsel %vm907, %v1470, -inf
        %v1678 = vmax.f32 %v1676, %v1677
        %v1679 = vsel %vm907, %v1477, -inf
        %v1680 = vmax.f32 %v1678, %v1679
        %v1681 = vsel %vm907, %v1484, -inf
        %v1682 = vmax.f32 %v1680, %v1681
        %v1683 = vsel %vm907, %v1491, -inf
        %v1684 = vmax.f32 %v1682, %v1683
        %v1685 = vsel %vm907, %v1530, -inf
        %v1686 = vsel %vm907, %v1537, -inf
        %v1687 = vmax.f32 %v1685, %v1686
        %v1688 = vsel %vm907, %v1544, -inf
        %v1689 = vmax.f32 %v1687, %v1688
        %v1690 = vsel %vm907, %v1551, -inf
        %v1691 = vmax.f32 %v1689, %v1690
        %v1692 = vsel %vm907, %v1558, -inf
        %v1693 = vmax.f32 %v1691, %v1692
        %v1694 = vsel %vm907, %v1565, -inf
        %v1695 = vmax.f32 %v1693, %v1694
        %v1696 = vsel %vm907, %v1572, -inf
        %v1697 = vmax.f32 %v1695, %v1696
        %v1698 = vsel %vm907, %v1579, -inf
        %v1699 = vmax.f32 %v1697, %v1698
        %v1700 = vsub.f32 %v914, %v1594
        %v1701 = vsub.f32 %v921, %v1594
        %v1702 = vsub.f32 %v928, %v1594
        %v1703 = vsub.f32 %v935, %v1594
        %v1704 = vsub.f32 %v942, %v1594
        %v1705 = vsub.f32 %v949, %v1594
        %v1706 = vsub.f32 %v956, %v1594
        %v1707 = vsub.f32 %v963, %v1594
        %v1708 = vsub.f32 %v1002, %v1609
        %v1709 = vsub.f32 %v1009, %v1609
        %v1710 = vsub.f32 %v1016, %v1609
        %v1711 = vsub.f32 %v1023, %v1609
        %v1712 = vsub.f32 %v1030, %v1609
        %v1713 = vsub.f32 %v1037, %v1609
        %v1714 = vsub.f32 %v1044, %v1609
        %v1715 = vsub.f32 %v1051, %v1609
        %v1716 = vsub.f32 %v1090, %v1624
        %v1717 = vsub.f32 %v1097, %v1624
        %v1718 = vsub.f32 %v1104, %v1624
        %v1719 = vsub.f32 %v1111, %v1624
        %v1720 = vsub.f32 %v1118, %v1624
        %v1721 = vsub.f32 %v1125, %v1624
        %v1722 = vsub.f32 %v1132, %v1624
        %v1723 = vsub.f32 %v1139, %v1624
        %v1724 = vsub.f32 %v1178, %v1639
        %v1725 = vsub.f32 %v1185, %v1639
        %v1726 = vsub.f32 %v1192, %v1639
        %v1727 = vsub.f32 %v1199, %v1639
        %v1728 = vsub.f32 %v1206, %v1639
        %v1729 = vsub.f32 %v1213, %v1639
        %v1730 = vsub.f32 %v1220, %v1639
        %v1731 = vsub.f32 %v1227, %v1639
        %v1732 = vsub.f32 %v1266, %v1654
        %v1733 = vsub.f32 %v1273, %v1654
        %v1734 = vsub.f32 %v1280, %v1654
        %v1735 = vsub.f32 %v1287, %v1654
        %v1736 = vsub.f32 %v1294, %v1654
        %v1737 = vsub.f32 %v1301, %v1654
        %v1738 = vsub.f32 %v1308, %v1654
        %v1739 = vsub.f32 %v1315, %v1654
        %v1740 = vsub.f32 %v1354, %v1669
        %v1741 = vsub.f32 %v1361, %v1669
        %v1742 = vsub.f32 %v1368, %v1669
        %v1743 = vsub.f32 %v1375, %v1669
        %v1744 = vsub.f32 %v1382, %v1669
        %v1745 = vsub.f32 %v1389, %v1669
        %v1746 = vsub.f32 %v1396, %v1669
        %v1747 = vsub.f32 %v1403, %v1669
        %v1748 = vsub.f32 %v1442, %v1684
        %v1749 = vsub.f32 %v1449, %v1684
        %v1750 = vsub.f32 %v1456, %v1684
        %v1751 = vsub.f32 %v1463, %v1684
        %v1752 = vsub.f32 %v1470, %v1684
        %v1753 = vsub.f32 %v1477, %v1684
        %v1754 = vsub.f32 %v1484, %v1684
        %v1755 = vsub.f32 %v1491, %v1684
        %v1756 = vsub.f32 %v1530, %v1699
        %v1757 = vsub.f32 %v1537, %v1699
        %v1758 = vsub.f32 %v1544, %v1699
        %v1759 = vsub.f32 %v1551, %v1699
        %v1760 = vsub.f32 %v1558, %v1699
        %v1761 = vsub.f32 %v1565, %v1699
        %v1762 = vsub.f32 %v1572, %v1699
        %v1763 = vsub.f32 %v1579, %v1699
        %v1764 = vmul.f32 %v1700, 1.442695
        %v1765 = vpow.pop %v1764
        %v1766 = vmul.f32 %v1701, 1.442695
        %v1767 = vpow.pop %v1766
        %v1768 = vmul.f32 %v1702, 1.442695
        %v1769 = vpow.pop %v1768
        %v1770 = vmul.f32 %v1703, 1.442695
        %v1771 = vpow.pop %v1770
        %v1772 = vmul.f32 %v1704, 1.442695
        %v1773 = vpow.pop %v1772
        %v1774 = vmul.f32 %v1705, 1.442695
        %v1775 = vpow.pop %v1774
        %v1776 = vmul.f32 %v1706, 1.442695
        %v1777 = vpow.pop %v1776
        %v1778 = vmul.f32 %v1707, 1.442695
        %v1779 = vpow.pop %v1778
        %v1780 = vmul.f32 %v1708, 1.442695
        %v1781 = vpow.pop %v1780
        %v1782 = vmul.f32 %v1709, 1.442695
        %v1783 = vpow.pop %v1782
        %v1784 = vmul.f32 %v1710, 1.442695
        %v1785 = vpow.pop %v1784
        %v1786 = vmul.f32 %v1711, 1.442695
        %v1787 = vpow.pop %v1786
        %v1788 = vmul.f32 %v1712, 1.442695
        %v1789 = vpow.pop %v1788
        %v1790 = vmul.f32 %v1713, 1.442695
        %v1791 = vpow.pop %v1790
        %v1792 = vmul.f32 %v1714, 1.442695
        %v1793 = vpow.pop %v1792
        %v1794 = vmul.f32 %v1715, 1.442695
        %v1795 = vpow.pop %v1794
        %v1796 = vmul.f32 %v1716, 1.442695
        %v1797 = vpow.pop %v1796
        %v1798 = vmul.f32 %v1717, 1.442695
        %v1799 = vpow.pop %v1798
        %v1800 = vmul.f32 %v1718, 1.442695
        %v1801 = vpow.pop %v1800
        %v1802 = vmul.f32 %v1719, 1.442695
        %v1803 = vpow.pop %v1802
        %v1804 = vmul.f32 %v1720, 1.442695
        %v1805 = vpow.pop %v1804
        %v1806 = vmul.f32 %v1721, 1.442695
        %v1807 = vpow.pop %v1806
        %v1808 = vmul.f32 %v1722, 1.442695
        %v1809 = vpow.pop %v1808
        %v1810 = vmul.f32 %v1723, 1.442695
        %v1811 = vpow.pop %v1810
        %v1812 = vmul.f32 %v1724, 1.442695
        %v1813 = vpow.pop %v1812
        %v1814 = vmul.f32 %v1725, 1.442695
        %v1815 = vpow.pop %v1814
        %v1816 = vmul.f32 %v1726, 1.442695
        %v1817 = vpow.pop %v1816
        %v1818 = vmul.f32 %v1727, 1.442695
        %v1819 = vpow.pop %v1818
        %v1820 = vmul.f32 %v1728, 1.442695
        %v1821 = vpow.pop %v1820
        %v1822 = vmul.f32 %v1729, 1.442695
        %v1823 = vpow.pop %v1822
        %v1824 = vmul.f32 %v1730, 1.442695
        %v1825 = vpow.pop %v1824
        %v1826 = vmul.f32 %v1731, 1.442695
        %v1827 = vpow.pop %v1826
        %v1828 = vmul.f32 %v1732, 1.442695
        %v1829 = vpow.pop %v1828
        %v1830 = vmul.f32 %v1733, 1.442695
        %v1831 = vpow.pop %v1830
        %v1832 = vmul.f32 %v1734, 1.442695
        %v1833 = vpow.pop %v1832
        %v1834 = vmul.f32 %v1735, 1.442695
        %v1835 = vpow.pop %v1834
        %v1836 = vmul.f32 %v1736, 1.442695
        %v1837 = vpow.pop %v1836
        %v1838 = vmul.f32 %v1737, 1.442695
        %v1839 = vpow.pop %v1838
        %v1840 = vmul.f32 %v1738, 1.442695
        %v1841 = vpow.pop %v1840
        %v1842 = vmul.f32 %v1739, 1.442695
        %v1843 = vpow.pop %v1842
        %v1844 = vmul.f32 %v1740, 1.442695
        %v1845 = vpow.pop %v1844
        %v1846 = vmul.f32 %v1741, 1.442695
        %v1847 = vpow.pop %v1846
        %v1848 = vmul.f32 %v1742, 1.442695
        %v1849 = vpow.pop %v1848
        %v1850 = vmul.f32 %v1743, 1.442695
        %v1851 = vpow.pop %v1850
        %v1852 = vmul.f32 %v1744, 1.442695
        %v1853 = vpow.pop %v1852
        %v1854 = vmul.f32 %v1745, 1.442695
        %v1855 = vpow.pop %v1854
        %v1856 = vmul.f32 %v1746, 1.442695
        %v1857 = vpow.pop %v1856
        %v1858 = vmul.f32 %v1747, 1.442695
        %v1859 = vpow.pop %v1858
        %v1860 = vmul.f32 %v1748, 1.442695
        %v1861 = vpow.pop %v1860
        %v1862 = vmul.f32 %v1749, 1.442695
        %v1863 = vpow.pop %v1862
        %v1864 = vmul.f32 %v1750, 1.442695
        %v1865 = vpow.pop %v1864
        %v1866 = vmul.f32 %v1751, 1.442695
        %v1867 = vpow.pop %v1866
        %v1868 = vmul.f32 %v1752, 1.442695
        %v1869 = vpow.pop %v1868
        %v1870 = vmul.f32 %v1753, 1.442695
        %v1871 = vpow.pop %v1870
        %v1872 = vmul.f32 %v1754, 1.442695
        %v1873 = vpow.pop %v1872
        %v1874 = vmul.f32 %v1755, 1.442695
        %v1875 = vpow.pop %v1874
        %v1876 = vmul.f32 %v1756, 1.442695
        %v1877 = vpow.pop %v1876
        %v1878 = vmul.f32 %v1757, 1.442695
        %v1879 = vpow.pop %v1878
        %v1880 = vmul.f32 %v1758, 1.442695
        %v1881 = vpow.pop %v1880
        %v1882 = vmul.f32 %v1759, 1.442695
        %v1883 = vpow.pop %v1882
        %v1884 = vmul.f32 %v1760, 1.442695
        %v1885 = vpow.pop %v1884
        %v1886 = vmul.f32 %v1761, 1.442695
        %v1887 = vpow.pop %v1886
        %v1888 = vmul.f32 %v1762, 1.442695
        %v1889 = vpow.pop %v1888
        %v1890 = vmul.f32 %v1763, 1.442695
        %v1891 = vpow.pop %v1890
        %v1892 = vsel %vm907, %v1765, 0.0
        %v1893 = vsel %vm907, %v1767, 0.0
        %v1894 = vadd.f32 %v1892, %v1893
        %v1895 = vsel %vm907, %v1769, 0.0
        %v1896 = vadd.f32 %v1894, %v1895
        %v1897 = vsel %vm907, %v1771, 0.0
        %v1898 = vadd.f32 %v1896, %v1897
        %v1899 = vsel %vm907, %v1773, 0.0
        %v1900 = vadd.f32 %v1898, %v1899
        %v1901 = vsel %vm907, %v1775, 0.0
        %v1902 = vadd.f32 %v1900, %v1901
        %v1903 = vsel %vm907, %v1777, 0.0
        %v1904 = vadd.f32 %v1902, %v1903
        %v1905 = vsel %vm907, %v1779, 0.0
        %v1906 = vadd.f32 %v1904, %v1905
        %v1907 = vsel %vm907, %v1781, 0.0
        %v1908 = vsel %vm907, %v1783, 0.0
        %v1909 = vadd.f32 %v1907, %v1908
        %v1910 = vsel %vm907, %v1785, 0.0
        %v1911 = vadd.f32 %v1909, %v1910
        %v1912 = vsel %vm907, %v1787, 0.0
        %v1913 = vadd.f32 %v1911, %v1912
        %v1914 = vsel %vm907, %v1789, 0.0
        %v1915 = vadd.f32 %v1913, %v1914
        %v1916 = vsel %vm907, %v1791, 0.0
        %v1917 = vadd.f32 %v1915, %v1916
        %v1918 = vsel %vm907, %v1793, 0.0
        %v1919 = vadd.f32 %v1917, %v1918
        %v1920 = vsel %vm907, %v1795, 0.0
        %v1921 = vadd.f32 %v1919, %v1920
        %v1922 = vsel %vm907, %v1797, 0.0
        %v1923 = vsel %vm907, %v1799, 0.0
        %v1924 = vadd.f32 %v1922, %v1923
        %v1925 = vsel %vm907, %v1801, 0.0
        %v1926 = vadd.f32 %v1924, %v1925
        %v1927 = vsel %vm907, %v1803, 0.0
        %v1928 = vadd.f32 %v1926, %v1927
        %v1929 = vsel %vm907, %v1805, 0.0
        %v1930 = vadd.f32 %v1928, %v1929
        %v1931 = vsel %vm907, %v1807, 0.0
        %v1932 = vadd.f32 %v1930, %v1931
        %v1933 = vsel %vm907, %v1809, 0.0
        %v1934 = vadd.f32 %v1932, %v1933
        %v1935 = vsel %vm907, %v1811, 0.0
        %v1936 = vadd.f32 %v1934, %v1935
        %v1937 = vsel %vm907, %v1813, 0.0
        %v1938 = vsel %vm907, %v1815, 0.0
        %v1939 = vadd.f32 %v1937, %v1938
        %v1940 = vsel %vm907, %v1817, 0.0
        %v1941 = vadd.f32 %v1939, %v1940
        %v1942 = vsel %vm907, %v1819, 0.0
        %v1943 = vadd.f32 %v1941, %v1942
        %v1944 = vsel %vm907, %v1821, 0.0
        %v1945 = vadd.f32 %v1943, %v1944
        %v1946 = vsel %vm907, %v1823, 0.0
        %v1947 = vadd.f32 %v1945, %v1946
        %v1948 = vsel %vm907, %v1825, 0.0
        %v1949 = vadd.f32 %v1947, %v1948
        %v1950 = vsel %vm907, %v1827, 0.0
        %v1951 = vadd.f32 %v1949, %v1950
        %v1952 = vsel %vm907, %v1829, 0.0
        %v1953 = vsel %vm907, %v1831, 0.0
        %v1954 = vadd.f32 %v1952, %v1953
        %v1955 = vsel %vm907, %v1833, 0.0
        %v1956 = vadd.f32 %v1954, %v1955
        %v1957 = vsel %vm907, %v1835, 0.0
        %v1958 = vadd.f32 %v1956, %v1957
        %v1959 = vsel %vm907, %v1837, 0.0
        %v1960 = vadd.f32 %v1958, %v1959
        %v1961 = vsel %vm907, %v1839, 0.0
        %v1962 = vadd.f32 %v1960, %v1961
        %v1963 = vsel %vm907, %v1841, 0.0
        %v1964 = vadd.f32 %v1962, %v1963
        %v1965 = vsel %vm907, %v1843, 0.0
        %v1966 = vadd.f32 %v1964, %v1965
        %v1967 = vsel %vm907, %v1845, 0.0
        %v1968 = vsel %vm907, %v1847, 0.0
        %v1969 = vadd.f32 %v1967, %v1968
        %v1970 = vsel %vm907, %v1849, 0.0
        %v1971 = vadd.f32 %v1969, %v1970
        %v1972 = vsel %vm907, %v1851, 0.0
        %v1973 = vadd.f32 %v1971, %v1972
        %v1974 = vsel %vm907, %v1853, 0.0
        %v1975 = vadd.f32 %v1973, %v1974
        %v1976 = vsel %vm907, %v1855, 0.0
        %v1977 = vadd.f32 %v1975, %v1976
        %v1978 = vsel %vm907, %v1857, 0.0
        %v1979 = vadd.f32 %v1977, %v1978
        %v1980 = vsel %vm907, %v1859, 0.0
        %v1981 = vadd.f32 %v1979, %v1980
        %v1982 = vsel %vm907, %v1861, 0.0
        %v1983 = vsel %vm907, %v1863, 0.0
        %v1984 = vadd.f32 %v1982, %v1983
        %v1985 = vsel %vm907, %v1865, 0.0
        %v1986 = vadd.f32 %v1984, %v1985
        %v1987 = vsel %vm907, %v1867, 0.0
        %v1988 = vadd.f32 %v1986, %v1987
        %v1989 = vsel %vm907, %v1869, 0.0
        %v1990 = vadd.f32 %v1988, %v1989
        %v1991 = vsel %vm907, %v1871, 0.0
        %v1992 = vadd.f32 %v1990, %v1991
        %v1993 = vsel %vm907, %v1873, 0.0
        %v1994 = vadd.f32 %v1992, %v1993
        %v1995 = vsel %vm907, %v1875, 0.0
        %v1996 = vadd.f32 %v1994, %v1995
        %v1997 = vsel %vm907, %v1877, 0.0
        %v1998 = vsel %vm907, %v1879, 0.0
        %v1999 = vadd.f32 %v1997, %v1998
        %v2000 = vsel %vm907, %v1881, 0.0
        %v2001 = vadd.f32 %v1999, %v2000
        %v2002 = vsel %vm907, %v1883, 0.0
        %v2003 = vadd.f32 %v2001, %v2002
        %v2004 = vsel %vm907, %v1885, 0.0
        %v2005 = vadd.f32 %v2003, %v2004
        %v2006 = vsel %vm907, %v1887, 0.0
        %v2007 = vadd.f32 %v2005, %v2006
        %v2008 = vsel %vm907, %v1889, 0.0
        %v2009 = vadd.f32 %v2007, %v2008
        %v2010 = vsel %vm907, %v1891, 0.0
        %v2011 = vadd.f32 %v2009, %v2010
        %v2012 = vrcp.pop %v1906
        %v2013 = vrcp.pop %v1921
        %v2014 = vrcp.pop %v1936
        %v2015 = vrcp.pop %v1951
        %v2016 = vrcp.pop %v1966
        %v2017 = vrcp.pop %v1981
        %v2018 = vrcp.pop %v1996
        %v2019 = vrcp.pop %v2011
        %v2020 = vmul.f32 %v1765, %v2012
        %v2021 = vmul.f32 %v1767, %v2012
        %v2022 = vmul.f32 %v1769, %v2012
        %v2023 = vmul.f32 %v1771, %v2012
        %v2024 = vmul.f32 %v1773, %v2012
        %v2025 = vmul.f32 %v1775, %v2012
        %v2026 = vmul.f32 %v1777, %v2012
        %v2027 = vmul.f32 %v1779, %v2012
        %v2028 = vmul.f32 %v1781, %v2013
        %v2029 = vmul.f32 %v1783, %v2013
        %v2030 = vmul.f32 %v1785, %v2013
        %v2031 = vmul.f32 %v1787, %v2013
        %v2032 = vmul.f32 %v1789, %v2013
        %v2033 = vmul.f32 %v1791, %v2013
        %v2034 = vmul.f32 %v1793, %v2013
        %v2035 = vmul.f32 %v1795, %v2013
        %v2036 = vmul.f32 %v1797, %v2014
        %v2037 = vmul.f32 %v1799, %v2014
        %v2038 = vmul.f32 %v1801, %v2014
        %v2039 = vmul.f32 %v1803, %v2014
        %v2040 = vmul.f32 %v1805, %v2014
        %v2041 = vmul.f32 %v1807, %v2014
        %v2042 = vmul.f32 %v1809, %v2014
        %v2043 = vmul.f32 %v1811, %v2014
        %v2044 = vmul.f32 %v1813, %v2015
        %v2045 = vmul.f32 %v1815, %v2015
        %v2046 = vmul.f32 %v1817, %v2015
        %v2047 = vmul.f32 %v1819, %v2015
        %v2048 = vmul.f32 %v1821, %v2015
        %v2049 = vmul.f32 %v1823, %v2015
        %v2050 = vmul.f32 %v1825, %v2015
        %v2051 = vmul.f32 %v1827, %v2015
        %v2052 = vmul.f32 %v1829, %v2016
        %v2053 = vmul.f32 %v1831, %v2016
        %v2054 = vmul.f32 %v1833, %v2016
        %v2055 = vmul.f32 %v1835, %v2016
        %v2056 = vmul.f32 %v1837, %v2016
        %v2057 = vmul.f32 %v1839, %v2016
        %v2058 = vmul.f32 %v1841, %v2016
        %v2059 = vmul.f32 %v1843, %v2016
        %v2060 = vmul.f32 %v1845, %v2017
        %v2061 = vmul.f32 %v1847, %v2017
        %v2062 = vmul.f32 %v1849, %v2017
        %v2063 = vmul.f32 %v1851, %v2017
        %v2064 = vmul.f32 %v1853, %v2017
        %v2065 = vmul.f32 %v1855, %v2017
        %v2066 = vmul.f32 %v1857, %v2017
        %v2067 = vmul.f32 %v1859, %v2017
        %v2068 = vmul.f32 %v1861, %v2018
        %v2069 = vmul.f32 %v1863, %v2018
        %v2070 = vmul.f32 %v1865, %v2018
        %v2071 = vmul.f32 %v1867, %v2018
        %v2072 = vmul.f32 %v1869, %v2018
        %v2073 = vmul.f32 %v1871, %v2018
        %v2074 = vmul.f32 %v1873, %v2018
        %v2075 = vmul.f32 %v1875, %v2018
        %v2076 = vmul.f32 %v1877, %v2019
        %v2077 = vmul.f32 %v1879, %v2019
        %v2078 = vmul.f32 %v1881, %v2019
        %v2079 = vmul.f32 %v1883, %v2019
        %v2080 = vmul.f32 %v1885, %v2019
        %v2081 = vmul.f32 %v1887, %v2019
        %v2082 = vmul.f32 %v1889, %v2019
        %v2083 = vmul.f32 %v1891, %v2019
        %v2084 = vmul.f32 %v2020, %v611
        %v2085 = vmul.f32 %v2020, %v612
        %v2086 = vmul.f32 %v2020, %v613
        %v2087 = vmul.f32 %v2020, %v614
        %v2088 = vmul.f32 %v2021, %v643
        %v2089 = vmul.f32 %v2021, %v644
        %v2090 = vmul.f32 %v2021, %v645
        %v2091 = vmul.f32 %v2021, %v646
        %v2092 = vmul.f32 %v2022, %v675
        %v2093 = vmul.f32 %v2022, %v676
        %v2094 = vmul.f32 %v2022, %v677
        %v2095 = vmul.f32 %v2022, %v678
        %v2096 = vmul.f32 %v2023, %v707
        %v2097 = vmul.f32 %v2023, %v708
        %v2098 = vmul.f32 %v2023, %v709
        %v2099 = vmul.f32 %v2023, %v710
        %v2100 = vmul.f32 %v2024, %v739
        %v2101 = vmul.f32 %v2024, %v740
        %v2102 = vmul.f32 %v2024, %v741
        %v2103 = vmul.f32 %v2024, %v742
        %v2104 = vmul.f32 %v2025, %v771
        %v2105 = vmul.f32 %v2025, %v772
        %v2106 = vmul.f32 %v2025, %v773
        %v2107 = vmul.f32 %v2025, %v774
        %v2108 = vmul.f32 %v2026, %v803
        %v2109 = vmul.f32 %v2026, %v804
        %v2110 = vmul.f32 %v2026, %v805
        %v2111 = vmul.f32 %v2026, %v806
        %v2112 = vmul.f32 %v2027, %v835
        %v2113 = vmul.f32 %v2027, %v836
        %v2114 = vmul.f32 %v2027, %v837
        %v2115 = vmul.f32 %v2027, %v838
        %v2116 = vsel %vm907, %v2084, 0.0
        %v2117 = vsel %vm907, %v2088, 0.0
        %v2118 = vadd.f32 %v2116, %v2117
        %v2119 = vsel %vm907, %v2092, 0.0
        %v2120 = vadd.f32 %v2118, %v2119
        %v2121 = vsel %vm907, %v2096, 0.0
        %v2122 = vadd.f32 %v2120, %v2121
        %v2123 = vsel %vm907, %v2100, 0.0
        %v2124 = vadd.f32 %v2122, %v2123
        %v2125 = vsel %vm907, %v2104, 0.0
        %v2126 = vadd.f32 %v2124, %v2125
        %v2127 = vsel %vm907, %v2108, 0.0
        %v2128 = vadd.f32 %v2126, %v2127
        %v2129 = vsel %vm907, %v2112, 0.0
        %v2130 = vadd.f32 %v2128, %v2129
        %v2131 = vsel %vm907, %v2085, 0.0
        %v2132 = vsel %vm907, %v2089, 0.0
        %v2133 = vadd.f32 %v2131, %v2132
        %v2134 = vsel %vm907, %v2093, 0.0
        %v2135 = vadd.f32 %v2133, %v2134
        %v2136 = vsel %vm907, %v2097, 0.0
        %v2137 = vadd.f32 %v2135, %v2136
        %v2138 = vsel %vm907, %v2101, 0.0
        %v2139 = vadd.f32 %v2137, %v2138
        %v2140 = vsel %vm907, %v2105, 0.0
        %v2141 = vadd.f32 %v2139, %v2140
        %v2142 = vsel %vm907, %v2109, 0.0
        %v2143 = vadd.f32 %v2141, %v2142
        %v2144 = vsel %vm907, %v2113, 0.0
        %v2145 = vadd.f32 %v2143, %v2144
        %v2146 = vsel %vm907, %v2086, 0.0
        %v2147 = vsel %vm907, %v2090, 0.0
        %v2148 = vadd.f32 %v2146, %v2147
        %v2149 = vsel %vm907, %v2094, 0.0
        %v2150 = vadd.f32 %v2148, %v2149
        %v2151 = vsel %vm907, %v2098, 0.0
        %v2152 = vadd.f32 %v2150, %v2151
        %v2153 = vsel %vm907, %v2102, 0.0
        %v2154 = vadd.f32 %v2152, %v2153
        %v2155 = vsel %vm907, %v2106, 0.0
        %v2156 = vadd.f32 %v2154, %v2155
        %v2157 = vsel %vm907, %v2110, 0.0
        %v2158 = vadd.f32 %v2156, %v2157
        %v2159 = vsel %vm907, %v2114, 0.0
        %v2160 = vadd.f32 %v2158, %v2159
        %v2161 = vsel %vm907, %v2087, 0.0
        %v2162 = vsel %vm907, %v2091, 0.0
        %v2163 = vadd.f32 %v2161, %v2162
        %v2164 = vsel %vm907, %v2095, 0.0
        %v2165 = vadd.f32 %v2163, %v2164
        %v2166 = vsel %vm907, %v2099, 0.0
        %v2167 = vadd.f32 %v2165, %v2166
        %v2168 = vsel %vm907, %v2103, 0.0
        %v2169 = vadd.f32 %v2167, %v2168
        %v2170 = vsel %vm907, %v2107, 0.0
        %v2171 = vadd.f32 %v2169, %v2170
        %v2172 = vsel %vm907, %v2111, 0.0
        %v2173 = vadd.f32 %v2171, %v2172
        %v2174 = vsel %vm907, %v2115, 0.0
        %v2175 = vadd.f32 %v2173, %v2174
        %v2176 = vmul.f32 %v2028, %v611
        %v2177 = vmul.f32 %v2028, %v612
        %v2178 = vmul.f32 %v2028, %v613
        %v2179 = vmul.f32 %v2028, %v614
        %v2180 = vmul.f32 %v2029, %v643
        %v2181 = vmul.f32 %v2029, %v644
        %v2182 = vmul.f32 %v2029, %v645
        %v2183 = vmul.f32 %v2029, %v646
        %v2184 = vmul.f32 %v2030, %v675
        %v2185 = vmul.f32 %v2030, %v676
        %v2186 = vmul.f32 %v2030, %v677
        %v2187 = vmul.f32 %v2030, %v678
        %v2188 = vmul.f32 %v2031, %v707
        %v2189 = vmul.f32 %v2031, %v708
        %v2190 = vmul.f32 %v2031, %v709
        %v2191 = vmul.f32 %v2031, %v710
        %v2192 = vmul.f32 %v2032, %v739
        %v2193 = vmul.f32 %v2032, %v740
        %v2194 = vmul.f32 %v2032, %v741
        %v2195 = vmul.f32 %v2032, %v742
        %v2196 = vmul.f32 %v2033, %v771
        %v2197 = vmul.f32 %v2033, %v772
        %v2198 = vmul.f32 %v2033, %v773
        %v2199 = vmul.f32 %v2033, %v774
        %v2200 = vmul.f32 %v2034, %v803
        %v2201 = vmul.f32 %v2034, %v804
        %v2202 = vmul.f32 %v2034, %v805
        %v2203 = vmul.f32 %v2034, %v806
        %v2204 = vmul.f32 %v2035, %v835
        %v2205 = vmul.f32 %v2035, %v836
        %v2206 = vmul.f32 %v2035, %v837
        %v2207 = vmul.f32 %v2035, %v838
        %v2208 = vsel %vm907, %v2176, 0.0
        %v2209 = vsel %vm907, %v2180, 0.0
        %v2210 = vadd.f32 %v2208, %v2209
        %v2211 = vsel %vm907, %v2184, 0.0
        %v2212 = vadd.f32 %v2210, %v2211
        %v2213 = vsel %vm907, %v2188, 0.0
        %v2214 = vadd.f32 %v2212, %v2213
        %v2215 = vsel %vm907, %v2192, 0.0
        %v2216 = vadd.f32 %v2214, %v2215
        %v2217 = vsel %vm907, %v2196, 0.0
        %v2218 = vadd.f32 %v2216, %v2217
        %v2219 = vsel %vm907, %v2200, 0.0
        %v2220 = vadd.f32 %v2218, %v2219
        %v2221 = vsel %vm907, %v2204, 0.0
        %v2222 = vadd.f32 %v2220, %v2221
        %v2223 = vsel %vm907, %v2177, 0.0
        %v2224 = vsel %vm907, %v2181, 0.0
        %v2225 = vadd.f32 %v2223, %v2224
        %v2226 = vsel %vm907, %v2185, 0.0
        %v2227 = vadd.f32 %v2225, %v2226
        %v2228 = vsel %vm907, %v2189, 0.0
        %v2229 = vadd.f32 %v2227, %v2228
        %v2230 = vsel %vm907, %v2193, 0.0
        %v2231 = vadd.f32 %v2229, %v2230
        %v2232 = vsel %vm907, %v2197, 0.0
        %v2233 = vadd.f32 %v2231, %v2232
        %v2234 = vsel %vm907, %v2201, 0.0
        %v2235 = vadd.f32 %v2233, %v2234
        %v2236 = vsel %vm907, %v2205, 0.0
        %v2237 = vadd.f32 %v2235, %v2236
        %v2238 = vsel %vm907, %v2178, 0.0
        %v2239 = vsel %vm907, %v2182, 0.0
        %v2240 = vadd.f32 %v2238, %v2239
        %v2241 = vsel %vm907, %v2186, 0.0
        %v2242 = vadd.f32 %v2240, %v2241
        %v2243 = vsel %vm907, %v2190, 0.0
        %v2244 = vadd.f32 %v2242, %v2243
        %v2245 = vsel %vm907, %v2194, 0.0
        %v2246 = vadd.f32 %v2244, %v2245
        %v2247 = vsel %vm907, %v2198, 0.0
        %v2248 = vadd.f32 %v2246, %v2247
        %v2249 = vsel %vm907, %v2202, 0.0
        %v2250 = vadd.f32 %v2248, %v2249
        %v2251 = vsel %vm907, %v2206, 0.0
        %v2252 = vadd.f32 %v2250, %v2251
        %v2253 = vsel %vm907, %v2179, 0.0
        %v2254 = vsel %vm907, %v2183, 0.0
        %v2255 = vadd.f32 %v2253, %v2254
        %v2256 = vsel %vm907, %v2187, 0.0
        %v2257 = vadd.f32 %v2255, %v2256
        %v2258 = vsel %vm907, %v2191, 0.0
        %v2259 = vadd.f32 %v2257, %v2258
        %v2260 = vsel %vm907, %v2195, 0.0
        %v2261 = vadd.f32 %v2259, %v2260
        %v2262 = vsel %vm907, %v2199, 0.0
        %v2263 = vadd.f32 %v2261, %v2262
        %v2264 = vsel %vm907, %v2203, 0.0
        %v2265 = vadd.f32 %v2263, %v2264
        %v2266 = vsel %vm907, %v2207, 0.0
        %v2267 = vadd.f32 %v2265, %v2266
        %v2268 = vmul.f32 %v2036, %v611
        %v2269 = vmul.f32 %v2036, %v612
        %v2270 = vmul.f32 %v2036, %v613
        %v2271 = vmul.f32 %v2036, %v614
        %v2272 = vmul.f32 %v2037, %v643
        %v2273 = vmul.f32 %v2037, %v644
        %v2274 = vmul.f32 %v2037, %v645
        %v2275 = vmul.f32 %v2037, %v646
        %v2276 = vmul.f32 %v2038, %v675
        %v2277 = vmul.f32 %v2038, %v676
        %v2278 = vmul.f32 %v2038, %v677
        %v2279 = vmul.f32 %v2038, %v678
        %v2280 = vmul.f32 %v2039, %v707
        %v2281 = vmul.f32 %v2039, %v708
        %v2282 = vmul.f32 %v2039, %v709
        %v2283 = vmul.f32 %v2039, %v710
        %v2284 = vmul.f32 %v2040, %v739
        %v2285 = vmul.f32 %v2040, %v740
        %v2286 = vmul.f32 %v2040, %v741
        %v2287 = vmul.f32 %v2040, %v742
        %v2288 = vmul.f32 %v2041, %v771
        %v2289 = vmul.f32 %v2041, %v772
        %v2290 = vmul.f32 %v2041, %v773
        %v2291 = vmul.f32 %v2041, %v774
        %v2292 = vmul.f32 %v2042, %v803
        %v2293 = vmul.f32 %v2042, %v804
        %v2294 = vmul.f32 %v2042, %v805
        %v2295 = vmul.f32 %v2042, %v806
        %v2296 = vmul.f32 %v2043, %v835
        %v2297 = vmul.f32 %v2043, %v836
        %v2298 = vmul.f32 %v2043, %v837
        %v2299 = vmul.f32 %v2043, %v838
        %v2300 = vsel %vm907, %v2268, 0.0
        %v2301 = vsel %vm907, %v2272, 0.0
        %v2302 = vadd.f32 %v2300, %v2301
        %v2303 = vsel %vm907, %v2276, 0.0
        %v2304 = vadd.f32 %v2302, %v2303
        %v2305 = vsel %vm907, %v2280, 0.0
        %v2306 = vadd.f32 %v2304, %v2305
        %v2307 = vsel %vm907, %v2284, 0.0
        %v2308 = vadd.f32 %v2306, %v2307
        %v2309 = vsel %vm907, %v2288, 0.0
        %v2310 = vadd.f32 %v2308, %v2309
        %v2311 = vsel %vm907, %v2292, 0.0
        %v2312 = vadd.f32 %v2310, %v2311
        %v2313 = vsel %vm907, %v2296, 0.0
        %v2314 = vadd.f32 %v2312, %v2313
        %v2315 = vsel %vm907, %v2269, 0.0
        %v2316 = vsel %vm907, %v2273, 0.0
        %v2317 = vadd.f32 %v2315, %v2316
        %v2318 = vsel %vm907, %v2277, 0.0
        %v2319 = vadd.f32 %v2317, %v2318
        %v2320 = vsel %vm907, %v2281, 0.0
        %v2321 = vadd.f32 %v2319, %v2320
        %v2322 = vsel %vm907, %v2285, 0.0
        %v2323 = vadd.f32 %v2321, %v2322
        %v2324 = vsel %vm907, %v2289, 0.0
        %v2325 = vadd.f32 %v2323, %v2324
        %v2326 = vsel %vm907, %v2293, 0.0
        %v2327 = vadd.f32 %v2325, %v2326
        %v2328 = vsel %vm907, %v2297, 0.0
        %v2329 = vadd.f32 %v2327, %v2328
        %v2330 = vsel %vm907, %v2270, 0.0
        %v2331 = vsel %vm907, %v2274, 0.0
        %v2332 = vadd.f32 %v2330, %v2331
        %v2333 = vsel %vm907, %v2278, 0.0
        %v2334 = vadd.f32 %v2332, %v2333
        %v2335 = vsel %vm907, %v2282, 0.0
        %v2336 = vadd.f32 %v2334, %v2335
        %v2337 = vsel %vm907, %v2286, 0.0
        %v2338 = vadd.f32 %v2336, %v2337
        %v2339 = vsel %vm907, %v2290, 0.0
        %v2340 = vadd.f32 %v2338, %v2339
        %v2341 = vsel %vm907, %v2294, 0.0
        %v2342 = vadd.f32 %v2340, %v2341
        %v2343 = vsel %vm907, %v2298, 0.0
        %v2344 = vadd.f32 %v2342, %v2343
        %v2345 = vsel %vm907, %v2271, 0.0
        %v2346 = vsel %vm907, %v2275, 0.0
        %v2347 = vadd.f32 %v2345, %v2346
        %v2348 = vsel %vm907, %v2279, 0.0
        %v2349 = vadd.f32 %v2347, %v2348
        %v2350 = vsel %vm907, %v2283, 0.0
        %v2351 = vadd.f32 %v2349, %v2350
        %v2352 = vsel %vm907, %v2287, 0.0
        %v2353 = vadd.f32 %v2351, %v2352
        %v2354 = vsel %vm907, %v2291, 0.0
        %v2355 = vadd.f32 %v2353, %v2354
        %v2356 = vsel %vm907, %v2295, 0.0
        %v2357 = vadd.f32 %v2355, %v2356
        %v2358 = vsel %vm907, %v2299, 0.0
        %v2359 = vadd.f32 %v2357, %v2358
        %v2360 = vmul.f32 %v2044, %v611
        %v2361 = vmul.f32 %v2044, %v612
        %v2362 = vmul.f32 %v2044, %v613
        %v2363 = vmul.f32 %v2044, %v614
        %v2364 = vmul.f32 %v2045, %v643
        %v2365 = vmul.f32 %v2045, %v644
        %v2366 = vmul.f32 %v2045, %v645
        %v2367 = vmul.f32 %v2045, %v646
        %v2368 = vmul.f32 %v2046, %v675
        %v2369 = vmul.f32 %v2046, %v676
        %v2370 = vmul.f32 %v2046, %v677
        %v2371 = vmul.f32 %v2046, %v678
        %v2372 = vmul.f32 %v2047, %v707
        %v2373 = vmul.f32 %v2047, %v708
        %v2374 = vmul.f32 %v2047, %v709
        %v2375 = vmul.f32 %v2047, %v710
        %v2376 = vmul.f32 %v2048, %v739
        %v2377 = vmul.f32 %v2048, %v740
        %v2378 = vmul.f32 %v2048, %v741
        %v2379 = vmul.f32 %v2048, %v742
        %v2380 = vmul.f32 %v2049, %v771
        %v2381 = vmul.f32 %v2049, %v772
        %v2382 = vmul.f32 %v2049, %v773
        %v2383 = vmul.f32 %v2049, %v774
        %v2384 = vmul.f32 %v2050, %v803
        %v2385 = vmul.f32 %v2050, %v804
        %v2386 = vmul.f32 %v2050, %v805
        %v2387 = vmul.f32 %v2050, %v806
        %v2388 = vmul.f32 %v2051, %v835
        %v2389 = vmul.f32 %v2051, %v836
        %v2390 = vmul.f32 %v2051, %v837
        %v2391 = vmul.f32 %v2051, %v838
        %v2392 = vsel %vm907, %v2360, 0.0
        %v2393 = vsel %vm907, %v2364, 0.0
        %v2394 = vadd.f32 %v2392, %v2393
        %v2395 = vsel %vm907, %v2368, 0.0
        %v2396 = vadd.f32 %v2394, %v2395
        %v2397 = vsel %vm907, %v2372, 0.0
        %v2398 = vadd.f32 %v2396, %v2397
        %v2399 = vsel %vm907, %v2376, 0.0
        %v2400 = vadd.f32 %v2398, %v2399
        %v2401 = vsel %vm907, %v2380, 0.0
        %v2402 = vadd.f32 %v2400, %v2401
        %v2403 = vsel %vm907, %v2384, 0.0
        %v2404 = vadd.f32 %v2402, %v2403
        %v2405 = vsel %vm907, %v2388, 0.0
        %v2406 = vadd.f32 %v2404, %v2405
        %v2407 = vsel %vm907, %v2361, 0.0
        %v2408 = vsel %vm907, %v2365, 0.0
        %v2409 = vadd.f32 %v2407, %v2408
        %v2410 = vsel %vm907, %v2369, 0.0
        %v2411 = vadd.f32 %v2409, %v2410
        %v2412 = vsel %vm907, %v2373, 0.0
        %v2413 = vadd.f32 %v2411, %v2412
        %v2414 = vsel %vm907, %v2377, 0.0
        %v2415 = vadd.f32 %v2413, %v2414
        %v2416 = vsel %vm907, %v2381, 0.0
        %v2417 = vadd.f32 %v2415, %v2416
        %v2418 = vsel %vm907, %v2385, 0.0
        %v2419 = vadd.f32 %v2417, %v2418
        %v2420 = vsel %vm907, %v2389, 0.0
        %v2421 = vadd.f32 %v2419, %v2420
        %v2422 = vsel %vm907, %v2362, 0.0
        %v2423 = vsel %vm907, %v2366, 0.0
        %v2424 = vadd.f32 %v2422, %v2423
        %v2425 = vsel %vm907, %v2370, 0.0
        %v2426 = vadd.f32 %v2424, %v2425
        %v2427 = vsel %vm907, %v2374, 0.0
        %v2428 = vadd.f32 %v2426, %v2427
        %v2429 = vsel %vm907, %v2378, 0.0
        %v2430 = vadd.f32 %v2428, %v2429
        %v2431 = vsel %vm907, %v2382, 0.0
        %v2432 = vadd.f32 %v2430, %v2431
        %v2433 = vsel %vm907, %v2386, 0.0
        %v2434 = vadd.f32 %v2432, %v2433
        %v2435 = vsel %vm907, %v2390, 0.0
        %v2436 = vadd.f32 %v2434, %v2435
        %v2437 = vsel %vm907, %v2363, 0.0
        %v2438 = vsel %vm907, %v2367, 0.0
        %v2439 = vadd.f32 %v2437, %v2438
        %v2440 = vsel %vm907, %v2371, 0.0
        %v2441 = vadd.f32 %v2439, %v2440
        %v2442 = vsel %vm907, %v2375, 0.0
        %v2443 = vadd.f32 %v2441, %v2442
        %v2444 = vsel %vm907, %v2379, 0.0
        %v2445 = vadd.f32 %v2443, %v2444
        %v2446 = vsel %vm907, %v2383, 0.0
        %v2447 = vadd.f32 %v2445, %v2446
        %v2448 = vsel %vm907, %v2387, 0.0
        %v2449 = vadd.f32 %v2447, %v2448
        %v2450 = vsel %vm907, %v2391, 0.0
        %v2451 = vadd.f32 %v2449, %v2450
        %v2452 = vmul.f32 %v2052, %v611
        %v2453 = vmul.f32 %v2052, %v612
        %v2454 = vmul.f32 %v2052, %v613
        %v2455 = vmul.f32 %v2052, %v614
        %v2456 = vmul.f32 %v2053, %v643
        %v2457 = vmul.f32 %v2053, %v644
        %v2458 = vmul.f32 %v2053, %v645
        %v2459 = vmul.f32 %v2053, %v646
        %v2460 = vmul.f32 %v2054, %v675
        %v2461 = vmul.f32 %v2054, %v676
        %v2462 = vmul.f32 %v2054, %v677
        %v2463 = vmul.f32 %v2054, %v678
        %v2464 = vmul.f32 %v2055, %v707
        %v2465 = vmul.f32 %v2055, %v708
        %v2466 = vmul.f32 %v2055, %v709
        %v2467 = vmul.f32 %v2055, %v710
        %v2468 = vmul.f32 %v2056, %v739
        %v2469 = vmul.f32 %v2056, %v740
        %v2470 = vmul.f32 %v2056, %v741
        %v2471 = vmul.f32 %v2056, %v742
        %v2472 = vmul.f32 %v2057, %v771
        %v2473 = vmul.f32 %v2057, %v772
        %v2474 = vmul.f32 %v2057, %v773
        %v2475 = vmul.f32 %v2057, %v774
        %v2476 = vmul.f32 %v2058, %v803
        %v2477 = vmul.f32 %v2058, %v804
        %v2478 = vmul.f32 %v2058, %v805
        %v2479 = vmul.f32 %v2058, %v806
        %v2480 = vmul.f32 %v2059, %v835
        %v2481 = vmul.f32 %v2059, %v836
        %v2482 = vmul.f32 %v2059, %v837
        %v2483 = vmul.f32 %v2059, %v838
        %v2484 = vsel %vm907, %v2452, 0.0
        %v2485 = vsel %vm907, %v2456, 0.0
        %v2486 = vadd.f32 %v2484, %v2485
        %v2487 = vsel %vm907, %v2460, 0.0
        %v2488 = vadd.f32 %v2486, %v2487
        %v2489 = vsel %vm907, %v2464, 0.0
        %v2490 = vadd.f32 %v2488, %v2489
        %v2491 = vsel %vm907, %v2468, 0.0
        %v2492 = vadd.f32 %v2490, %v2491
        %v2493 = vsel %vm907, %v2472, 0.0
        %v2494 = vadd.f32 %v2492, %v2493
        %v2495 = vsel %vm907, %v2476, 0.0
        %v2496 = vadd.f32 %v2494, %v2495
        %v2497 = vsel %vm907, %v2480, 0.0
        %v2498 = vadd.f32 %v2496, %v2497
        %v2499 = vsel %vm907, %v2453, 0.0
        %v2500 = vsel %vm907, %v2457, 0.0
        %v2501 = vadd.f32 %v2499, %v2500
        %v2502 = vsel %vm907, %v2461, 0.0
        %v2503 = vadd.f32 %v2501, %v2502
        %v2504 = vsel %vm907, %v2465, 0.0
        %v2505 = vadd.f32 %v2503, %v2504
        %v2506 = vsel %vm907, %v2469, 0.0
        %v2507 = vadd.f32 %v2505, %v2506
        %v2508 = vsel %vm907, %v2473, 0.0
        %v2509 = vadd.f32 %v2507, %v2508
        %v2510 = vsel %vm907, %v2477, 0.0
        %v2511 = vadd.f32 %v2509, %v2510
        %v2512 = vsel %vm907, %v2481, 0.0
        %v2513 = vadd.f32 %v2511, %v2512
        %v2514 = vsel %vm907, %v2454, 0.0
        %v2515 = vsel %vm907, %v2458, 0.0
        %v2516 = vadd.f32 %v2514, %v2515
        %v2517 = vsel %vm907, %v2462, 0.0
        %v2518 = vadd.f32 %v2516, %v2517
        %v2519 = vsel %vm907, %v2466, 0.0
        %v2520 = vadd.f32 %v2518, %v2519
        %v2521 = vsel %vm907, %v2470, 0.0
        %v2522 = vadd.f32 %v2520, %v2521
        %v2523 = vsel %vm907, %v2474, 0.0
        %v2524 = vadd.f32 %v2522, %v2523
        %v2525 = vsel %vm907, %v2478, 0.0
        %v2526 = vadd.f32 %v2524, %v2525
        %v2527 = vsel %vm907, %v2482, 0.0
        %v2528 = vadd.f32 %v2526, %v2527
        %v2529 = vsel %vm907, %v2455, 0.0
        %v2530 = vsel %vm907, %v2459, 0.0
        %v2531 = vadd.f32 %v2529, %v2530
        %v2532 = vsel %vm907, %v2463, 0.0
        %v2533 = vadd.f32 %v2531, %v2532
        %v2534 = vsel %vm907, %v2467, 0.0
        %v2535 = vadd.f32 %v2533, %v2534
        %v2536 = vsel %vm907, %v2471, 0.0
        %v2537 = vadd.f32 %v2535, %v2536
        %v2538 = vsel %vm907, %v2475, 0.0
        %v2539 = vadd.f32 %v2537, %v2538
        %v2540 = vsel %vm907, %v2479, 0.0
        %v2541 = vadd.f32 %v2539, %v2540
        %v2542 = vsel %vm907, %v2483, 0.0
        %v2543 = vadd.f32 %v2541, %v2542
        %v2544 = vmul.f32 %v2060, %v611
        %v2545 = vmul.f32 %v2060, %v612
        %v2546 = vmul.f32 %v2060, %v613
        %v2547 = vmul.f32 %v2060, %v614
        %v2548 = vmul.f32 %v2061, %v643
        %v2549 = vmul.f32 %v2061, %v644
        %v2550 = vmul.f32 %v2061, %v645
        %v2551 = vmul.f32 %v2061, %v646
        %v2552 = vmul.f32 %v2062, %v675
        %v2553 = vmul.f32 %v2062, %v676
        %v2554 = vmul.f32 %v2062, %v677
        %v2555 = vmul.f32 %v2062, %v678
        %v2556 = vmul.f32 %v2063, %v707
        %v2557 = vmul.f32 %v2063, %v708
        %v2558 = vmul.f32 %v2063, %v709
        %v2559 = vmul.f32 %v2063, %v710
        %v2560 = vmul.f32 %v2064, %v739
        %v2561 = vmul.f32 %v2064, %v740
        %v2562 = vmul.f32 %v2064, %v741
        %v2563 = vmul.f32 %v2064, %v742
        %v2564 = vmul.f32 %v2065, %v771
        %v2565 = vmul.f32 %v2065, %v772
        %v2566 = vmul.f32 %v2065, %v773
        %v2567 = vmul.f32 %v2065, %v774
        %v2568 = vmul.f32 %v2066, %v803
        %v2569 = vmul.f32 %v2066, %v804
        %v2570 = vmul.f32 %v2066, %v805
        %v2571 = vmul.f32 %v2066, %v806
        %v2572 = vmul.f32 %v2067, %v835
        %v2573 = vmul.f32 %v2067, %v836
        %v2574 = vmul.f32 %v2067, %v837
        %v2575 = vmul.f32 %v2067, %v838
        %v2576 = vsel %vm907, %v2544, 0.0
        %v2577 = vsel %vm907, %v2548, 0.0
        %v2578 = vadd.f32 %v2576, %v2577
        %v2579 = vsel %vm907, %v2552, 0.0
        %v2580 = vadd.f32 %v2578, %v2579
        %v2581 = vsel %vm907, %v2556, 0.0
        %v2582 = vadd.f32 %v2580, %v2581
        %v2583 = vsel %vm907, %v2560, 0.0
        %v2584 = vadd.f32 %v2582, %v2583
        %v2585 = vsel %vm907, %v2564, 0.0
        %v2586 = vadd.f32 %v2584, %v2585
        %v2587 = vsel %vm907, %v2568, 0.0
        %v2588 = vadd.f32 %v2586, %v2587
        %v2589 = vsel %vm907, %v2572, 0.0
        %v2590 = vadd.f32 %v2588, %v2589
        %v2591 = vsel %vm907, %v2545, 0.0
        %v2592 = vsel %vm907, %v2549, 0.0
        %v2593 = vadd.f32 %v2591, %v2592
        %v2594 = vsel %vm907, %v2553, 0.0
        %v2595 = vadd.f32 %v2593, %v2594
        %v2596 = vsel %vm907, %v2557, 0.0
        %v2597 = vadd.f32 %v2595, %v2596
        %v2598 = vsel %vm907, %v2561, 0.0
        %v2599 = vadd.f32 %v2597, %v2598
        %v2600 = vsel %vm907, %v2565, 0.0
        %v2601 = vadd.f32 %v2599, %v2600
        %v2602 = vsel %vm907, %v2569, 0.0
        %v2603 = vadd.f32 %v2601, %v2602
        %v2604 = vsel %vm907, %v2573, 0.0
        %v2605 = vadd.f32 %v2603, %v2604
        %v2606 = vsel %vm907, %v2546, 0.0
        %v2607 = vsel %vm907, %v2550, 0.0
        %v2608 = vadd.f32 %v2606, %v2607
        %v2609 = vsel %vm907, %v2554, 0.0
        %v2610 = vadd.f32 %v2608, %v2609
        %v2611 = vsel %vm907, %v2558, 0.0
        %v2612 = vadd.f32 %v2610, %v2611
        %v2613 = vsel %vm907, %v2562, 0.0
        %v2614 = vadd.f32 %v2612, %v2613
        %v2615 = vsel %vm907, %v2566, 0.0
        %v2616 = vadd.f32 %v2614, %v2615
        %v2617 = vsel %vm907, %v2570, 0.0
        %v2618 = vadd.f32 %v2616, %v2617
        %v2619 = vsel %vm907, %v2574, 0.0
        %v2620 = vadd.f32 %v2618, %v2619
        %v2621 = vsel %vm907, %v2547, 0.0
        %v2622 = vsel %vm907, %v2551, 0.0
        %v2623 = vadd.f32 %v2621, %v2622
        %v2624 = vsel %vm907, %v2555, 0.0
        %v2625 = vadd.f32 %v2623, %v2624
        %v2626 = vsel %vm907, %v2559, 0.0
        %v2627 = vadd.f32 %v2625, %v2626
        %v2628 = vsel %vm907, %v2563, 0.0
        %v2629 = vadd.f32 %v2627, %v2628
        %v2630 = vsel %vm907, %v2567, 0.0
        %v2631 = vadd.f32 %v2629, %v2630
        %v2632 = vsel %vm907, %v2571, 0.0
        %v2633 = vadd.f32 %v2631, %v2632
        %v2634 = vsel %vm907, %v2575, 0.0
        %v2635 = vadd.f32 %v2633, %v2634
        %v2636 = vmul.f32 %v2068, %v611
        %v2637 = vmul.f32 %v2068, %v612
        %v2638 = vmul.f32 %v2068, %v613
        %v2639 = vmul.f32 %v2068, %v614
        %v2640 = vmul.f32 %v2069, %v643
        %v2641 = vmul.f32 %v2069, %v644
        %v2642 = vmul.f32 %v2069, %v645
        %v2643 = vmul.f32 %v2069, %v646
        %v2644 = vmul.f32 %v2070, %v675
        %v2645 = vmul.f32 %v2070, %v676
        %v2646 = vmul.f32 %v2070, %v677
        %v2647 = vmul.f32 %v2070, %v678
        %v2648 = vmul.f32 %v2071, %v707
        %v2649 = vmul.f32 %v2071, %v708
        %v2650 = vmul.f32 %v2071, %v709
        %v2651 = vmul.f32 %v2071, %v710
        %v2652 = vmul.f32 %v2072, %v739
        %v2653 = vmul.f32 %v2072, %v740
        %v2654 = vmul.f32 %v2072, %v741
        %v2655 = vmul.f32 %v2072, %v742
        %v2656 = vmul.f32 %v2073, %v771
        %v2657 = vmul.f32 %v2073, %v772
        %v2658 = vmul.f32 %v2073, %v773
        %v2659 = vmul.f32 %v2073, %v774
        %v2660 = vmul.f32 %v2074, %v803
        %v2661 = vmul.f32 %v2074, %v804
        %v2662 = vmul.f32 %v2074, %v805
        %v2663 = vmul.f32 %v2074, %v806
        %v2664 = vmul.f32 %v2075, %v835
        %v2665 = vmul.f32 %v2075, %v836
        %v2666 = vmul.f32 %v2075, %v837
        %v2667 = vmul.f32 %v2075, %v838
        %v2668 = vsel %vm907, %v2636, 0.0
        %v2669 = vsel %vm907, %v2640, 0.0
        %v2670 = vadd.f32 %v2668, %v2669
        %v2671 = vsel %vm907, %v2644, 0.0
        %v2672 = vadd.f32 %v2670, %v2671
        %v2673 = vsel %vm907, %v2648, 0.0
        %v2674 = vadd.f32 %v2672, %v2673
        %v2675 = vsel %vm907, %v2652, 0.0
        %v2676 = vadd.f32 %v2674, %v2675
        %v2677 = vsel %vm907, %v2656, 0.0
        %v2678 = vadd.f32 %v2676, %v2677
        %v2679 = vsel %vm907, %v2660, 0.0
        %v2680 = vadd.f32 %v2678, %v2679
        %v2681 = vsel %vm907, %v2664, 0.0
        %v2682 = vadd.f32 %v2680, %v2681
        %v2683 = vsel %vm907, %v2637, 0.0
        %v2684 = vsel %vm907, %v2641, 0.0
        %v2685 = vadd.f32 %v2683, %v2684
        %v2686 = vsel %vm907, %v2645, 0.0
        %v2687 = vadd.f32 %v2685, %v2686
        %v2688 = vsel %vm907, %v2649, 0.0
        %v2689 = vadd.f32 %v2687, %v2688
        %v2690 = vsel %vm907, %v2653, 0.0
        %v2691 = vadd.f32 %v2689, %v2690
        %v2692 = vsel %vm907, %v2657, 0.0
        %v2693 = vadd.f32 %v2691, %v2692
        %v2694 = vsel %vm907, %v2661, 0.0
        %v2695 = vadd.f32 %v2693, %v2694
        %v2696 = vsel %vm907, %v2665, 0.0
        %v2697 = vadd.f32 %v2695, %v2696
        %v2698 = vsel %vm907, %v2638, 0.0
        %v2699 = vsel %vm907, %v2642, 0.0
        %v2700 = vadd.f32 %v2698, %v2699
        %v2701 = vsel %vm907, %v2646, 0.0
        %v2702 = vadd.f32 %v2700, %v2701
        %v2703 = vsel %vm907, %v2650, 0.0
        %v2704 = vadd.f32 %v2702, %v2703
        %v2705 = vsel %vm907, %v2654, 0.0
        %v2706 = vadd.f32 %v2704, %v2705
        %v2707 = vsel %vm907, %v2658, 0.0
        %v2708 = vadd.f32 %v2706, %v2707
        %v2709 = vsel %vm907, %v2662, 0.0
        %v2710 = vadd.f32 %v2708, %v2709
        %v2711 = vsel %vm907, %v2666, 0.0
        %v2712 = vadd.f32 %v2710, %v2711
        %v2713 = vsel %vm907, %v2639, 0.0
        %v2714 = vsel %vm907, %v2643, 0.0
        %v2715 = vadd.f32 %v2713, %v2714
        %v2716 = vsel %vm907, %v2647, 0.0
        %v2717 = vadd.f32 %v2715, %v2716
        %v2718 = vsel %vm907, %v2651, 0.0
        %v2719 = vadd.f32 %v2717, %v2718
        %v2720 = vsel %vm907, %v2655, 0.0
        %v2721 = vadd.f32 %v2719, %v2720
        %v2722 = vsel %vm907, %v2659, 0.0
        %v2723 = vadd.f32 %v2721, %v2722
        %v2724 = vsel %vm907, %v2663, 0.0
        %v2725 = vadd.f32 %v2723, %v2724
        %v2726 = vsel %vm907, %v2667, 0.0
        %v2727 = vadd.f32 %v2725, %v2726
        %v2728 = vmul.f32 %v2076, %v611
        %v2729 = vmul.f32 %v2076, %v612
        %v2730 = vmul.f32 %v2076, %v613
        %v2731 = vmul.f32 %v2076, %v614
        %v2732 = vmul.f32 %v2077, %v643
        %v2733 = vmul.f32 %v2077, %v644
        %v2734 = vmul.f32 %v2077, %v645
        %v2735 = vmul.f32 %v2077, %v646
        %v2736 = vmul.f32 %v2078, %v675
        %v2737 = vmul.f32 %v2078, %v676
        %v2738 = vmul.f32 %v2078, %v677
        %v2739 = vmul.f32 %v2078, %v678
        %v2740 = vmul.f32 %v2079, %v707
        %v2741 = vmul.f32 %v2079, %v708
        %v2742 = vmul.f32 %v2079, %v709
        %v2743 = vmul.f32 %v2079, %v710
        %v2744 = vmul.f32 %v2080, %v739
        %v2745 = vmul.f32 %v2080, %v740
        %v2746 = vmul.f32 %v2080, %v741
        %v2747 = vmul.f32 %v2080, %v742
        %v2748 = vmul.f32 %v2081, %v771
        %v2749 = vmul.f32 %v2081, %v772
        %v2750 = vmul.f32 %v2081, %v773
        %v2751 = vmul.f32 %v2081, %v774
        %v2752 = vmul.f32 %v2082, %v803
        %v2753 = vmul.f32 %v2082, %v804
        %v2754 = vmul.f32 %v2082, %v805
        %v2755 = vmul.f32 %v2082, %v806
        %v2756 = vmul.f32 %v2083, %v835
        %v2757 = vmul.f32 %v2083, %v836
        %v2758 = vmul.f32 %v2083, %v837
        %v2759 = vmul.f32 %v2083, %v838
        %v2760 = vsel %vm907, %v2728, 0.0
        %v2761 = vsel %vm907, %v2732, 0.0
        %v2762 = vadd.f32 %v2760, %v2761
        %v2763 = vsel %vm907, %v2736, 0.0
        %v2764 = vadd.f32 %v2762, %v2763
        %v2765 = vsel %vm907, %v2740, 0.0
        %v2766 = vadd.f32 %v2764, %v2765
        %v2767 = vsel %vm907, %v2744, 0.0
        %v2768 = vadd.f32 %v2766, %v2767
        %v2769 = vsel %vm907, %v2748, 0.0
        %v2770 = vadd.f32 %v2768, %v2769
        %v2771 = vsel %vm907, %v2752, 0.0
        %v2772 = vadd.f32 %v2770, %v2771
        %v2773 = vsel %vm907, %v2756, 0.0
        %v2774 = vadd.f32 %v2772, %v2773
        %v2775 = vsel %vm907, %v2729, 0.0
        %v2776 = vsel %vm907, %v2733, 0.0
        %v2777 = vadd.f32 %v2775, %v2776
        %v2778 = vsel %vm907, %v2737, 0.0
        %v2779 = vadd.f32 %v2777, %v2778
        %v2780 = vsel %vm907, %v2741, 0.0
        %v2781 = vadd.f32 %v2779, %v2780
        %v2782 = vsel %vm907, %v2745, 0.0
        %v2783 = vadd.f32 %v2781, %v2782
        %v2784 = vsel %vm907, %v2749, 0.0
        %v2785 = vadd.f32 %v2783, %v2784
        %v2786 = vsel %vm907, %v2753, 0.0
        %v2787 = vadd.f32 %v2785, %v2786
        %v2788 = vsel %vm907, %v2757, 0.0
        %v2789 = vadd.f32 %v2787, %v2788
        %v2790 = vsel %vm907, %v2730, 0.0
        %v2791 = vsel %vm907, %v2734, 0.0
        %v2792 = vadd.f32 %v2790, %v2791
        %v2793 = vsel %vm907, %v2738, 0.0
        %v2794 = vadd.f32 %v2792, %v2793
        %v2795 = vsel %vm907, %v2742, 0.0
        %v2796 = vadd.f32 %v2794, %v2795
        %v2797 = vsel %vm907, %v2746, 0.0
        %v2798 = vadd.f32 %v2796, %v2797
        %v2799 = vsel %vm907, %v2750, 0.0
        %v2800 = vadd.f32 %v2798, %v2799
        %v2801 = vsel %vm907, %v2754, 0.0
        %v2802 = vadd.f32 %v2800, %v2801
        %v2803 = vsel %vm907, %v2758, 0.0
        %v2804 = vadd.f32 %v2802, %v2803
        %v2805 = vsel %vm907, %v2731, 0.0
        %v2806 = vsel %vm907, %v2735, 0.0
        %v2807 = vadd.f32 %v2805, %v2806
        %v2808 = vsel %vm907, %v2739, 0.0
        %v2809 = vadd.f32 %v2807, %v2808
        %v2810 = vsel %vm907, %v2743, 0.0
        %v2811 = vadd.f32 %v2809, %v2810
        %v2812 = vsel %vm907, %v2747, 0.0
        %v2813 = vadd.f32 %v2811, %v2812
        %v2814 = vsel %vm907, %v2751, 0.0
        %v2815 = vadd.f32 %v2813, %v2814
        %v2816 = vsel %vm907, %v2755, 0.0
        %v2817 = vadd.f32 %v2815, %v2816
        %v2818 = vsel %vm907, %v2759, 0.0
        %v2819 = vadd.f32 %v2817, %v2818
        %2820 = vxpose.xlu0.b32.start [1/16] %v2130, 128
        %2821 = vxpose.xlu0.b32.cont [2/16] %v2145, 128
        %2822 = vxpose.xlu0.b32.cont [3/16] %v2160, 128
        %2823 = vxpose.xlu0.b32.cont [4/16] %v2175, 128
        %2824 = vxpose.xlu0.b32.cont [5/16] 0.0, 128
        %2825 = vxpose.xlu0.b32.cont [6/16] 0.0, 128
        %2826 = vxpose.xlu0.b32.cont [7/16] 0.0, 128
        %2827 = vxpose.xlu0.b32.cont [8/16] 0.0, 128
        %2828 = vxpose.xlu0.b32.cont [9/16] 0.0, 128
        %2829 = vxpose.xlu0.b32.cont [10/16] 0.0, 128
        %2830 = vxpose.xlu0.b32.cont [11/16] 0.0, 128
        %2831 = vxpose.xlu0.b32.cont [12/16] 0.0, 128
        %2832 = vxpose.xlu0.b32.cont [13/16] 0.0, 128
        %2833 = vxpose.xlu0.b32.cont [14/16] 0.0, 128
        %2834 = vxpose.xlu0.b32.cont [15/16] 0.0, 128
        %2835 = vxpose.xlu0.b32.end [16/16] 0.0, 128
        %v2836 = vpop.trf.xlu0
        %v2837 = vpop.trf.xlu0
        %v2838 = vpop.trf.xlu0
        %v2839 = vpop.trf.xlu0
        %v2840 = vpop.trf.xlu0
        %v2841 = vpop.trf.xlu0
        %v2842 = vpop.trf.xlu0
        %v2843 = vpop.trf.xlu0
        %v2844 = vpop.trf.xlu0
        %v2845 = vpop.trf.xlu0
        %v2846 = vpop.trf.xlu0
        %v2847 = vpop.trf.xlu0
        %v2848 = vpop.trf.xlu0
        %v2849 = vpop.trf.xlu0
        %v2850 = vpop.trf.xlu0
        %v2851 = vpop.trf.xlu0
        %2852 = vxpose.xlu0.b32.start [1/16] %v2222, 128
        %2853 = vxpose.xlu0.b32.cont [2/16] %v2237, 128
        %2854 = vxpose.xlu0.b32.cont [3/16] %v2252, 128
        %2855 = vxpose.xlu0.b32.cont [4/16] %v2267, 128
        %2856 = vxpose.xlu0.b32.cont [5/16] 0.0, 128
        %2857 = vxpose.xlu0.b32.cont [6/16] 0.0, 128
        %2858 = vxpose.xlu0.b32.cont [7/16] 0.0, 128
        %2859 = vxpose.xlu0.b32.cont [8/16] 0.0, 128
        %2860 = vxpose.xlu0.b32.cont [9/16] 0.0, 128
        %2861 = vxpose.xlu0.b32.cont [10/16] 0.0, 128
        %2862 = vxpose.xlu0.b32.cont [11/16] 0.0, 128
        %2863 = vxpose.xlu0.b32.cont [12/16] 0.0, 128
        %2864 = vxpose.xlu0.b32.cont [13/16] 0.0, 128
        %2865 = vxpose.xlu0.b32.cont [14/16] 0.0, 128
        %2866 = vxpose.xlu0.b32.cont [15/16] 0.0, 128
        %2867 = vxpose.xlu0.b32.end [16/16] 0.0, 128
        %v2868 = vpop.trf.xlu0
        %v2869 = vpop.trf.xlu0
        %v2870 = vpop.trf.xlu0
        %v2871 = vpop.trf.xlu0
        %v2872 = vpop.trf.xlu0
        %v2873 = vpop.trf.xlu0
        %v2874 = vpop.trf.xlu0
        %v2875 = vpop.trf.xlu0
        %v2876 = vpop.trf.xlu0
        %v2877 = vpop.trf.xlu0
        %v2878 = vpop.trf.xlu0
        %v2879 = vpop.trf.xlu0
        %v2880 = vpop.trf.xlu0
        %v2881 = vpop.trf.xlu0
        %v2882 = vpop.trf.xlu0
        %v2883 = vpop.trf.xlu0
        %2884 = vxpose.xlu0.b32.start [1/16] %v2314, 128
        %2885 = vxpose.xlu0.b32.cont [2/16] %v2329, 128
        %2886 = vxpose.xlu0.b32.cont [3/16] %v2344, 128
        %2887 = vxpose.xlu0.b32.cont [4/16] %v2359, 128
        %2888 = vxpose.xlu0.b32.cont [5/16] 0.0, 128
        %2889 = vxpose.xlu0.b32.cont [6/16] 0.0, 128
        %2890 = vxpose.xlu0.b32.cont [7/16] 0.0, 128
        %2891 = vxpose.xlu0.b32.cont [8/16] 0.0, 128
        %2892 = vxpose.xlu0.b32.cont [9/16] 0.0, 128
        %2893 = vxpose.xlu0.b32.cont [10/16] 0.0, 128
        %2894 = vxpose.xlu0.b32.cont [11/16] 0.0, 128
        %2895 = vxpose.xlu0.b32.cont [12/16] 0.0, 128
        %2896 = vxpose.xlu0.b32.cont [13/16] 0.0, 128
        %2897 = vxpose.xlu0.b32.cont [14/16] 0.0, 128
        %2898 = vxpose.xlu0.b32.cont [15/16] 0.0, 128
        %2899 = vxpose.xlu0.b32.end [16/16] 0.0, 128
        %v2900 = vpop.trf.xlu0
        %v2901 = vpop.trf.xlu0
        %v2902 = vpop.trf.xlu0
        %v2903 = vpop.trf.xlu0
        %v2904 = vpop.trf.xlu0
        %v2905 = vpop.trf.xlu0
        %v2906 = vpop.trf.xlu0
        %v2907 = vpop.trf.xlu0
        %v2908 = vpop.trf.xlu0
        %v2909 = vpop.trf.xlu0
        %v2910 = vpop.trf.xlu0
        %v2911 = vpop.trf.xlu0
        %v2912 = vpop.trf.xlu0
        %v2913 = vpop.trf.xlu0
        %v2914 = vpop.trf.xlu0
        %v2915 = vpop.trf.xlu0
        %2916 = vxpose.xlu0.b32.start [1/16] %v2406, 128
        %2917 = vxpose.xlu0.b32.cont [2/16] %v2421, 128
        %2918 = vxpose.xlu0.b32.cont [3/16] %v2436, 128
        %2919 = vxpose.xlu0.b32.cont [4/16] %v2451, 128
        %2920 = vxpose.xlu0.b32.cont [5/16] 0.0, 128
        %2921 = vxpose.xlu0.b32.cont [6/16] 0.0, 128
        %2922 = vxpose.xlu0.b32.cont [7/16] 0.0, 128
        %2923 = vxpose.xlu0.b32.cont [8/16] 0.0, 128
        %2924 = vxpose.xlu0.b32.cont [9/16] 0.0, 128
        %2925 = vxpose.xlu0.b32.cont [10/16] 0.0, 128
        %2926 = vxpose.xlu0.b32.cont [11/16] 0.0, 128
        %2927 = vxpose.xlu0.b32.cont [12/16] 0.0, 128
        %2928 = vxpose.xlu0.b32.cont [13/16] 0.0, 128
        %2929 = vxpose.xlu0.b32.cont [14/16] 0.0, 128
        %2930 = vxpose.xlu0.b32.cont [15/16] 0.0, 128
        %2931 = vxpose.xlu0.b32.end [16/16] 0.0, 128
        %v2932 = vpop.trf.xlu0
        %v2933 = vpop.trf.xlu0
        %v2934 = vpop.trf.xlu0
        %v2935 = vpop.trf.xlu0
        %v2936 = vpop.trf.xlu0
        %v2937 = vpop.trf.xlu0
        %v2938 = vpop.trf.xlu0
        %v2939 = vpop.trf.xlu0
        %v2940 = vpop.trf.xlu0
        %v2941 = vpop.trf.xlu0
        %v2942 = vpop.trf.xlu0
        %v2943 = vpop.trf.xlu0
        %v2944 = vpop.trf.xlu0
        %v2945 = vpop.trf.xlu0
        %v2946 = vpop.trf.xlu0
        %v2947 = vpop.trf.xlu0
        %2948 = vxpose.xlu0.b32.start [1/16] %v2498, 128
        %2949 = vxpose.xlu0.b32.cont [2/16] %v2513, 128
        %2950 = vxpose.xlu0.b32.cont [3/16] %v2528, 128
        %2951 = vxpose.xlu0.b32.cont [4/16] %v2543, 128
        %2952 = vxpose.xlu0.b32.cont [5/16] 0.0, 128
        %2953 = vxpose.xlu0.b32.cont [6/16] 0.0, 128
        %2954 = vxpose.xlu0.b32.cont [7/16] 0.0, 128
        %2955 = vxpose.xlu0.b32.cont [8/16] 0.0, 128
        %2956 = vxpose.xlu0.b32.cont [9/16] 0.0, 128
        %2957 = vxpose.xlu0.b32.cont [10/16] 0.0, 128
        %2958 = vxpose.xlu0.b32.cont [11/16] 0.0, 128
        %2959 = vxpose.xlu0.b32.cont [12/16] 0.0, 128
        %2960 = vxpose.xlu0.b32.cont [13/16] 0.0, 128
        %2961 = vxpose.xlu0.b32.cont [14/16] 0.0, 128
        %2962 = vxpose.xlu0.b32.cont [15/16] 0.0, 128
        %2963 = vxpose.xlu0.b32.end [16/16] 0.0, 128
        %v2964 = vpop.trf.xlu0
        %v2965 = vpop.trf.xlu0
        %v2966 = vpop.trf.xlu0
        %v2967 = vpop.trf.xlu0
        %v2968 = vpop.trf.xlu0
        %v2969 = vpop.trf.xlu0
        %v2970 = vpop.trf.xlu0
        %v2971 = vpop.trf.xlu0
        %v2972 = vpop.trf.xlu0
        %v2973 = vpop.trf.xlu0
        %v2974 = vpop.trf.xlu0
        %v2975 = vpop.trf.xlu0
        %v2976 = vpop.trf.xlu0
        %v2977 = vpop.trf.xlu0
        %v2978 = vpop.trf.xlu0
        %v2979 = vpop.trf.xlu0
        %2980 = vxpose.xlu0.b32.start [1/16] %v2590, 128
        %2981 = vxpose.xlu0.b32.cont [2/16] %v2605, 128
        %2982 = vxpose.xlu0.b32.cont [3/16] %v2620, 128
        %2983 = vxpose.xlu0.b32.cont [4/16] %v2635, 128
        %2984 = vxpose.xlu0.b32.cont [5/16] 0.0, 128
        %2985 = vxpose.xlu0.b32.cont [6/16] 0.0, 128
        %2986 = vxpose.xlu0.b32.cont [7/16] 0.0, 128
        %2987 = vxpose.xlu0.b32.cont [8/16] 0.0, 128
        %2988 = vxpose.xlu0.b32.cont [9/16] 0.0, 128
        %2989 = vxpose.xlu0.b32.cont [10/16] 0.0, 128
        %2990 = vxpose.xlu0.b32.cont [11/16] 0.0, 128
        %2991 = vxpose.xlu0.b32.cont [12/16] 0.0, 128
        %2992 = vxpose.xlu0.b32.cont [13/16] 0.0, 128
        %2993 = vxpose.xlu0.b32.cont [14/16] 0.0, 128
        %2994 = vxpose.xlu0.b32.cont [15/16] 0.0, 128
        %2995 = vxpose.xlu0.b32.end [16/16] 0.0, 128
        %v2996 = vpop.trf.xlu0
        %v2997 = vpop.trf.xlu0
        %v2998 = vpop.trf.xlu0
        %v2999 = vpop.trf.xlu0
        %v3000 = vpop.trf.xlu0
        %v3001 = vpop.trf.xlu0
        %v3002 = vpop.trf.xlu0
        %v3003 = vpop.trf.xlu0
        %v3004 = vpop.trf.xlu0
        %v3005 = vpop.trf.xlu0
        %v3006 = vpop.trf.xlu0
        %v3007 = vpop.trf.xlu0
        %v3008 = vpop.trf.xlu0
        %v3009 = vpop.trf.xlu0
        %v3010 = vpop.trf.xlu0
        %v3011 = vpop.trf.xlu0
        %3012 = vxpose.xlu0.b32.start [1/16] %v2682, 128
        %3013 = vxpose.xlu0.b32.cont [2/16] %v2697, 128
        %3014 = vxpose.xlu0.b32.cont [3/16] %v2712, 128
        %3015 = vxpose.xlu0.b32.cont [4/16] %v2727, 128
        %3016 = vxpose.xlu0.b32.cont [5/16] 0.0, 128
        %3017 = vxpose.xlu0.b32.cont [6/16] 0.0, 128
        %3018 = vxpose.xlu0.b32.cont [7/16] 0.0, 128
        %3019 = vxpose.xlu0.b32.cont [8/16] 0.0, 128
        %3020 = vxpose.xlu0.b32.cont [9/16] 0.0, 128
        %3021 = vxpose.xlu0.b32.cont [10/16] 0.0, 128
        %3022 = vxpose.xlu0.b32.cont [11/16] 0.0, 128
        %3023 = vxpose.xlu0.b32.cont [12/16] 0.0, 128
        %3024 = vxpose.xlu0.b32.cont [13/16] 0.0, 128
        %3025 = vxpose.xlu0.b32.cont [14/16] 0.0, 128
        %3026 = vxpose.xlu0.b32.cont [15/16] 0.0, 128
        %3027 = vxpose.xlu0.b32.end [16/16] 0.0, 128
        %v3028 = vpop.trf.xlu0
        %v3029 = vpop.trf.xlu0
        %v3030 = vpop.trf.xlu0
        %v3031 = vpop.trf.xlu0
        %v3032 = vpop.trf.xlu0
        %v3033 = vpop.trf.xlu0
        %v3034 = vpop.trf.xlu0
        %v3035 = vpop.trf.xlu0
        %v3036 = vpop.trf.xlu0
        %v3037 = vpop.trf.xlu0
        %v3038 = vpop.trf.xlu0
        %v3039 = vpop.trf.xlu0
        %v3040 = vpop.trf.xlu0
        %v3041 = vpop.trf.xlu0
        %v3042 = vpop.trf.xlu0
        %v3043 = vpop.trf.xlu0
        %3044 = vxpose.xlu0.b32.start [1/16] %v2774, 128
        %3045 = vxpose.xlu0.b32.cont [2/16] %v2789, 128
        %3046 = vxpose.xlu0.b32.cont [3/16] %v2804, 128
        %3047 = vxpose.xlu0.b32.cont [4/16] %v2819, 128
        %3048 = vxpose.xlu0.b32.cont [5/16] 0.0, 128
        %3049 = vxpose.xlu0.b32.cont [6/16] 0.0, 128
        %3050 = vxpose.xlu0.b32.cont [7/16] 0.0, 128
        %3051 = vxpose.xlu0.b32.cont [8/16] 0.0, 128
        %3052 = vxpose.xlu0.b32.cont [9/16] 0.0, 128
        %3053 = vxpose.xlu0.b32.cont [10/16] 0.0, 128
        %3054 = vxpose.xlu0.b32.cont [11/16] 0.0, 128
        %3055 = vxpose.xlu0.b32.cont [12/16] 0.0, 128
        %3056 = vxpose.xlu0.b32.cont [13/16] 0.0, 128
        %3057 = vxpose.xlu0.b32.cont [14/16] 0.0, 128
        %3058 = vxpose.xlu0.b32.cont [15/16] 0.0, 128
        %3059 = vxpose.xlu0.b32.end [16/16] 0.0, 128
        %v3060 = vpop.trf.xlu0
        %v3061 = vpop.trf.xlu0
        %v3062 = vpop.trf.xlu0
        %v3063 = vpop.trf.xlu0
        %v3064 = vpop.trf.xlu0
        %v3065 = vpop.trf.xlu0
        %v3066 = vpop.trf.xlu0
        %v3067 = vpop.trf.xlu0
        %v3068 = vpop.trf.xlu0
        %v3069 = vpop.trf.xlu0
        %v3070 = vpop.trf.xlu0
        %v3071 = vpop.trf.xlu0
        %v3072 = vpop.trf.xlu0
        %v3073 = vpop.trf.xlu0
        %v3074 = vpop.trf.xlu0
        %v3075 = vpop.trf.xlu0
        %v3076 = vpack.c.bf16 %v2837, %v2836
        %v3077 = vpack.c.bf16 %v2869, %v2868
        %v3078 = vpack.c.bf16 %v2901, %v2900
        %v3079 = vpack.c.bf16 %v2933, %v2932
        %v3080 = vpack.c.bf16 %v2965, %v2964
        %v3081 = vpack.c.bf16 %v2997, %v2996
        %v3082 = vpack.c.bf16 %v3029, %v3028
        %v3083 = vpack.c.bf16 %v3061, %v3060
        %v3084 = vld [vmem:[#allocation8] sm:$0xf]
        %v3085 = vld [vmem:[#allocation8 + $0x4] sm:$0xf]
        %v3086 = vld [vmem:[#allocation8 + $0x8] sm:$0xf]
        %v3087 = vld [vmem:[#allocation8 + $0xc] sm:$0xf]
        %v3088 = vld [vmem:[#allocation10] sm:$0x1]
        %v3090 = vlaneseq
        %v3091 = vshrl.u32 %v3090, 7
        %v3092 = vsub.s32 0, %v3091
        %v3093 = vrot.slane %v3088, %v3092
        %v3099 = vunpack.c.l.b16 %v3084
        %v3100 = vunpack.c.l.b16 %v3085
        %v3101 = vunpack.c.l.b16 %v3086
        %v3102 = vunpack.c.l.b16 %v3087
        %v3103 = vpack.c.b16 %v3100, %v3099
        %v3104 = vpack.c.b16 %v3102, %v3101
        %v3108 = vsel %vm465, %v3076, 0
        %v3111 = vsel %vm465, %v3077, 0
        %v3114 = vsel %vm465, %v3078, 0
        %v3117 = vsel %vm465, %v3079, 0
        %v3120 = vsel %vm465, %v3080, 0
        %v3123 = vsel %vm465, %v3081, 0
        %v3126 = vsel %vm465, %v3082, 0
        %v3129 = vsel %vm465, %v3083, 0
        %3131 = vmatprep.subr.bf16.mxu0 0
        %3132 = vmatpush1.bf16.msra.mxu0 %v3103
        %3133 = vmatprep.subr.bf16.mxu0 0
        %3134 = vmatpush1.bf16.msra.mxu0 %v3104
        %3135 = vmatprep.subr.bf16.mxu0 0
        %3136 = vmatpush1.bf16.msra.mxu0 0
        %3137 = vmatprep.subr.bf16.mxu0 0
        %3138 = vmatpush1.bf16.msra.mxu0 0
        %3139 = vmatprep.subr.bf16.mxu0 0
        %3140 = vmatpush1.bf16.msra.mxu0 0
        %3141 = vmatprep.subr.bf16.mxu0 0
        %3142 = vmatpush1.bf16.msra.mxu0 0
        %3143 = vmatprep.subr.bf16.mxu0 0
        %3144 = vmatpush1.bf16.msra.mxu0 0
        %3145 = vmatprep.subr.bf16.mxu0 0
        %3146 = vmatpush1.bf16.msra.mxu0 0
        %3147 = vmatprep.subr.bf16.mxu0 0
        %3148 = vmatpush1.bf16.msra.mxu0 0
        %3149 = vmatprep.subr.bf16.mxu0 0
        %3150 = vmatpush1.bf16.msra.mxu0 0
        %3151 = vmatprep.subr.bf16.mxu0 0
        %3152 = vmatpush1.bf16.msra.mxu0 0
        %3153 = vmatprep.subr.bf16.mxu0 0
        %3154 = vmatpush1.bf16.msra.mxu0 0
        %3155 = vmatprep.subr.bf16.mxu0 0
        %3156 = vmatpush1.bf16.msra.mxu0 0
        %3157 = vmatprep.subr.bf16.mxu0 0
        %3158 = vmatpush1.bf16.msra.mxu0 0
        %3159 = vmatprep.subr.bf16.mxu0 0
        %3160 = vmatpush1.bf16.msra.mxu0 0
        %3161 = vmatprep.subr.bf16.mxu0 0
        %3162 = vmatpush1.bf16.msra.mxu0 0
        %3163 = vmatprep.mubr.bf16.mxu0 0
        %3164 = vmatmul.mubr.bf16.gmra.mrb[0].mxu0 %v3108
        %v3165 = vpop.f32.mrb[0].mxu0
        %v3166 = vadd.f32 %v3093, %v3165
        %v3167 = vpop.f32.mrb[0].mxu0
        %v3168 = vpop.f32.mrb[0].mxu0
        %v3169 = vadd.f32 %v3093, %v3168
        %v3170 = vpop.f32.mrb[0].mxu0
        %3171 = vmatprep.mubr.bf16.mxu0 0
        %3172 = vmatmul.mubr.bf16.gmra.mrb[0].mxu0 %v3111
        %v3173 = vpop.f32.mrb[0].mxu0
        %v3174 = vadd.f32 %v3093, %v3173
        %v3175 = vpop.f32.mrb[0].mxu0
        %v3176 = vpop.f32.mrb[0].mxu0
        %v3177 = vadd.f32 %v3093, %v3176
        %v3178 = vpop.f32.mrb[0].mxu0
        %3179 = vmatprep.mubr.bf16.mxu0 0
        %3180 = vmatmul.mubr.bf16.gmra.mrb[0].mxu0 %v3114
        %v3181 = vpop.f32.mrb[0].mxu0
        %v3182 = vadd.f32 %v3093, %v3181
        %v3183 = vpop.f32.mrb[0].mxu0
        %v3184 = vpop.f32.mrb[0].mxu0
        %v3185 = vadd.f32 %v3093, %v3184
        %v3186 = vpop.f32.mrb[0].mxu0
        %3187 = vmatprep.mubr.bf16.mxu0 0
        %3188 = vmatmul.mubr.bf16.gmra.mrb[0].mxu0 %v3117
        %v3189 = vpop.f32.mrb[0].mxu0
        %v3190 = vadd.f32 %v3093, %v3189
        %v3191 = vpop.f32.mrb[0].mxu0
        %v3192 = vpop.f32.mrb[0].mxu0
        %v3193 = vadd.f32 %v3093, %v3192
        %v3194 = vpop.f32.mrb[0].mxu0
        %3195 = vmatprep.mubr.bf16.mxu0 0
        %3196 = vmatmul.mubr.bf16.gmra.mrb[0].mxu0 %v3120
        %v3197 = vpop.f32.mrb[0].mxu0
        %v3198 = vadd.f32 %v3093, %v3197
        %v3199 = vpop.f32.mrb[0].mxu0
        %v3200 = vpop.f32.mrb[0].mxu0
        %v3201 = vadd.f32 %v3093, %v3200
        %v3202 = vpop.f32.mrb[0].mxu0
        %3203 = vmatprep.mubr.bf16.mxu0 0
        %3204 = vmatmul.mubr.bf16.gmra.mrb[0].mxu0 %v3123
        %v3205 = vpop.f32.mrb[0].mxu0
        %v3206 = vadd.f32 %v3093, %v3205
        %v3207 = vpop.f32.mrb[0].mxu0
        %v3208 = vpop.f32.mrb[0].mxu0
        %v3209 = vadd.f32 %v3093, %v3208
        %v3210 = vpop.f32.mrb[0].mxu0
        %3211 = vmatprep.mubr.bf16.mxu0 0
        %3212 = vmatmul.mubr.bf16.gmra.mrb[0].mxu0 %v3126
        %v3213 = vpop.f32.mrb[0].mxu0
        %v3214 = vadd.f32 %v3093, %v3213
        %v3215 = vpop.f32.mrb[0].mxu0
        %v3216 = vpop.f32.mrb[0].mxu0
        %v3217 = vadd.f32 %v3093, %v3216
        %v3218 = vpop.f32.mrb[0].mxu0
        %3219 = vmatprep.mubr.bf16.mxu0 0
        %3220 = vmatmul.mubr.bf16.gmra.mrb[0].mxu0 %v3129
        %v3221 = vpop.f32.mrb[0].mxu0
        %v3222 = vadd.f32 %v3093, %v3221
        %v3223 = vpop.f32.mrb[0].mxu0
        %v3224 = vpop.f32.mrb[0].mxu0
        %v3225 = vadd.f32 %v3093, %v3224
        %v3226 = vpop.f32.mrb[0].mxu0
        %3227 = vdwg.mxu0
        %3228 = vst.msk [vmem:[%s314] sm:$0xff] %vm465, %v3166
        %3229 = vst.msk [vmem:[%s314 + $0x8] sm:$0xff] %vm465, %v3169
        %3230 = vst.msk [vmem:[%s314 + $0x10] sm:$0xff] %vm465, %v3174
        %3231 = vst.msk [vmem:[%s314 + $0x18] sm:$0xff] %vm465, %v3177
        %3232 = vst.msk [vmem:[%s314 + $0x20] sm:$0xff] %vm465, %v3182
        %3233 = vst.msk [vmem:[%s314 + $0x28] sm:$0xff] %vm465, %v3185
        %3234 = vst.msk [vmem:[%s314 + $0x30] sm:$0xff] %vm465, %v3190
        %3235 = vst.msk [vmem:[%s314 + $0x38] sm:$0xff] %vm465, %v3193
        %3236 = vst.msk [vmem:[%s314 + $0x40] sm:$0xff] %vm465, %v3198
        %3237 = vst.msk [vmem:[%s314 + $0x48] sm:$0xff] %vm465, %v3201
        %3238 = vst.msk [vmem:[%s314 + $0x50] sm:$0xff] %vm465, %v3206
        %3239 = vst.msk [vmem:[%s314 + $0x58] sm:$0xff] %vm465, %v3209
        %3240 = vst.msk [vmem:[%s314 + $0x60] sm:$0xff] %vm465, %v3214
        %3241 = vst.msk [vmem:[%s314 + $0x68] sm:$0xff] %vm465, %v3217
        %3242 = vst.msk [vmem:[%s314 + $0x70] sm:$0xff] %vm465, %v3222
        %3243 = vst.msk [vmem:[%s314 + $0x78] sm:$0xff] %vm465, %v3225
        %s3244 = sand.u32 %s158, 1
        %s3245 = scalar_lea.sflag [#allocation4], %s3244
        %s3246 = sand.u32 %s158, 1
        %s3247 = smul.addr %s3246, 128
        %s3248 = scalar_lea.vmem [#allocation11], %s3247
        // Predicated region
        $region61: #{tpu_custom_call.1} parent=39 // pred_check
          %p3249 = pneg %p168
        $region62: #{tpu_custom_call.1} parent=39 // pred_check_branch
          %3251 = sbr.rel (%p3249) target = $region64
        $region63: #{tpu_custom_call.1} parent=39 // pred_region
          %s3252 = smul.u32 2, %s29
          %s3254 = ssub.s32 2048, 2048
          %3255 = vsyncadd %s3245, %s3254
          %s3256 = smul.addr %s28, 16
          %s3257 = sadd.s32 %s3252, %s3256
          %s3258 = smul.addr %s3257, 128
          %s3259 = scalar_lea.hbm %s5, %s3258
          %s3260 = sshll.u32 %s3248, 4
          %s3261 = int_to_ptr.vmem [resolvable:$true] %s3260
          %3266 = dma.vmem_to_hbm [thread:$0]  %s3261, 2048, %s3259, %s3245, 128, 128, 8
        $region64: #{tpu_custom_call.1} parent=39 // pred_fallthru
          _
      $region40: #{tpu_custom_call.1} parent=5 // pred_fallthru
        _
      %p3267 = scmp.le.s32.totalorder 2, %s19
      // Predicated region
      $region65: #{tpu_custom_call.1} parent=5 // pred_check
        %p3268 = pneg %p3267
      $region66: #{tpu_custom_call.1} parent=5 // pred_check_branch
        %3270 = sbr.rel (%p3268) target = $region68
      $region67: #{tpu_custom_call.1} parent=5 // pred_region
        %s3271 = ssub.s32 %s19, 2
        // Predicated region
        $region69: #{tpu_custom_call.1} parent=67 // pred_check
          %p3272 = pneg %p174
        $region70: #{tpu_custom_call.1} parent=67 // pred_check_branch
          %3274 = sbr.rel (%p3272) target = $region72
        $region71: #{tpu_custom_call.1} parent=67 // pred_region
          %s3275 = sand.u32 %s159, 1
          %s3276 = scalar_lea.sflag [#allocation4], %s3275
          %s3277 = sand.u32 %s159, 1
          %s3278 = smul.addr %s3277, 128
          %s3279 = scalar_lea.vmem [#allocation11], %s3278
          %3280 = dma.done %s3276, 2048
        $region72: #{tpu_custom_call.1} parent=67 // pred_fallthru
          _
      $region68: #{tpu_custom_call.1} parent=5 // pred_fallthru
        _
    $region6: #{tpu_custom_call.1} parent=1 // loop_footer
      %s23 = sadd.s32 1, %s19
    $region7: #{tpu_custom_call.1} parent=1 // loop_footer_branch
      %18 = sbr.rel target = $region3
    $region8: #{tpu_custom_call.1} parent=1 // loop_exit
      _
    %3281 = vsyncpa [#allocation3], 1
    %s3282 = scalar_lea.sflag [#allocation3], 1
    %3283 = vsyncpa %s3282, 1
    %3284 = vsyncpa [#allocation6], 1
    %s3285 = scalar_lea.sflag [#allocation6], 1
    %3286 = vsyncpa %s3285, 1
    %3287 = vsyncpa [#allocation9], 1
    %3288 = vsyncpa [#allocation4], 1
    %s3289 = scalar_lea.sflag [#allocation4], 1
    %3290 = vsyncpa %s3289, 1

// kernel: tpu_custom_call.1
$region0: #{tpu_custom_call.1}
  #allocation0 [shape = 'u32[]', space=smem, size = 0x4, offset = 0x4, fixed_abs, tag = 'smem constant byte address 0x4 - core index']
  #allocation1 [shape = 'u32[144,128]{1,0:T(1,128)}', space=vmem, size = 0x12000, scoped, tag = 'internal scratch']
  %s0 = inlined_call_operand.hbm [shape: f32[8,32], index: 0, kind: input, shape index: {}]
  %s1 = inlined_call_operand.hbm [shape: f32[2,8,16,32], index: 1, kind: input, shape index: {}]
  %s2 = inlined_call_operand.hbm [shape: bf16[32,96], index: 2, kind: input, shape index: {}]
  %s3 = inlined_call_operand.hbm [shape: bf16[32,32], index: 3, kind: input, shape index: {}]
  %s4 = inlined_call_operand.hbm [shape: f32[1,32], index: 4, kind: input, shape index: {}]
  %s5 = inlined_call_operand.hbm [shape: f32[2,8,16,32], index: 5, kind: output, shape index: {}]
  %s6 = sld [smem:[#allocation0]]
  $region73: #{tpu_custom_call.1} parent=0
    _
  %s8 = ssub.s32 1, %s6
  %s9 = scalar_select 0, %s8, %s6
  $region1: #{tpu_custom_call.1} parent=0
    #allocation2 [shape = 'u8[4096]{0}', space=vmem, size = 0x1000, scoped, tag = 'input window, operand 0, single buffered']
    #allocation3 [shape = 's32[2]{0}', space=sflag, size = 0x8, scoped, tag = 'scoped memory for tpu_custom_call.1']
    #allocation4 [shape = 's32[2]{0}', space=sflag, size = 0x8, scoped, tag = 'scoped memory for tpu_custom_call.1']
    #allocation5 [shape = 'u8[131072]{0}', space=vmem, size = 0x20000, scoped, tag = 'input window, operand 1']
    #allocation6 [shape = 's32[2]{0}', space=sflag, size = 0x8, scoped, tag = 'scoped memory for tpu_custom_call.1']
    #allocation7 [shape = 'u8[8192]{0}', space=vmem, size = 0x2000, scoped, tag = 'input window, operand 2, single buffered']
    #allocation8 [shape = 'u8[8192]{0}', space=vmem, size = 0x2000, scoped, tag = 'input window, operand 3, single buffered']
    #allocation9 [shape = 's32[1]{0}', space=sflag, size = 0x4, scoped, tag = 'scoped memory for tpu_custom_call.1']
    #allocation10 [shape = 'u8[512]{0}', space=vmem, size = 0x400, scoped, tag = 'input window, operand 4, single buffered']
    #allocation11 [shape = 'u8[131072]{0}', space=vmem, size = 0x20000, scoped, tag = 'output window, operand 0']
    %10 = vsyncpa [#allocation3], 0
    %11 = vsyncpa [#allocation6], 0
    %s12 = scalar_lea.sflag [#allocation6], 1
    %13 = vsyncpa %s12, 0
    %14 = vsyncpa [#allocation9], 0
    %15 = vsyncpa [#allocation4], 0
    %s16 = scalar_lea.sflag [#allocation4], 1
    %17 = vsyncpa %s16, 0
    loop: start=0, step=1, limit=4
    $region2: #{tpu_custom_call.1} parent=1 // loop_pre_header
      _
    $region3: #{tpu_custom_call.1} parent=1 // loop_header
      %s19 = sphi 0, %s23
      %p20 = scmp.ge.s32.totalorder %s19, 4
      %s26 = sphi 0, %s38
      %s27 = sphi 0, %s34
      %s28 = sphi 0, %s26
      %s29 = sphi 0, %s27
      %s30 = sphi 0, %s28
      %s31 = sphi 0, %s29
      %s39 = sphi 0, %s39
      %s41 = sphi 0, %s39
      %s42 = sphi 0, %s41
      %s56 = sphi 0, %s42
      %s64 = sphi 0, %s66
      %s67 = sphi 0, %s64
      %s68 = sphi 0, %s67
      %s84 = sphi 0, %s68
      %s88 = sphi 0, %s88
      %s90 = sphi 0, %s88
      %s91 = sphi 0, %s90
      %s105 = sphi 0, %s91
      %s109 = sphi 0, %s109
      %s111 = sphi 0, %s109
      %s112 = sphi 0, %s111
      %s126 = sphi 0, %s112
      %s130 = sphi 0, %s130
      %s132 = sphi 0, %s130
      %s133 = sphi 0, %s132
      %s147 = sphi 0, %s133
      %s155 = sphi 0, %s157
      %s158 = sphi 0, %s155
      %s159 = sphi 0, %s158
      %s175 = sphi 0, %s159
    $region4: #{tpu_custom_call.1} parent=1 // loop_header_branch
      %22 = sbr.rel (%p20) target = $region8
    $region5: #{tpu_custom_call.1} parent=1 // loop_body
      %s24 = ssub.s32 %s19, 1
      %s25 = ssub.s32 %s19, 2
      %s32 = sadd.s32 1, %s27
      %p33 = scmp.ge.s32.totalorder %s32, 1
      %s34 = scalar_select %p33, 0, %s32
      %s35 = sadd.s32 1, %s26
      %s36 = scalar_select %p33, %s35, %s26
      %p37 = scmp.ge.s32.totalorder %s36, 2
      %s38 = scalar_select %p37, 0, %s36
      %s40 = sadd.s32 %s39, 1
      %p43 = scmp.eq.s32.totalorder %s19, 1
      %p44 = scmp.ne.s32.totalorder %s39, %s41
      %p45 = scmp.eq.s32.totalorder %s19, 0
      %p46 = por %p44, %p45
      %p47 = scmp.ne.s32.totalorder %s39, %s41
      %p48 = scmp.eq.s32.totalorder %s24, 1
      %p49 = por %p47, %p48
      %p50 = scmp.ne.s32.totalorder %s41, %s42
      %p51 = scmp.eq.s32.totalorder %s24, 0
      %p52 = por %p50, %p51
      %p53 = scmp.ne.s32.totalorder %s41, %s42
      %p54 = scmp.eq.s32.totalorder %s25, 1
      %p55 = por %p53, %p54
      %p57 = scmp.ne.s32.totalorder %s42, %s56
      %p58 = scmp.eq.s32.totalorder %s25, 0
      %p59 = por %p57, %p58
      %s60 = ssub.s32 %s26, %s38
      %s61 = ssub.s32 %s27, %s34
      %s62 = sor.u32 %s60, %s61
      %p63 = scmp.eq.s32.totalorder %s62, 0
      %s65 = sadd.s32 %s64, 1
      %s66 = scalar_select %p63, %s64, %s65
      %p69 = pneg %p63
      %p70 = scmp.eq.s32.totalorder %s19, 1
      %p71 = por %p69, %p70
      %p72 = scmp.ne.s32.totalorder %s64, %s67
      %p73 = scmp.eq.s32.totalorder %s19, 0
      %p74 = por %p72, %p73
      %p75 = scmp.ne.s32.totalorder %s64, %s67
      %p76 = scmp.eq.s32.totalorder %s24, 1
      %p77 = por %p75, %p76
      %p78 = scmp.ne.s32.totalorder %s67, %s68
      %p79 = scmp.eq.s32.totalorder %s24, 0
      %p80 = por %p78, %p79
      %p81 = scmp.ne.s32.totalorder %s67, %s68
      %p82 = scmp.eq.s32.totalorder %s25, 1
      %p83 = por %p81, %p82
      %p85 = scmp.ne.s32.totalorder %s68, %s84
      %p86 = scmp.eq.s32.totalorder %s25, 0
      %p87 = por %p85, %p86
      %s89 = sadd.s32 %s88, 1
      %p92 = scmp.eq.s32.totalorder %s19, 1
      %p93 = scmp.ne.s32.totalorder %s88, %s90
      %p94 = scmp.eq.s32.totalorder %s19, 0
      %p95 = por %p93, %p94
      %p96 = scmp.ne.s32.totalorder %s88, %s90
      %p97 = scmp.eq.s32.totalorder %s24, 1
      %p98 = por %p96, %p97
      %p99 = scmp.ne.s32.totalorder %s90, %s91
      %p100 = scmp.eq.s32.totalorder %s24, 0
      %p101 = por %p99, %p100
      %p102 = scmp.ne.s32.totalorder %s90, %s91
      %p103 = scmp.eq.s32.totalorder %s25, 1
      %p104 = por %p102, %p103
      %p106 = scmp.ne.s32.totalorder %s91, %s105
      %p107 = scmp.eq.s32.totalorder %s25, 0
      %p108 = por %p106, %p107
      %s110 = sadd.s32 %s109, 1
      %p113 = scmp.eq.s32.totalorder %s19, 1
      %p114 = scmp.ne.s32.totalorder %s109, %s111
      %p115 = scmp.eq.s32.totalorder %s19, 0
      %p116 = por %p114, %p115
      %p117 = scmp.ne.s32.totalorder %s109, %s111
      %p118 = scmp.eq.s32.totalorder %s24, 1
      %p119 = por %p117, %p118
      %p120 = scmp.ne.s32.totalorder %s111, %s112
      %p121 = scmp.eq.s32.totalorder %s24, 0
      %p122 = por %p120, %p121
      %p123 = scmp.ne.s32.totalorder %s111, %s112
      %p124 = scmp.eq.s32.totalorder %s25, 1
      %p125 = por %p123, %p124
      %p127 = scmp.ne.s32.totalorder %s112, %s126
      %p128 = scmp.eq.s32.totalorder %s25, 0
      %p129 = por %p127, %p128
      %s131 = sadd.s32 %s130, 1
      %p134 = scmp.eq.s32.totalorder %s19, 1
      %p135 = scmp.ne.s32.totalorder %s130, %s132
      %p136 = scmp.eq.s32.totalorder %s19, 0
      %p137 = por %p135, %p136
      %p138 = scmp.ne.s32.totalorder %s130, %s132
      %p139 = scmp.eq.s32.totalorder %s24, 1
      %p140 = por %p138, %p139
      %p141 = scmp.ne.s32.totalorder %s132, %s133
      %p142 = scmp.eq.s32.totalorder %s24, 0
      %p143 = por %p141, %p142
      %p144 = scmp.ne.s32.totalorder %s132, %s133
      %p145 = scmp.eq.s32.totalorder %s25, 1
      %p146 = por %p144, %p145
      %p148 = scmp.ne.s32.totalorder %s133, %s147
      %p149 = scmp.eq.s32.totalorder %s25, 0
      %p150 = por %p148, %p149
      %s151 = ssub.s32 %s26, %s38
      %s152 = ssub.s32 %s27, %s34
      %s153 = sor.u32 %s151, %s152
      %p154 = scmp.eq.s32.totalorder %s153, 0
      %s156 = sadd.s32 %s155, 1
      %s157 = scalar_select %p154, %s155, %s156
      %p160 = pneg %p154
      %p161 = scmp.eq.s32.totalorder %s19, 1
      %p162 = por %p160, %p161
      %p163 = scmp.ne.s32.totalorder %s155, %s158
      %p164 = scmp.eq.s32.totalorder %s19, 0
      %p165 = por %p163, %p164
      %p166 = scmp.ne.s32.totalorder %s155, %s158
      %p167 = scmp.eq.s32.totalorder %s24, 1
      %p168 = por %p166, %p167
      %p169 = scmp.ne.s32.totalorder %s158, %s159
      %p170 = scmp.eq.s32.totalorder %s24, 0
      %p171 = por %p169, %p170
      %p172 = scmp.ne.s32.totalorder %s158, %s159
      %p173 = scmp.eq.s32.totalorder %s25, 1
      %p174 = por %p172, %p173
      %p176 = scmp.ne.s32.totalorder %s159, %s175
      %p177 = scmp.eq.s32.totalorder %s25, 0
      %p178 = por %p176, %p177
      %p179 = scmp.le.s32.totalorder 1, %s19
      %p180 = scmp.lt.s32.totalorder %s19, 3
      %p181 = pnand %p179, %p180
      %p182 = pneg %p181
      // Predicated region
      $region9: #{tpu_custom_call.1} parent=5 // pred_check
        _
      $region10: #{tpu_custom_call.1} parent=5 // pred_check_branch
        %184 = sbr.rel (%p181) target = $region12
      $region11: #{tpu_custom_call.1} parent=5 // pred_region
        %s185 = ssub.s32 %s19, 1
        // Predicated region
        $region13: #{tpu_custom_call.1} parent=11 // pred_check
          %p186 = pneg %p52
        $region14: #{tpu_custom_call.1} parent=11 // pred_check_branch
          %188 = sbr.rel (%p186) target = $region16
        $region15: #{tpu_custom_call.1} parent=11 // pred_region
          %s190 = ssub.s32 128, 128
          %191 = vsyncadd [#allocation3], %s190
          %s193 = sshll.u32 [#allocation2], 4
          %s194 = int_to_ptr.vmem [resolvable:$true] %s193
          %196 = dma.hbm_to_vmem [thread:$0]  %s0, 128, %s194, [#allocation3]
        $region16: #{tpu_custom_call.1} parent=11 // pred_fallthru
          _
        // Predicated region
        $region17: #{tpu_custom_call.1} parent=11 // pred_check
          %p197 = pneg %p101
        $region18: #{tpu_custom_call.1} parent=11 // pred_check_branch
          %199 = sbr.rel (%p197) target = $region20
        $region19: #{tpu_custom_call.1} parent=11 // pred_region
          %s201 = ssub.s32 256, 256
          %202 = vsyncadd [#allocation6], %s201
          %s203 = sshll.u32 [#allocation7], 4
          %s204 = int_to_ptr.vmem [resolvable:$true] %s203
          %209 = dma.hbm_to_vmem [thread:$0]  %s2, 256, %s204, [#allocation6], 64, 64, 4
        $region20: #{tpu_custom_call.1} parent=11 // pred_fallthru
          _
        // Predicated region
        $region21: #{tpu_custom_call.1} parent=11 // pred_check
          %p210 = pneg %p122
        $region22: #{tpu_custom_call.1} parent=11 // pred_check_branch
          %212 = sbr.rel (%p210) target = $region24
        $region23: #{tpu_custom_call.1} parent=11 // pred_region
          %s214 = ssub.s32 256, 256
          %215 = vsyncadd [#allocation9], %s214
          %s216 = sshll.u32 [#allocation8], 4
          %s217 = int_to_ptr.vmem [resolvable:$true] %s216
          %222 = dma.hbm_to_vmem [thread:$0]  %s3, 256, %s217, [#allocation9], 64, 64, 4
        $region24: #{tpu_custom_call.1} parent=11 // pred_fallthru
          _
        // Predicated region
        $region25: #{tpu_custom_call.1} parent=11 // pred_check
          %p223 = pneg %p143
        $region26: #{tpu_custom_call.1} parent=11 // pred_check_branch
          %225 = sbr.rel (%p223) target = $region28
        $region27: #{tpu_custom_call.1} parent=11 // pred_region
          %s227 = ssub.s32 16, 16
          %228 = vsyncadd [#allocation9], %s227
          %s230 = sshll.u32 [#allocation10], 4
          %s231 = int_to_ptr.vmem [resolvable:$true] %s230
          %233 = dma.hbm_to_vmem [thread:$0]  %s4, 16, %s231, [#allocation9]
        $region28: #{tpu_custom_call.1} parent=11 // pred_fallthru
          _
      $region12: #{tpu_custom_call.1} parent=5 // pred_fallthru
        _
      %p234 = scmp.lt.s32.totalorder %s19, 2
      // Predicated region
      $region29: #{tpu_custom_call.1} parent=5 // pred_check
        %p235 = pneg %p234
      $region30: #{tpu_custom_call.1} parent=5 // pred_check_branch
        %237 = sbr.rel (%p235) target = $region32
      $region31: #{tpu_custom_call.1} parent=5 // pred_region
        // Predicated region
        $region33: #{tpu_custom_call.1} parent=31 // pred_check
          %p238 = pneg %p74
        $region34: #{tpu_custom_call.1} parent=31 // pred_check_branch
          %240 = sbr.rel (%p238) target = $region36
        $region35: #{tpu_custom_call.1} parent=31 // pred_region
          %s241 = sand.u32 %s19, 1
          %s242 = scalar_lea.sflag [#allocation6], %s241
          %s243 = sand.u32 %s64, 1
          %s244 = smul.addr %s243, 128
          %s245 = scalar_lea.vmem [#allocation5], %s244
          %s246 = smul.u32 2, %s27
          %s248 = ssub.s32 2048, 2048
          %249 = vsyncadd %s242, %s248
          %s250 = smul.addr %s26, 16
          %s251 = sadd.s32 %s246, %s250
          %s252 = smul.addr %s251, 128
          %s253 = scalar_lea.hbm %s1, %s252
          %s254 = sshll.u32 %s245, 4
          %s255 = int_to_ptr.vmem [resolvable:$true] %s254
          %260 = dma.hbm_to_vmem [thread:$0]  %s253, 2048, %s255, %s242, 128, 128, 8
        $region36: #{tpu_custom_call.1} parent=31 // pred_fallthru
          _
      $region32: #{tpu_custom_call.1} parent=5 // pred_fallthru
        _
      %p261 = scmp.le.s32.totalorder 1, %s19
      %p262 = scmp.lt.s32.totalorder %s19, 3
      %p263 = pnand %p261, %p262
      %p264 = pneg %p263
      // Predicated region
      $region37: #{tpu_custom_call.1} parent=5 // pred_check
        _
      $region38: #{tpu_custom_call.1} parent=5 // pred_check_branch
        %266 = sbr.rel (%p263) target = $region40
      $region39: #{tpu_custom_call.1} parent=5 // pred_region
        %s267 = ssub.s32 %s19, 1
        // Predicated region
        $region41: #{tpu_custom_call.1} parent=39 // pred_check
          %p268 = pneg %p52
        $region42: #{tpu_custom_call.1} parent=39 // pred_check_branch
          %270 = sbr.rel (%p268) target = $region44
        $region43: #{tpu_custom_call.1} parent=39 // pred_region
          %271 = dma.done [#allocation3], 128
        $region44: #{tpu_custom_call.1} parent=39 // pred_fallthru
          _
        %s272 = sand.u32 %s24, 1
        %s273 = scalar_lea.sflag [#allocation6], %s272
        %s274 = sand.u32 %s67, 1
        %s275 = smul.addr %s274, 128
        %s276 = scalar_lea.vmem [#allocation5], %s275
        // Predicated region
        $region45: #{tpu_custom_call.1} parent=39 // pred_check
          %p277 = pneg %p80
        $region46: #{tpu_custom_call.1} parent=39 // pred_check_branch
          %279 = sbr.rel (%p277) target = $region48
        $region47: #{tpu_custom_call.1} parent=39 // pred_region
          %280 = dma.done %s273, 2048
        $region48: #{tpu_custom_call.1} parent=39 // pred_fallthru
          _
        // Predicated region
        $region49: #{tpu_custom_call.1} parent=39 // pred_check
          %p281 = pneg %p101
        $region50: #{tpu_custom_call.1} parent=39 // pred_check_branch
          %283 = sbr.rel (%p281) target = $region52
        $region51: #{tpu_custom_call.1} parent=39 // pred_region
          %284 = dma.done [#allocation6], 256
        $region52: #{tpu_custom_call.1} parent=39 // pred_fallthru
          _
        // Predicated region
        $region53: #{tpu_custom_call.1} parent=39 // pred_check
          %p285 = pneg %p122
        $region54: #{tpu_custom_call.1} parent=39 // pred_check_branch
          %287 = sbr.rel (%p285) target = $region56
        $region55: #{tpu_custom_call.1} parent=39 // pred_region
          %288 = dma.done [#allocation9], 256
        $region56: #{tpu_custom_call.1} parent=39 // pred_fallthru
          _
        // Predicated region
        $region57: #{tpu_custom_call.1} parent=39 // pred_check
          %p289 = pneg %p143
        $region58: #{tpu_custom_call.1} parent=39 // pred_check_branch
          %291 = sbr.rel (%p289) target = $region60
        $region59: #{tpu_custom_call.1} parent=39 // pred_region
          %292 = dma.done [#allocation9], 16
        $region60: #{tpu_custom_call.1} parent=39 // pred_fallthru
          _
        %p293 = pneg %p52
        %p294 = pneg %p49
        %s295 = sand.u32 %s24, 1
        %s296 = scalar_lea.sflag [#allocation6], %s295
        %s297 = sand.u32 %s67, 1
        %s298 = smul.addr %s297, 128
        %s299 = scalar_lea.vmem [#allocation5], %s298
        %p300 = pneg %p80
        %p301 = pneg %p77
        %p302 = pneg %p101
        %p303 = pneg %p98
        %p304 = pneg %p122
        %p305 = pneg %p119
        %p306 = pneg %p143
        %p307 = pneg %p140
        %p308 = pneg %p171
        %p309 = pneg %p168
        %s310 = sand.u32 %s158, 1
        %s311 = scalar_lea.sflag [#allocation4], %s310
        %s312 = sand.u32 %s158, 1
        %s313 = smul.addr %s312, 128
        %s314 = scalar_lea.vmem [#allocation11], %s313
        %s315 = smul.u32 2, %s29
        %s316 = smul.u32 2, %s29
        %v318 = vld [vmem:[%s276] sm:$0xff]
        %v319 = vld [vmem:[%s276 + $0x8] sm:$0xff]
        %v320 = vld [vmem:[%s276 + $0x10] sm:$0xff]
        %v321 = vld [vmem:[%s276 + $0x18] sm:$0xff]
        %v322 = vld [vmem:[%s276 + $0x20] sm:$0xff]
        %v323 = vld [vmem:[%s276 + $0x28] sm:$0xff]
        %v324 = vld [vmem:[%s276 + $0x30] sm:$0xff]
        %v325 = vld [vmem:[%s276 + $0x38] sm:$0xff]
        %v326 = vld [vmem:[%s276 + $0x40] sm:$0xff]
        %v327 = vld [vmem:[%s276 + $0x48] sm:$0xff]
        %v328 = vld [vmem:[%s276 + $0x50] sm:$0xff]
        %v329 = vld [vmem:[%s276 + $0x58] sm:$0xff]
        %v330 = vld [vmem:[%s276 + $0x60] sm:$0xff]
        %v331 = vld [vmem:[%s276 + $0x68] sm:$0xff]
        %v332 = vld [vmem:[%s276 + $0x70] sm:$0xff]
        %v333 = vld [vmem:[%s276 + $0x78] sm:$0xff]
        %v334 = vld [vmem:[#allocation2] sm:$0xff]
        %v336 = vcombine.high %v334, %v334
        %v338 = vunpack.c.l.s4 1966171168
        %v339 = vunpack.c.0.s8 %v338
        %v340 = vlaneseq
        %v341 = vshrl.u32 %v340, 7
        %v342 = vsub.s32 %v339, %v341
        %v343 = vrot.slane %v334, %v342
        %v345 = vunpack.c.l.s4 1966171168
        %v346 = vunpack.c.0.s8 %v345
        %v347 = vlaneseq
        %v348 = vshrl.u32 %v347, 7
        %v349 = vsub.s32 %v346, %v348
        %v350 = vrot.slane %v336, %v349
        %v351 = vcombine.high %v343, %v343
        %v352 = vcombine.high %v350, %v350
        %v354 = vunpack.c.l.s4 1966171168
        %v355 = vunpack.c.0.s8 %v354
        %v356 = vlaneseq
        %v357 = vshrl.u32 %v356, 7
        %v358 = vsub.s32 %v355, %v357
        %v359 = vrot.slane %v343, %v358
        %v361 = vunpack.c.l.s4 1966171168
        %v362 = vunpack.c.0.s8 %v361
        %v363 = vlaneseq
        %v364 = vshrl.u32 %v363, 7
        %v365 = vsub.s32 %v362, %v364
        %v366 = vrot.slane %v350, %v365
        %v368 = vunpack.c.l.s4 1966171168
        %v369 = vunpack.c.0.s8 %v368
        %v370 = vlaneseq
        %v371 = vshrl.u32 %v370, 7
        %v372 = vsub.s32 %v369, %v371
        %v373 = vrot.slane %v351, %v372
        %v375 = vunpack.c.l.s4 1966171168
        %v376 = vunpack.c.0.s8 %v375
        %v377 = vlaneseq
        %v378 = vshrl.u32 %v377, 7
        %v379 = vsub.s32 %v376, %v378
        %v380 = vrot.slane %v352, %v379
        %v381 = vcombine.high %v359, %v359
        %v382 = vcombine.high %v366, %v366
        %v383 = vcombine.high %v373, %v373
        %v384 = vcombine.high %v380, %v380
        %v385 = vlaneseq
        %v386 = vshrl.u32 %v385, 7
        %v387 = vsub.s32 0, %v386
        %v388 = vrot.slane %v359, %v387
        %v389 = vlaneseq
        %v390 = vshrl.u32 %v389, 7
        %v391 = vsub.s32 0, %v390
        %v392 = vrot.slane %v373, %v391
        %v393 = vlaneseq
        %v394 = vshrl.u32 %v393, 7
        %v395 = vsub.s32 0, %v394
        %v396 = vrot.slane %v381, %v395
        %v397 = vlaneseq
        %v398 = vshrl.u32 %v397, 7
        %v399 = vsub.s32 0, %v398
        %v400 = vrot.slane %v383, %v399
        %v401 = vlaneseq
        %v402 = vshrl.u32 %v401, 7
        %v403 = vsub.s32 0, %v402
        %v404 = vrot.slane %v366, %v403
        %v405 = vlaneseq
        %v406 = vshrl.u32 %v405, 7
        %v407 = vsub.s32 0, %v406
        %v408 = vrot.slane %v380, %v407
        %v409 = vlaneseq
        %v410 = vshrl.u32 %v409, 7
        %v411 = vsub.s32 0, %v410
        %v412 = vrot.slane %v382, %v411
        %v413 = vlaneseq
        %v414 = vshrl.u32 %v413, 7
        %v415 = vsub.s32 0, %v414
        %v416 = vrot.slane %v384, %v415
        %v425 = vadd.f32 %v318, %v388
        %v426 = vadd.f32 %v319, %v388
        %v427 = vadd.f32 %v320, %v392
        %v428 = vadd.f32 %v321, %v392
        %v429 = vadd.f32 %v322, %v396
        %v430 = vadd.f32 %v323, %v396
        %v431 = vadd.f32 %v324, %v400
        %v432 = vadd.f32 %v325, %v400
        %v433 = vadd.f32 %v326, %v404
        %v434 = vadd.f32 %v327, %v404
        %v435 = vadd.f32 %v328, %v408
        %v436 = vadd.f32 %v329, %v408
        %v437 = vadd.f32 %v330, %v412
        %v438 = vadd.f32 %v331, %v412
        %v439 = vadd.f32 %v332, %v416
        %v440 = vadd.f32 %v333, %v416
        %v441 = vpack.c.bf16 %v426, %v425
        %v442 = vpack.c.bf16 %v428, %v427
        %v443 = vpack.c.bf16 %v430, %v429
        %v444 = vpack.c.bf16 %v432, %v431
        %v445 = vpack.c.bf16 %v434, %v433
        %v446 = vpack.c.bf16 %v436, %v435
        %v447 = vpack.c.bf16 %v438, %v437
        %v448 = vpack.c.bf16 %v440, %v439
        %v449 = vld [vmem:[#allocation7] sm:$0xf]
        %v450 = vld [vmem:[#allocation7 + $0x4] sm:$0xf]
        %v451 = vld [vmem:[#allocation7 + $0x8] sm:$0xf]
        %v452 = vld [vmem:[#allocation7 + $0xc] sm:$0xf]
        %v457 = vunpack.c.l.b16 %v449
        %v458 = vunpack.c.l.b16 %v450
        %v459 = vunpack.c.l.b16 %v451
        %v460 = vunpack.c.l.b16 %v452
        %v461 = vpack.c.b16 %v458, %v457
        %v462 = vpack.c.b16 %v460, %v459
        %vm465 = vcmask 261120
        %v467 = vsel %vm465, %v441, 0
        %v470 = vsel %vm465, %v442, 0
        %v473 = vsel %vm465, %v443, 0
        %v476 = vsel %vm465, %v444, 0
        %v479 = vsel %vm465, %v445, 0
        %v482 = vsel %vm465, %v446, 0
        %v485 = vsel %vm465, %v447, 0
        %v488 = vsel %vm465, %v448, 0
        %490 = vmatprep.subr.bf16.mxu0 0
        %491 = vmatpush1.bf16.msra.mxu0 %v461
        %492 = vmatprep.subr.bf16.mxu0 0
        %493 = vmatpush1.bf16.msra.mxu0 %v462
        %494 = vmatprep.subr.bf16.mxu0 0
        %495 = vmatpush1.bf16.msra.mxu0 0
        %496 = vmatprep.subr.bf16.mxu0 0
        %497 = vmatpush1.bf16.msra.mxu0 0
        %498 = vmatprep.subr.bf16.mxu0 0
        %499 = vmatpush1.bf16.msra.mxu0 0
        %500 = vmatprep.subr.bf16.mxu0 0
        %501 = vmatpush1.bf16.msra.mxu0 0
        %502 = vmatprep.subr.bf16.mxu0 0
        %503 = vmatpush1.bf16.msra.mxu0 0
        %504 = vmatprep.subr.bf16.mxu0 0
        %505 = vmatpush1.bf16.msra.mxu0 0
        %506 = vmatprep.subr.bf16.mxu0 0
        %507 = vmatpush1.bf16.msra.mxu0 0
        %508 = vmatprep.subr.bf16.mxu0 0
        %509 = vmatpush1.bf16.msra.mxu0 0
        %510 = vmatprep.subr.bf16.mxu0 0
        %511 = vmatpush1.bf16.msra.mxu0 0
        %512 = vmatprep.subr.bf16.mxu0 0
        %513 = vmatpush1.bf16.msra.mxu0 0
        %514 = vmatprep.subr.bf16.mxu0 0
        %515 = vmatpush1.bf16.msra.mxu0 0
        %516 = vmatprep.subr.bf16.mxu0 0
        %517 = vmatpush1.bf16.msra.mxu0 0
        %518 = vmatprep.subr.bf16.mxu0 0
        %519 = vmatpush1.bf16.msra.mxu0 0
        %520 = vmatprep.subr.bf16.mxu0 0
        %521 = vmatpush1.bf16.msra.mxu0 0
        %522 = vmatprep.mubr.bf16.mxu0 0
        %523 = vmatmul.mubr.bf16.gmra.mrb[0].mxu0 %v467
        %v524 = vpop.f32.mrb[0].mxu0
        %v525 = vadd.f32 0.0, %v524
        %v526 = vpop.f32.mrb[0].mxu0
        %v527 = vpop.f32.mrb[0].mxu0
        %v528 = vadd.f32 0.0, %v527
        %v529 = vpop.f32.mrb[0].mxu0
        %530 = vmatprep.mubr.bf16.mxu0 0
        %531 = vmatmul.mubr.bf16.gmra.mrb[0].mxu0 %v470
        %v532 = vpop.f32.mrb[0].mxu0
        %v533 = vadd.f32 0.0, %v532
        %v534 = vpop.f32.mrb[0].mxu0
        %v535 = vpop.f32.mrb[0].mxu0
        %v536 = vadd.f32 0.0, %v535
        %v537 = vpop.f32.mrb[0].mxu0
        %538 = vmatprep.mubr.bf16.mxu0 0
        %539 = vmatmul.mubr.bf16.gmra.mrb[0].mxu0 %v473
        %v540 = vpop.f32.mrb[0].mxu0
        %v541 = vadd.f32 0.0, %v540
        %v542 = vpop.f32.mrb[0].mxu0
        %v543 = vpop.f32.mrb[0].mxu0
        %v544 = vadd.f32 0.0, %v543
        %v545 = vpop.f32.mrb[0].mxu0
        %546 = vmatprep.mubr.bf16.mxu0 0
        %547 = vmatmul.mubr.bf16.gmra.mrb[0].mxu0 %v476
        %v548 = vpop.f32.mrb[0].mxu0
        %v549 = vadd.f32 0.0, %v548
        %v550 = vpop.f32.mrb[0].mxu0
        %v551 = vpop.f32.mrb[0].mxu0
        %v552 = vadd.f32 0.0, %v551
        %v553 = vpop.f32.mrb[0].mxu0
        %554 = vmatprep.mubr.bf16.mxu0 0
        %555 = vmatmul.mubr.bf16.gmra.mrb[0].mxu0 %v479
        %v556 = vpop.f32.mrb[0].mxu0
        %v557 = vadd.f32 0.0, %v556
        %v558 = vpop.f32.mrb[0].mxu0
        %v559 = vpop.f32.mrb[0].mxu0
        %v560 = vadd.f32 0.0, %v559
        %v561 = vpop.f32.mrb[0].mxu0
        %562 = vmatprep.mubr.bf16.mxu0 0
        %563 = vmatmul.mubr.bf16.gmra.mrb[0].mxu0 %v482
        %v564 = vpop.f32.mrb[0].mxu0
        %v565 = vadd.f32 0.0, %v564
        %v566 = vpop.f32.mrb[0].mxu0
        %v567 = vpop.f32.mrb[0].mxu0
        %v568 = vadd.f32 0.0, %v567
        %v569 = vpop.f32.mrb[0].mxu0
        %570 = vmatprep.mubr.bf16.mxu0 0
        %571 = vmatmul.mubr.bf16.gmra.mrb[0].mxu0 %v485
        %v572 = vpop.f32.mrb[0].mxu0
        %v573 = vadd.f32 0.0, %v572
        %v574 = vpop.f32.mrb[0].mxu0
        %v575 = vpop.f32.mrb[0].mxu0
        %v576 = vadd.f32 0.0, %v575
        %v577 = vpop.f32.mrb[0].mxu0
        %578 = vmatprep.mubr.bf16.mxu0 0
        %579 = vmatmul.mubr.bf16.gmra.mrb[0].mxu0 %v488
        %v580 = vpop.f32.mrb[0].mxu0
        %v581 = vadd.f32 0.0, %v580
        %v582 = vpop.f32.mrb[0].mxu0
        %v583 = vpop.f32.mrb[0].mxu0
        %v584 = vadd.f32 0.0, %v583
        %v585 = vpop.f32.mrb[0].mxu0
        %586 = vdwg.mxu0
        %587 = vxpose.xlu0.b32.start [1/16] %v525, 128
        %588 = vxpose.xlu0.b32.cont [2/16] %v528, 128
        %589 = vxpose.xlu0.b32.cont [3/16] 0.0, 128
        %590 = vxpose.xlu0.b32.cont [4/16] 0.0, 128
        %591 = vxpose.xlu0.b32.cont [5/16] 0.0, 128
        %592 = vxpose.xlu0.b32.cont [6/16] 0.0, 128
        %593 = vxpose.xlu0.b32.cont [7/16] 0.0, 128
        %594 = vxpose.xlu0.b32.cont [8/16] 0.0, 128
        %595 = vxpose.xlu0.b32.cont [9/16] 0.0, 128
        %596 = vxpose.xlu0.b32.cont [10/16] 0.0, 128
        %597 = vxpose.xlu0.b32.cont [11/16] 0.0, 128
        %598 = vxpose.xlu0.b32.cont [12/16] 0.0, 128
        %599 = vxpose.xlu0.b32.cont [13/16] 0.0, 128
        %600 = vxpose.xlu0.b32.cont [14/16] 0.0, 128
        %601 = vxpose.xlu0.b32.cont [15/16] 0.0, 128
        %602 = vxpose.xlu0.b32.end [16/16] 0.0, 128
        %v603 = vpop.trf.xlu0
        %v604 = vpop.trf.xlu0
        %v605 = vpop.trf.xlu0
        %v606 = vpop.trf.xlu0
        %v607 = vpop.trf.xlu0
        %v608 = vpop.trf.xlu0
        %v609 = vpop.trf.xlu0
        %v610 = vpop.trf.xlu0
        %v611 = vpop.trf.xlu0
        %v612 = vpop.trf.xlu0
        %v613 = vpop.trf.xlu0
        %v614 = vpop.trf.xlu0
        %v615 = vpop.trf.xlu0
        %v616 = vpop.trf.xlu0
        %v617 = vpop.trf.xlu0
        %v618 = vpop.trf.xlu0
        %619 = vxpose.xlu0.b32.start [1/16] %v533, 128
        %620 = vxpose.xlu0.b32.cont [2/16] %v536, 128
        %621 = vxpose.xlu0.b32.cont [3/16] 0.0, 128
        %622 = vxpose.xlu0.b32.cont [4/16] 0.0, 128
        %623 = vxpose.xlu0.b32.cont [5/16] 0.0, 128
        %624 = vxpose.xlu0.b32.cont [6/16] 0.0, 128
        %625 = vxpose.xlu0.b32.cont [7/16] 0.0, 128
        %626 = vxpose.xlu0.b32.cont [8/16] 0.0, 128
        %627 = vxpose.xlu0.b32.cont [9/16] 0.0, 128
        %628 = vxpose.xlu0.b32.cont [10/16] 0.0, 128
        %629 = vxpose.xlu0.b32.cont [11/16] 0.0, 128
        %630 = vxpose.xlu0.b32.cont [12/16] 0.0, 128
        %631 = vxpose.xlu0.b32.cont [13/16] 0.0, 128
        %632 = vxpose.xlu0.b32.cont [14/16] 0.0, 128
        %633 = vxpose.xlu0.b32.cont [15/16] 0.0, 128
        %634 = vxpose.xlu0.b32.end [16/16] 0.0, 128
        %v635 = vpop.trf.xlu0
        %v636 = vpop.trf.xlu0
        %v637 = vpop.trf.xlu0
        %v638 = vpop.trf.xlu0
        %v639 = vpop.trf.xlu0
        %v640 = vpop.trf.xlu0
        %v641 = vpop.trf.xlu0
        %v642 = vpop.trf.xlu0
        %v643 = vpop.trf.xlu0
        %v644 = vpop.trf.xlu0
        %v645 = vpop.trf.xlu0
        %v646 = vpop.trf.xlu0
        %v647 = vpop.trf.xlu0
        %v648 = vpop.trf.xlu0
        %v649 = vpop.trf.xlu0
        %v650 = vpop.trf.xlu0
        %651 = vxpose.xlu0.b32.start [1/16] %v541, 128
        %652 = vxpose.xlu0.b32.cont [2/16] %v544, 128
        %653 = vxpose.xlu0.b32.cont [3/16] 0.0, 128
        %654 = vxpose.xlu0.b32.cont [4/16] 0.0, 128
        %655 = vxpose.xlu0.b32.cont [5/16] 0.0, 128
        %656 = vxpose.xlu0.b32.cont [6/16] 0.0, 128
        %657 = vxpose.xlu0.b32.cont [7/16] 0.0, 128
        %658 = vxpose.xlu0.b32.cont [8/16] 0.0, 128
        %659 = vxpose.xlu0.b32.cont [9/16] 0.0, 128
        %660 = vxpose.xlu0.b32.cont [10/16] 0.0, 128
        %661 = vxpose.xlu0.b32.cont [11/16] 0.0, 128
        %662 = vxpose.xlu0.b32.cont [12/16] 0.0, 128
        %663 = vxpose.xlu0.b32.cont [13/16] 0.0, 128
        %664 = vxpose.xlu0.b32.cont [14/16] 0.0, 128
        %665 = vxpose.xlu0.b32.cont [15/16] 0.0, 128
        %666 = vxpose.xlu0.b32.end [16/16] 0.0, 128
        %v667 = vpop.trf.xlu0
        %v668 = vpop.trf.xlu0
        %v669 = vpop.trf.xlu0
        %v670 = vpop.trf.xlu0
        %v671 = vpop.trf.xlu0
        %v672 = vpop.trf.xlu0
        %v673 = vpop.trf.xlu0
        %v674 = vpop.trf.xlu0
        %v675 = vpop.trf.xlu0
        %v676 = vpop.trf.xlu0
        %v677 = vpop.trf.xlu0
        %v678 = vpop.trf.xlu0
        %v679 = vpop.trf.xlu0
        %v680 = vpop.trf.xlu0
        %v681 = vpop.trf.xlu0
        %v682 = vpop.trf.xlu0
        %683 = vxpose.xlu0.b32.start [1/16] %v549, 128
        %684 = vxpose.xlu0.b32.cont [2/16] %v552, 128
        %685 = vxpose.xlu0.b32.cont [3/16] 0.0, 128
        %686 = vxpose.xlu0.b32.cont [4/16] 0.0, 128
        %687 = vxpose.xlu0.b32.cont [5/16] 0.0, 128
        %688 = vxpose.xlu0.b32.cont [6/16] 0.0, 128
        %689 = vxpose.xlu0.b32.cont [7/16] 0.0, 128
        %690 = vxpose.xlu0.b32.cont [8/16] 0.0, 128
        %691 = vxpose.xlu0.b32.cont [9/16] 0.0, 128
        %692 = vxpose.xlu0.b32.cont [10/16] 0.0, 128
        %693 = vxpose.xlu0.b32.cont [11/16] 0.0, 128
        %694 = vxpose.xlu0.b32.cont [12/16] 0.0, 128
        %695 = vxpose.xlu0.b32.cont [13/16] 0.0, 128
        %696 = vxpose.xlu0.b32.cont [14/16] 0.0, 128
        %697 = vxpose.xlu0.b32.cont [15/16] 0.0, 128
        %698 = vxpose.xlu0.b32.end [16/16] 0.0, 128
        %v699 = vpop.trf.xlu0
        %v700 = vpop.trf.xlu0
        %v701 = vpop.trf.xlu0
        %v702 = vpop.trf.xlu0
        %v703 = vpop.trf.xlu0
        %v704 = vpop.trf.xlu0
        %v705 = vpop.trf.xlu0
        %v706 = vpop.trf.xlu0
        %v707 = vpop.trf.xlu0
        %v708 = vpop.trf.xlu0
        %v709 = vpop.trf.xlu0
        %v710 = vpop.trf.xlu0
        %v711 = vpop.trf.xlu0
        %v712 = vpop.trf.xlu0
        %v713 = vpop.trf.xlu0
        %v714 = vpop.trf.xlu0
        %715 = vxpose.xlu0.b32.start [1/16] %v557, 128
        %716 = vxpose.xlu0.b32.cont [2/16] %v560, 128
        %717 = vxpose.xlu0.b32.cont [3/16] 0.0, 128
        %718 = vxpose.xlu0.b32.cont [4/16] 0.0, 128
        %719 = vxpose.xlu0.b32.cont [5/16] 0.0, 128
        %720 = vxpose.xlu0.b32.cont [6/16] 0.0, 128
        %721 = vxpose.xlu0.b32.cont [7/16] 0.0, 128
        %722 = vxpose.xlu0.b32.cont [8/16] 0.0, 128
        %723 = vxpose.xlu0.b32.cont [9/16] 0.0, 128
        %724 = vxpose.xlu0.b32.cont [10/16] 0.0, 128
        %725 = vxpose.xlu0.b32.cont [11/16] 0.0, 128
        %726 = vxpose.xlu0.b32.cont [12/16] 0.0, 128
        %727 = vxpose.xlu0.b32.cont [13/16] 0.0, 128
        %728 = vxpose.xlu0.b32.cont [14/16] 0.0, 128
        %729 = vxpose.xlu0.b32.cont [15/16] 0.0, 128
        %730 = vxpose.xlu0.b32.end [16/16] 0.0, 128
        %v731 = vpop.trf.xlu0
        %v732 = vpop.trf.xlu0
        %v733 = vpop.trf.xlu0
        %v734 = vpop.trf.xlu0
        %v735 = vpop.trf.xlu0
        %v736 = vpop.trf.xlu0
        %v737 = vpop.trf.xlu0
        %v738 = vpop.trf.xlu0
        %v739 = vpop.trf.xlu0
        %v740 = vpop.trf.xlu0
        %v741 = vpop.trf.xlu0
        %v742 = vpop.trf.xlu0
        %v743 = vpop.trf.xlu0
        %v744 = vpop.trf.xlu0
        %v745 = vpop.trf.xlu0
        %v746 = vpop.trf.xlu0
        %747 = vxpose.xlu0.b32.start [1/16] %v565, 128
        %748 = vxpose.xlu0.b32.cont [2/16] %v568, 128
        %749 = vxpose.xlu0.b32.cont [3/16] 0.0, 128
        %750 = vxpose.xlu0.b32.cont [4/16] 0.0, 128
        %751 = vxpose.xlu0.b32.cont [5/16] 0.0, 128
        %752 = vxpose.xlu0.b32.cont [6/16] 0.0, 128
        %753 = vxpose.xlu0.b32.cont [7/16] 0.0, 128
        %754 = vxpose.xlu0.b32.cont [8/16] 0.0, 128
        %755 = vxpose.xlu0.b32.cont [9/16] 0.0, 128
        %756 = vxpose.xlu0.b32.cont [10/16] 0.0, 128
        %757 = vxpose.xlu0.b32.cont [11/16] 0.0, 128
        %758 = vxpose.xlu0.b32.cont [12/16] 0.0, 128
        %759 = vxpose.xlu0.b32.cont [13/16] 0.0, 128
        %760 = vxpose.xlu0.b32.cont [14/16] 0.0, 128
        %761 = vxpose.xlu0.b32.cont [15/16] 0.0, 128
        %762 = vxpose.xlu0.b32.end [16/16] 0.0, 128
        %v763 = vpop.trf.xlu0
        %v764 = vpop.trf.xlu0
        %v765 = vpop.trf.xlu0
        %v766 = vpop.trf.xlu0
        %v767 = vpop.trf.xlu0
        %v768 = vpop.trf.xlu0
        %v769 = vpop.trf.xlu0
        %v770 = vpop.trf.xlu0
        %v771 = vpop.trf.xlu0
        %v772 = vpop.trf.xlu0
        %v773 = vpop.trf.xlu0
        %v774 = vpop.trf.xlu0
        %v775 = vpop.trf.xlu0
        %v776 = vpop.trf.xlu0
        %v777 = vpop.trf.xlu0
        %v778 = vpop.trf.xlu0
        %779 = vxpose.xlu0.b32.start [1/16] %v573, 128
        %780 = vxpose.xlu0.b32.cont [2/16] %v576, 128
        %781 = vxpose.xlu0.b32.cont [3/16] 0.0, 128
        %782 = vxpose.xlu0.b32.cont [4/16] 0.0, 128
        %783 = vxpose.xlu0.b32.cont [5/16] 0.0, 128
        %784 = vxpose.xlu0.b32.cont [6/16] 0.0, 128
        %785 = vxpose.xlu0.b32.cont [7/16] 0.0, 128
        %786 = vxpose.xlu0.b32.cont [8/16] 0.0, 128
        %787 = vxpose.xlu0.b32.cont [9/16] 0.0, 128
        %788 = vxpose.xlu0.b32.cont [10/16] 0.0, 128
        %789 = vxpose.xlu0.b32.cont [11/16] 0.0, 128
        %790 = vxpose.xlu0.b32.cont [12/16] 0.0, 128
        %791 = vxpose.xlu0.b32.cont [13/16] 0.0, 128
        %792 = vxpose.xlu0.b32.cont [14/16] 0.0, 128
        %793 = vxpose.xlu0.b32.cont [15/16] 0.0, 128
        %794 = vxpose.xlu0.b32.end [16/16] 0.0, 128
        %v795 = vpop.trf.xlu0
        %v796 = vpop.trf.xlu0
        %v797 = vpop.trf.xlu0
        %v798 = vpop.trf.xlu0
        %v799 = vpop.trf.xlu0
        %v800 = vpop.trf.xlu0
        %v801 = vpop.trf.xlu0
        %v802 = vpop.trf.xlu0
        %v803 = vpop.trf.xlu0
        %v804 = vpop.trf.xlu0
        %v805 = vpop.trf.xlu0
        %v806 = vpop.trf.xlu0
        %v807 = vpop.trf.xlu0
        %v808 = vpop.trf.xlu0
        %v809 = vpop.trf.xlu0
        %v810 = vpop.trf.xlu0
        %811 = vxpose.xlu0.b32.start [1/16] %v581, 128
        %812 = vxpose.xlu0.b32.cont [2/16] %v584, 128
        %813 = vxpose.xlu0.b32.cont [3/16] 0.0, 128
        %814 = vxpose.xlu0.b32.cont [4/16] 0.0, 128
        %815 = vxpose.xlu0.b32.cont [5/16] 0.0, 128
        %816 = vxpose.xlu0.b32.cont [6/16] 0.0, 128
        %817 = vxpose.xlu0.b32.cont [7/16] 0.0, 128
        %818 = vxpose.xlu0.b32.cont [8/16] 0.0, 128
        %819 = vxpose.xlu0.b32.cont [9/16] 0.0, 128
        %820 = vxpose.xlu0.b32.cont [10/16] 0.0, 128
        %821 = vxpose.xlu0.b32.cont [11/16] 0.0, 128
        %822 = vxpose.xlu0.b32.cont [12/16] 0.0, 128
        %823 = vxpose.xlu0.b32.cont [13/16] 0.0, 128
        %824 = vxpose.xlu0.b32.cont [14/16] 0.0, 128
        %825 = vxpose.xlu0.b32.cont [15/16] 0.0, 128
        %826 = vxpose.xlu0.b32.end [16/16] 0.0, 128
        %v827 = vpop.trf.xlu0
        %v828 = vpop.trf.xlu0
        %v829 = vpop.trf.xlu0
        %v830 = vpop.trf.xlu0
        %v831 = vpop.trf.xlu0
        %v832 = vpop.trf.xlu0
        %v833 = vpop.trf.xlu0
        %v834 = vpop.trf.xlu0
        %v835 = vpop.trf.xlu0
        %v836 = vpop.trf.xlu0
        %v837 = vpop.trf.xlu0
        %v838 = vpop.trf.xlu0
        %v839 = vpop.trf.xlu0
        %v840 = vpop.trf.xlu0
        %v841 = vpop.trf.xlu0
        %v842 = vpop.trf.xlu0
        %v843 = vmul.f32 %v603, 0.5
        %v844 = vmul.f32 %v604, 0.5
        %v845 = vmul.f32 %v605, 0.5
        %v846 = vmul.f32 %v606, 0.5
        %v847 = vmul.f32 %v635, 0.5
        %v848 = vmul.f32 %v636, 0.5
        %v849 = vmul.f32 %v637, 0.5
        %v850 = vmul.f32 %v638, 0.5
        %v851 = vmul.f32 %v667, 0.5
        %v852 = vmul.f32 %v668, 0.5
        %v853 = vmul.f32 %v669, 0.5
        %v854 = vmul.f32 %v670, 0.5
        %v855 = vmul.f32 %v699, 0.5
        %v856 = vmul.f32 %v700, 0.5
        %v857 = vmul.f32 %v701, 0.5
        %v858 = vmul.f32 %v702, 0.5
        %v859 = vmul.f32 %v731, 0.5
        %v860 = vmul.f32 %v732, 0.5
        %v861 = vmul.f32 %v733, 0.5
        %v862 = vmul.f32 %v734, 0.5
        %v863 = vmul.f32 %v763, 0.5
        %v864 = vmul.f32 %v764, 0.5
        %v865 = vmul.f32 %v765, 0.5
        %v866 = vmul.f32 %v766, 0.5
        %v867 = vmul.f32 %v795, 0.5
        %v868 = vmul.f32 %v796, 0.5
        %v869 = vmul.f32 %v797, 0.5
        %v870 = vmul.f32 %v798, 0.5
        %v871 = vmul.f32 %v827, 0.5
        %v872 = vmul.f32 %v828, 0.5
        %v873 = vmul.f32 %v829, 0.5
        %v874 = vmul.f32 %v830, 0.5
        %v875 = vmul.f32 %v843, %v607
        %v876 = vmul.f32 %v844, %v608
        %v877 = vmul.f32 %v845, %v609
        %v878 = vmul.f32 %v846, %v610
        %v879 = vmul.f32 %v843, %v639
        %v880 = vmul.f32 %v844, %v640
        %v881 = vmul.f32 %v845, %v641
        %v882 = vmul.f32 %v846, %v642
        %v883 = vmul.f32 %v843, %v671
        %v884 = vmul.f32 %v844, %v672
        %v885 = vmul.f32 %v845, %v673
        %v886 = vmul.f32 %v846, %v674
        %v887 = vmul.f32 %v843, %v703
        %v888 = vmul.f32 %v844, %v704
        %v889 = vmul.f32 %v845, %v705
        %v890 = vmul.f32 %v846, %v706
        %v891 = vmul.f32 %v843, %v735
        %v892 = vmul.f32 %v844, %v736
        %v893 = vmul.f32 %v845, %v737
        %v894 = vmul.f32 %v846, %v738
        %v895 = vmul.f32 %v843, %v767
        %v896 = vmul.f32 %v844, %v768
        %v897 = vmul.f32 %v845, %v769
        %v898 = vmul.f32 %v846, %v770
        %v899 = vmul.f32 %v843, %v799
        %v900 = vmul.f32 %v844, %v800
        %v901 = vmul.f32 %v845, %v801
        %v902 = vmul.f32 %v846, %v802
        %v903 = vmul.f32 %v843, %v831
        %v904 = vmul.f32 %v844, %v832
        %v905 = vmul.f32 %v845, %v833
        %v906 = vmul.f32 %v846, %v834
        %vm907 = vcmask 130048
        %v908 = vsel %vm907, %v875, 0.0
        %v909 = vsel %vm907, %v876, 0.0
        %v910 = vadd.f32 %v908, %v909
        %v911 = vsel %vm907, %v877, 0.0
        %v912 = vadd.f32 %v910, %v911
        %v913 = vsel %vm907, %v878, 0.0
        %v914 = vadd.f32 %v912, %v913
        %v915 = vsel %vm907, %v879, 0.0
        %v916 = vsel %vm907, %v880, 0.0
        %v917 = vadd.f32 %v915, %v916
        %v918 = vsel %vm907, %v881, 0.0
        %v919 = vadd.f32 %v917, %v918
        %v920 = vsel %vm907, %v882, 0.0
        %v921 = vadd.f32 %v919, %v920
        %v922 = vsel %vm907, %v883, 0.0
        %v923 = vsel %vm907, %v884, 0.0
        %v924 = vadd.f32 %v922, %v923
        %v925 = vsel %vm907, %v885, 0.0
        %v926 = vadd.f32 %v924, %v925
        %v927 = vsel %vm907, %v886, 0.0
        %v928 = vadd.f32 %v926, %v927
        %v929 = vsel %vm907, %v887, 0.0
        %v930 = vsel %vm907, %v888, 0.0
        %v931 = vadd.f32 %v929, %v930
        %v932 = vsel %vm907, %v889, 0.0
        %v933 = vadd.f32 %v931, %v932
        %v934 = vsel %vm907, %v890, 0.0
        %v935 = vadd.f32 %v933, %v934
        %v936 = vsel %vm907, %v891, 0.0
        %v937 = vsel %vm907, %v892, 0.0
        %v938 = vadd.f32 %v936, %v937
        %v939 = vsel %vm907, %v893, 0.0
        %v940 = vadd.f32 %v938, %v939
        %v941 = vsel %vm907, %v894, 0.0
        %v942 = vadd.f32 %v940, %v941
        %v943 = vsel %vm907, %v895, 0.0
        %v944 = vsel %vm907, %v896, 0.0
        %v945 = vadd.f32 %v943, %v944
        %v946 = vsel %vm907, %v897, 0.0
        %v947 = vadd.f32 %v945, %v946
        %v948 = vsel %vm907, %v898, 0.0
        %v949 = vadd.f32 %v947, %v948
        %v950 = vsel %vm907, %v899, 0.0
        %v951 = vsel %vm907, %v900, 0.0
        %v952 = vadd.f32 %v950, %v951
        %v953 = vsel %vm907, %v901, 0.0
        %v954 = vadd.f32 %v952, %v953
        %v955 = vsel %vm907, %v902, 0.0
        %v956 = vadd.f32 %v954, %v955
        %v957 = vsel %vm907, %v903, 0.0
        %v958 = vsel %vm907, %v904, 0.0
        %v959 = vadd.f32 %v957, %v958
        %v960 = vsel %vm907, %v905, 0.0
        %v961 = vadd.f32 %v959, %v960
        %v962 = vsel %vm907, %v906, 0.0
        %v963 = vadd.f32 %v961, %v962
        %v964 = vmul.f32 %v847, %v607
        %v965 = vmul.f32 %v848, %v608
        %v966 = vmul.f32 %v849, %v609
        %v967 = vmul.f32 %v850, %v610
        %v968 = vmul.f32 %v847, %v639
        %v969 = vmul.f32 %v848, %v640
        %v970 = vmul.f32 %v849, %v641
        %v971 = vmul.f32 %v850, %v642
        %v972 = vmul.f32 %v847, %v671
        %v973 = vmul.f32 %v848, %v672
        %v974 = vmul.f32 %v849, %v673
        %v975 = vmul.f32 %v850, %v674
        %v976 = vmul.f32 %v847, %v703
        %v977 = vmul.f32 %v848, %v704
        %v978 = vmul.f32 %v849, %v705
        %v979 = vmul.f32 %v850, %v706
        %v980 = vmul.f32 %v847, %v735
        %v981 = vmul.f32 %v848, %v736
        %v982 = vmul.f32 %v849, %v737
        %v983 = vmul.f32 %v850, %v738
        %v984 = vmul.f32 %v847, %v767
        %v985 = vmul.f32 %v848, %v768
        %v986 = vmul.f32 %v849, %v769
        %v987 = vmul.f32 %v850, %v770
        %v988 = vmul.f32 %v847, %v799
        %v989 = vmul.f32 %v848, %v800
        %v990 = vmul.f32 %v849, %v801
        %v991 = vmul.f32 %v850, %v802
        %v992 = vmul.f32 %v847, %v831
        %v993 = vmul.f32 %v848, %v832
        %v994 = vmul.f32 %v849, %v833
        %v995 = vmul.f32 %v850, %v834
        %v996 = vsel %vm907, %v964, 0.0
        %v997 = vsel %vm907, %v965, 0.0
        %v998 = vadd.f32 %v996, %v997
        %v999 = vsel %vm907, %v966, 0.0
        %v1000 = vadd.f32 %v998, %v999
        %v1001 = vsel %vm907, %v967, 0.0
        %v1002 = vadd.f32 %v1000, %v1001
        %v1003 = vsel %vm907, %v968, 0.0
        %v1004 = vsel %vm907, %v969, 0.0
        %v1005 = vadd.f32 %v1003, %v1004
        %v1006 = vsel %vm907, %v970, 0.0
        %v1007 = vadd.f32 %v1005, %v1006
        %v1008 = vsel %vm907, %v971, 0.0
        %v1009 = vadd.f32 %v1007, %v1008
        %v1010 = vsel %vm907, %v972, 0.0
        %v1011 = vsel %vm907, %v973, 0.0
        %v1012 = vadd.f32 %v1010, %v1011
        %v1013 = vsel %vm907, %v974, 0.0
        %v1014 = vadd.f32 %v1012, %v1013
        %v1015 = vsel %vm907, %v975, 0.0
        %v1016 = vadd.f32 %v1014, %v1015
        %v1017 = vsel %vm907, %v976, 0.0
        %v1018 = vsel %vm907, %v977, 0.0
        %v1019 = vadd.f32 %v1017, %v1018
        %v1020 = vsel %vm907, %v978, 0.0
        %v1021 = vadd.f32 %v1019, %v1020
        %v1022 = vsel %vm907, %v979, 0.0
        %v1023 = vadd.f32 %v1021, %v1022
        %v1024 = vsel %vm907, %v980, 0.0
        %v1025 = vsel %vm907, %v981, 0.0
        %v1026 = vadd.f32 %v1024, %v1025
        %v1027 = vsel %vm907, %v982, 0.0
        %v1028 = vadd.f32 %v1026, %v1027
        %v1029 = vsel %vm907, %v983, 0.0
        %v1030 = vadd.f32 %v1028, %v1029
        %v1031 = vsel %vm907, %v984, 0.0
        %v1032 = vsel %vm907, %v985, 0.0
        %v1033 = vadd.f32 %v1031, %v1032
        %v1034 = vsel %vm907, %v986, 0.0
        %v1035 = vadd.f32 %v1033, %v1034
        %v1036 = vsel %vm907, %v987, 0.0
        %v1037 = vadd.f32 %v1035, %v1036
        %v1038 = vsel %vm907, %v988, 0.0
        %v1039 = vsel %vm907, %v989, 0.0
        %v1040 = vadd.f32 %v1038, %v1039
        %v1041 = vsel %vm907, %v990, 0.0
        %v1042 = vadd.f32 %v1040, %v1041
        %v1043 = vsel %vm907, %v991, 0.0
        %v1044 = vadd.f32 %v1042, %v1043
        %v1045 = vsel %vm907, %v992, 0.0
        %v1046 = vsel %vm907, %v993, 0.0
        %v1047 = vadd.f32 %v1045, %v1046
        %v1048 = vsel %vm907, %v994, 0.0
        %v1049 = vadd.f32 %v1047, %v1048
        %v1050 = vsel %vm907, %v995, 0.0
        %v1051 = vadd.f32 %v1049, %v1050
        %v1052 = vmul.f32 %v851, %v607
        %v1053 = vmul.f32 %v852, %v608
        %v1054 = vmul.f32 %v853, %v609
        %v1055 = vmul.f32 %v854, %v610
        %v1056 = vmul.f32 %v851, %v639
        %v1057 = vmul.f32 %v852, %v640
        %v1058 = vmul.f32 %v853, %v641
        %v1059 = vmul.f32 %v854, %v642
        %v1060 = vmul.f32 %v851, %v671
        %v1061 = vmul.f32 %v852, %v672
        %v1062 = vmul.f32 %v853, %v673
        %v1063 = vmul.f32 %v854, %v674
        %v1064 = vmul.f32 %v851, %v703
        %v1065 = vmul.f32 %v852, %v704
        %v1066 = vmul.f32 %v853, %v705
        %v1067 = vmul.f32 %v854, %v706
        %v1068 = vmul.f32 %v851, %v735
        %v1069 = vmul.f32 %v852, %v736
        %v1070 = vmul.f32 %v853, %v737
        %v1071 = vmul.f32 %v854, %v738
        %v1072 = vmul.f32 %v851, %v767
        %v1073 = vmul.f32 %v852, %v768
        %v1074 = vmul.f32 %v853, %v769
        %v1075 = vmul.f32 %v854, %v770
        %v1076 = vmul.f32 %v851, %v799
        %v1077 = vmul.f32 %v852, %v800
        %v1078 = vmul.f32 %v853, %v801
        %v1079 = vmul.f32 %v854, %v802
        %v1080 = vmul.f32 %v851, %v831
        %v1081 = vmul.f32 %v852, %v832
        %v1082 = vmul.f32 %v853, %v833
        %v1083 = vmul.f32 %v854, %v834
        %v1084 = vsel %vm907, %v1052, 0.0
        %v1085 = vsel %vm907, %v1053, 0.0
        %v1086 = vadd.f32 %v1084, %v1085
        %v1087 = vsel %vm907, %v1054, 0.0
        %v1088 = vadd.f32 %v1086, %v1087
        %v1089 = vsel %vm907, %v1055, 0.0
        %v1090 = vadd.f32 %v1088, %v1089
        %v1091 = vsel %vm907, %v1056, 0.0
        %v1092 = vsel %vm907, %v1057, 0.0
        %v1093 = vadd.f32 %v1091, %v1092
        %v1094 = vsel %vm907, %v1058, 0.0
        %v1095 = vadd.f32 %v1093, %v1094
        %v1096 = vsel %vm907, %v1059, 0.0
        %v1097 = vadd.f32 %v1095, %v1096
        %v1098 = vsel %vm907, %v1060, 0.0
        %v1099 = vsel %vm907, %v1061, 0.0
        %v1100 = vadd.f32 %v1098, %v1099
        %v1101 = vsel %vm907, %v1062, 0.0
        %v1102 = vadd.f32 %v1100, %v1101
        %v1103 = vsel %vm907, %v1063, 0.0
        %v1104 = vadd.f32 %v1102, %v1103
        %v1105 = vsel %vm907, %v1064, 0.0
        %v1106 = vsel %vm907, %v1065, 0.0
        %v1107 = vadd.f32 %v1105, %v1106
        %v1108 = vsel %vm907, %v1066, 0.0
        %v1109 = vadd.f32 %v1107, %v1108
        %v1110 = vsel %vm907, %v1067, 0.0
        %v1111 = vadd.f32 %v1109, %v1110
        %v1112 = vsel %vm907, %v1068, 0.0
        %v1113 = vsel %vm907, %v1069, 0.0
        %v1114 = vadd.f32 %v1112, %v1113
        %v1115 = vsel %vm907, %v1070, 0.0
        %v1116 = vadd.f32 %v1114, %v1115
        %v1117 = vsel %vm907, %v1071, 0.0
        %v1118 = vadd.f32 %v1116, %v1117
        %v1119 = vsel %vm907, %v1072, 0.0
        %v1120 = vsel %vm907, %v1073, 0.0
        %v1121 = vadd.f32 %v1119, %v1120
        %v1122 = vsel %vm907, %v1074, 0.0
        %v1123 = vadd.f32 %v1121, %v1122
        %v1124 = vsel %vm907, %v1075, 0.0
        %v1125 = vadd.f32 %v1123, %v1124
        %v1126 = vsel %vm907, %v1076, 0.0
        %v1127 = vsel %vm907, %v1077, 0.0
        %v1128 = vadd.f32 %v1126, %v1127
        %v1129 = vsel %vm907, %v1078, 0.0
        %v1130 = vadd.f32 %v1128, %v1129
        %v1131 = vsel %vm907, %v1079, 0.0
        %v1132 = vadd.f32 %v1130, %v1131
        %v1133 = vsel %vm907, %v1080, 0.0
        %v1134 = vsel %vm907, %v1081, 0.0
        %v1135 = vadd.f32 %v1133, %v1134
        %v1136 = vsel %vm907, %v1082, 0.0
        %v1137 = vadd.f32 %v1135, %v1136
        %v1138 = vsel %vm907, %v1083, 0.0
        %v1139 = vadd.f32 %v1137, %v1138
        %v1140 = vmul.f32 %v855, %v607
        %v1141 = vmul.f32 %v856, %v608
        %v1142 = vmul.f32 %v857, %v609
        %v1143 = vmul.f32 %v858, %v610
        %v1144 = vmul.f32 %v855, %v639
        %v1145 = vmul.f32 %v856, %v640
        %v1146 = vmul.f32 %v857, %v641
        %v1147 = vmul.f32 %v858, %v642
        %v1148 = vmul.f32 %v855, %v671
        %v1149 = vmul.f32 %v856, %v672
        %v1150 = vmul.f32 %v857, %v673
        %v1151 = vmul.f32 %v858, %v674
        %v1152 = vmul.f32 %v855, %v703
        %v1153 = vmul.f32 %v856, %v704
        %v1154 = vmul.f32 %v857, %v705
        %v1155 = vmul.f32 %v858, %v706
        %v1156 = vmul.f32 %v855, %v735
        %v1157 = vmul.f32 %v856, %v736
        %v1158 = vmul.f32 %v857, %v737
        %v1159 = vmul.f32 %v858, %v738
        %v1160 = vmul.f32 %v855, %v767
        %v1161 = vmul.f32 %v856, %v768
        %v1162 = vmul.f32 %v857, %v769
        %v1163 = vmul.f32 %v858, %v770
        %v1164 = vmul.f32 %v855, %v799
        %v1165 = vmul.f32 %v856, %v800
        %v1166 = vmul.f32 %v857, %v801
        %v1167 = vmul.f32 %v858, %v802
        %v1168 = vmul.f32 %v855, %v831
        %v1169 = vmul.f32 %v856, %v832
        %v1170 = vmul.f32 %v857, %v833
        %v1171 = vmul.f32 %v858, %v834
        %v1172 = vsel %vm907, %v1140, 0.0
        %v1173 = vsel %vm907, %v1141, 0.0
        %v1174 = vadd.f32 %v1172, %v1173
        %v1175 = vsel %vm907, %v1142, 0.0
        %v1176 = vadd.f32 %v1174, %v1175
        %v1177 = vsel %vm907, %v1143, 0.0
        %v1178 = vadd.f32 %v1176, %v1177
        %v1179 = vsel %vm907, %v1144, 0.0
        %v1180 = vsel %vm907, %v1145, 0.0
        %v1181 = vadd.f32 %v1179, %v1180
        %v1182 = vsel %vm907, %v1146, 0.0
        %v1183 = vadd.f32 %v1181, %v1182
        %v1184 = vsel %vm907, %v1147, 0.0
        %v1185 = vadd.f32 %v1183, %v1184
        %v1186 = vsel %vm907, %v1148, 0.0
        %v1187 = vsel %vm907, %v1149, 0.0
        %v1188 = vadd.f32 %v1186, %v1187
        %v1189 = vsel %vm907, %v1150, 0.0
        %v1190 = vadd.f32 %v1188, %v1189
        %v1191 = vsel %vm907, %v1151, 0.0
        %v1192 = vadd.f32 %v1190, %v1191
        %v1193 = vsel %vm907, %v1152, 0.0
        %v1194 = vsel %vm907, %v1153, 0.0
        %v1195 = vadd.f32 %v1193, %v1194
        %v1196 = vsel %vm907, %v1154, 0.0
        %v1197 = vadd.f32 %v1195, %v1196
        %v1198 = vsel %vm907, %v1155, 0.0
        %v1199 = vadd.f32 %v1197, %v1198
        %v1200 = vsel %vm907, %v1156, 0.0
        %v1201 = vsel %vm907, %v1157, 0.0
        %v1202 = vadd.f32 %v1200, %v1201
        %v1203 = vsel %vm907, %v1158, 0.0
        %v1204 = vadd.f32 %v1202, %v1203
        %v1205 = vsel %vm907, %v1159, 0.0
        %v1206 = vadd.f32 %v1204, %v1205
        %v1207 = vsel %vm907, %v1160, 0.0
        %v1208 = vsel %vm907, %v1161, 0.0
        %v1209 = vadd.f32 %v1207, %v1208
        %v1210 = vsel %vm907, %v1162, 0.0
        %v1211 = vadd.f32 %v1209, %v1210
        %v1212 = vsel %vm907, %v1163, 0.0
        %v1213 = vadd.f32 %v1211, %v1212
        %v1214 = vsel %vm907, %v1164, 0.0
        %v1215 = vsel %vm907, %v1165, 0.0
        %v1216 = vadd.f32 %v1214, %v1215
        %v1217 = vsel %vm907, %v1166, 0.0
        %v1218 = vadd.f32 %v1216, %v1217
        %v1219 = vsel %vm907, %v1167, 0.0
        %v1220 = vadd.f32 %v1218, %v1219
        %v1221 = vsel %vm907, %v1168, 0.0
        %v1222 = vsel %vm907, %v1169, 0.0
        %v1223 = vadd.f32 %v1221, %v1222
        %v1224 = vsel %vm907, %v1170, 0.0
        %v1225 = vadd.f32 %v1223, %v1224
        %v1226 = vsel %vm907, %v1171, 0.0
        %v1227 = vadd.f32 %v1225, %v1226
        %v1228 = vmul.f32 %v859, %v607
        %v1229 = vmul.f32 %v860, %v608
        %v1230 = vmul.f32 %v861, %v609
        %v1231 = vmul.f32 %v862, %v610
        %v1232 = vmul.f32 %v859, %v639
        %v1233 = vmul.f32 %v860, %v640
        %v1234 = vmul.f32 %v861, %v641
        %v1235 = vmul.f32 %v862, %v642
        %v1236 = vmul.f32 %v859, %v671
        %v1237 = vmul.f32 %v860, %v672
        %v1238 = vmul.f32 %v861, %v673
        %v1239 = vmul.f32 %v862, %v674
        %v1240 = vmul.f32 %v859, %v703
        %v1241 = vmul.f32 %v860, %v704
        %v1242 = vmul.f32 %v861, %v705
        %v1243 = vmul.f32 %v862, %v706
        %v1244 = vmul.f32 %v859, %v735
        %v1245 = vmul.f32 %v860, %v736
        %v1246 = vmul.f32 %v861, %v737
        %v1247 = vmul.f32 %v862, %v738
        %v1248 = vmul.f32 %v859, %v767
        %v1249 = vmul.f32 %v860, %v768
        %v1250 = vmul.f32 %v861, %v769
        %v1251 = vmul.f32 %v862, %v770
        %v1252 = vmul.f32 %v859, %v799
        %v1253 = vmul.f32 %v860, %v800
        %v1254 = vmul.f32 %v861, %v801
        %v1255 = vmul.f32 %v862, %v802
        %v1256 = vmul.f32 %v859, %v831
        %v1257 = vmul.f32 %v860, %v832
        %v1258 = vmul.f32 %v861, %v833
        %v1259 = vmul.f32 %v862, %v834
        %v1260 = vsel %vm907, %v1228, 0.0
        %v1261 = vsel %vm907, %v1229, 0.0
        %v1262 = vadd.f32 %v1260, %v1261
        %v1263 = vsel %vm907, %v1230, 0.0
        %v1264 = vadd.f32 %v1262, %v1263
        %v1265 = vsel %vm907, %v1231, 0.0
        %v1266 = vadd.f32 %v1264, %v1265
        %v1267 = vsel %vm907, %v1232, 0.0
        %v1268 = vsel %vm907, %v1233, 0.0
        %v1269 = vadd.f32 %v1267, %v1268
        %v1270 = vsel %vm907, %v1234, 0.0
        %v1271 = vadd.f32 %v1269, %v1270
        %v1272 = vsel %vm907, %v1235, 0.0
        %v1273 = vadd.f32 %v1271, %v1272
        %v1274 = vsel %vm907, %v1236, 0.0
        %v1275 = vsel %vm907, %v1237, 0.0
        %v1276 = vadd.f32 %v1274, %v1275
        %v1277 = vsel %vm907, %v1238, 0.0
        %v1278 = vadd.f32 %v1276, %v1277
        %v1279 = vsel %vm907, %v1239, 0.0
        %v1280 = vadd.f32 %v1278, %v1279
        %v1281 = vsel %vm907, %v1240, 0.0
        %v1282 = vsel %vm907, %v1241, 0.0
        %v1283 = vadd.f32 %v1281, %v1282
        %v1284 = vsel %vm907, %v1242, 0.0
        %v1285 = vadd.f32 %v1283, %v1284
        %v1286 = vsel %vm907, %v1243, 0.0
        %v1287 = vadd.f32 %v1285, %v1286
        %v1288 = vsel %vm907, %v1244, 0.0
        %v1289 = vsel %vm907, %v1245, 0.0
        %v1290 = vadd.f32 %v1288, %v1289
        %v1291 = vsel %vm907, %v1246, 0.0
        %v1292 = vadd.f32 %v1290, %v1291
        %v1293 = vsel %vm907, %v1247, 0.0
        %v1294 = vadd.f32 %v1292, %v1293
        %v1295 = vsel %vm907, %v1248, 0.0
        %v1296 = vsel %vm907, %v1249, 0.0
        %v1297 = vadd.f32 %v1295, %v1296
        %v1298 = vsel %vm907, %v1250, 0.0
        %v1299 = vadd.f32 %v1297, %v1298
        %v1300 = vsel %vm907, %v1251, 0.0
        %v1301 = vadd.f32 %v1299, %v1300
        %v1302 = vsel %vm907, %v1252, 0.0
        %v1303 = vsel %vm907, %v1253, 0.0
        %v1304 = vadd.f32 %v1302, %v1303
        %v1305 = vsel %vm907, %v1254, 0.0
        %v1306 = vadd.f32 %v1304, %v1305
        %v1307 = vsel %vm907, %v1255, 0.0
        %v1308 = vadd.f32 %v1306, %v1307
        %v1309 = vsel %vm907, %v1256, 0.0
        %v1310 = vsel %vm907, %v1257, 0.0
        %v1311 = vadd.f32 %v1309, %v1310
        %v1312 = vsel %vm907, %v1258, 0.0
        %v1313 = vadd.f32 %v1311, %v1312
        %v1314 = vsel %vm907, %v1259, 0.0
        %v1315 = vadd.f32 %v1313, %v1314
        %v1316 = vmul.f32 %v863, %v607
        %v1317 = vmul.f32 %v864, %v608
        %v1318 = vmul.f32 %v865, %v609
        %v1319 = vmul.f32 %v866, %v610
        %v1320 = vmul.f32 %v863, %v639
        %v1321 = vmul.f32 %v864, %v640
        %v1322 = vmul.f32 %v865, %v641
        %v1323 = vmul.f32 %v866, %v642
        %v1324 = vmul.f32 %v863, %v671
        %v1325 = vmul.f32 %v864, %v672
        %v1326 = vmul.f32 %v865, %v673
        %v1327 = vmul.f32 %v866, %v674
        %v1328 = vmul.f32 %v863, %v703
        %v1329 = vmul.f32 %v864, %v704
        %v1330 = vmul.f32 %v865, %v705
        %v1331 = vmul.f32 %v866, %v706
        %v1332 = vmul.f32 %v863, %v735
        %v1333 = vmul.f32 %v864, %v736
        %v1334 = vmul.f32 %v865, %v737
        %v1335 = vmul.f32 %v866, %v738
        %v1336 = vmul.f32 %v863, %v767
        %v1337 = vmul.f32 %v864, %v768
        %v1338 = vmul.f32 %v865, %v769
        %v1339 = vmul.f32 %v866, %v770
        %v1340 = vmul.f32 %v863, %v799
        %v1341 = vmul.f32 %v864, %v800
        %v1342 = vmul.f32 %v865, %v801
        %v1343 = vmul.f32 %v866, %v802
        %v1344 = vmul.f32 %v863, %v831
        %v1345 = vmul.f32 %v864, %v832
        %v1346 = vmul.f32 %v865, %v833
        %v1347 = vmul.f32 %v866, %v834
        %v1348 = vsel %vm907, %v1316, 0.0
        %v1349 = vsel %vm907, %v1317, 0.0
        %v1350 = vadd.f32 %v1348, %v1349
        %v1351 = vsel %vm907, %v1318, 0.0
        %v1352 = vadd.f32 %v1350, %v1351
        %v1353 = vsel %vm907, %v1319, 0.0
        %v1354 = vadd.f32 %v1352, %v1353
        %v1355 = vsel %vm907, %v1320, 0.0
        %v1356 = vsel %vm907, %v1321, 0.0
        %v1357 = vadd.f32 %v1355, %v1356
        %v1358 = vsel %vm907, %v1322, 0.0
        %v1359 = vadd.f32 %v1357, %v1358
        %v1360 = vsel %vm907, %v1323, 0.0
        %v1361 = vadd.f32 %v1359, %v1360
        %v1362 = vsel %vm907, %v1324, 0.0
        %v1363 = vsel %vm907, %v1325, 0.0
        %v1364 = vadd.f32 %v1362, %v1363
        %v1365 = vsel %vm907, %v1326, 0.0
        %v1366 = vadd.f32 %v1364, %v1365
        %v1367 = vsel %vm907, %v1327, 0.0
        %v1368 = vadd.f32 %v1366, %v1367
        %v1369 = vsel %vm907, %v1328, 0.0
        %v1370 = vsel %vm907, %v1329, 0.0
        %v1371 = vadd.f32 %v1369, %v1370
        %v1372 = vsel %vm907, %v1330, 0.0
        %v1373 = vadd.f32 %v1371, %v1372
        %v1374 = vsel %vm907, %v1331, 0.0
        %v1375 = vadd.f32 %v1373, %v1374
        %v1376 = vsel %vm907, %v1332, 0.0
        %v1377 = vsel %vm907, %v1333, 0.0
        %v1378 = vadd.f32 %v1376, %v1377
        %v1379 = vsel %vm907, %v1334, 0.0
        %v1380 = vadd.f32 %v1378, %v1379
        %v1381 = vsel %vm907, %v1335, 0.0
        %v1382 = vadd.f32 %v1380, %v1381
        %v1383 = vsel %vm907, %v1336, 0.0
        %v1384 = vsel %vm907, %v1337, 0.0
        %v1385 = vadd.f32 %v1383, %v1384
        %v1386 = vsel %vm907, %v1338, 0.0
        %v1387 = vadd.f32 %v1385, %v1386
        %v1388 = vsel %vm907, %v1339, 0.0
        %v1389 = vadd.f32 %v1387, %v1388
        %v1390 = vsel %vm907, %v1340, 0.0
        %v1391 = vsel %vm907, %v1341, 0.0
        %v1392 = vadd.f32 %v1390, %v1391
        %v1393 = vsel %vm907, %v1342, 0.0
        %v1394 = vadd.f32 %v1392, %v1393
        %v1395 = vsel %vm907, %v1343, 0.0
        %v1396 = vadd.f32 %v1394, %v1395
        %v1397 = vsel %vm907, %v1344, 0.0
        %v1398 = vsel %vm907, %v1345, 0.0
        %v1399 = vadd.f32 %v1397, %v1398
        %v1400 = vsel %vm907, %v1346, 0.0
        %v1401 = vadd.f32 %v1399, %v1400
        %v1402 = vsel %vm907, %v1347, 0.0
        %v1403 = vadd.f32 %v1401, %v1402
        %v1404 = vmul.f32 %v867, %v607
        %v1405 = vmul.f32 %v868, %v608
        %v1406 = vmul.f32 %v869, %v609
        %v1407 = vmul.f32 %v870, %v610
        %v1408 = vmul.f32 %v867, %v639
        %v1409 = vmul.f32 %v868, %v640
        %v1410 = vmul.f32 %v869, %v641
        %v1411 = vmul.f32 %v870, %v642
        %v1412 = vmul.f32 %v867, %v671
        %v1413 = vmul.f32 %v868, %v672
        %v1414 = vmul.f32 %v869, %v673
        %v1415 = vmul.f32 %v870, %v674
        %v1416 = vmul.f32 %v867, %v703
        %v1417 = vmul.f32 %v868, %v704
        %v1418 = vmul.f32 %v869, %v705
        %v1419 = vmul.f32 %v870, %v706
        %v1420 = vmul.f32 %v867, %v735
        %v1421 = vmul.f32 %v868, %v736
        %v1422 = vmul.f32 %v869, %v737
        %v1423 = vmul.f32 %v870, %v738
        %v1424 = vmul.f32 %v867, %v767
        %v1425 = vmul.f32 %v868, %v768
        %v1426 = vmul.f32 %v869, %v769
        %v1427 = vmul.f32 %v870, %v770
        %v1428 = vmul.f32 %v867, %v799
        %v1429 = vmul.f32 %v868, %v800
        %v1430 = vmul.f32 %v869, %v801
        %v1431 = vmul.f32 %v870, %v802
        %v1432 = vmul.f32 %v867, %v831
        %v1433 = vmul.f32 %v868, %v832
        %v1434 = vmul.f32 %v869, %v833
        %v1435 = vmul.f32 %v870, %v834
        %v1436 = vsel %vm907, %v1404, 0.0
        %v1437 = vsel %vm907, %v1405, 0.0
        %v1438 = vadd.f32 %v1436, %v1437
        %v1439 = vsel %vm907, %v1406, 0.0
        %v1440 = vadd.f32 %v1438, %v1439
        %v1441 = vsel %vm907, %v1407, 0.0
        %v1442 = vadd.f32 %v1440, %v1441
        %v1443 = vsel %vm907, %v1408, 0.0
        %v1444 = vsel %vm907, %v1409, 0.0
        %v1445 = vadd.f32 %v1443, %v1444
        %v1446 = vsel %vm907, %v1410, 0.0
        %v1447 = vadd.f32 %v1445, %v1446
        %v1448 = vsel %vm907, %v1411, 0.0
        %v1449 = vadd.f32 %v1447, %v1448
        %v1450 = vsel %vm907, %v1412, 0.0
        %v1451 = vsel %vm907, %v1413, 0.0
        %v1452 = vadd.f32 %v1450, %v1451
        %v1453 = vsel %vm907, %v1414, 0.0
        %v1454 = vadd.f32 %v1452, %v1453
        %v1455 = vsel %vm907, %v1415, 0.0
        %v1456 = vadd.f32 %v1454, %v1455
        %v1457 = vsel %vm907, %v1416, 0.0
        %v1458 = vsel %vm907, %v1417, 0.0
        %v1459 = vadd.f32 %v1457, %v1458
        %v1460 = vsel %vm907, %v1418, 0.0
        %v1461 = vadd.f32 %v1459, %v1460
        %v1462 = vsel %vm907, %v1419, 0.0
        %v1463 = vadd.f32 %v1461, %v1462
        %v1464 = vsel %vm907, %v1420, 0.0
        %v1465 = vsel %vm907, %v1421, 0.0
        %v1466 = vadd.f32 %v1464, %v1465
        %v1467 = vsel %vm907, %v1422, 0.0
        %v1468 = vadd.f32 %v1466, %v1467
        %v1469 = vsel %vm907, %v1423, 0.0
        %v1470 = vadd.f32 %v1468, %v1469
        %v1471 = vsel %vm907, %v1424, 0.0
        %v1472 = vsel %vm907, %v1425, 0.0
        %v1473 = vadd.f32 %v1471, %v1472
        %v1474 = vsel %vm907, %v1426, 0.0
        %v1475 = vadd.f32 %v1473, %v1474
        %v1476 = vsel %vm907, %v1427, 0.0
        %v1477 = vadd.f32 %v1475, %v1476
        %v1478 = vsel %vm907, %v1428, 0.0
        %v1479 = vsel %vm907, %v1429, 0.0
        %v1480 = vadd.f32 %v1478, %v1479
        %v1481 = vsel %vm907, %v1430, 0.0
        %v1482 = vadd.f32 %v1480, %v1481
        %v1483 = vsel %vm907, %v1431, 0.0
        %v1484 = vadd.f32 %v1482, %v1483
        %v1485 = vsel %vm907, %v1432, 0.0
        %v1486 = vsel %vm907, %v1433, 0.0
        %v1487 = vadd.f32 %v1485, %v1486
        %v1488 = vsel %vm907, %v1434, 0.0
        %v1489 = vadd.f32 %v1487, %v1488
        %v1490 = vsel %vm907, %v1435, 0.0
        %v1491 = vadd.f32 %v1489, %v1490
        %v1492 = vmul.f32 %v871, %v607
        %v1493 = vmul.f32 %v872, %v608
        %v1494 = vmul.f32 %v873, %v609
        %v1495 = vmul.f32 %v874, %v610
        %v1496 = vmul.f32 %v871, %v639
        %v1497 = vmul.f32 %v872, %v640
        %v1498 = vmul.f32 %v873, %v641
        %v1499 = vmul.f32 %v874, %v642
        %v1500 = vmul.f32 %v871, %v671
        %v1501 = vmul.f32 %v872, %v672
        %v1502 = vmul.f32 %v873, %v673
        %v1503 = vmul.f32 %v874, %v674
        %v1504 = vmul.f32 %v871, %v703
        %v1505 = vmul.f32 %v872, %v704
        %v1506 = vmul.f32 %v873, %v705
        %v1507 = vmul.f32 %v874, %v706
        %v1508 = vmul.f32 %v871, %v735
        %v1509 = vmul.f32 %v872, %v736
        %v1510 = vmul.f32 %v873, %v737
        %v1511 = vmul.f32 %v874, %v738
        %v1512 = vmul.f32 %v871, %v767
        %v1513 = vmul.f32 %v872, %v768
        %v1514 = vmul.f32 %v873, %v769
        %v1515 = vmul.f32 %v874, %v770
        %v1516 = vmul.f32 %v871, %v799
        %v1517 = vmul.f32 %v872, %v800
        %v1518 = vmul.f32 %v873, %v801
        %v1519 = vmul.f32 %v874, %v802
        %v1520 = vmul.f32 %v871, %v831
        %v1521 = vmul.f32 %v872, %v832
        %v1522 = vmul.f32 %v873, %v833
        %v1523 = vmul.f32 %v874, %v834
        %v1524 = vsel %vm907, %v1492, 0.0
        %v1525 = vsel %vm907, %v1493, 0.0
        %v1526 = vadd.f32 %v1524, %v1525
        %v1527 = vsel %vm907, %v1494, 0.0
        %v1528 = vadd.f32 %v1526, %v1527
        %v1529 = vsel %vm907, %v1495, 0.0
        %v1530 = vadd.f32 %v1528, %v1529
        %v1531 = vsel %vm907, %v1496, 0.0
        %v1532 = vsel %vm907, %v1497, 0.0
        %v1533 = vadd.f32 %v1531, %v1532
        %v1534 = vsel %vm907, %v1498, 0.0
        %v1535 = vadd.f32 %v1533, %v1534
        %v1536 = vsel %vm907, %v1499, 0.0
        %v1537 = vadd.f32 %v1535, %v1536
        %v1538 = vsel %vm907, %v1500, 0.0
        %v1539 = vsel %vm907, %v1501, 0.0
        %v1540 = vadd.f32 %v1538, %v1539
        %v1541 = vsel %vm907, %v1502, 0.0
        %v1542 = vadd.f32 %v1540, %v1541
        %v1543 = vsel %vm907, %v1503, 0.0
        %v1544 = vadd.f32 %v1542, %v1543
        %v1545 = vsel %vm907, %v1504, 0.0
        %v1546 = vsel %vm907, %v1505, 0.0
        %v1547 = vadd.f32 %v1545, %v1546
        %v1548 = vsel %vm907, %v1506, 0.0
        %v1549 = vadd.f32 %v1547, %v1548
        %v1550 = vsel %vm907, %v1507, 0.0
        %v1551 = vadd.f32 %v1549, %v1550
        %v1552 = vsel %vm907, %v1508, 0.0
        %v1553 = vsel %vm907, %v1509, 0.0
        %v1554 = vadd.f32 %v1552, %v1553
        %v1555 = vsel %vm907, %v1510, 0.0
        %v1556 = vadd.f32 %v1554, %v1555
        %v1557 = vsel %vm907, %v1511, 0.0
        %v1558 = vadd.f32 %v1556, %v1557
        %v1559 = vsel %vm907, %v1512, 0.0
        %v1560 = vsel %vm907, %v1513, 0.0
        %v1561 = vadd.f32 %v1559, %v1560
        %v1562 = vsel %vm907, %v1514, 0.0
        %v1563 = vadd.f32 %v1561, %v1562
        %v1564 = vsel %vm907, %v1515, 0.0
        %v1565 = vadd.f32 %v1563, %v1564
        %v1566 = vsel %vm907, %v1516, 0.0
        %v1567 = vsel %vm907, %v1517, 0.0
        %v1568 = vadd.f32 %v1566, %v1567
        %v1569 = vsel %vm907, %v1518, 0.0
        %v1570 = vadd.f32 %v1568, %v1569
        %v1571 = vsel %vm907, %v1519, 0.0
        %v1572 = vadd.f32 %v1570, %v1571
        %v1573 = vsel %vm907, %v1520, 0.0
        %v1574 = vsel %vm907, %v1521, 0.0
        %v1575 = vadd.f32 %v1573, %v1574
        %v1576 = vsel %vm907, %v1522, 0.0
        %v1577 = vadd.f32 %v1575, %v1576
        %v1578 = vsel %vm907, %v1523, 0.0
        %v1579 = vadd.f32 %v1577, %v1578
        %v1580 = vsel %vm907, %v914, -inf
        %v1581 = vsel %vm907, %v921, -inf
        %v1582 = vmax.f32 %v1580, %v1581
        %v1583 = vsel %vm907, %v928, -inf
        %v1584 = vmax.f32 %v1582, %v1583
        %v1585 = vsel %vm907, %v935, -inf
        %v1586 = vmax.f32 %v1584, %v1585
        %v1587 = vsel %vm907, %v942, -inf
        %v1588 = vmax.f32 %v1586, %v1587
        %v1589 = vsel %vm907, %v949, -inf
        %v1590 = vmax.f32 %v1588, %v1589
        %v1591 = vsel %vm907, %v956, -inf
        %v1592 = vmax.f32 %v1590, %v1591
        %v1593 = vsel %vm907, %v963, -inf
        %v1594 = vmax.f32 %v1592, %v1593
        %v1595 = vsel %vm907, %v1002, -inf
        %v1596 = vsel %vm907, %v1009, -inf
        %v1597 = vmax.f32 %v1595, %v1596
        %v1598 = vsel %vm907, %v1016, -inf
        %v1599 = vmax.f32 %v1597, %v1598
        %v1600 = vsel %vm907, %v1023, -inf
        %v1601 = vmax.f32 %v1599, %v1600
        %v1602 = vsel %vm907, %v1030, -inf
        %v1603 = vmax.f32 %v1601, %v1602
        %v1604 = vsel %vm907, %v1037, -inf
        %v1605 = vmax.f32 %v1603, %v1604
        %v1606 = vsel %vm907, %v1044, -inf
        %v1607 = vmax.f32 %v1605, %v1606
        %v1608 = vsel %vm907, %v1051, -inf
        %v1609 = vmax.f32 %v1607, %v1608
        %v1610 = vsel %vm907, %v1090, -inf
        %v1611 = vsel %vm907, %v1097, -inf
        %v1612 = vmax.f32 %v1610, %v1611
        %v1613 = vsel %vm907, %v1104, -inf
        %v1614 = vmax.f32 %v1612, %v1613
        %v1615 = vsel %vm907, %v1111, -inf
        %v1616 = vmax.f32 %v1614, %v1615
        %v1617 = vsel %vm907, %v1118, -inf
        %v1618 = vmax.f32 %v1616, %v1617
        %v1619 = vsel %vm907, %v1125, -inf
        %v1620 = vmax.f32 %v1618, %v1619
        %v1621 = vsel %vm907, %v1132, -inf
        %v1622 = vmax.f32 %v1620, %v1621
        %v1623 = vsel %vm907, %v1139, -inf
        %v1624 = vmax.f32 %v1622, %v1623
        %v1625 = vsel %vm907, %v1178, -inf
        %v1626 = vsel %vm907, %v1185, -inf
        %v1627 = vmax.f32 %v1625, %v1626
        %v1628 = vsel %vm907, %v1192, -inf
        %v1629 = vmax.f32 %v1627, %v1628
        %v1630 = vsel %vm907, %v1199, -inf
        %v1631 = vmax.f32 %v1629, %v1630
        %v1632 = vsel %vm907, %v1206, -inf
        %v1633 = vmax.f32 %v1631, %v1632
        %v1634 = vsel %vm907, %v1213, -inf
        %v1635 = vmax.f32 %v1633, %v1634
        %v1636 = vsel %vm907, %v1220, -inf
        %v1637 = vmax.f32 %v1635, %v1636
        %v1638 = vsel %vm907, %v1227, -inf
        %v1639 = vmax.f32 %v1637, %v1638
        %v1640 = vsel %vm907, %v1266, -inf
        %v1641 = vsel %vm907, %v1273, -inf
        %v1642 = vmax.f32 %v1640, %v1641
        %v1643 = vsel %vm907, %v1280, -inf
        %v1644 = vmax.f32 %v1642, %v1643
        %v1645 = vsel %vm907, %v1287, -inf
        %v1646 = vmax.f32 %v1644, %v1645
        %v1647 = vsel %vm907, %v1294, -inf
        %v1648 = vmax.f32 %v1646, %v1647
        %v1649 = vsel %vm907, %v1301, -inf
        %v1650 = vmax.f32 %v1648, %v1649
        %v1651 = vsel %vm907, %v1308, -inf
        %v1652 = vmax.f32 %v1650, %v1651
        %v1653 = vsel %vm907, %v1315, -inf
        %v1654 = vmax.f32 %v1652, %v1653
        %v1655 = vsel %vm907, %v1354, -inf
        %v1656 = vsel %vm907, %v1361, -inf
        %v1657 = vmax.f32 %v1655, %v1656
        %v1658 = vsel %vm907, %v1368, -inf
        %v1659 = vmax.f32 %v1657, %v1658
        %v1660 = vsel %vm907, %v1375, -inf
        %v1661 = vmax.f32 %v1659, %v1660
        %v1662 = vsel %vm907, %v1382, -inf
        %v1663 = vmax.f32 %v1661, %v1662
        %v1664 = vsel %vm907, %v1389, -inf
        %v1665 = vmax.f32 %v1663, %v1664
        %v1666 = vsel %vm907, %v1396, -inf
        %v1667 = vmax.f32 %v1665, %v1666
        %v1668 = vsel %vm907, %v1403, -inf
        %v1669 = vmax.f32 %v1667, %v1668
        %v1670 = vsel %vm907, %v1442, -inf
        %v1671 = vsel %vm907, %v1449, -inf
        %v1672 = vmax.f32 %v1670, %v1671
        %v1673 = vsel %vm907, %v1456, -inf
        %v1674 = vmax.f32 %v1672, %v1673
        %v1675 = vsel %vm907, %v1463, -inf
        %v1676 = vmax.f32 %v1674, %v1675
        %v1677 = vsel %vm907, %v1470, -inf
        %v1678 = vmax.f32 %v1676, %v1677
        %v1679 = vsel %vm907, %v1477, -inf
        %v1680 = vmax.f32 %v1678, %v1679
        %v1681 = vsel %vm907, %v1484, -inf
        %v1682 = vmax.f32 %v1680, %v1681
        %v1683 = vsel %vm907, %v1491, -inf
        %v1684 = vmax.f32 %v1682, %v1683
        %v1685 = vsel %vm907, %v1530, -inf
        %v1686 = vsel %vm907, %v1537, -inf
        %v1687 = vmax.f32 %v1685, %v1686
        %v1688 = vsel %vm907, %v1544, -inf
        %v1689 = vmax.f32 %v1687, %v1688
        %v1690 = vsel %vm907, %v1551, -inf
        %v1691 = vmax.f32 %v1689, %v1690
        %v1692 = vsel %vm907, %v1558, -inf
        %v1693 = vmax.f32 %v1691, %v1692
        %v1694 = vsel %vm907, %v1565, -inf
        %v1695 = vmax.f32 %v1693, %v1694
        %v1696 = vsel %vm907, %v1572, -inf
        %v1697 = vmax.f32 %v1695, %v1696
        %v1698 = vsel %vm907, %v1579, -inf
        %v1699 = vmax.f32 %v1697, %v1698
        %v1700 = vsub.f32 %v914, %v1594
        %v1701 = vsub.f32 %v921, %v1594
        %v1702 = vsub.f32 %v928, %v1594
        %v1703 = vsub.f32 %v935, %v1594
        %v1704 = vsub.f32 %v942, %v1594
        %v1705 = vsub.f32 %v949, %v1594
        %v1706 = vsub.f32 %v956, %v1594
        %v1707 = vsub.f32 %v963, %v1594
        %v1708 = vsub.f32 %v1002, %v1609
        %v1709 = vsub.f32 %v1009, %v1609
        %v1710 = vsub.f32 %v1016, %v1609
        %v1711 = vsub.f32 %v1023, %v1609
        %v1712 = vsub.f32 %v1030, %v1609
        %v1713 = vsub.f32 %v1037, %v1609
        %v1714 = vsub.f32 %v1044, %v1609
        %v1715 = vsub.f32 %v1051, %v1609
        %v1716 = vsub.f32 %v1090, %v1624
        %v1717 = vsub.f32 %v1097, %v1624
        %v1718 = vsub.f32 %v1104, %v1624
        %v1719 = vsub.f32 %v1111, %v1624
        %v1720 = vsub.f32 %v1118, %v1624
        %v1721 = vsub.f32 %v1125, %v1624
        %v1722 = vsub.f32 %v1132, %v1624
        %v1723 = vsub.f32 %v1139, %v1624
        %v1724 = vsub.f32 %v1178, %v1639
        %v1725 = vsub.f32 %v1185, %v1639
        %v1726 = vsub.f32 %v1192, %v1639
        %v1727 = vsub.f32 %v1199, %v1639
        %v1728 = vsub.f32 %v1206, %v1639
        %v1729 = vsub.f32 %v1213, %v1639
        %v1730 = vsub.f32 %v1220, %v1639
        %v1731 = vsub.f32 %v1227, %v1639
        %v1732 = vsub.f32 %v1266, %v1654
        %v1733 = vsub.f32 %v1273, %v1654
        %v1734 = vsub.f32 %v1280, %v1654
        %v1735 = vsub.f32 %v1287, %v1654
        %v1736 = vsub.f32 %v1294, %v1654
        %v1737 = vsub.f32 %v1301, %v1654
        %v1738 = vsub.f32 %v1308, %v1654
        %v1739 = vsub.f32 %v1315, %v1654
        %v1740 = vsub.f32 %v1354, %v1669
        %v1741 = vsub.f32 %v1361, %v1669
        %v1742 = vsub.f32 %v1368, %v1669
        %v1743 = vsub.f32 %v1375, %v1669
        %v1744 = vsub.f32 %v1382, %v1669
        %v1745 = vsub.f32 %v1389, %v1669
        %v1746 = vsub.f32 %v1396, %v1669
        %v1747 = vsub.f32 %v1403, %v1669
        %v1748 = vsub.f32 %v1442, %v1684
        %v1749 = vsub.f32 %v1449, %v1684
        %v1750 = vsub.f32 %v1456, %v1684
        %v1751 = vsub.f32 %v1463, %v1684
        %v1752 = vsub.f32 %v1470, %v1684
        %v1753 = vsub.f32 %v1477, %v1684
        %v1754 = vsub.f32 %v1484, %v1684
        %v1755 = vsub.f32 %v1491, %v1684
        %v1756 = vsub.f32 %v1530, %v1699
        %v1757 = vsub.f32 %v1537, %v1699
        %v1758 = vsub.f32 %v1544, %v1699
        %v1759 = vsub.f32 %v1551, %v1699
        %v1760 = vsub.f32 %v1558, %v1699
        %v1761 = vsub.f32 %v1565, %v1699
        %v1762 = vsub.f32 %v1572, %v1699
        %v1763 = vsub.f32 %v1579, %v1699
        %v1764 = vmul.f32 %v1700, 1.442695
        %v1765 = vpow.pop %v1764
        %v1766 = vmul.f32 %v1701, 1.442695
        %v1767 = vpow.pop %v1766
        %v1768 = vmul.f32 %v1702, 1.442695
        %v1769 = vpow.pop %v1768
        %v1770 = vmul.f32 %v1703, 1.442695
        %v1771 = vpow.pop %v1770
        %v1772 = vmul.f32 %v1704, 1.442695
        %v1773 = vpow.pop %v1772
        %v1774 = vmul.f32 %v1705, 1.442695
        %v1775 = vpow.pop %v1774
        %v1776 = vmul.f32 %v1706, 1.442695
        %v1777 = vpow.pop %v1776
        %v1778 = vmul.f32 %v1707, 1.442695
        %v1779 = vpow.pop %v1778
        %v1780 = vmul.f32 %v1708, 1.442695
        %v1781 = vpow.pop %v1780
        %v1782 = vmul.f32 %v1709, 1.442695
        %v1783 = vpow.pop %v1782
        %v1784 = vmul.f32 %v1710, 1.442695
        %v1785 = vpow.pop %v1784
        %v1786 = vmul.f32 %v1711, 1.442695
        %v1787 = vpow.pop %v1786
        %v1788 = vmul.f32 %v1712, 1.442695
        %v1789 = vpow.pop %v1788
        %v1790 = vmul.f32 %v1713, 1.442695
        %v1791 = vpow.pop %v1790
        %v1792 = vmul.f32 %v1714, 1.442695
        %v1793 = vpow.pop %v1792
        %v1794 = vmul.f32 %v1715, 1.442695
        %v1795 = vpow.pop %v1794
        %v1796 = vmul.f32 %v1716, 1.442695
        %v1797 = vpow.pop %v1796
        %v1798 = vmul.f32 %v1717, 1.442695
        %v1799 = vpow.pop %v1798
        %v1800 = vmul.f32 %v1718, 1.442695
        %v1801 = vpow.pop %v1800
        %v1802 = vmul.f32 %v1719, 1.442695
        %v1803 = vpow.pop %v1802
        %v1804 = vmul.f32 %v1720, 1.442695
        %v1805 = vpow.pop %v1804
        %v1806 = vmul.f32 %v1721, 1.442695
        %v1807 = vpow.pop %v1806
        %v1808 = vmul.f32 %v1722, 1.442695
        %v1809 = vpow.pop %v1808
        %v1810 = vmul.f32 %v1723, 1.442695
        %v1811 = vpow.pop %v1810
        %v1812 = vmul.f32 %v1724, 1.442695
        %v1813 = vpow.pop %v1812
        %v1814 = vmul.f32 %v1725, 1.442695
        %v1815 = vpow.pop %v1814
        %v1816 = vmul.f32 %v1726, 1.442695
        %v1817 = vpow.pop %v1816
        %v1818 = vmul.f32 %v1727, 1.442695
        %v1819 = vpow.pop %v1818
        %v1820 = vmul.f32 %v1728, 1.442695
        %v1821 = vpow.pop %v1820
        %v1822 = vmul.f32 %v1729, 1.442695
        %v1823 = vpow.pop %v1822
        %v1824 = vmul.f32 %v1730, 1.442695
        %v1825 = vpow.pop %v1824
        %v1826 = vmul.f32 %v1731, 1.442695
        %v1827 = vpow.pop %v1826
        %v1828 = vmul.f32 %v1732, 1.442695
        %v1829 = vpow.pop %v1828
        %v1830 = vmul.f32 %v1733, 1.442695
        %v1831 = vpow.pop %v1830
        %v1832 = vmul.f32 %v1734, 1.442695
        %v1833 = vpow.pop %v1832
        %v1834 = vmul.f32 %v1735, 1.442695
        %v1835 = vpow.pop %v1834
        %v1836 = vmul.f32 %v1736, 1.442695
        %v1837 = vpow.pop %v1836
        %v1838 = vmul.f32 %v1737, 1.442695
        %v1839 = vpow.pop %v1838
        %v1840 = vmul.f32 %v1738, 1.442695
        %v1841 = vpow.pop %v1840
        %v1842 = vmul.f32 %v1739, 1.442695
        %v1843 = vpow.pop %v1842
        %v1844 = vmul.f32 %v1740, 1.442695
        %v1845 = vpow.pop %v1844
        %v1846 = vmul.f32 %v1741, 1.442695
        %v1847 = vpow.pop %v1846
        %v1848 = vmul.f32 %v1742, 1.442695
        %v1849 = vpow.pop %v1848
        %v1850 = vmul.f32 %v1743, 1.442695
        %v1851 = vpow.pop %v1850
        %v1852 = vmul.f32 %v1744, 1.442695
        %v1853 = vpow.pop %v1852
        %v1854 = vmul.f32 %v1745, 1.442695
        %v1855 = vpow.pop %v1854
        %v1856 = vmul.f32 %v1746, 1.442695
        %v1857 = vpow.pop %v1856
        %v1858 = vmul.f32 %v1747, 1.442695
        %v1859 = vpow.pop %v1858
        %v1860 = vmul.f32 %v1748, 1.442695
        %v1861 = vpow.pop %v1860
        %v1862 = vmul.f32 %v1749, 1.442695
        %v1863 = vpow.pop %v1862
        %v1864 = vmul.f32 %v1750, 1.442695
        %v1865 = vpow.pop %v1864
        %v1866 = vmul.f32 %v1751, 1.442695
        %v1867 = vpow.pop %v1866
        %v1868 = vmul.f32 %v1752, 1.442695
        %v1869 = vpow.pop %v1868
        %v1870 = vmul.f32 %v1753, 1.442695
        %v1871 = vpow.pop %v1870
        %v1872 = vmul.f32 %v1754, 1.442695
        %v1873 = vpow.pop %v1872
        %v1874 = vmul.f32 %v1755, 1.442695
        %v1875 = vpow.pop %v1874
        %v1876 = vmul.f32 %v1756, 1.442695
        %v1877 = vpow.pop %v1876
        %v1878 = vmul.f32 %v1757, 1.442695
        %v1879 = vpow.pop %v1878
        %v1880 = vmul.f32 %v1758, 1.442695
        %v1881 = vpow.pop %v1880
        %v1882 = vmul.f32 %v1759, 1.442695
        %v1883 = vpow.pop %v1882
        %v1884 = vmul.f32 %v1760, 1.442695
        %v1885 = vpow.pop %v1884
        %v1886 = vmul.f32 %v1761, 1.442695
        %v1887 = vpow.pop %v1886
        %v1888 = vmul.f32 %v1762, 1.442695
        %v1889 = vpow.pop %v1888
        %v1890 = vmul.f32 %v1763, 1.442695
        %v1891 = vpow.pop %v1890
        %v1892 = vsel %vm907, %v1765, 0.0
        %v1893 = vsel %vm907, %v1767, 0.0
        %v1894 = vadd.f32 %v1892, %v1893
        %v1895 = vsel %vm907, %v1769, 0.0
        %v1896 = vadd.f32 %v1894, %v1895
        %v1897 = vsel %vm907, %v1771, 0.0
        %v1898 = vadd.f32 %v1896, %v1897
        %v1899 = vsel %vm907, %v1773, 0.0
        %v1900 = vadd.f32 %v1898, %v1899
        %v1901 = vsel %vm907, %v1775, 0.0
        %v1902 = vadd.f32 %v1900, %v1901
        %v1903 = vsel %vm907, %v1777, 0.0
        %v1904 = vadd.f32 %v1902, %v1903
        %v1905 = vsel %vm907, %v1779, 0.0
        %v1906 = vadd.f32 %v1904, %v1905
        %v1907 = vsel %vm907, %v1781, 0.0
        %v1908 = vsel %vm907, %v1783, 0.0
        %v1909 = vadd.f32 %v1907, %v1908
        %v1910 = vsel %vm907, %v1785, 0.0
        %v1911 = vadd.f32 %v1909, %v1910
        %v1912 = vsel %vm907, %v1787, 0.0
        %v1913 = vadd.f32 %v1911, %v1912
        %v1914 = vsel %vm907, %v1789, 0.0
        %v1915 = vadd.f32 %v1913, %v1914
        %v1916 = vsel %vm907, %v1791, 0.0
        %v1917 = vadd.f32 %v1915, %v1916
        %v1918 = vsel %vm907, %v1793, 0.0
        %v1919 = vadd.f32 %v1917, %v1918
        %v1920 = vsel %vm907, %v1795, 0.0
        %v1921 = vadd.f32 %v1919, %v1920
        %v1922 = vsel %vm907, %v1797, 0.0
        %v1923 = vsel %vm907, %v1799, 0.0
        %v1924 = vadd.f32 %v1922, %v1923
        %v1925 = vsel %vm907, %v1801, 0.0
        %v1926 = vadd.f32 %v1924, %v1925
        %v1927 = vsel %vm907, %v1803, 0.0
        %v1928 = vadd.f32 %v1926, %v1927
        %v1929 = vsel %vm907, %v1805, 0.0
        %v1930 = vadd.f32 %v1928, %v1929
        %v1931 = vsel %vm907, %v1807, 0.0
        %v1932 = vadd.f32 %v1930, %v1931
        %v1933 = vsel %vm907, %v1809, 0.0
        %v1934 = vadd.f32 %v1932, %v1933
        %v1935 = vsel %vm907, %v1811, 0.0
        %v1936 = vadd.f32 %v1934, %v1935
        %v1937 = vsel %vm907, %v1813, 0.0
        %v1938 = vsel %vm907, %v1815, 0.0
        %v1939 = vadd.f32 %v1937, %v1938
        %v1940 = vsel %vm907, %v1817, 0.0
        %v1941 = vadd.f32 %v1939, %v1940
        %v1942 = vsel %vm907, %v1819, 0.0
        %v1943 = vadd.f32 %v1941, %v1942
        %v1944 = vsel %vm907, %v1821, 0.0
        %v1945 = vadd.f32 %v1943, %v1944
        %v1946 = vsel %vm907, %v1823, 0.0
        %v1947 = vadd.f32 %v1945, %v1946
        %v1948 = vsel %vm907, %v1825, 0.0
        %v1949 = vadd.f32 %v1947, %v1948
        %v1950 = vsel %vm907, %v1827, 0.0
        %v1951 = vadd.f32 %v1949, %v1950
        %v1952 = vsel %vm907, %v1829, 0.0
        %v1953 = vsel %vm907, %v1831, 0.0
        %v1954 = vadd.f32 %v1952, %v1953
        %v1955 = vsel %vm907, %v1833, 0.0
        %v1956 = vadd.f32 %v1954, %v1955
        %v1957 = vsel %vm907, %v1835, 0.0
        %v1958 = vadd.f32 %v1956, %v1957
        %v1959 = vsel %vm907, %v1837, 0.0
        %v1960 = vadd.f32 %v1958, %v1959
        %v1961 = vsel %vm907, %v1839, 0.0
        %v1962 = vadd.f32 %v1960, %v1961
        %v1963 = vsel %vm907, %v1841, 0.0
        %v1964 = vadd.f32 %v1962, %v1963
        %v1965 = vsel %vm907, %v1843, 0.0
        %v1966 = vadd.f32 %v1964, %v1965
        %v1967 = vsel %vm907, %v1845, 0.0
        %v1968 = vsel %vm907, %v1847, 0.0
        %v1969 = vadd.f32 %v1967, %v1968
        %v1970 = vsel %vm907, %v1849, 0.0
        %v1971 = vadd.f32 %v1969, %v1970
        %v1972 = vsel %vm907, %v1851, 0.0
        %v1973 = vadd.f32 %v1971, %v1972
        %v1974 = vsel %vm907, %v1853, 0.0
        %v1975 = vadd.f32 %v1973, %v1974
        %v1976 = vsel %vm907, %v1855, 0.0
        %v1977 = vadd.f32 %v1975, %v1976
        %v1978 = vsel %vm907, %v1857, 0.0
        %v1979 = vadd.f32 %v1977, %v1978
        %v1980 = vsel %vm907, %v1859, 0.0
        %v1981 = vadd.f32 %v1979, %v1980
        %v1982 = vsel %vm907, %v1861, 0.0
        %v1983 = vsel %vm907, %v1863, 0.0
        %v1984 = vadd.f32 %v1982, %v1983
        %v1985 = vsel %vm907, %v1865, 0.0
        %v1986 = vadd.f32 %v1984, %v1985
        %v1987 = vsel %vm907, %v1867, 0.0
        %v1988 = vadd.f32 %v1986, %v1987
        %v1989 = vsel %vm907, %v1869, 0.0
        %v1990 = vadd.f32 %v1988, %v1989
        %v1991 = vsel %vm907, %v1871, 0.0
        %v1992 = vadd.f32 %v1990, %v1991
        %v1993 = vsel %vm907, %v1873, 0.0
        %v1994 = vadd.f32 %v1992, %v1993
        %v1995 = vsel %vm907, %v1875, 0.0
        %v1996 = vadd.f32 %v1994, %v1995
        %v1997 = vsel %vm907, %v1877, 0.0
        %v1998 = vsel %vm907, %v1879, 0.0
        %v1999 = vadd.f32 %v1997, %v1998
        %v2000 = vsel %vm907, %v1881, 0.0
        %v2001 = vadd.f32 %v1999, %v2000
        %v2002 = vsel %vm907, %v1883, 0.0
        %v2003 = vadd.f32 %v2001, %v2002
        %v2004 = vsel %vm907, %v1885, 0.0
        %v2005 = vadd.f32 %v2003, %v2004
        %v2006 = vsel %vm907, %v1887, 0.0
        %v2007 = vadd.f32 %v2005, %v2006
        %v2008 = vsel %vm907, %v1889, 0.0
        %v2009 = vadd.f32 %v2007, %v2008
        %v2010 = vsel %vm907, %v1891, 0.0
        %v2011 = vadd.f32 %v2009, %v2010
        %v2012 = vrcp.pop %v1906
        %v2013 = vrcp.pop %v1921
        %v2014 = vrcp.pop %v1936
        %v2015 = vrcp.pop %v1951
        %v2016 = vrcp.pop %v1966
        %v2017 = vrcp.pop %v1981
        %v2018 = vrcp.pop %v1996
        %v2019 = vrcp.pop %v2011
        %v2020 = vmul.f32 %v1765, %v2012
        %v2021 = vmul.f32 %v1767, %v2012
        %v2022 = vmul.f32 %v1769, %v2012
        %v2023 = vmul.f32 %v1771, %v2012
        %v2024 = vmul.f32 %v1773, %v2012
        %v2025 = vmul.f32 %v1775, %v2012
        %v2026 = vmul.f32 %v1777, %v2012
        %v2027 = vmul.f32 %v1779, %v2012
        %v2028 = vmul.f32 %v1781, %v2013
        %v2029 = vmul.f32 %v1783, %v2013
        %v2030 = vmul.f32 %v1785, %v2013
        %v2031 = vmul.f32 %v1787, %v2013
        %v2032 = vmul.f32 %v1789, %v2013
        %v2033 = vmul.f32 %v1791, %v2013
        %v2034 = vmul.f32 %v1793, %v2013
        %v2035 = vmul.f32 %v1795, %v2013
        %v2036 = vmul.f32 %v1797, %v2014
        %v2037 = vmul.f32 %v1799, %v2014
        %v2038 = vmul.f32 %v1801, %v2014
        %v2039 = vmul.f32 %v1803, %v2014
        %v2040 = vmul.f32 %v1805, %v2014
        %v2041 = vmul.f32 %v1807, %v2014
        %v2042 = vmul.f32 %v1809, %v2014
        %v2043 = vmul.f32 %v1811, %v2014
        %v2044 = vmul.f32 %v1813, %v2015
        %v2045 = vmul.f32 %v1815, %v2015
        %v2046 = vmul.f32 %v1817, %v2015
        %v2047 = vmul.f32 %v1819, %v2015
        %v2048 = vmul.f32 %v1821, %v2015
        %v2049 = vmul.f32 %v1823, %v2015
        %v2050 = vmul.f32 %v1825, %v2015
        %v2051 = vmul.f32 %v1827, %v2015
        %v2052 = vmul.f32 %v1829, %v2016
        %v2053 = vmul.f32 %v1831, %v2016
        %v2054 = vmul.f32 %v1833, %v2016
        %v2055 = vmul.f32 %v1835, %v2016
        %v2056 = vmul.f32 %v1837, %v2016
        %v2057 = vmul.f32 %v1839, %v2016
        %v2058 = vmul.f32 %v1841, %v2016
        %v2059 = vmul.f32 %v1843, %v2016
        %v2060 = vmul.f32 %v1845, %v2017
        %v2061 = vmul.f32 %v1847, %v2017
        %v2062 = vmul.f32 %v1849, %v2017
        %v2063 = vmul.f32 %v1851, %v2017
        %v2064 = vmul.f32 %v1853, %v2017
        %v2065 = vmul.f32 %v1855, %v2017
        %v2066 = vmul.f32 %v1857, %v2017
        %v2067 = vmul.f32 %v1859, %v2017
        %v2068 = vmul.f32 %v1861, %v2018
        %v2069 = vmul.f32 %v1863, %v2018
        %v2070 = vmul.f32 %v1865, %v2018
        %v2071 = vmul.f32 %v1867, %v2018
        %v2072 = vmul.f32 %v1869, %v2018
        %v2073 = vmul.f32 %v1871, %v2018
        %v2074 = vmul.f32 %v1873, %v2018
        %v2075 = vmul.f32 %v1875, %v2018
        %v2076 = vmul.f32 %v1877, %v2019
        %v2077 = vmul.f32 %v1879, %v2019
        %v2078 = vmul.f32 %v1881, %v2019
        %v2079 = vmul.f32 %v1883, %v2019
        %v2080 = vmul.f32 %v1885, %v2019
        %v2081 = vmul.f32 %v1887, %v2019
        %v2082 = vmul.f32 %v1889, %v2019
        %v2083 = vmul.f32 %v1891, %v2019
        %v2084 = vmul.f32 %v2020, %v611
        %v2085 = vmul.f32 %v2020, %v612
        %v2086 = vmul.f32 %v2020, %v613
        %v2087 = vmul.f32 %v2020, %v614
        %v2088 = vmul.f32 %v2021, %v643
        %v2089 = vmul.f32 %v2021, %v644
        %v2090 = vmul.f32 %v2021, %v645
        %v2091 = vmul.f32 %v2021, %v646
        %v2092 = vmul.f32 %v2022, %v675
        %v2093 = vmul.f32 %v2022, %v676
        %v2094 = vmul.f32 %v2022, %v677
        %v2095 = vmul.f32 %v2022, %v678
        %v2096 = vmul.f32 %v2023, %v707
        %v2097 = vmul.f32 %v2023, %v708
        %v2098 = vmul.f32 %v2023, %v709
        %v2099 = vmul.f32 %v2023, %v710
        %v2100 = vmul.f32 %v2024, %v739
        %v2101 = vmul.f32 %v2024, %v740
        %v2102 = vmul.f32 %v2024, %v741
        %v2103 = vmul.f32 %v2024, %v742
        %v2104 = vmul.f32 %v2025, %v771
        %v2105 = vmul.f32 %v2025, %v772
        %v2106 = vmul.f32 %v2025, %v773
        %v2107 = vmul.f32 %v2025, %v774
        %v2108 = vmul.f32 %v2026, %v803
        %v2109 = vmul.f32 %v2026, %v804
        %v2110 = vmul.f32 %v2026, %v805
        %v2111 = vmul.f32 %v2026, %v806
        %v2112 = vmul.f32 %v2027, %v835
        %v2113 = vmul.f32 %v2027, %v836
        %v2114 = vmul.f32 %v2027, %v837
        %v2115 = vmul.f32 %v2027, %v838
        %v2116 = vsel %vm907, %v2084, 0.0
        %v2117 = vsel %vm907, %v2088, 0.0
        %v2118 = vadd.f32 %v2116, %v2117
        %v2119 = vsel %vm907, %v2092, 0.0
        %v2120 = vadd.f32 %v2118, %v2119
        %v2121 = vsel %vm907, %v2096, 0.0
        %v2122 = vadd.f32 %v2120, %v2121
        %v2123 = vsel %vm907, %v2100, 0.0
        %v2124 = vadd.f32 %v2122, %v2123
        %v2125 = vsel %vm907, %v2104, 0.0
        %v2126 = vadd.f32 %v2124, %v2125
        %v2127 = vsel %vm907, %v2108, 0.0
        %v2128 = vadd.f32 %v2126, %v2127
        %v2129 = vsel %vm907, %v2112, 0.0
        %v2130 = vadd.f32 %v2128, %v2129
        %v2131 = vsel %vm907, %v2085, 0.0
        %v2132 = vsel %vm907, %v2089, 0.0
        %v2133 = vadd.f32 %v2131, %v2132
        %v2134 = vsel %vm907, %v2093, 0.0
        %v2135 = vadd.f32 %v2133, %v2134
        %v2136 = vsel %vm907, %v2097, 0.0
        %v2137 = vadd.f32 %v2135, %v2136
        %v2138 = vsel %vm907, %v2101, 0.0
        %v2139 = vadd.f32 %v2137, %v2138
        %v2140 = vsel %vm907, %v2105, 0.0
        %v2141 = vadd.f32 %v2139, %v2140
        %v2142 = vsel %vm907, %v2109, 0.0
        %v2143 = vadd.f32 %v2141, %v2142
        %v2144 = vsel %vm907, %v2113, 0.0
        %v2145 = vadd.f32 %v2143, %v2144
        %v2146 = vsel %vm907, %v2086, 0.0
        %v2147 = vsel %vm907, %v2090, 0.0
        %v2148 = vadd.f32 %v2146, %v2147
        %v2149 = vsel %vm907, %v2094, 0.0
        %v2150 = vadd.f32 %v2148, %v2149
        %v2151 = vsel %vm907, %v2098, 0.0
        %v2152 = vadd.f32 %v2150, %v2151
        %v2153 = vsel %vm907, %v2102, 0.0
        %v2154 = vadd.f32 %v2152, %v2153
        %v2155 = vsel %vm907, %v2106, 0.0
        %v2156 = vadd.f32 %v2154, %v2155
        %v2157 = vsel %vm907, %v2110, 0.0
        %v2158 = vadd.f32 %v2156, %v2157
        %v2159 = vsel %vm907, %v2114, 0.0
        %v2160 = vadd.f32 %v2158, %v2159
        %v2161 = vsel %vm907, %v2087, 0.0
        %v2162 = vsel %vm907, %v2091, 0.0
        %v2163 = vadd.f32 %v2161, %v2162
        %v2164 = vsel %vm907, %v2095, 0.0
        %v2165 = vadd.f32 %v2163, %v2164
        %v2166 = vsel %vm907, %v2099, 0.0
        %v2167 = vadd.f32 %v2165, %v2166
        %v2168 = vsel %vm907, %v2103, 0.0
        %v2169 = vadd.f32 %v2167, %v2168
        %v2170 = vsel %vm907, %v2107, 0.0
        %v2171 = vadd.f32 %v2169, %v2170
        %v2172 = vsel %vm907, %v2111, 0.0
        %v2173 = vadd.f32 %v2171, %v2172
        %v2174 = vsel %vm907, %v2115, 0.0
        %v2175 = vadd.f32 %v2173, %v2174
        %v2176 = vmul.f32 %v2028, %v611
        %v2177 = vmul.f32 %v2028, %v612
        %v2178 = vmul.f32 %v2028, %v613
        %v2179 = vmul.f32 %v2028, %v614
        %v2180 = vmul.f32 %v2029, %v643
        %v2181 = vmul.f32 %v2029, %v644
        %v2182 = vmul.f32 %v2029, %v645
        %v2183 = vmul.f32 %v2029, %v646
        %v2184 = vmul.f32 %v2030, %v675
        %v2185 = vmul.f32 %v2030, %v676
        %v2186 = vmul.f32 %v2030, %v677
        %v2187 = vmul.f32 %v2030, %v678
        %v2188 = vmul.f32 %v2031, %v707
        %v2189 = vmul.f32 %v2031, %v708
        %v2190 = vmul.f32 %v2031, %v709
        %v2191 = vmul.f32 %v2031, %v710
        %v2192 = vmul.f32 %v2032, %v739
        %v2193 = vmul.f32 %v2032, %v740
        %v2194 = vmul.f32 %v2032, %v741
        %v2195 = vmul.f32 %v2032, %v742
        %v2196 = vmul.f32 %v2033, %v771
        %v2197 = vmul.f32 %v2033, %v772
        %v2198 = vmul.f32 %v2033, %v773
        %v2199 = vmul.f32 %v2033, %v774
        %v2200 = vmul.f32 %v2034, %v803
        %v2201 = vmul.f32 %v2034, %v804
        %v2202 = vmul.f32 %v2034, %v805
        %v2203 = vmul.f32 %v2034, %v806
        %v2204 = vmul.f32 %v2035, %v835
        %v2205 = vmul.f32 %v2035, %v836
        %v2206 = vmul.f32 %v2035, %v837
        %v2207 = vmul.f32 %v2035, %v838
        %v2208 = vsel %vm907, %v2176, 0.0
        %v2209 = vsel %vm907, %v2180, 0.0
        %v2210 = vadd.f32 %v2208, %v2209
        %v2211 = vsel %vm907, %v2184, 0.0
        %v2212 = vadd.f32 %v2210, %v2211
        %v2213 = vsel %vm907, %v2188, 0.0
        %v2214 = vadd.f32 %v2212, %v2213
        %v2215 = vsel %vm907, %v2192, 0.0
        %v2216 = vadd.f32 %v2214, %v2215
        %v2217 = vsel %vm907, %v2196, 0.0
        %v2218 = vadd.f32 %v2216, %v2217
        %v2219 = vsel %vm907, %v2200, 0.0
        %v2220 = vadd.f32 %v2218, %v2219
        %v2221 = vsel %vm907, %v2204, 0.0
        %v2222 = vadd.f32 %v2220, %v2221
        %v2223 = vsel %vm907, %v2177, 0.0
        %v2224 = vsel %vm907, %v2181, 0.0
        %v2225 = vadd.f32 %v2223, %v2224
        %v2226 = vsel %vm907, %v2185, 0.0
        %v2227 = vadd.f32 %v2225, %v2226
        %v2228 = vsel %vm907, %v2189, 0.0
        %v2229 = vadd.f32 %v2227, %v2228
        %v2230 = vsel %vm907, %v2193, 0.0
        %v2231 = vadd.f32 %v2229, %v2230
        %v2232 = vsel %vm907, %v2197, 0.0
        %v2233 = vadd.f32 %v2231, %v2232
        %v2234 = vsel %vm907, %v2201, 0.0
        %v2235 = vadd.f32 %v2233, %v2234
        %v2236 = vsel %vm907, %v2205, 0.0
        %v2237 = vadd.f32 %v2235, %v2236
        %v2238 = vsel %vm907, %v2178, 0.0
        %v2239 = vsel %vm907, %v2182, 0.0
        %v2240 = vadd.f32 %v2238, %v2239
        %v2241 = vsel %vm907, %v2186, 0.0
        %v2242 = vadd.f32 %v2240, %v2241
        %v2243 = vsel %vm907, %v2190, 0.0
        %v2244 = vadd.f32 %v2242, %v2243
        %v2245 = vsel %vm907, %v2194, 0.0
        %v2246 = vadd.f32 %v2244, %v2245
        %v2247 = vsel %vm907, %v2198, 0.0
        %v2248 = vadd.f32 %v2246, %v2247
        %v2249 = vsel %vm907, %v2202, 0.0
        %v2250 = vadd.f32 %v2248, %v2249
        %v2251 = vsel %vm907, %v2206, 0.0
        %v2252 = vadd.f32 %v2250, %v2251
        %v2253 = vsel %vm907, %v2179, 0.0
        %v2254 = vsel %vm907, %v2183, 0.0
        %v2255 = vadd.f32 %v2253, %v2254
        %v2256 = vsel %vm907, %v2187, 0.0
        %v2257 = vadd.f32 %v2255, %v2256
        %v2258 = vsel %vm907, %v2191, 0.0
        %v2259 = vadd.f32 %v2257, %v2258
        %v2260 = vsel %vm907, %v2195, 0.0
        %v2261 = vadd.f32 %v2259, %v2260
        %v2262 = vsel %vm907, %v2199, 0.0
        %v2263 = vadd.f32 %v2261, %v2262
        %v2264 = vsel %vm907, %v2203, 0.0
        %v2265 = vadd.f32 %v2263, %v2264
        %v2266 = vsel %vm907, %v2207, 0.0
        %v2267 = vadd.f32 %v2265, %v2266
        %v2268 = vmul.f32 %v2036, %v611
        %v2269 = vmul.f32 %v2036, %v612
        %v2270 = vmul.f32 %v2036, %v613
        %v2271 = vmul.f32 %v2036, %v614
        %v2272 = vmul.f32 %v2037, %v643
        %v2273 = vmul.f32 %v2037, %v644
        %v2274 = vmul.f32 %v2037, %v645
        %v2275 = vmul.f32 %v2037, %v646
        %v2276 = vmul.f32 %v2038, %v675
        %v2277 = vmul.f32 %v2038, %v676
        %v2278 = vmul.f32 %v2038, %v677
        %v2279 = vmul.f32 %v2038, %v678
        %v2280 = vmul.f32 %v2039, %v707
        %v2281 = vmul.f32 %v2039, %v708
        %v2282 = vmul.f32 %v2039, %v709
        %v2283 = vmul.f32 %v2039, %v710
        %v2284 = vmul.f32 %v2040, %v739
        %v2285 = vmul.f32 %v2040, %v740
        %v2286 = vmul.f32 %v2040, %v741
        %v2287 = vmul.f32 %v2040, %v742
        %v2288 = vmul.f32 %v2041, %v771
        %v2289 = vmul.f32 %v2041, %v772
        %v2290 = vmul.f32 %v2041, %v773
        %v2291 = vmul.f32 %v2041, %v774
        %v2292 = vmul.f32 %v2042, %v803
        %v2293 = vmul.f32 %v2042, %v804
        %v2294 = vmul.f32 %v2042, %v805
        %v2295 = vmul.f32 %v2042, %v806
        %v2296 = vmul.f32 %v2043, %v835
        %v2297 = vmul.f32 %v2043, %v836
        %v2298 = vmul.f32 %v2043, %v837
        %v2299 = vmul.f32 %v2043, %v838
        %v2300 = vsel %vm907, %v2268, 0.0
        %v2301 = vsel %vm907, %v2272, 0.0
        %v2302 = vadd.f32 %v2300, %v2301
        %v2303 = vsel %vm907, %v2276, 0.0
        %v2304 = vadd.f32 %v2302, %v2303
        %v2305 = vsel %vm907, %v2280, 0.0
        %v2306 = vadd.f32 %v2304, %v2305
        %v2307 = vsel %vm907, %v2284, 0.0
        %v2308 = vadd.f32 %v2306, %v2307
        %v2309 = vsel %vm907, %v2288, 0.0
        %v2310 = vadd.f32 %v2308, %v2309
        %v2311 = vsel %vm907, %v2292, 0.0
        %v2312 = vadd.f32 %v2310, %v2311
        %v2313 = vsel %vm907, %v2296, 0.0
        %v2314 = vadd.f32 %v2312, %v2313
        %v2315 = vsel %vm907, %v2269, 0.0
        %v2316 = vsel %vm907, %v2273, 0.0
        %v2317 = vadd.f32 %v2315, %v2316
        %v2318 = vsel %vm907, %v2277, 0.0
        %v2319 = vadd.f32 %v2317, %v2318
        %v2320 = vsel %vm907, %v2281, 0.0
        %v2321 = vadd.f32 %v2319, %v2320
        %v2322 = vsel %vm907, %v2285, 0.0
        %v2323 = vadd.f32 %v2321, %v2322
        %v2324 = vsel %vm907, %v2289, 0.0
        %v2325 = vadd.f32 %v2323, %v2324
        %v2326 = vsel %vm907, %v2293, 0.0
        %v2327 = vadd.f32 %v2325, %v2326
        %v2328 = vsel %vm907, %v2297, 0.0
        %v2329 = vadd.f32 %v2327, %v2328
        %v2330 = vsel %vm907, %v2270, 0.0
        %v2331 = vsel %vm907, %v2274, 0.0
        %v2332 = vadd.f32 %v2330, %v2331
        %v2333 = vsel %vm907, %v2278, 0.0
        %v2334 = vadd.f32 %v2332, %v2333
        %v2335 = vsel %vm907, %v2282, 0.0
        %v2336 = vadd.f32 %v2334, %v2335
        %v2337 = vsel %vm907, %v2286, 0.0
        %v2338 = vadd.f32 %v2336, %v2337
        %v2339 = vsel %vm907, %v2290, 0.0
        %v2340 = vadd.f32 %v2338, %v2339
        %v2341 = vsel %vm907, %v2294, 0.0
        %v2342 = vadd.f32 %v2340, %v2341
        %v2343 = vsel %vm907, %v2298, 0.0
        %v2344 = vadd.f32 %v2342, %v2343
        %v2345 = vsel %vm907, %v2271, 0.0
        %v2346 = vsel %vm907, %v2275, 0.0
        %v2347 = vadd.f32 %v2345, %v2346
        %v2348 = vsel %vm907, %v2279, 0.0
        %v2349 = vadd.f32 %v2347, %v2348
        %v2350 = vsel %vm907, %v2283, 0.0
        %v2351 = vadd.f32 %v2349, %v2350
        %v2352 = vsel %vm907, %v2287, 0.0
        %v2353 = vadd.f32 %v2351, %v2352
        %v2354 = vsel %vm907, %v2291, 0.0
        %v2355 = vadd.f32 %v2353, %v2354
        %v2356 = vsel %vm907, %v2295, 0.0
        %v2357 = vadd.f32 %v2355, %v2356
        %v2358 = vsel %vm907, %v2299, 0.0
        %v2359 = vadd.f32 %v2357, %v2358
        %v2360 = vmul.f32 %v2044, %v611
        %v2361 = vmul.f32 %v2044, %v612
        %v2362 = vmul.f32 %v2044, %v613
        %v2363 = vmul.f32 %v2044, %v614
        %v2364 = vmul.f32 %v2045, %v643
        %v2365 = vmul.f32 %v2045, %v644
        %v2366 = vmul.f32 %v2045, %v645
        %v2367 = vmul.f32 %v2045, %v646
        %v2368 = vmul.f32 %v2046, %v675
        %v2369 = vmul.f32 %v2046, %v676
        %v2370 = vmul.f32 %v2046, %v677
        %v2371 = vmul.f32 %v2046, %v678
        %v2372 = vmul.f32 %v2047, %v707
        %v2373 = vmul.f32 %v2047, %v708
        %v2374 = vmul.f32 %v2047, %v709
        %v2375 = vmul.f32 %v2047, %v710
        %v2376 = vmul.f32 %v2048, %v739
        %v2377 = vmul.f32 %v2048, %v740
        %v2378 = vmul.f32 %v2048, %v741
        %v2379 = vmul.f32 %v2048, %v742
        %v2380 = vmul.f32 %v2049, %v771
        %v2381 = vmul.f32 %v2049, %v772
        %v2382 = vmul.f32 %v2049, %v773
        %v2383 = vmul.f32 %v2049, %v774
        %v2384 = vmul.f32 %v2050, %v803
        %v2385 = vmul.f32 %v2050, %v804
        %v2386 = vmul.f32 %v2050, %v805
        %v2387 = vmul.f32 %v2050, %v806
        %v2388 = vmul.f32 %v2051, %v835
        %v2389 = vmul.f32 %v2051, %v836
        %v2390 = vmul.f32 %v2051, %v837
        %v2391 = vmul.f32 %v2051, %v838
        %v2392 = vsel %vm907, %v2360, 0.0
        %v2393 = vsel %vm907, %v2364, 0.0
        %v2394 = vadd.f32 %v2392, %v2393
        %v2395 = vsel %vm907, %v2368, 0.0
        %v2396 = vadd.f32 %v2394, %v2395
        %v2397 = vsel %vm907, %v2372, 0.0
        %v2398 = vadd.f32 %v2396, %v2397
        %v2399 = vsel %vm907, %v2376, 0.0
        %v2400 = vadd.f32 %v2398, %v2399
        %v2401 = vsel %vm907, %v2380, 0.0
        %v2402 = vadd.f32 %v2400, %v2401
        %v2403 = vsel %vm907, %v2384, 0.0
        %v2404 = vadd.f32 %v2402, %v2403
        %v2405 = vsel %vm907, %v2388, 0.0
        %v2406 = vadd.f32 %v2404, %v2405
        %v2407 = vsel %vm907, %v2361, 0.0
        %v2408 = vsel %vm907, %v2365, 0.0
        %v2409 = vadd.f32 %v2407, %v2408
        %v2410 = vsel %vm907, %v2369, 0.0
        %v2411 = vadd.f32 %v2409, %v2410
        %v2412 = vsel %vm907, %v2373, 0.0
        %v2413 = vadd.f32 %v2411, %v2412
        %v2414 = vsel %vm907, %v2377, 0.0
        %v2415 = vadd.f32 %v2413, %v2414
        %v2416 = vsel %vm907, %v2381, 0.0
        %v2417 = vadd.f32 %v2415, %v2416
        %v2418 = vsel %vm907, %v2385, 0.0
        %v2419 = vadd.f32 %v2417, %v2418
        %v2420 = vsel %vm907, %v2389, 0.0
        %v2421 = vadd.f32 %v2419, %v2420
        %v2422 = vsel %vm907, %v2362, 0.0
        %v2423 = vsel %vm907, %v2366, 0.0
        %v2424 = vadd.f32 %v2422, %v2423
        %v2425 = vsel %vm907, %v2370, 0.0
        %v2426 = vadd.f32 %v2424, %v2425
        %v2427 = vsel %vm907, %v2374, 0.0
        %v2428 = vadd.f32 %v2426, %v2427
        %v2429 = vsel %vm907, %v2378, 0.0
        %v2430 = vadd.f32 %v2428, %v2429
        %v2431 = vsel %vm907, %v2382, 0.0
        %v2432 = vadd.f32 %v2430, %v2431
        %v2433 = vsel %vm907, %v2386, 0.0
        %v2434 = vadd.f32 %v2432, %v2433
        %v2435 = vsel %vm907, %v2390, 0.0
        %v2436 = vadd.f32 %v2434, %v2435
        %v2437 = vsel %vm907, %v2363, 0.0
        %v2438 = vsel %vm907, %v2367, 0.0
        %v2439 = vadd.f32 %v2437, %v2438
        %v2440 = vsel %vm907, %v2371, 0.0
        %v2441 = vadd.f32 %v2439, %v2440
        %v2442 = vsel %vm907, %v2375, 0.0
        %v2443 = vadd.f32 %v2441, %v2442
        %v2444 = vsel %vm907, %v2379, 0.0
        %v2445 = vadd.f32 %v2443, %v2444
        %v2446 = vsel %vm907, %v2383, 0.0
        %v2447 = vadd.f32 %v2445, %v2446
        %v2448 = vsel %vm907, %v2387, 0.0
        %v2449 = vadd.f32 %v2447, %v2448
        %v2450 = vsel %vm907, %v2391, 0.0
        %v2451 = vadd.f32 %v2449, %v2450
        %v2452 = vmul.f32 %v2052, %v611
        %v2453 = vmul.f32 %v2052, %v612
        %v2454 = vmul.f32 %v2052, %v613
        %v2455 = vmul.f32 %v2052, %v614
        %v2456 = vmul.f32 %v2053, %v643
        %v2457 = vmul.f32 %v2053, %v644
        %v2458 = vmul.f32 %v2053, %v645
        %v2459 = vmul.f32 %v2053, %v646
        %v2460 = vmul.f32 %v2054, %v675
        %v2461 = vmul.f32 %v2054, %v676
        %v2462 = vmul.f32 %v2054, %v677
        %v2463 = vmul.f32 %v2054, %v678
        %v2464 = vmul.f32 %v2055, %v707
        %v2465 = vmul.f32 %v2055, %v708
        %v2466 = vmul.f32 %v2055, %v709
        %v2467 = vmul.f32 %v2055, %v710
        %v2468 = vmul.f32 %v2056, %v739
        %v2469 = vmul.f32 %v2056, %v740
        %v2470 = vmul.f32 %v2056, %v741
        %v2471 = vmul.f32 %v2056, %v742
        %v2472 = vmul.f32 %v2057, %v771
        %v2473 = vmul.f32 %v2057, %v772
        %v2474 = vmul.f32 %v2057, %v773
        %v2475 = vmul.f32 %v2057, %v774
        %v2476 = vmul.f32 %v2058, %v803
        %v2477 = vmul.f32 %v2058, %v804
        %v2478 = vmul.f32 %v2058, %v805
        %v2479 = vmul.f32 %v2058, %v806
        %v2480 = vmul.f32 %v2059, %v835
        %v2481 = vmul.f32 %v2059, %v836
        %v2482 = vmul.f32 %v2059, %v837
        %v2483 = vmul.f32 %v2059, %v838
        %v2484 = vsel %vm907, %v2452, 0.0
        %v2485 = vsel %vm907, %v2456, 0.0
        %v2486 = vadd.f32 %v2484, %v2485
        %v2487 = vsel %vm907, %v2460, 0.0
        %v2488 = vadd.f32 %v2486, %v2487
        %v2489 = vsel %vm907, %v2464, 0.0
        %v2490 = vadd.f32 %v2488, %v2489
        %v2491 = vsel %vm907, %v2468, 0.0
        %v2492 = vadd.f32 %v2490, %v2491
        %v2493 = vsel %vm907, %v2472, 0.0
        %v2494 = vadd.f32 %v2492, %v2493
        %v2495 = vsel %vm907, %v2476, 0.0
        %v2496 = vadd.f32 %v2494, %v2495
        %v2497 = vsel %vm907, %v2480, 0.0
        %v2498 = vadd.f32 %v2496, %v2497
        %v2499 = vsel %vm907, %v2453, 0.0
        %v2500 = vsel %vm907, %v2457, 0.0
        %v2501 = vadd.f32 %v2499, %v2500
        %v2502 = vsel %vm907, %v2461, 0.0
        %v2503 = vadd.f32 %v2501, %v2502
        %v2504 = vsel %vm907, %v2465, 0.0
        %v2505 = vadd.f32 %v2503, %v2504
        %v2506 = vsel %vm907, %v2469, 0.0
        %v2507 = vadd.f32 %v2505, %v2506
        %v2508 = vsel %vm907, %v2473, 0.0
        %v2509 = vadd.f32 %v2507, %v2508
        %v2510 = vsel %vm907, %v2477, 0.0
        %v2511 = vadd.f32 %v2509, %v2510
        %v2512 = vsel %vm907, %v2481, 0.0
        %v2513 = vadd.f32 %v2511, %v2512
        %v2514 = vsel %vm907, %v2454, 0.0
        %v2515 = vsel %vm907, %v2458, 0.0
        %v2516 = vadd.f32 %v2514, %v2515
        %v2517 = vsel %vm907, %v2462, 0.0
        %v2518 = vadd.f32 %v2516, %v2517
        %v2519 = vsel %vm907, %v2466, 0.0
        %v2520 = vadd.f32 %v2518, %v2519
        %v2521 = vsel %vm907, %v2470, 0.0
        %v2522 = vadd.f32 %v2520, %v2521
        %v2523 = vsel %vm907, %v2474, 0.0
        %v2524 = vadd.f32 %v2522, %v2523
        %v2525 = vsel %vm907, %v2478, 0.0
        %v2526 = vadd.f32 %v2524, %v2525
        %v2527 = vsel %vm907, %v2482, 0.0
        %v2528 = vadd.f32 %v2526, %v2527
        %v2529 = vsel %vm907, %v2455, 0.0
        %v2530 = vsel %vm907, %v2459, 0.0
        %v2531 = vadd.f32 %v2529, %v2530
        %v2532 = vsel %vm907, %v2463, 0.0
        %v2533 = vadd.f32 %v2531, %v2532
        %v2534 = vsel %vm907, %v2467, 0.0
        %v2535 = vadd.f32 %v2533, %v2534
        %v2536 = vsel %vm907, %v2471, 0.0
        %v2537 = vadd.f32 %v2535, %v2536
        %v2538 = vsel %vm907, %v2475, 0.0
        %v2539 = vadd.f32 %v2537, %v2538
        %v2540 = vsel %vm907, %v2479, 0.0
        %v2541 = vadd.f32 %v2539, %v2540
        %v2542 = vsel %vm907, %v2483, 0.0
        %v2543 = vadd.f32 %v2541, %v2542
        %v2544 = vmul.f32 %v2060, %v611
        %v2545 = vmul.f32 %v2060, %v612
        %v2546 = vmul.f32 %v2060, %v613
        %v2547 = vmul.f32 %v2060, %v614
        %v2548 = vmul.f32 %v2061, %v643
        %v2549 = vmul.f32 %v2061, %v644
        %v2550 = vmul.f32 %v2061, %v645
        %v2551 = vmul.f32 %v2061, %v646
        %v2552 = vmul.f32 %v2062, %v675
        %v2553 = vmul.f32 %v2062, %v676
        %v2554 = vmul.f32 %v2062, %v677
        %v2555 = vmul.f32 %v2062, %v678
        %v2556 = vmul.f32 %v2063, %v707
        %v2557 = vmul.f32 %v2063, %v708
        %v2558 = vmul.f32 %v2063, %v709
        %v2559 = vmul.f32 %v2063, %v710
        %v2560 = vmul.f32 %v2064, %v739
        %v2561 = vmul.f32 %v2064, %v740
        %v2562 = vmul.f32 %v2064, %v741
        %v2563 = vmul.f32 %v2064, %v742
        %v2564 = vmul.f32 %v2065, %v771
        %v2565 = vmul.f32 %v2065, %v772
        %v2566 = vmul.f32 %v2065, %v773
        %v2567 = vmul.f32 %v2065, %v774
        %v2568 = vmul.f32 %v2066, %v803
        %v2569 = vmul.f32 %v2066, %v804
        %v2570 = vmul.f32 %v2066, %v805
        %v2571 = vmul.f32 %v2066, %v806
        %v2572 = vmul.f32 %v2067, %v835
        %v2573 = vmul.f32 %v2067, %v836
        %v2574 = vmul.f32 %v2067, %v837
        %v2575 = vmul.f32 %v2067, %v838
        %v2576 = vsel %vm907, %v2544, 0.0
        %v2577 = vsel %vm907, %v2548, 0.0
        %v2578 = vadd.f32 %v2576, %v2577
        %v2579 = vsel %vm907, %v2552, 0.0
        %v2580 = vadd.f32 %v2578, %v2579
        %v2581 = vsel %vm907, %v2556, 0.0
        %v2582 = vadd.f32 %v2580, %v2581
        %v2583 = vsel %vm907, %v2560, 0.0
        %v2584 = vadd.f32 %v2582, %v2583
        %v2585 = vsel %vm907, %v2564, 0.0
        %v2586 = vadd.f32 %v2584, %v2585
        %v2587 = vsel %vm907, %v2568, 0.0
        %v2588 = vadd.f32 %v2586, %v2587
        %v2589 = vsel %vm907, %v2572, 0.0
        %v2590 = vadd.f32 %v2588, %v2589
        %v2591 = vsel %vm907, %v2545, 0.0
        %v2592 = vsel %vm907, %v2549, 0.0
        %v2593 = vadd.f32 %v2591, %v2592
        %v2594 = vsel %vm907, %v2553, 0.0
        %v2595 = vadd.f32 %v2593, %v2594
        %v2596 = vsel %vm907, %v2557, 0.0
        %v2597 = vadd.f32 %v2595, %v2596
        %v2598 = vsel %vm907, %v2561, 0.0
        %v2599 = vadd.f32 %v2597, %v2598
        %v2600 = vsel %vm907, %v2565, 0.0
        %v2601 = vadd.f32 %v2599, %v2600
        %v2602 = vsel %vm907, %v2569, 0.0
        %v2603 = vadd.f32 %v2601, %v2602
        %v2604 = vsel %vm907, %v2573, 0.0
        %v2605 = vadd.f32 %v2603, %v2604
        %v2606 = vsel %vm907, %v2546, 0.0
        %v2607 = vsel %vm907, %v2550, 0.0
        %v2608 = vadd.f32 %v2606, %v2607
        %v2609 = vsel %vm907, %v2554, 0.0
        %v2610 = vadd.f32 %v2608, %v2609
        %v2611 = vsel %vm907, %v2558, 0.0
        %v2612 = vadd.f32 %v2610, %v2611
        %v2613 = vsel %vm907, %v2562, 0.0
        %v2614 = vadd.f32 %v2612, %v2613
        %v2615 = vsel %vm907, %v2566, 0.0
        %v2616 = vadd.f32 %v2614, %v2615
        %v2617 = vsel %vm907, %v2570, 0.0
        %v2618 = vadd.f32 %v2616, %v2617
        %v2619 = vsel %vm907, %v2574, 0.0
        %v2620 = vadd.f32 %v2618, %v2619
        %v2621 = vsel %vm907, %v2547, 0.0
        %v2622 = vsel %vm907, %v2551, 0.0
        %v2623 = vadd.f32 %v2621, %v2622
        %v2624 = vsel %vm907, %v2555, 0.0
        %v2625 = vadd.f32 %v2623, %v2624
        %v2626 = vsel %vm907, %v2559, 0.0
        %v2627 = vadd.f32 %v2625, %v2626
        %v2628 = vsel %vm907, %v2563, 0.0
        %v2629 = vadd.f32 %v2627, %v2628
        %v2630 = vsel %vm907, %v2567, 0.0
        %v2631 = vadd.f32 %v2629, %v2630
        %v2632 = vsel %vm907, %v2571, 0.0
        %v2633 = vadd.f32 %v2631, %v2632
        %v2634 = vsel %vm907, %v2575, 0.0
        %v2635 = vadd.f32 %v2633, %v2634
        %v2636 = vmul.f32 %v2068, %v611
        %v2637 = vmul.f32 %v2068, %v612
        %v2638 = vmul.f32 %v2068, %v613
        %v2639 = vmul.f32 %v2068, %v614
        %v2640 = vmul.f32 %v2069, %v643
        %v2641 = vmul.f32 %v2069, %v644
        %v2642 = vmul.f32 %v2069, %v645
        %v2643 = vmul.f32 %v2069, %v646
        %v2644 = vmul.f32 %v2070, %v675
        %v2645 = vmul.f32 %v2070, %v676
        %v2646 = vmul.f32 %v2070, %v677
        %v2647 = vmul.f32 %v2070, %v678
        %v2648 = vmul.f32 %v2071, %v707
        %v2649 = vmul.f32 %v2071, %v708
        %v2650 = vmul.f32 %v2071, %v709
        %v2651 = vmul.f32 %v2071, %v710
        %v2652 = vmul.f32 %v2072, %v739
        %v2653 = vmul.f32 %v2072, %v740
        %v2654 = vmul.f32 %v2072, %v741
        %v2655 = vmul.f32 %v2072, %v742
        %v2656 = vmul.f32 %v2073, %v771
        %v2657 = vmul.f32 %v2073, %v772
        %v2658 = vmul.f32 %v2073, %v773
        %v2659 = vmul.f32 %v2073, %v774
        %v2660 = vmul.f32 %v2074, %v803
        %v2661 = vmul.f32 %v2074, %v804
        %v2662 = vmul.f32 %v2074, %v805
        %v2663 = vmul.f32 %v2074, %v806
        %v2664 = vmul.f32 %v2075, %v835
        %v2665 = vmul.f32 %v2075, %v836
        %v2666 = vmul.f32 %v2075, %v837
        %v2667 = vmul.f32 %v2075, %v838
        %v2668 = vsel %vm907, %v2636, 0.0
        %v2669 = vsel %vm907, %v2640, 0.0
        %v2670 = vadd.f32 %v2668, %v2669
        %v2671 = vsel %vm907, %v2644, 0.0
        %v2672 = vadd.f32 %v2670, %v2671
        %v2673 = vsel %vm907, %v2648, 0.0
        %v2674 = vadd.f32 %v2672, %v2673
        %v2675 = vsel %vm907, %v2652, 0.0
        %v2676 = vadd.f32 %v2674, %v2675
        %v2677 = vsel %vm907, %v2656, 0.0
        %v2678 = vadd.f32 %v2676, %v2677
        %v2679 = vsel %vm907, %v2660, 0.0
        %v2680 = vadd.f32 %v2678, %v2679
        %v2681 = vsel %vm907, %v2664, 0.0
        %v2682 = vadd.f32 %v2680, %v2681
        %v2683 = vsel %vm907, %v2637, 0.0
        %v2684 = vsel %vm907, %v2641, 0.0
        %v2685 = vadd.f32 %v2683, %v2684
        %v2686 = vsel %vm907, %v2645, 0.0
        %v2687 = vadd.f32 %v2685, %v2686
        %v2688 = vsel %vm907, %v2649, 0.0
        %v2689 = vadd.f32 %v2687, %v2688
        %v2690 = vsel %vm907, %v2653, 0.0
        %v2691 = vadd.f32 %v2689, %v2690
        %v2692 = vsel %vm907, %v2657, 0.0
        %v2693 = vadd.f32 %v2691, %v2692
        %v2694 = vsel %vm907, %v2661, 0.0
        %v2695 = vadd.f32 %v2693, %v2694
        %v2696 = vsel %vm907, %v2665, 0.0
        %v2697 = vadd.f32 %v2695, %v2696
        %v2698 = vsel %vm907, %v2638, 0.0
        %v2699 = vsel %vm907, %v2642, 0.0
        %v2700 = vadd.f32 %v2698, %v2699
        %v2701 = vsel %vm907, %v2646, 0.0
        %v2702 = vadd.f32 %v2700, %v2701
        %v2703 = vsel %vm907, %v2650, 0.0
        %v2704 = vadd.f32 %v2702, %v2703
        %v2705 = vsel %vm907, %v2654, 0.0
        %v2706 = vadd.f32 %v2704, %v2705
        %v2707 = vsel %vm907, %v2658, 0.0
        %v2708 = vadd.f32 %v2706, %v2707
        %v2709 = vsel %vm907, %v2662, 0.0
        %v2710 = vadd.f32 %v2708, %v2709
        %v2711 = vsel %vm907, %v2666, 0.0
        %v2712 = vadd.f32 %v2710, %v2711
        %v2713 = vsel %vm907, %v2639, 0.0
        %v2714 = vsel %vm907, %v2643, 0.0
        %v2715 = vadd.f32 %v2713, %v2714
        %v2716 = vsel %vm907, %v2647, 0.0
        %v2717 = vadd.f32 %v2715, %v2716
        %v2718 = vsel %vm907, %v2651, 0.0
        %v2719 = vadd.f32 %v2717, %v2718
        %v2720 = vsel %vm907, %v2655, 0.0
        %v2721 = vadd.f32 %v2719, %v2720
        %v2722 = vsel %vm907, %v2659, 0.0
        %v2723 = vadd.f32 %v2721, %v2722
        %v2724 = vsel %vm907, %v2663, 0.0
        %v2725 = vadd.f32 %v2723, %v2724
        %v2726 = vsel %vm907, %v2667, 0.0
        %v2727 = vadd.f32 %v2725, %v2726
        %v2728 = vmul.f32 %v2076, %v611
        %v2729 = vmul.f32 %v2076, %v612
        %v2730 = vmul.f32 %v2076, %v613
        %v2731 = vmul.f32 %v2076, %v614
        %v2732 = vmul.f32 %v2077, %v643
        %v2733 = vmul.f32 %v2077, %v644
        %v2734 = vmul.f32 %v2077, %v645
        %v2735 = vmul.f32 %v2077, %v646
        %v2736 = vmul.f32 %v2078, %v675
        %v2737 = vmul.f32 %v2078, %v676
        %v2738 = vmul.f32 %v2078, %v677
        %v2739 = vmul.f32 %v2078, %v678
        %v2740 = vmul.f32 %v2079, %v707
        %v2741 = vmul.f32 %v2079, %v708
        %v2742 = vmul.f32 %v2079, %v709
        %v2743 = vmul.f32 %v2079, %v710
        %v2744 = vmul.f32 %v2080, %v739
        %v2745 = vmul.f32 %v2080, %v740
        %v2746 = vmul.f32 %v2080, %v741
        %v2747 = vmul.f32 %v2080, %v742
        %v2748 = vmul.f32 %v2081, %v771
        %v2749 = vmul.f32 %v2081, %v772
        %v2750 = vmul.f32 %v2081, %v773
        %v2751 = vmul.f32 %v2081, %v774
        %v2752 = vmul.f32 %v2082, %v803
        %v2753 = vmul.f32 %v2082, %v804
        %v2754 = vmul.f32 %v2082, %v805
        %v2755 = vmul.f32 %v2082, %v806
        %v2756 = vmul.f32 %v2083, %v835
        %v2757 = vmul.f32 %v2083, %v836
        %v2758 = vmul.f32 %v2083, %v837
        %v2759 = vmul.f32 %v2083, %v838
        %v2760 = vsel %vm907, %v2728, 0.0
        %v2761 = vsel %vm907, %v2732, 0.0
        %v2762 = vadd.f32 %v2760, %v2761
        %v2763 = vsel %vm907, %v2736, 0.0
        %v2764 = vadd.f32 %v2762, %v2763
        %v2765 = vsel %vm907, %v2740, 0.0
        %v2766 = vadd.f32 %v2764, %v2765
        %v2767 = vsel %vm907, %v2744, 0.0
        %v2768 = vadd.f32 %v2766, %v2767
        %v2769 = vsel %vm907, %v2748, 0.0
        %v2770 = vadd.f32 %v2768, %v2769
        %v2771 = vsel %vm907, %v2752, 0.0
        %v2772 = vadd.f32 %v2770, %v2771
        %v2773 = vsel %vm907, %v2756, 0.0
        %v2774 = vadd.f32 %v2772, %v2773
        %v2775 = vsel %vm907, %v2729, 0.0
        %v2776 = vsel %vm907, %v2733, 0.0
        %v2777 = vadd.f32 %v2775, %v2776
        %v2778 = vsel %vm907, %v2737, 0.0
        %v2779 = vadd.f32 %v2777, %v2778
        %v2780 = vsel %vm907, %v2741, 0.0
        %v2781 = vadd.f32 %v2779, %v2780
        %v2782 = vsel %vm907, %v2745, 0.0
        %v2783 = vadd.f32 %v2781, %v2782
        %v2784 = vsel %vm907, %v2749, 0.0
        %v2785 = vadd.f32 %v2783, %v2784
        %v2786 = vsel %vm907, %v2753, 0.0
        %v2787 = vadd.f32 %v2785, %v2786
        %v2788 = vsel %vm907, %v2757, 0.0
        %v2789 = vadd.f32 %v2787, %v2788
        %v2790 = vsel %vm907, %v2730, 0.0
        %v2791 = vsel %vm907, %v2734, 0.0
        %v2792 = vadd.f32 %v2790, %v2791
        %v2793 = vsel %vm907, %v2738, 0.0
        %v2794 = vadd.f32 %v2792, %v2793
        %v2795 = vsel %vm907, %v2742, 0.0
        %v2796 = vadd.f32 %v2794, %v2795
        %v2797 = vsel %vm907, %v2746, 0.0
        %v2798 = vadd.f32 %v2796, %v2797
        %v2799 = vsel %vm907, %v2750, 0.0
        %v2800 = vadd.f32 %v2798, %v2799
        %v2801 = vsel %vm907, %v2754, 0.0
        %v2802 = vadd.f32 %v2800, %v2801
        %v2803 = vsel %vm907, %v2758, 0.0
        %v2804 = vadd.f32 %v2802, %v2803
        %v2805 = vsel %vm907, %v2731, 0.0
        %v2806 = vsel %vm907, %v2735, 0.0
        %v2807 = vadd.f32 %v2805, %v2806
        %v2808 = vsel %vm907, %v2739, 0.0
        %v2809 = vadd.f32 %v2807, %v2808
        %v2810 = vsel %vm907, %v2743, 0.0
        %v2811 = vadd.f32 %v2809, %v2810
        %v2812 = vsel %vm907, %v2747, 0.0
        %v2813 = vadd.f32 %v2811, %v2812
        %v2814 = vsel %vm907, %v2751, 0.0
        %v2815 = vadd.f32 %v2813, %v2814
        %v2816 = vsel %vm907, %v2755, 0.0
        %v2817 = vadd.f32 %v2815, %v2816
        %v2818 = vsel %vm907, %v2759, 0.0
        %v2819 = vadd.f32 %v2817, %v2818
        %2820 = vxpose.xlu0.b32.start [1/16] %v2130, 128
        %2821 = vxpose.xlu0.b32.cont [2/16] %v2145, 128
        %2822 = vxpose.xlu0.b32.cont [3/16] %v2160, 128
        %2823 = vxpose.xlu0.b32.cont [4/16] %v2175, 128
        %2824 = vxpose.xlu0.b32.cont [5/16] 0.0, 128
        %2825 = vxpose.xlu0.b32.cont [6/16] 0.0, 128
        %2826 = vxpose.xlu0.b32.cont [7/16] 0.0, 128
        %2827 = vxpose.xlu0.b32.cont [8/16] 0.0, 128
        %2828 = vxpose.xlu0.b32.cont [9/16] 0.0, 128
        %2829 = vxpose.xlu0.b32.cont [10/16] 0.0, 128
        %2830 = vxpose.xlu0.b32.cont [11/16] 0.0, 128
        %2831 = vxpose.xlu0.b32.cont [12/16] 0.0, 128
        %2832 = vxpose.xlu0.b32.cont [13/16] 0.0, 128
        %2833 = vxpose.xlu0.b32.cont [14/16] 0.0, 128
        %2834 = vxpose.xlu0.b32.cont [15/16] 0.0, 128
        %2835 = vxpose.xlu0.b32.end [16/16] 0.0, 128
        %v2836 = vpop.trf.xlu0
        %v2837 = vpop.trf.xlu0
        %v2838 = vpop.trf.xlu0
        %v2839 = vpop.trf.xlu0
        %v2840 = vpop.trf.xlu0
        %v2841 = vpop.trf.xlu0
        %v2842 = vpop.trf.xlu0
        %v2843 = vpop.trf.xlu0
        %v2844 = vpop.trf.xlu0
        %v2845 = vpop.trf.xlu0
        %v2846 = vpop.trf.xlu0
        %v2847 = vpop.trf.xlu0
        %v2848 = vpop.trf.xlu0
        %v2849 = vpop.trf.xlu0
        %v2850 = vpop.trf.xlu0
        %v2851 = vpop.trf.xlu0
        %2852 = vxpose.xlu0.b32.start [1/16] %v2222, 128
        %2853 = vxpose.xlu0.b32.cont [2/16] %v2237, 128
        %2854 = vxpose.xlu0.b32.cont [3/16] %v2252, 128
        %2855 = vxpose.xlu0.b32.cont [4/16] %v2267, 128
        %2856 = vxpose.xlu0.b32.cont [5/16] 0.0, 128
        %2857 = vxpose.xlu0.b32.cont [6/16] 0.0, 128
        %2858 = vxpose.xlu0.b32.cont [7/16] 0.0, 128
        %2859 = vxpose.xlu0.b32.cont [8/16] 0.0, 128
        %2860 = vxpose.xlu0.b32.cont [9/16] 0.0, 128
        %2861 = vxpose.xlu0.b32.cont [10/16] 0.0, 128
        %2862 = vxpose.xlu0.b32.cont [11/16] 0.0, 128
        %2863 = vxpose.xlu0.b32.cont [12/16] 0.0, 128
        %2864 = vxpose.xlu0.b32.cont [13/16] 0.0, 128
        %2865 = vxpose.xlu0.b32.cont [14/16] 0.0, 128
        %2866 = vxpose.xlu0.b32.cont [15/16] 0.0, 128
        %2867 = vxpose.xlu0.b32.end [16/16] 0.0, 128
        %v2868 = vpop.trf.xlu0
        %v2869 = vpop.trf.xlu0
        %v2870 = vpop.trf.xlu0
        %v2871 = vpop.trf.xlu0
        %v2872 = vpop.trf.xlu0
        %v2873 = vpop.trf.xlu0
        %v2874 = vpop.trf.xlu0
        %v2875 = vpop.trf.xlu0
        %v2876 = vpop.trf.xlu0
        %v2877 = vpop.trf.xlu0
        %v2878 = vpop.trf.xlu0
        %v2879 = vpop.trf.xlu0
        %v2880 = vpop.trf.xlu0
        %v2881 = vpop.trf.xlu0
        %v2882 = vpop.trf.xlu0
        %v2883 = vpop.trf.xlu0
        %2884 = vxpose.xlu0.b32.start [1/16] %v2314, 128
        %2885 = vxpose.xlu0.b32.cont [2/16] %v2329, 128
        %2886 = vxpose.xlu0.b32.cont [3/16] %v2344, 128
        %2887 = vxpose.xlu0.b32.cont [4/16] %v2359, 128
        %2888 = vxpose.xlu0.b32.cont [5/16] 0.0, 128
        %2889 = vxpose.xlu0.b32.cont [6/16] 0.0, 128
        %2890 = vxpose.xlu0.b32.cont [7/16] 0.0, 128
        %2891 = vxpose.xlu0.b32.cont [8/16] 0.0, 128
        %2892 = vxpose.xlu0.b32.cont [9/16] 0.0, 128
        %2893 = vxpose.xlu0.b32.cont [10/16] 0.0, 128
        %2894 = vxpose.xlu0.b32.cont [11/16] 0.0, 128
        %2895 = vxpose.xlu0.b32.cont [12/16] 0.0, 128
        %2896 = vxpose.xlu0.b32.cont [13/16] 0.0, 128
        %2897 = vxpose.xlu0.b32.cont [14/16] 0.0, 128
        %2898 = vxpose.xlu0.b32.cont [15/16] 0.0, 128
        %2899 = vxpose.xlu0.b32.end [16/16] 0.0, 128
        %v2900 = vpop.trf.xlu0
        %v2901 = vpop.trf.xlu0
        %v2902 = vpop.trf.xlu0
        %v2903 = vpop.trf.xlu0
        %v2904 = vpop.trf.xlu0
        %v2905 = vpop.trf.xlu0
        %v2906 = vpop.trf.xlu0
        %v2907 = vpop.trf.xlu0
        %v2908 = vpop.trf.xlu0
        %v2909 = vpop.trf.xlu0
        %v2910 = vpop.trf.xlu0
        %v2911 = vpop.trf.xlu0
        %v2912 = vpop.trf.xlu0
        %v2913 = vpop.trf.xlu0
        %v2914 = vpop.trf.xlu0
        %v2915 = vpop.trf.xlu0
        %2916 = vxpose.xlu0.b32.start [1/16] %v2406, 128
        %2917 = vxpose.xlu0.b32.cont [2/16] %v2421, 128
        %2918 = vxpose.xlu0.b32.cont [3/16] %v2436, 128
        %2919 = vxpose.xlu0.b32.cont [4/16] %v2451, 128
        %2920 = vxpose.xlu0.b32.cont [5/16] 0.0, 128
        %2921 = vxpose.xlu0.b32.cont [6/16] 0.0, 128
        %2922 = vxpose.xlu0.b32.cont [7/16] 0.0, 128
        %2923 = vxpose.xlu0.b32.cont [8/16] 0.0, 128
        %2924 = vxpose.xlu0.b32.cont [9/16] 0.0, 128
        %2925 = vxpose.xlu0.b32.cont [10/16] 0.0, 128
        %2926 = vxpose.xlu0.b32.cont [11/16] 0.0, 128
        %2927 = vxpose.xlu0.b32.cont [12/16] 0.0, 128
        %2928 = vxpose.xlu0.b32.cont [13/16] 0.0, 128
        %2929 = vxpose.xlu0.b32.cont [14/16] 0.0, 128
        %2930 = vxpose.xlu0.b32.cont [15/16] 0.0, 128
        %2931 = vxpose.xlu0.b32.end [16/16] 0.0, 128
        %v2932 = vpop.trf.xlu0
        %v2933 = vpop.trf.xlu0
        %v2934 = vpop.trf.xlu0
        %v2935 = vpop.trf.xlu0
        %v2936 = vpop.trf.xlu0
        %v2937 = vpop.trf.xlu0
        %v2938 = vpop.trf.xlu0
        %v2939 = vpop.trf.xlu0
        %v2940 = vpop.trf.xlu0
        %v2941 = vpop.trf.xlu0
        %v2942 = vpop.trf.xlu0
        %v2943 = vpop.trf.xlu0
        %v2944 = vpop.trf.xlu0
        %v2945 = vpop.trf.xlu0
        %v2946 = vpop.trf.xlu0
        %v2947 = vpop.trf.xlu0
        %2948 = vxpose.xlu0.b32.start [1/16] %v2498, 128
        %2949 = vxpose.xlu0.b32.cont [2/16] %v2513, 128
        %2950 = vxpose.xlu0.b32.cont [3/16] %v2528, 128
        %2951 = vxpose.xlu0.b32.cont [4/16] %v2543, 128
        %2952 = vxpose.xlu0.b32.cont [5/16] 0.0, 128
        %2953 = vxpose.xlu0.b32.cont [6/16] 0.0, 128
        %2954 = vxpose.xlu0.b32.cont [7/16] 0.0, 128
        %2955 = vxpose.xlu0.b32.cont [8/16] 0.0, 128
        %2956 = vxpose.xlu0.b32.cont [9/16] 0.0, 128
        %2957 = vxpose.xlu0.b32.cont [10/16] 0.0, 128
        %2958 = vxpose.xlu0.b32.cont [11/16] 0.0, 128
        %2959 = vxpose.xlu0.b32.cont [12/16] 0.0, 128
        %2960 = vxpose.xlu0.b32.cont [13/16] 0.0, 128
        %2961 = vxpose.xlu0.b32.cont [14/16] 0.0, 128
        %2962 = vxpose.xlu0.b32.cont [15/16] 0.0, 128
        %2963 = vxpose.xlu0.b32.end [16/16] 0.0, 128
        %v2964 = vpop.trf.xlu0
        %v2965 = vpop.trf.xlu0
        %v2966 = vpop.trf.xlu0
        %v2967 = vpop.trf.xlu0
        %v2968 = vpop.trf.xlu0
        %v2969 = vpop.trf.xlu0
        %v2970 = vpop.trf.xlu0
        %v2971 = vpop.trf.xlu0
        %v2972 = vpop.trf.xlu0
        %v2973 = vpop.trf.xlu0
        %v2974 = vpop.trf.xlu0
        %v2975 = vpop.trf.xlu0
        %v2976 = vpop.trf.xlu0
        %v2977 = vpop.trf.xlu0
        %v2978 = vpop.trf.xlu0
        %v2979 = vpop.trf.xlu0
        %2980 = vxpose.xlu0.b32.start [1/16] %v2590, 128
        %2981 = vxpose.xlu0.b32.cont [2/16] %v2605, 128
        %2982 = vxpose.xlu0.b32.cont [3/16] %v2620, 128
        %2983 = vxpose.xlu0.b32.cont [4/16] %v2635, 128
        %2984 = vxpose.xlu0.b32.cont [5/16] 0.0, 128
        %2985 = vxpose.xlu0.b32.cont [6/16] 0.0, 128
        %2986 = vxpose.xlu0.b32.cont [7/16] 0.0, 128
        %2987 = vxpose.xlu0.b32.cont [8/16] 0.0, 128
        %2988 = vxpose.xlu0.b32.cont [9/16] 0.0, 128
        %2989 = vxpose.xlu0.b32.cont [10/16] 0.0, 128
        %2990 = vxpose.xlu0.b32.cont [11/16] 0.0, 128
        %2991 = vxpose.xlu0.b32.cont [12/16] 0.0, 128
        %2992 = vxpose.xlu0.b32.cont [13/16] 0.0, 128
        %2993 = vxpose.xlu0.b32.cont [14/16] 0.0, 128
        %2994 = vxpose.xlu0.b32.cont [15/16] 0.0, 128
        %2995 = vxpose.xlu0.b32.end [16/16] 0.0, 128
        %v2996 = vpop.trf.xlu0
        %v2997 = vpop.trf.xlu0
        %v2998 = vpop.trf.xlu0
        %v2999 = vpop.trf.xlu0
        %v3000 = vpop.trf.xlu0
        %v3001 = vpop.trf.xlu0
        %v3002 = vpop.trf.xlu0
        %v3003 = vpop.trf.xlu0
        %v3004 = vpop.trf.xlu0
        %v3005 = vpop.trf.xlu0
        %v3006 = vpop.trf.xlu0
        %v3007 = vpop.trf.xlu0
        %v3008 = vpop.trf.xlu0
        %v3009 = vpop.trf.xlu0
        %v3010 = vpop.trf.xlu0
        %v3011 = vpop.trf.xlu0
        %3012 = vxpose.xlu0.b32.start [1/16] %v2682, 128
        %3013 = vxpose.xlu0.b32.cont [2/16] %v2697, 128
        %3014 = vxpose.xlu0.b32.cont [3/16] %v2712, 128
        %3015 = vxpose.xlu0.b32.cont [4/16] %v2727, 128
        %3016 = vxpose.xlu0.b32.cont [5/16] 0.0, 128
        %3017 = vxpose.xlu0.b32.cont [6/16] 0.0, 128
        %3018 = vxpose.xlu0.b32.cont [7/16] 0.0, 128
        %3019 = vxpose.xlu0.b32.cont [8/16] 0.0, 128
        %3020 = vxpose.xlu0.b32.cont [9/16] 0.0, 128
        %3021 = vxpose.xlu0.b32.cont [10/16] 0.0, 128
        %3022 = vxpose.xlu0.b32.cont [11/16] 0.0, 128
        %3023 = vxpose.xlu0.b32.cont [12/16] 0.0, 128
        %3024 = vxpose.xlu0.b32.cont [13/16] 0.0, 128
        %3025 = vxpose.xlu0.b32.cont [14/16] 0.0, 128
        %3026 = vxpose.xlu0.b32.cont [15/16] 0.0, 128
        %3027 = vxpose.xlu0.b32.end [16/16] 0.0, 128
        %v3028 = vpop.trf.xlu0
        %v3029 = vpop.trf.xlu0
        %v3030 = vpop.trf.xlu0
        %v3031 = vpop.trf.xlu0
        %v3032 = vpop.trf.xlu0
        %v3033 = vpop.trf.xlu0
        %v3034 = vpop.trf.xlu0
        %v3035 = vpop.trf.xlu0
        %v3036 = vpop.trf.xlu0
        %v3037 = vpop.trf.xlu0
        %v3038 = vpop.trf.xlu0
        %v3039 = vpop.trf.xlu0
        %v3040 = vpop.trf.xlu0
        %v3041 = vpop.trf.xlu0
        %v3042 = vpop.trf.xlu0
        %v3043 = vpop.trf.xlu0
        %3044 = vxpose.xlu0.b32.start [1/16] %v2774, 128
        %3045 = vxpose.xlu0.b32.cont [2/16] %v2789, 128
        %3046 = vxpose.xlu0.b32.cont [3/16] %v2804, 128
        %3047 = vxpose.xlu0.b32.cont [4/16] %v2819, 128
        %3048 = vxpose.xlu0.b32.cont [5/16] 0.0, 128
        %3049 = vxpose.xlu0.b32.cont [6/16] 0.0, 128
        %3050 = vxpose.xlu0.b32.cont [7/16] 0.0, 128
        %3051 = vxpose.xlu0.b32.cont [8/16] 0.0, 128
        %3052 = vxpose.xlu0.b32.cont [9/16] 0.0, 128
        %3053 = vxpose.xlu0.b32.cont [10/16] 0.0, 128
        %3054 = vxpose.xlu0.b32.cont [11/16] 0.0, 128
        %3055 = vxpose.xlu0.b32.cont [12/16] 0.0, 128
        %3056 = vxpose.xlu0.b32.cont [13/16] 0.0, 128
        %3057 = vxpose.xlu0.b32.cont [14/16] 0.0, 128
        %3058 = vxpose.xlu0.b32.cont [15/16] 0.0, 128
        %3059 = vxpose.xlu0.b32.end [16/16] 0.0, 128
        %v3060 = vpop.trf.xlu0
        %v3061 = vpop.trf.xlu0
        %v3062 = vpop.trf.xlu0
        %v3063 = vpop.trf.xlu0
        %v3064 = vpop.trf.xlu0
        %v3065 = vpop.trf.xlu0
        %v3066 = vpop.trf.xlu0
        %v3067 = vpop.trf.xlu0
        %v3068 = vpop.trf.xlu0
        %v3069 = vpop.trf.xlu0
        %v3070 = vpop.trf.xlu0
        %v3071 = vpop.trf.xlu0
        %v3072 = vpop.trf.xlu0
        %v3073 = vpop.trf.xlu0
        %v3074 = vpop.trf.xlu0
        %v3075 = vpop.trf.xlu0
        %v3076 = vpack.c.bf16 %v2837, %v2836
        %v3077 = vpack.c.bf16 %v2869, %v2868
        %v3078 = vpack.c.bf16 %v2901, %v2900
        %v3079 = vpack.c.bf16 %v2933, %v2932
        %v3080 = vpack.c.bf16 %v2965, %v2964
        %v3081 = vpack.c.bf16 %v2997, %v2996
        %v3082 = vpack.c.bf16 %v3029, %v3028
        %v3083 = vpack.c.bf16 %v3061, %v3060
        %v3084 = vld [vmem:[#allocation8] sm:$0xf]
        %v3085 = vld [vmem:[#allocation8 + $0x4] sm:$0xf]
        %v3086 = vld [vmem:[#allocation8 + $0x8] sm:$0xf]
        %v3087 = vld [vmem:[#allocation8 + $0xc] sm:$0xf]
        %v3088 = vld [vmem:[#allocation10] sm:$0x1]
        %v3090 = vlaneseq
        %v3091 = vshrl.u32 %v3090, 7
        %v3092 = vsub.s32 0, %v3091
        %v3093 = vrot.slane %v3088, %v3092
        %v3099 = vunpack.c.l.b16 %v3084
        %v3100 = vunpack.c.l.b16 %v3085
        %v3101 = vunpack.c.l.b16 %v3086
        %v3102 = vunpack.c.l.b16 %v3087
        %v3103 = vpack.c.b16 %v3100, %v3099
        %v3104 = vpack.c.b16 %v3102, %v3101
        %v3108 = vsel %vm465, %v3076, 0
        %v3111 = vsel %vm465, %v3077, 0
        %v3114 = vsel %vm465, %v3078, 0
        %v3117 = vsel %vm465, %v3079, 0
        %v3120 = vsel %vm465, %v3080, 0
        %v3123 = vsel %vm465, %v3081, 0
        %v3126 = vsel %vm465, %v3082, 0
        %v3129 = vsel %vm465, %v3083, 0
        %3131 = vmatprep.subr.bf16.mxu0 0
        %3132 = vmatpush1.bf16.msra.mxu0 %v3103
        %3133 = vmatprep.subr.bf16.mxu0 0
        %3134 = vmatpush1.bf16.msra.mxu0 %v3104
        %3135 = vmatprep.subr.bf16.mxu0 0
        %3136 = vmatpush1.bf16.msra.mxu0 0
        %3137 = vmatprep.subr.bf16.mxu0 0
        %3138 = vmatpush1.bf16.msra.mxu0 0
        %3139 = vmatprep.subr.bf16.mxu0 0
        %3140 = vmatpush1.bf16.msra.mxu0 0
        %3141 = vmatprep.subr.bf16.mxu0 0
        %3142 = vmatpush1.bf16.msra.mxu0 0
        %3143 = vmatprep.subr.bf16.mxu0 0
        %3144 = vmatpush1.bf16.msra.mxu0 0
        %3145 = vmatprep.subr.bf16.mxu0 0
        %3146 = vmatpush1.bf16.msra.mxu0 0
        %3147 = vmatprep.subr.bf16.mxu0 0
        %3148 = vmatpush1.bf16.msra.mxu0 0
        %3149 = vmatprep.subr.bf16.mxu0 0
        %3150 = vmatpush1.bf16.msra.mxu0 0
        %3151 = vmatprep.subr.bf16.mxu0 0
        %3152 = vmatpush1.bf16.msra.mxu0 0
        %3153 = vmatprep.subr.bf16.mxu0 0
        %3154 = vmatpush1.bf16.msra.mxu0 0
        %3155 = vmatprep.subr.bf16.mxu0 0
        %3156 = vmatpush1.bf16.msra.mxu0 0
        %3157 = vmatprep.subr.bf16.mxu0 0
        %3158 = vmatpush1.bf16.msra.mxu0 0
        %3159 = vmatprep.subr.bf16.mxu0 0
        %3160 = vmatpush1.bf16.msra.mxu0 0
        %3161 = vmatprep.subr.bf16.mxu0 0
        %3162 = vmatpush1.bf16.msra.mxu0 0
        %3163 = vmatprep.mubr.bf16.mxu0 0
        %3164 = vmatmul.mubr.bf16.gmra.mrb[0].mxu0 %v3108
        %v3165 = vpop.f32.mrb[0].mxu0
        %v3166 = vadd.f32 %v3093, %v3165
        %v3167 = vpop.f32.mrb[0].mxu0
        %v3168 = vpop.f32.mrb[0].mxu0
        %v3169 = vadd.f32 %v3093, %v3168
        %v3170 = vpop.f32.mrb[0].mxu0
        %3171 = vmatprep.mubr.bf16.mxu0 0
        %3172 = vmatmul.mubr.bf16.gmra.mrb[0].mxu0 %v3111
        %v3173 = vpop.f32.mrb[0].mxu0
        %v3174 = vadd.f32 %v3093, %v3173
        %v3175 = vpop.f32.mrb[0].mxu0
        %v3176 = vpop.f32.mrb[0].mxu0
        %v3177 = vadd.f32 %v3093, %v3176
        %v3178 = vpop.f32.mrb[0].mxu0
        %3179 = vmatprep.mubr.bf16.mxu0 0
        %3180 = vmatmul.mubr.bf16.gmra.mrb[0].mxu0 %v3114
        %v3181 = vpop.f32.mrb[0].mxu0
        %v3182 = vadd.f32 %v3093, %v3181
        %v3183 = vpop.f32.mrb[0].mxu0
        %v3184 = vpop.f32.mrb[0].mxu0
        %v3185 = vadd.f32 %v3093, %v3184
        %v3186 = vpop.f32.mrb[0].mxu0
        %3187 = vmatprep.mubr.bf16.mxu0 0
        %3188 = vmatmul.mubr.bf16.gmra.mrb[0].mxu0 %v3117
        %v3189 = vpop.f32.mrb[0].mxu0
        %v3190 = vadd.f32 %v3093, %v3189
        %v3191 = vpop.f32.mrb[0].mxu0
        %v3192 = vpop.f32.mrb[0].mxu0
        %v3193 = vadd.f32 %v3093, %v3192
        %v3194 = vpop.f32.mrb[0].mxu0
        %3195 = vmatprep.mubr.bf16.mxu0 0
        %3196 = vmatmul.mubr.bf16.gmra.mrb[0].mxu0 %v3120
        %v3197 = vpop.f32.mrb[0].mxu0
        %v3198 = vadd.f32 %v3093, %v3197
        %v3199 = vpop.f32.mrb[0].mxu0
        %v3200 = vpop.f32.mrb[0].mxu0
        %v3201 = vadd.f32 %v3093, %v3200
        %v3202 = vpop.f32.mrb[0].mxu0
        %3203 = vmatprep.mubr.bf16.mxu0 0
        %3204 = vmatmul.mubr.bf16.gmra.mrb[0].mxu0 %v3123
        %v3205 = vpop.f32.mrb[0].mxu0
        %v3206 = vadd.f32 %v3093, %v3205
        %v3207 = vpop.f32.mrb[0].mxu0
        %v3208 = vpop.f32.mrb[0].mxu0
        %v3209 = vadd.f32 %v3093, %v3208
        %v3210 = vpop.f32.mrb[0].mxu0
        %3211 = vmatprep.mubr.bf16.mxu0 0
        %3212 = vmatmul.mubr.bf16.gmra.mrb[0].mxu0 %v3126
        %v3213 = vpop.f32.mrb[0].mxu0
        %v3214 = vadd.f32 %v3093, %v3213
        %v3215 = vpop.f32.mrb[0].mxu0
        %v3216 = vpop.f32.mrb[0].mxu0
        %v3217 = vadd.f32 %v3093, %v3216
        %v3218 = vpop.f32.mrb[0].mxu0
        %3219 = vmatprep.mubr.bf16.mxu0 0
        %3220 = vmatmul.mubr.bf16.gmra.mrb[0].mxu0 %v3129
        %v3221 = vpop.f32.mrb[0].mxu0
        %v3222 = vadd.f32 %v3093, %v3221
        %v3223 = vpop.f32.mrb[0].mxu0
        %v3224 = vpop.f32.mrb[0].mxu0
        %v3225 = vadd.f32 %v3093, %v3224
        %v3226 = vpop.f32.mrb[0].mxu0
        %3227 = vdwg.mxu0
        %3228 = vst.msk [vmem:[%s314] sm:$0xff] %vm465, %v3166
        %3229 = vst.msk [vmem:[%s314 + $0x8] sm:$0xff] %vm465, %v3169
        %3230 = vst.msk [vmem:[%s314 + $0x10] sm:$0xff] %vm465, %v3174
        %3231 = vst.msk [vmem:[%s314 + $0x18] sm:$0xff] %vm465, %v3177
        %3232 = vst.msk [vmem:[%s314 + $0x20] sm:$0xff] %vm465, %v3182
        %3233 = vst.msk [vmem:[%s314 + $0x28] sm:$0xff] %vm465, %v3185
        %3234 = vst.msk [vmem:[%s314 + $0x30] sm:$0xff] %vm465, %v3190
        %3235 = vst.msk [vmem:[%s314 + $0x38] sm:$0xff] %vm465, %v3193
        %3236 = vst.msk [vmem:[%s314 + $0x40] sm:$0xff] %vm465, %v3198
        %3237 = vst.msk [vmem:[%s314 + $0x48] sm:$0xff] %vm465, %v3201
        %3238 = vst.msk [vmem:[%s314 + $0x50] sm:$0xff] %vm465, %v3206
        %3239 = vst.msk [vmem:[%s314 + $0x58] sm:$0xff] %vm465, %v3209
        %3240 = vst.msk [vmem:[%s314 + $0x60] sm:$0xff] %vm465, %v3214
        %3241 = vst.msk [vmem:[%s314 + $0x68] sm:$0xff] %vm465, %v3217
        %3242 = vst.msk [vmem:[%s314 + $0x70] sm:$0xff] %vm465, %v3222
        %3243 = vst.msk [vmem:[%s314 + $0x78] sm:$0xff] %vm465, %v3225
        %s3244 = sand.u32 %s158, 1
        %s3245 = scalar_lea.sflag [#allocation4], %s3244
        %s3246 = sand.u32 %s158, 1
        %s3247 = smul.addr %s3246, 128
        %s3248 = scalar_lea.vmem [#allocation11], %s3247
        // Predicated region
        $region61: #{tpu_custom_call.1} parent=39 // pred_check
          %p3249 = pneg %p168
        $region62: #{tpu_custom_call.1} parent=39 // pred_check_branch
          %3251 = sbr.rel (%p3249) target = $region64
        $region63: #{tpu_custom_call.1} parent=39 // pred_region
          %s3252 = smul.u32 2, %s29
          %s3254 = ssub.s32 2048, 2048
          %3255 = vsyncadd %s3245, %s3254
          %s3256 = smul.addr %s28, 16
          %s3257 = sadd.s32 %s3252, %s3256
          %s3258 = smul.addr %s3257, 128
          %s3259 = scalar_lea.hbm %s5, %s3258
          %s3260 = sshll.u32 %s3248, 4
          %s3261 = int_to_ptr.vmem [resolvable:$true] %s3260
          %3266 = dma.vmem_to_hbm [thread:$0]  %s3261, 2048, %s3259, %s3245, 128, 128, 8
        $region64: #{tpu_custom_call.1} parent=39 // pred_fallthru
          _
      $region40: #{tpu_custom_call.1} parent=5 // pred_fallthru
        _
      %p3267 = scmp.le.s32.totalorder 2, %s19
      // Predicated region
      $region65: #{tpu_custom_call.1} parent=5 // pred_check
        %p3268 = pneg %p3267
      $region66: #{tpu_custom_call.1} parent=5 // pred_check_branch
        %3270 = sbr.rel (%p3268) target = $region68
      $region67: #{tpu_custom_call.1} parent=5 // pred_region
        %s3271 = ssub.s32 %s19, 2
        // Predicated region
        $region69: #{tpu_custom_call.1} parent=67 // pred_check
          %p3272 = pneg %p174
        $region70: #{tpu_custom_call.1} parent=67 // pred_check_branch
          %3274 = sbr.rel (%p3272) target = $region72
        $region71: #{tpu_custom_call.1} parent=67 // pred_region
          %s3275 = sand.u32 %s159, 1
          %s3276 = scalar_lea.sflag [#allocation4], %s3275
          %s3277 = sand.u32 %s159, 1
          %s3278 = smul.addr %s3277, 128
          %s3279 = scalar_lea.vmem [#allocation11], %s3278
          %3280 = dma.done %s3276, 2048
        $region72: #{tpu_custom_call.1} parent=67 // pred_fallthru
          _
      $region68: #{tpu_custom_call.1} parent=5 // pred_fallthru
        _
    $region6: #{tpu_custom_call.1} parent=1 // loop_footer
      %s23 = sadd.s32 1, %s19
    $region7: #{tpu_custom_call.1} parent=1 // loop_footer_branch
      %18 = sbr.rel target = $region3
    $region8: #{tpu_custom_call.1} parent=1 // loop_exit
      _
    %3281 = vsyncpa [#allocation3], 1
    %s3282 = scalar_lea.sflag [#allocation3], 1
    %3283 = vsyncpa %s3282, 1
    %3284 = vsyncpa [#allocation6], 1
    %s3285 = scalar_lea.sflag [#allocation6], 1
    %3286 = vsyncpa %s3285, 1
    %3287 = vsyncpa [#allocation9], 1
    %3288 = vsyncpa [#allocation4], 1
    %s3289 = scalar_lea.sflag [#allocation4], 1
    %3290 = vsyncpa %s3289, 1

</llo_original>
